<compile_context>
chip_gen: v7x
topology: tpu7x:2x2x1
jax: 0.10.0
libtpu: 0.0.40
codegen_flags: <defaults>
</compile_context>

<pallas_src>
import math

import jax
import jax.numpy as jnp
from jax.experimental import pallas as pl
from jax.experimental.pallas import tpu as pltpu

# ----------------------------- configuration ---------------------------------
BATCH = 2
IMG = 32                      # scaled down from 224 (ViTConfig image_size)
PATCH = 16                    # ViTConfig patch_size
CHANNELS = 3
HIDDEN = 192                  # ViTConfig hidden_size
HEADS = 3                     # ViTConfig num_attention_heads
HEAD_DIM = HIDDEN // HEADS
INTER = 768                   # ViTConfig intermediate_size
LAYERS = 2                    # scaled down from 12 for a small runnable example
NUM_PATCHES = (IMG // PATCH) ** 2
SEQ = NUM_PATCHES + 1         # +1 CLS token
SEQ_PAD = 8                   # per-image sequence padded to a sublane multiple
TOK_PAD = BATCH * SEQ_PAD     # 16 token rows per backbone
POOL_ROWS = 8                 # pooled output padded to a full sublane tile
PATCH_DIM = CHANNELS * PATCH * PATCH
NUM_BACKBONES = 4             # online1, online2, target1, target2
PROJ_IN = 2 * HIDDEN          # cat([feat1, feat2], dim=1)
PROJ_HID = 1024
PROJ_OUT = 128
HEAD_ROWS = 8                 # online-fused + target-fused rows padded to 8
VEC_ROWS = 8                  # packed per-layer vector rows
LN_EPS = 1e-12                # ViTConfig layer_norm_eps
ATTN_SCALE = 1.0 / math.sqrt(HEAD_DIM)
NEG_INF = -1e30


# ------------------------------- kernel helpers --------------------------------
def _layernorm(x, w, b):
    mu = jnp.mean(x, axis=-1, keepdims=True)
    var = jnp.mean((x - mu) ** 2, axis=-1, keepdims=True)
    return (x - mu) * jax.lax.rsqrt(var + LN_EPS) * w + b


def _gelu(x):
    # TODO(synk): HF ViT uses exact erf-GELU; erf has no clean Mosaic lowering, so
    # the tanh approximation is used here (max abs error ~1e-3).
    c = math.sqrt(2.0 / math.pi)
    return 0.5 * x * (1.0 + jnp.tanh(c * (x + 0.044715 * x * x * x)))


def _bf16(x):
    return x.astype(jnp.bfloat16)


# ----------------------- fused backbone kernel (4 ViTs) ------------------------
# Grid is (NUM_BACKBONES,); the LAYERS=2 layer loop is fully unrolled in-kernel.
def backbone_kernel(patch_ref, pw_ref, base_ref, qkvw_ref, ow_ref, w1_ref, w2_ref,
                    vec_ref, out_ref):
    # --- patch embedding + CLS + positional embeddings ---------------------------
    # patch rows of patch_ref hold the flattened patches, CLS/pad rows are 0;
    # base_ref holds (cls+pos) / (patch_bias+pos) / 0 per row, so one matmul plus one
    # add builds the full [TOK_PAD, HIDDEN] token matrix.
    x = jnp.dot(_bf16(patch_ref[0]), pw_ref[0],
                preferred_element_type=jnp.float32) + base_ref[0]

    key_ids = jax.lax.broadcasted_iota(jnp.int32, (1, SEQ_PAD), 1)
    key_bias = jnp.where(key_ids < SEQ, 0.0, NEG_INF)     # mask padded key columns (f32)

    for layer in range(LAYERS):                            # static unroll (LAYERS=2)
        # --- unpack the single packed vector block for this layer -----------------
        vecs = vec_ref[0, layer]                           # [VEC_ROWS, INTER] f32
        ln1w = vecs[0:1, :HIDDEN]
        ln1b = vecs[1:2, :HIDDEN]
        qkvb = vecs[2:3, :3 * HIDDEN]
        ob = vecs[3:4, :HIDDEN]
        ln2w = vecs[4:5, :HIDDEN]
        ln2b = vecs[5:6, :HIDDEN]
        b1 = vecs[6:7, :]
        b2 = vecs[7:8, :HIDDEN]

        qkvw = qkvw_ref[0, layer]                          # [HIDDEN, 3*HIDDEN] bf16
        ow = ow_ref[0, layer]                              # [HIDDEN, HIDDEN]   bf16
        w1 = w1_ref[0, layer]                              # [HIDDEN, INTER]    bf16
        w2 = w2_ref[0, layer]                              # [INTER, HIDDEN]    bf16

        # --- pre-LN multi-head self-attention (fused QKV matmul) ------------------
        xn = _layernorm(x, ln1w, ln1b)
        qkv = jnp.dot(_bf16(xn), qkvw,
                      preferred_element_type=jnp.float32) + qkvb     # [TOK_PAD, 3H]
        q = qkv[:, 0:HIDDEN] * ATTN_SCALE                  # scale folded into q once
        k = qkv[:, HIDDEN:2 * HIDDEN]
        v = qkv[:, 2 * HIDDEN:3 * HIDDEN]

        attn_blocks = []
        for b in range(BATCH):                             # static unroll (B=2)
            rs = slice(b * SEQ_PAD, (b + 1) * SEQ_PAD)
            attn_b = None
            for h in range(HEADS):                         # static unroll (3 heads)
                cs = slice(h * HEAD_DIM, (h + 1) * HEAD_DIM)
                qh, kh, vh = q[rs, cs], k[rs, cs], v[rs, cs]   # [SEQ_PAD, HEAD_DIM]
                s = jax.lax.dot_general(qh, kh, (((1,), (1,)), ((), ())),
                                        preferred_element_type=jnp.float32)
                s = s + key_bias
                s = s - jnp.max(s, axis=-1, keepdims=True)
                p = jnp.exp(s)
                p = p * pl.reciprocal(jnp.sum(p, axis=-1, keepdims=True), approx=True)
                ctx = jnp.dot(p, vh, preferred_element_type=jnp.float32)  # [SEQ_PAD, HD]
                # fold output projection per head: no masked 64-lane ctx stores
                contrib = jnp.dot(_bf16(ctx), ow[cs, :],
                                  preferred_element_type=jnp.float32)     # [SEQ_PAD, H]
                attn_b = contrib if attn_b is None else attn_b + contrib
            attn_blocks.append(attn_b)
        attn = jnp.concatenate(attn_blocks, axis=0) + ob   # [TOK_PAD, HIDDEN]
        h1 = x + attn                                      # residual 1

        # --- pre-LN GELU MLP -------------------------------------------------------
        hn = _layernorm(h1, ln2w, ln2b)
        ff = jnp.dot(_bf16(hn), w1, preferred_element_type=jnp.float32) + b1
        ff = _gelu(ff)
        x = h1 + jnp.dot(_bf16(ff), w2, preferred_element_type=jnp.float32) + b2

    # --- token-mean pooling fused into the kernel epilogue (x.mean(dim=1)) --------
    row_id = jax.lax.broadcasted_iota(jnp.int32, (POOL_ROWS, TOK_PAD), 0)
    col_id = jax.lax.broadcasted_iota(jnp.int32, (POOL_ROWS, TOK_PAD), 1)
    valid = (col_id >= row_id * SEQ_PAD) & (col_id < row_id * SEQ_PAD + SEQ)
    pool_w = jnp.where(valid, 1.0 / SEQ, 0.0)              # [POOL_ROWS, TOK_PAD]
    out_ref[0] = jnp.dot(pool_w, x, preferred_element_type=jnp.float32)


# ---------------- fused projection + prediction heads kernel -------------------
def heads_kernel(x_ref, pw1_ref, pb1_ref, pw2_ref, pb2_ref,
                 qw1_ref, qb1_ref, qw2_ref, qb2_ref, pred_ref, proj_ref):
    # projection head: Linear -> ReLU -> (Dropout(0.3) = identity in eval) -> Linear
    h = jnp.dot(_bf16(x_ref[...]), pw1_ref[...],
                preferred_element_type=jnp.float32) + pb1_ref[...]
    h = jnp.maximum(h, 0.0)
    proj = jnp.dot(_bf16(h), pw2_ref[...],
                   preferred_element_type=jnp.float32) + pb2_ref[...]
    # prediction head: Linear -> ReLU -> Linear (applied to all rows; the wrapper
    # only keeps the online rows of `pred` and the target rows of `proj`)
    g = jnp.dot(_bf16(proj), qw1_ref[...],
                preferred_element_type=jnp.float32) + qb1_ref[...]
    g = jnp.maximum(g, 0.0)
    pred = jnp.dot(_bf16(g), qw2_ref[...],
                   preferred_element_type=jnp.float32) + qb2_ref[...]
    proj_ref[...] = proj
    pred_ref[...] = pred


# --------------------------- pallas_call plumbing ------------------------------
def _extract_patches(x):
    B, C, H, W = x.shape
    gh, gw = H // PATCH, W // PATCH
    p = x.reshape(B, C, gh, PATCH, gw, PATCH).transpose(0, 2, 4, 1, 3, 5)
    return p.reshape(B, gh * gw, PATCH_DIM)               # (C, kh, kw) flatten order


def _patch_tokens(x):
    p = _extract_patches(x)                                # [B, NP, PATCH_DIM]
    pt = jnp.zeros((BATCH, SEQ_PAD, PATCH_DIM), jnp.float32)
    pt = pt.at[:, 1:SEQ, :].set(p)                         # row 0 = CLS, rows>=SEQ pad
    return pt.reshape(TOK_PAD, PATCH_DIM)


def fused_backbone_forward(packed, x1, x2):
    """Run all four ViT backbones in one pallas_call; returns [NB, BATCH, HIDDEN]."""
    t1 = _patch_tokens(x1)
    t2 = _patch_tokens(x2)
    patches = jnp.stack([t1, t2, t1, t2])                  # [NB, TOK_PAD, PATCH_DIM]

    const_spec = lambda shp: pl.BlockSpec((1,) + shp, lambda n: (n, 0, 0))
    layer_spec = lambda shp: pl.BlockSpec((1, LAYERS) + shp, lambda n: (n, 0, 0, 0))

    pooled = pl.pallas_call(
        backbone_kernel,
        grid=(NUM_BACKBONES,),
        in_specs=[const_spec((TOK_PAD, PATCH_DIM)),
                  const_spec((PATCH_DIM, HIDDEN)),
                  const_spec((TOK_PAD, HIDDEN)),
                  layer_spec((HIDDEN, 3 * HIDDEN)),
                  layer_spec((HIDDEN, HIDDEN)),
                  layer_spec((HIDDEN, INTER)),
                  layer_spec((INTER, HIDDEN)),
                  layer_spec((VEC_ROWS, INTER))],
        out_specs=pl.BlockSpec((1, POOL_ROWS, HIDDEN), lambda n: (n, 0, 0)),
        out_shape=jax.ShapeDtypeStruct((NUM_BACKBONES, POOL_ROWS, HIDDEN), jnp.float32),
        compiler_params=pltpu.CompilerParams(
            dimension_semantics=("parallel",)),
        cost_estimate=pl.CostEstimate(flops=135_000_000,
                                      transcendentals=110_000,
                                      bytes_accessed=9_000_000),
    )(patches, packed["patch_w"], packed["tok_base"], packed["qkvw"],
      packed["ow"], packed["w1"], packed["w2"], packed["vecs"])
    return pooled[:, :BATCH, :]


def heads_forward(packed, fused):
    pred, proj = pl.pallas_call(
        heads_kernel,
        out_shape=(jax.ShapeDtypeStruct((HEAD_ROWS, PROJ_OUT), jnp.float32),
                   jax.ShapeDtypeStruct((HEAD_ROWS, PROJ_OUT), jnp.float32)),
    )(fused, packed["proj_w1"], packed["proj_b1"], packed["proj_w2"], packed["proj_b2"],
      packed["pred_w1"], packed["pred_b1"], packed["pred_w2"], packed["pred_b2"])
    return pred, proj


# ------------------------------ parameters ------------------------------------
def _init_linear(key, fan_in, fan_out):
    kw, kb = jax.random.split(key)
    bound = 1.0 / math.sqrt(fan_in)
    w = jax.random.uniform(kw, (fan_in, fan_out), jnp.float32, -bound, bound)
    b = jax.random.uniform(kb, (1, fan_out), jnp.float32, -bound, bound)  # 2-D bias
    return w, b


def init_backbone(key):
    keys = iter(jax.random.split(key, 3 + 6 * LAYERS))
    patch_w, patch_b = _init_linear(next(keys), PATCH_DIM, HIDDEN)
    cls = 0.02 * jax.random.normal(next(keys), (1, HIDDEN), jnp.float32)
    pos = 0.02 * jax.random.normal(next(keys), (SEQ, HIDDEN), jnp.float32)
    layers = []
    for _ in range(LAYERS):
        qw, qb = _init_linear(next(keys), HIDDEN, HIDDEN)
        kw, kb = _init_linear(next(keys), HIDDEN, HIDDEN)
        vw, vb = _init_linear(next(keys), HIDDEN, HIDDEN)
        ow, ob = _init_linear(next(keys), HIDDEN, HIDDEN)
        w1, b1 = _init_linear(next(keys), HIDDEN, INTER)
        w2, b2 = _init_linear(next(keys), INTER, HIDDEN)
        layers.append(dict(
            ln1w=jnp.ones((1, HIDDEN), jnp.float32), ln1b=jnp.zeros((1, HIDDEN), jnp.float32),
            qw=qw, qb=qb, kw=kw, kb=kb, vw=vw, vb=vb, ow=ow, ob=ob,
            ln2w=jnp.ones((1, HIDDEN), jnp.float32), ln2b=jnp.zeros((1, HIDDEN), jnp.float32),
            w1=w1, b1=b1, w2=w2, b2=b2))
    return dict(patch_w=patch_w, patch_b=patch_b, cls=cls, pos=pos, layers=layers)


def init_params(key):
    ks = jax.random.split(key, 8)
    pw1, pb1 = _init_linear(ks[4], PROJ_IN, PROJ_HID)
    pw2, pb2 = _init_linear(ks[5], PROJ_HID, PROJ_OUT)
    qw1, qb1 = _init_linear(ks[6], PROJ_OUT, PROJ_OUT)
    qw2, qb2 = _init_linear(ks[7], PROJ_OUT, PROJ_OUT)
    return dict(
        online1=init_backbone(ks[0]), online2=init_backbone(ks[1]),
        target1=init_backbone(ks[2]), target2=init_backbone(ks[3]),
        projection_head=dict(w1=pw1, b1=pb1, w2=pw2, b2=pb2),
        prediction_head=dict(w1=qw1, b1=qb1, w2=qw2, b2=qb2))


def pack_params(params):
    """One-time packing of module params into the stacked kernel layout.

    Matmul weights -> bf16; LayerNorm params / biases / bases stay f32.  This runs
    ONCE at init time, so the per-forward path streams the already-stacked arrays
    straight from HBM with no re-stacking traffic.
    """
    backbones = [params["online1"], params["online2"],
                 params["target1"], params["target2"]]

    patch_w = jnp.stack([bp["patch_w"] for bp in backbones]).astype(jnp.bfloat16)

    tok_base = []
    for bp in backbones:
        base = jnp.zeros((SEQ_PAD, HIDDEN), jnp.float32)
        base = base.at[0, :].set(bp["cls"][0] + bp["pos"][0])
        base = base.at[1:SEQ, :].set(bp["patch_b"] + bp["pos"][1:SEQ])
        tok_base.append(jnp.broadcast_to(base[None], (BATCH, SEQ_PAD, HIDDEN))
                        .reshape(TOK_PAD, HIDDEN))
    tok_base = jnp.stack(tok_base)                         # [NB, TOK_PAD, HIDDEN]

    def stack_layers(fn):
        return jnp.stack([jnp.stack([fn(lp) for lp in bp["layers"]]) for bp in backbones])

    qkvw = stack_layers(
        lambda lp: jnp.concatenate([lp["qw"], lp["kw"], lp["vw"]], axis=1)
    ).astype(jnp.bfloat16)                                 # [NB, L, HIDDEN, 3*HIDDEN]
    ow = stack_layers(lambda lp: lp["ow"]).astype(jnp.bfloat16)
    w1 = stack_layers(lambda lp: lp["w1"]).astype(jnp.bfloat16)
    w2 = stack_layers(lambda lp: lp["w2"]).astype(jnp.bfloat16)

    def vec_rows(lp):
        def pad(v):
            v = v.reshape(-1)
            return jnp.pad(v, (0, INTER - v.shape[0]))
        qkvb = jnp.concatenate([lp["qb"].reshape(-1), lp["kb"].reshape(-1),
                                lp["vb"].reshape(-1)])
        rows = [lp["ln1w"], lp["ln1b"], qkvb, lp["ob"],
                lp["ln2w"], lp["ln2b"], lp["b1"], lp["b2"]]
        return jnp.stack([pad(r) for r in rows])           # [VEC_ROWS, INTER] f32

    vecs = stack_layers(vec_rows)                          # [NB, L, VEC_ROWS, INTER]

    return dict(
        patch_w=patch_w, tok_base=tok_base, qkvw=qkvw, ow=ow, w1=w1, w2=w2, vecs=vecs,
        proj_w1=params["projection_head"]["w1"].astype(jnp.bfloat16),
        proj_b1=params["projection_head"]["b1"],
        proj_w2=params["projection_head"]["w2"].astype(jnp.bfloat16),
        proj_b2=params["projection_head"]["b2"],
        pred_w1=params["prediction_head"]["w1"].astype(jnp.bfloat16),
        pred_b1=params["prediction_head"]["b1"],
        pred_w2=params["prediction_head"]["w2"].astype(jnp.bfloat16),
        pred_b2=params["prediction_head"]["b2"])


# ------------------------------ forward pass -----------------------------------
def dual_forward(packed, x1, x2):
    feats = fused_backbone_forward(packed, x1, x2)          # [4, B, HIDDEN]

    online_fused = jnp.concatenate([feats[0], feats[1]], axis=1)             # [B, 2H]
    target_fused = jax.lax.stop_gradient(
        jnp.concatenate([feats[2], feats[3]], axis=1))       # torch.no_grad() path

    fused = jnp.zeros((HEAD_ROWS, PROJ_IN), jnp.float32)
    fused = fused.at[0:BATCH, :].set(online_fused)
    fused = fused.at[BATCH:2 * BATCH, :].set(target_fused)

    pred, proj = heads_forward(packed, fused)
    online_pred = pred[0:BATCH]
    target_proj = jax.lax.stop_gradient(proj[BATCH:2 * BATCH])   # .detach()
    return online_pred, target_proj


# ---------------------------------- main ---------------------------------------
if __name__ == "__main__":
    key = jax.random.PRNGKey(0)
    k_params, k_x1, k_x2 = jax.random.split(key, 3)
    params = init_params(k_params)
    packed = jax.tree_util.tree_map(jax.block_until_ready, pack_params(params))  # one-time

    x1 = jax.random.normal(k_x1, (BATCH, CHANNELS, IMG, IMG), jnp.float32)
    x2 = jax.random.normal(k_x2, (BATCH, CHANNELS, IMG, IMG), jnp.float32)

    fwd = jax.jit(dual_forward)
    online_pred, target_proj = fwd(packed, x1, x2)
    jax.block_until_ready((online_pred, target_proj))

    assert online_pred.shape == (BATCH, PROJ_OUT)
    assert target_proj.shape == (BATCH, PROJ_OUT)
    assert bool(jnp.all(jnp.isfinite(online_pred))) and bool(jnp.all(jnp.isfinite(target_proj)))
    print("KERNEL_OK")
</pallas_src>

<mosaic_0001>
module attributes {stable_mosaic.version = 11 : i64} {
  func.func @backbone_kernel(%arg0: i32, %arg1: memref<1x16x768xf32, #tpu.memory_space<vmem>>, %arg2: memref<1x768x192xbf16, #tpu.memory_space<vmem>>, %arg3: memref<1x16x192xf32, #tpu.memory_space<vmem>>, %arg4: memref<1x2x192x576xbf16, #tpu.memory_space<vmem>>, %arg5: memref<1x2x192x192xbf16, #tpu.memory_space<vmem>>, %arg6: memref<1x2x192x768xbf16, #tpu.memory_space<vmem>>, %arg7: memref<1x2x768x192xbf16, #tpu.memory_space<vmem>>, %arg8: memref<1x2x8x768xf32, #tpu.memory_space<vmem>>, %arg9: memref<1x8x192xf32, #tpu.memory_space<vmem>>) attributes {dimension_semantics = [#tpu.dimension_semantics<parallel>], iteration_bounds = array<i64: 4>, scalar_prefetch = 0 : i64, scratch_operands = 0 : i64, tpu.core_type = #tpu.core_type<tc>, window_params = [{transform_indices = @transform_0, window_bounds = array<i64: 1, 16, 768>}, {transform_indices = @transform_1, window_bounds = array<i64: 1, 768, 192>}, {transform_indices = @transform_2, window_bounds = array<i64: 1, 16, 192>}, {transform_indices = @transform_3, window_bounds = array<i64: 1, 2, 192, 576>}, {transform_indices = @transform_4, window_bounds = array<i64: 1, 2, 192, 192>}, {transform_indices = @transform_5, window_bounds = array<i64: 1, 2, 192, 768>}, {transform_indices = @transform_6, window_bounds = array<i64: 1, 2, 768, 192>}, {transform_indices = @transform_7, window_bounds = array<i64: 1, 2, 8, 768>}, {transform_indices = @transform_8, window_bounds = array<i64: 1, 8, 192>}]} {
    %c0 = arith.constant 0 : index
    %c0_0 = arith.constant 0 : index
    %c0_1 = arith.constant 0 : index
    %0 = vector.load %arg1[%c0, %c0_0, %c0_1] : memref<1x16x768xf32, #tpu.memory_space<vmem>>, vector<1x16x768xf32>
    %1 = vector.shape_cast %0 : vector<1x16x768xf32> to vector<16x768xf32>
    %2 = arith.truncf %1 : vector<16x768xf32> to vector<16x768xbf16>
    %c0_2 = arith.constant 0 : index
    %c0_3 = arith.constant 0 : index
    %c0_4 = arith.constant 0 : index
    %3 = vector.load %arg2[%c0_2, %c0_3, %c0_4] : memref<1x768x192xbf16, #tpu.memory_space<vmem>>, vector<1x768x192xbf16>
    %4 = vector.shape_cast %3 : vector<1x768x192xbf16> to vector<768x192xbf16>
    %cst = arith.constant dense<0.000000e+00> : vector<16x192xf32>
    %5 = tpu.matmul %2, %4, %cst {dimension_numbers = #tpu.dot_dimension_numbers<[1], [0], [0], [1], [0, 0, 1, 1], [], []>} : vector<16x768xbf16>, vector<768x192xbf16>, vector<16x192xf32> -> vector<16x192xf32>
    %c0_5 = arith.constant 0 : index
    %c0_6 = arith.constant 0 : index
    %c0_7 = arith.constant 0 : index
    %6 = vector.load %arg3[%c0_5, %c0_6, %c0_7] : memref<1x16x192xf32, #tpu.memory_space<vmem>>, vector<1x16x192xf32>
    %7 = vector.shape_cast %6 : vector<1x16x192xf32> to vector<16x192xf32>
    %8 = arith.addf %5, %7 : vector<16x192xf32>
    %9 = tpu.iota {dimensions = array<i32: 1>} : vector<1x8xi32>
    %c5_i32 = arith.constant 5 : i32
    %10 = vector.broadcast %c5_i32 : i32 to vector<1x8xi32>
    %11 = arith.cmpi slt, %9, %10 : vector<1x8xi32>
    %cst_8 = arith.constant 0.000000e+00 : f32
    %cst_9 = arith.constant -1.000000e+30 : f32
    %12 = vector.broadcast %cst_8 : f32 to vector<1x8xf32>
    %13 = vector.broadcast %cst_9 : f32 to vector<1x8xf32>
    %14 = arith.select %11, %12, %13 : vector<1x8xi1>, vector<1x8xf32>
    %c0_10 = arith.constant 0 : index
    %c0_11 = arith.constant 0 : index
    %c0_12 = arith.constant 0 : index
    %c0_13 = arith.constant 0 : index
    %15 = vector.load %arg8[%c0_10, %c0_11, %c0_12, %c0_13] : memref<1x2x8x768xf32, #tpu.memory_space<vmem>>, vector<1x1x8x768xf32>
    %16 = vector.shape_cast %15 : vector<1x1x8x768xf32> to vector<8x768xf32>
    %17 = vector.extract_strided_slice %16 {offsets = [0, 0], sizes = [1, 192], strides = [1, 1]} : vector<8x768xf32> to vector<1x192xf32>
    %18 = vector.extract_strided_slice %16 {offsets = [1, 0], sizes = [1, 192], strides = [1, 1]} : vector<8x768xf32> to vector<1x192xf32>
    %19 = vector.extract_strided_slice %16 {offsets = [2, 0], sizes = [1, 576], strides = [1, 1]} : vector<8x768xf32> to vector<1x576xf32>
    %20 = vector.extract_strided_slice %16 {offsets = [3, 0], sizes = [1, 192], strides = [1, 1]} : vector<8x768xf32> to vector<1x192xf32>
    %21 = vector.extract_strided_slice %16 {offsets = [4, 0], sizes = [1, 192], strides = [1, 1]} : vector<8x768xf32> to vector<1x192xf32>
    %22 = vector.extract_strided_slice %16 {offsets = [5, 0], sizes = [1, 192], strides = [1, 1]} : vector<8x768xf32> to vector<1x192xf32>
    %23 = vector.extract_strided_slice %16 {offsets = [6, 0], sizes = [1, 768], strides = [1, 1]} : vector<8x768xf32> to vector<1x768xf32>
    %24 = vector.extract_strided_slice %16 {offsets = [7, 0], sizes = [1, 192], strides = [1, 1]} : vector<8x768xf32> to vector<1x192xf32>
    %c0_14 = arith.constant 0 : index
    %c0_15 = arith.constant 0 : index
    %c0_16 = arith.constant 0 : index
    %c0_17 = arith.constant 0 : index
    %25 = vector.load %arg4[%c0_14, %c0_15, %c0_16, %c0_17] : memref<1x2x192x576xbf16, #tpu.memory_space<vmem>>, vector<1x1x192x576xbf16>
    %26 = vector.shape_cast %25 : vector<1x1x192x576xbf16> to vector<192x576xbf16>
    %c0_18 = arith.constant 0 : index
    %c0_19 = arith.constant 0 : index
    %c0_20 = arith.constant 0 : index
    %c0_21 = arith.constant 0 : index
    %27 = vector.load %arg5[%c0_18, %c0_19, %c0_20, %c0_21] : memref<1x2x192x192xbf16, #tpu.memory_space<vmem>>, vector<1x1x192x192xbf16>
    %28 = vector.shape_cast %27 : vector<1x1x192x192xbf16> to vector<192x192xbf16>
    %c0_22 = arith.constant 0 : index
    %c0_23 = arith.constant 0 : index
    %c0_24 = arith.constant 0 : index
    %c0_25 = arith.constant 0 : index
    %29 = vector.load %arg6[%c0_22, %c0_23, %c0_24, %c0_25] : memref<1x2x192x768xbf16, #tpu.memory_space<vmem>>, vector<1x1x192x768xbf16>
    %30 = vector.shape_cast %29 : vector<1x1x192x768xbf16> to vector<192x768xbf16>
    %c0_26 = arith.constant 0 : index
    %c0_27 = arith.constant 0 : index
    %c0_28 = arith.constant 0 : index
    %c0_29 = arith.constant 0 : index
    %31 = vector.load %arg7[%c0_26, %c0_27, %c0_28, %c0_29] : memref<1x2x768x192xbf16, #tpu.memory_space<vmem>>, vector<1x1x768x192xbf16>
    %32 = vector.shape_cast %31 : vector<1x1x768x192xbf16> to vector<768x192xbf16>
    %cst_30 = arith.constant dense<0.000000e+00> : vector<16xf32>
    %33 = vector.multi_reduction <add>, %8, %cst_30 [1] : vector<16x192xf32> to vector<16xf32>
    %34 = vector.shape_cast %33 : vector<16xf32> to vector<16x1xf32>
    %cst_31 = arith.constant 1.920000e+02 : f32
    %35 = vector.broadcast %cst_31 : f32 to vector<16x1xf32>
    %36 = arith.divf %34, %35 : vector<16x1xf32>
    %37 = vector.broadcast %36 : vector<16x1xf32> to vector<16x192xf32>
    %38 = arith.subf %8, %37 : vector<16x192xf32>
    %39 = arith.mulf %38, %38 : vector<16x192xf32>
    %cst_32 = arith.constant dense<0.000000e+00> : vector<16xf32>
    %40 = vector.multi_reduction <add>, %39, %cst_32 [1] : vector<16x192xf32> to vector<16xf32>
    %41 = vector.shape_cast %40 : vector<16xf32> to vector<16x1xf32>
    %cst_33 = arith.constant 1.920000e+02 : f32
    %42 = vector.broadcast %cst_33 : f32 to vector<16x1xf32>
    %43 = arith.divf %41, %42 : vector<16x1xf32>
    %44 = vector.broadcast %36 : vector<16x1xf32> to vector<16x192xf32>
    %45 = arith.subf %8, %44 : vector<16x192xf32>
    %cst_34 = arith.constant 9.99999996E-13 : f32
    %46 = vector.broadcast %cst_34 : f32 to vector<16x1xf32>
    %47 = arith.addf %43, %46 : vector<16x1xf32>
    %48 = math.rsqrt %47 : vector<16x1xf32>
    %49 = vector.broadcast %48 : vector<16x1xf32> to vector<16x192xf32>
    %50 = arith.mulf %45, %49 : vector<16x192xf32>
    %51 = vector.broadcast %17 : vector<1x192xf32> to vector<16x192xf32>
    %52 = arith.mulf %50, %51 : vector<16x192xf32>
    %53 = vector.broadcast %18 : vector<1x192xf32> to vector<16x192xf32>
    %54 = arith.addf %52, %53 : vector<16x192xf32>
    %55 = arith.truncf %54 : vector<16x192xf32> to vector<16x192xbf16>
    %cst_35 = arith.constant dense<0.000000e+00> : vector<16x576xf32>
    %56 = tpu.matmul %55, %26, %cst_35 {dimension_numbers = #tpu.dot_dimension_numbers<[1], [0], [0], [1], [0, 0, 1, 1], [], []>} : vector<16x192xbf16>, vector<192x576xbf16>, vector<16x576xf32> -> vector<16x576xf32>
    %57 = vector.broadcast %19 : vector<1x576xf32> to vector<16x576xf32>
    %58 = arith.addf %56, %57 : vector<16x576xf32>
    %59 = vector.extract_strided_slice %58 {offsets = [0, 0], sizes = [16, 192], strides = [1, 1]} : vector<16x576xf32> to vector<16x192xf32>
    %cst_36 = arith.constant 1.250000e-01 : f32
    %60 = vector.broadcast %cst_36 : f32 to vector<16x192xf32>
    %61 = arith.mulf %59, %60 : vector<16x192xf32>
    %62 = vector.extract_strided_slice %58 {offsets = [0, 192], sizes = [16, 192], strides = [1, 1]} : vector<16x576xf32> to vector<16x192xf32>
    %63 = vector.extract_strided_slice %58 {offsets = [0, 384], sizes = [16, 192], strides = [1, 1]} : vector<16x576xf32> to vector<16x192xf32>
    %64 = vector.extract_strided_slice %61 {offsets = [0, 0], sizes = [8, 64], strides = [1, 1]} : vector<16x192xf32> to vector<8x64xf32>
    %65 = vector.extract_strided_slice %62 {offsets = [0, 0], sizes = [8, 64], strides = [1, 1]} : vector<16x192xf32> to vector<8x64xf32>
    %66 = vector.extract_strided_slice %63 {offsets = [0, 0], sizes = [8, 64], strides = [1, 1]} : vector<16x192xf32> to vector<8x64xf32>
    %cst_37 = arith.constant dense<0.000000e+00> : vector<8x8xf32>
    %67 = tpu.matmul %64, %65, %cst_37 {dimension_numbers = #tpu.dot_dimension_numbers<[1], [1], [0], [0], [0, 0, 1, 0], [], []>} : vector<8x64xf32>, vector<8x64xf32>, vector<8x8xf32> -> vector<8x8xf32>
    %68 = vector.broadcast %14 : vector<1x8xf32> to vector<8x8xf32>
    %69 = arith.addf %67, %68 : vector<8x8xf32>
    %cst_38 = arith.constant dense<0xFF800000> : vector<8xf32>
    %70 = vector.multi_reduction <maximumf>, %69, %cst_38 [1] : vector<8x8xf32> to vector<8xf32>
    %71 = vector.shape_cast %70 : vector<8xf32> to vector<8x1xf32>
    %72 = vector.broadcast %71 : vector<8x1xf32> to vector<8x8xf32>
    %73 = arith.subf %69, %72 : vector<8x8xf32>
    %74 = math.exp %73 : vector<8x8xf32>
    %cst_39 = arith.constant dense<0.000000e+00> : vector<8xf32>
    %75 = vector.multi_reduction <add>, %74, %cst_39 [1] : vector<8x8xf32> to vector<8xf32>
    %76 = vector.shape_cast %75 : vector<8xf32> to vector<8x1xf32>
    %77 = tpu.reciprocal %76 {approx = true} : vector<8x1xf32> -> vector<8x1xf32>
    %78 = vector.broadcast %77 : vector<8x1xf32> to vector<8x8xf32>
    %79 = arith.mulf %74, %78 : vector<8x8xf32>
    %cst_40 = arith.constant dense<0.000000e+00> : vector<8x64xf32>
    %80 = tpu.matmul %79, %66, %cst_40 {dimension_numbers = #tpu.dot_dimension_numbers<[1], [0], [0], [1], [0, 0, 1, 1], [], []>} : vector<8x8xf32>, vector<8x64xf32>, vector<8x64xf32> -> vector<8x64xf32>
    %81 = arith.truncf %80 : vector<8x64xf32> to vector<8x64xbf16>
    %82 = vector.extract_strided_slice %28 {offsets = [0, 0], sizes = [64, 192], strides = [1, 1]} : vector<192x192xbf16> to vector<64x192xbf16>
    %cst_41 = arith.constant dense<0.000000e+00> : vector<8x192xf32>
    %83 = tpu.matmul %81, %82, %cst_41 {dimension_numbers = #tpu.dot_dimension_numbers<[1], [0], [0], [1], [0, 0, 1, 1], [], []>} : vector<8x64xbf16>, vector<64x192xbf16>, vector<8x192xf32> -> vector<8x192xf32>
    %84 = vector.extract_strided_slice %61 {offsets = [0, 64], sizes = [8, 64], strides = [1, 1]} : vector<16x192xf32> to vector<8x64xf32>
    %85 = vector.extract_strided_slice %62 {offsets = [0, 64], sizes = [8, 64], strides = [1, 1]} : vector<16x192xf32> to vector<8x64xf32>
    %86 = vector.extract_strided_slice %63 {offsets = [0, 64], sizes = [8, 64], strides = [1, 1]} : vector<16x192xf32> to vector<8x64xf32>
    %cst_42 = arith.constant dense<0.000000e+00> : vector<8x8xf32>
    %87 = tpu.matmul %84, %85, %cst_42 {dimension_numbers = #tpu.dot_dimension_numbers<[1], [1], [0], [0], [0, 0, 1, 0], [], []>} : vector<8x64xf32>, vector<8x64xf32>, vector<8x8xf32> -> vector<8x8xf32>
    %88 = vector.broadcast %14 : vector<1x8xf32> to vector<8x8xf32>
    %89 = arith.addf %87, %88 : vector<8x8xf32>
    %cst_43 = arith.constant dense<0xFF800000> : vector<8xf32>
    %90 = vector.multi_reduction <maximumf>, %89, %cst_43 [1] : vector<8x8xf32> to vector<8xf32>
    %91 = vector.shape_cast %90 : vector<8xf32> to vector<8x1xf32>
    %92 = vector.broadcast %91 : vector<8x1xf32> to vector<8x8xf32>
    %93 = arith.subf %89, %92 : vector<8x8xf32>
    %94 = math.exp %93 : vector<8x8xf32>
    %cst_44 = arith.constant dense<0.000000e+00> : vector<8xf32>
    %95 = vector.multi_reduction <add>, %94, %cst_44 [1] : vector<8x8xf32> to vector<8xf32>
    %96 = vector.shape_cast %95 : vector<8xf32> to vector<8x1xf32>
    %97 = tpu.reciprocal %96 {approx = true} : vector<8x1xf32> -> vector<8x1xf32>
    %98 = vector.broadcast %97 : vector<8x1xf32> to vector<8x8xf32>
    %99 = arith.mulf %94, %98 : vector<8x8xf32>
    %cst_45 = arith.constant dense<0.000000e+00> : vector<8x64xf32>
    %100 = tpu.matmul %99, %86, %cst_45 {dimension_numbers = #tpu.dot_dimension_numbers<[1], [0], [0], [1], [0, 0, 1, 1], [], []>} : vector<8x8xf32>, vector<8x64xf32>, vector<8x64xf32> -> vector<8x64xf32>
    %101 = arith.truncf %100 : vector<8x64xf32> to vector<8x64xbf16>
    %102 = vector.extract_strided_slice %28 {offsets = [64, 0], sizes = [64, 192], strides = [1, 1]} : vector<192x192xbf16> to vector<64x192xbf16>
    %cst_46 = arith.constant dense<0.000000e+00> : vector<8x192xf32>
    %103 = tpu.matmul %101, %102, %cst_46 {dimension_numbers = #tpu.dot_dimension_numbers<[1], [0], [0], [1], [0, 0, 1, 1], [], []>} : vector<8x64xbf16>, vector<64x192xbf16>, vector<8x192xf32> -> vector<8x192xf32>
    %104 = arith.addf %83, %103 : vector<8x192xf32>
    %105 = vector.extract_strided_slice %61 {offsets = [0, 128], sizes = [8, 64], strides = [1, 1]} : vector<16x192xf32> to vector<8x64xf32>
    %106 = vector.extract_strided_slice %62 {offsets = [0, 128], sizes = [8, 64], strides = [1, 1]} : vector<16x192xf32> to vector<8x64xf32>
    %107 = vector.extract_strided_slice %63 {offsets = [0, 128], sizes = [8, 64], strides = [1, 1]} : vector<16x192xf32> to vector<8x64xf32>
    %cst_47 = arith.constant dense<0.000000e+00> : vector<8x8xf32>
    %108 = tpu.matmul %105, %106, %cst_47 {dimension_numbers = #tpu.dot_dimension_numbers<[1], [1], [0], [0], [0, 0, 1, 0], [], []>} : vector<8x64xf32>, vector<8x64xf32>, vector<8x8xf32> -> vector<8x8xf32>
    %109 = vector.broadcast %14 : vector<1x8xf32> to vector<8x8xf32>
    %110 = arith.addf %108, %109 : vector<8x8xf32>
    %cst_48 = arith.constant dense<0xFF800000> : vector<8xf32>
    %111 = vector.multi_reduction <maximumf>, %110, %cst_48 [1] : vector<8x8xf32> to vector<8xf32>
    %112 = vector.shape_cast %111 : vector<8xf32> to vector<8x1xf32>
    %113 = vector.broadcast %112 : vector<8x1xf32> to vector<8x8xf32>
    %114 = arith.subf %110, %113 : vector<8x8xf32>
    %115 = math.exp %114 : vector<8x8xf32>
    %cst_49 = arith.constant dense<0.000000e+00> : vector<8xf32>
    %116 = vector.multi_reduction <add>, %115, %cst_49 [1] : vector<8x8xf32> to vector<8xf32>
    %117 = vector.shape_cast %116 : vector<8xf32> to vector<8x1xf32>
    %118 = tpu.reciprocal %117 {approx = true} : vector<8x1xf32> -> vector<8x1xf32>
    %119 = vector.broadcast %118 : vector<8x1xf32> to vector<8x8xf32>
    %120 = arith.mulf %115, %119 : vector<8x8xf32>
    %cst_50 = arith.constant dense<0.000000e+00> : vector<8x64xf32>
    %121 = tpu.matmul %120, %107, %cst_50 {dimension_numbers = #tpu.dot_dimension_numbers<[1], [0], [0], [1], [0, 0, 1, 1], [], []>} : vector<8x8xf32>, vector<8x64xf32>, vector<8x64xf32> -> vector<8x64xf32>
    %122 = arith.truncf %121 : vector<8x64xf32> to vector<8x64xbf16>
    %123 = vector.extract_strided_slice %28 {offsets = [128, 0], sizes = [64, 192], strides = [1, 1]} : vector<192x192xbf16> to vector<64x192xbf16>
    %cst_51 = arith.constant dense<0.000000e+00> : vector<8x192xf32>
    %124 = tpu.matmul %122, %123, %cst_51 {dimension_numbers = #tpu.dot_dimension_numbers<[1], [0], [0], [1], [0, 0, 1, 1], [], []>} : vector<8x64xbf16>, vector<64x192xbf16>, vector<8x192xf32> -> vector<8x192xf32>
    %125 = arith.addf %104, %124 : vector<8x192xf32>
    %126 = vector.extract_strided_slice %61 {offsets = [8, 0], sizes = [8, 64], strides = [1, 1]} : vector<16x192xf32> to vector<8x64xf32>
    %127 = vector.extract_strided_slice %62 {offsets = [8, 0], sizes = [8, 64], strides = [1, 1]} : vector<16x192xf32> to vector<8x64xf32>
    %128 = vector.extract_strided_slice %63 {offsets = [8, 0], sizes = [8, 64], strides = [1, 1]} : vector<16x192xf32> to vector<8x64xf32>
    %cst_52 = arith.constant dense<0.000000e+00> : vector<8x8xf32>
    %129 = tpu.matmul %126, %127, %cst_52 {dimension_numbers = #tpu.dot_dimension_numbers<[1], [1], [0], [0], [0, 0, 1, 0], [], []>} : vector<8x64xf32>, vector<8x64xf32>, vector<8x8xf32> -> vector<8x8xf32>
    %130 = vector.broadcast %14 : vector<1x8xf32> to vector<8x8xf32>
    %131 = arith.addf %129, %130 : vector<8x8xf32>
    %cst_53 = arith.constant dense<0xFF800000> : vector<8xf32>
    %132 = vector.multi_reduction <maximumf>, %131, %cst_53 [1] : vector<8x8xf32> to vector<8xf32>
    %133 = vector.shape_cast %132 : vector<8xf32> to vector<8x1xf32>
    %134 = vector.broadcast %133 : vector<8x1xf32> to vector<8x8xf32>
    %135 = arith.subf %131, %134 : vector<8x8xf32>
    %136 = math.exp %135 : vector<8x8xf32>
    %cst_54 = arith.constant dense<0.000000e+00> : vector<8xf32>
    %137 = vector.multi_reduction <add>, %136, %cst_54 [1] : vector<8x8xf32> to vector<8xf32>
    %138 = vector.shape_cast %137 : vector<8xf32> to vector<8x1xf32>
    %139 = tpu.reciprocal %138 {approx = true} : vector<8x1xf32> -> vector<8x1xf32>
    %140 = vector.broadcast %139 : vector<8x1xf32> to vector<8x8xf32>
    %141 = arith.mulf %136, %140 : vector<8x8xf32>
    %cst_55 = arith.constant dense<0.000000e+00> : vector<8x64xf32>
    %142 = tpu.matmul %141, %128, %cst_55 {dimension_numbers = #tpu.dot_dimension_numbers<[1], [0], [0], [1], [0, 0, 1, 1], [], []>} : vector<8x8xf32>, vector<8x64xf32>, vector<8x64xf32> -> vector<8x64xf32>
    %143 = arith.truncf %142 : vector<8x64xf32> to vector<8x64xbf16>
    %144 = vector.extract_strided_slice %28 {offsets = [0, 0], sizes = [64, 192], strides = [1, 1]} : vector<192x192xbf16> to vector<64x192xbf16>
    %cst_56 = arith.constant dense<0.000000e+00> : vector<8x192xf32>
    %145 = tpu.matmul %143, %144, %cst_56 {dimension_numbers = #tpu.dot_dimension_numbers<[1], [0], [0], [1], [0, 0, 1, 1], [], []>} : vector<8x64xbf16>, vector<64x192xbf16>, vector<8x192xf32> -> vector<8x192xf32>
    %146 = vector.extract_strided_slice %61 {offsets = [8, 64], sizes = [8, 64], strides = [1, 1]} : vector<16x192xf32> to vector<8x64xf32>
    %147 = vector.extract_strided_slice %62 {offsets = [8, 64], sizes = [8, 64], strides = [1, 1]} : vector<16x192xf32> to vector<8x64xf32>
    %148 = vector.extract_strided_slice %63 {offsets = [8, 64], sizes = [8, 64], strides = [1, 1]} : vector<16x192xf32> to vector<8x64xf32>
    %cst_57 = arith.constant dense<0.000000e+00> : vector<8x8xf32>
    %149 = tpu.matmul %146, %147, %cst_57 {dimension_numbers = #tpu.dot_dimension_numbers<[1], [1], [0], [0], [0, 0, 1, 0], [], []>} : vector<8x64xf32>, vector<8x64xf32>, vector<8x8xf32> -> vector<8x8xf32>
    %150 = vector.broadcast %14 : vector<1x8xf32> to vector<8x8xf32>
    %151 = arith.addf %149, %150 : vector<8x8xf32>
    %cst_58 = arith.constant dense<0xFF800000> : vector<8xf32>
    %152 = vector.multi_reduction <maximumf>, %151, %cst_58 [1] : vector<8x8xf32> to vector<8xf32>
    %153 = vector.shape_cast %152 : vector<8xf32> to vector<8x1xf32>
    %154 = vector.broadcast %153 : vector<8x1xf32> to vector<8x8xf32>
    %155 = arith.subf %151, %154 : vector<8x8xf32>
    %156 = math.exp %155 : vector<8x8xf32>
    %cst_59 = arith.constant dense<0.000000e+00> : vector<8xf32>
    %157 = vector.multi_reduction <add>, %156, %cst_59 [1] : vector<8x8xf32> to vector<8xf32>
    %158 = vector.shape_cast %157 : vector<8xf32> to vector<8x1xf32>
    %159 = tpu.reciprocal %158 {approx = true} : vector<8x1xf32> -> vector<8x1xf32>
    %160 = vector.broadcast %159 : vector<8x1xf32> to vector<8x8xf32>
    %161 = arith.mulf %156, %160 : vector<8x8xf32>
    %cst_60 = arith.constant dense<0.000000e+00> : vector<8x64xf32>
    %162 = tpu.matmul %161, %148, %cst_60 {dimension_numbers = #tpu.dot_dimension_numbers<[1], [0], [0], [1], [0, 0, 1, 1], [], []>} : vector<8x8xf32>, vector<8x64xf32>, vector<8x64xf32> -> vector<8x64xf32>
    %163 = arith.truncf %162 : vector<8x64xf32> to vector<8x64xbf16>
    %164 = vector.extract_strided_slice %28 {offsets = [64, 0], sizes = [64, 192], strides = [1, 1]} : vector<192x192xbf16> to vector<64x192xbf16>
    %cst_61 = arith.constant dense<0.000000e+00> : vector<8x192xf32>
    %165 = tpu.matmul %163, %164, %cst_61 {dimension_numbers = #tpu.dot_dimension_numbers<[1], [0], [0], [1], [0, 0, 1, 1], [], []>} : vector<8x64xbf16>, vector<64x192xbf16>, vector<8x192xf32> -> vector<8x192xf32>
    %166 = arith.addf %145, %165 : vector<8x192xf32>
    %167 = vector.extract_strided_slice %61 {offsets = [8, 128], sizes = [8, 64], strides = [1, 1]} : vector<16x192xf32> to vector<8x64xf32>
    %168 = vector.extract_strided_slice %62 {offsets = [8, 128], sizes = [8, 64], strides = [1, 1]} : vector<16x192xf32> to vector<8x64xf32>
    %169 = vector.extract_strided_slice %63 {offsets = [8, 128], sizes = [8, 64], strides = [1, 1]} : vector<16x192xf32> to vector<8x64xf32>
    %cst_62 = arith.constant dense<0.000000e+00> : vector<8x8xf32>
    %170 = tpu.matmul %167, %168, %cst_62 {dimension_numbers = #tpu.dot_dimension_numbers<[1], [1], [0], [0], [0, 0, 1, 0], [], []>} : vector<8x64xf32>, vector<8x64xf32>, vector<8x8xf32> -> vector<8x8xf32>
    %171 = vector.broadcast %14 : vector<1x8xf32> to vector<8x8xf32>
    %172 = arith.addf %170, %171 : vector<8x8xf32>
    %cst_63 = arith.constant dense<0xFF800000> : vector<8xf32>
    %173 = vector.multi_reduction <maximumf>, %172, %cst_63 [1] : vector<8x8xf32> to vector<8xf32>
    %174 = vector.shape_cast %173 : vector<8xf32> to vector<8x1xf32>
    %175 = vector.broadcast %174 : vector<8x1xf32> to vector<8x8xf32>
    %176 = arith.subf %172, %175 : vector<8x8xf32>
    %177 = math.exp %176 : vector<8x8xf32>
    %cst_64 = arith.constant dense<0.000000e+00> : vector<8xf32>
    %178 = vector.multi_reduction <add>, %177, %cst_64 [1] : vector<8x8xf32> to vector<8xf32>
    %179 = vector.shape_cast %178 : vector<8xf32> to vector<8x1xf32>
    %180 = tpu.reciprocal %179 {approx = true} : vector<8x1xf32> -> vector<8x1xf32>
    %181 = vector.broadcast %180 : vector<8x1xf32> to vector<8x8xf32>
    %182 = arith.mulf %177, %181 : vector<8x8xf32>
    %cst_65 = arith.constant dense<0.000000e+00> : vector<8x64xf32>
    %183 = tpu.matmul %182, %169, %cst_65 {dimension_numbers = #tpu.dot_dimension_numbers<[1], [0], [0], [1], [0, 0, 1, 1], [], []>} : vector<8x8xf32>, vector<8x64xf32>, vector<8x64xf32> -> vector<8x64xf32>
    %184 = arith.truncf %183 : vector<8x64xf32> to vector<8x64xbf16>
    %185 = vector.extract_strided_slice %28 {offsets = [128, 0], sizes = [64, 192], strides = [1, 1]} : vector<192x192xbf16> to vector<64x192xbf16>
    %cst_66 = arith.constant dense<0.000000e+00> : vector<8x192xf32>
    %186 = tpu.matmul %184, %185, %cst_66 {dimension_numbers = #tpu.dot_dimension_numbers<[1], [0], [0], [1], [0, 0, 1, 1], [], []>} : vector<8x64xbf16>, vector<64x192xbf16>, vector<8x192xf32> -> vector<8x192xf32>
    %187 = arith.addf %166, %186 : vector<8x192xf32>
    %188 = tpu.concatenate %125, %187 in 0 : vector<8x192xf32>, vector<8x192xf32> -> vector<16x192xf32>
    %189 = vector.broadcast %20 : vector<1x192xf32> to vector<16x192xf32>
    %190 = arith.addf %188, %189 : vector<16x192xf32>
    %191 = arith.addf %8, %190 : vector<16x192xf32>
    %cst_67 = arith.constant dense<0.000000e+00> : vector<16xf32>
    %192 = vector.multi_reduction <add>, %191, %cst_67 [1] : vector<16x192xf32> to vector<16xf32>
    %193 = vector.shape_cast %192 : vector<16xf32> to vector<16x1xf32>
    %cst_68 = arith.constant 1.920000e+02 : f32
    %194 = vector.broadcast %cst_68 : f32 to vector<16x1xf32>
    %195 = arith.divf %193, %194 : vector<16x1xf32>
    %196 = vector.broadcast %195 : vector<16x1xf32> to vector<16x192xf32>
    %197 = arith.subf %191, %196 : vector<16x192xf32>
    %198 = arith.mulf %197, %197 : vector<16x192xf32>
    %cst_69 = arith.constant dense<0.000000e+00> : vector<16xf32>
    %199 = vector.multi_reduction <add>, %198, %cst_69 [1] : vector<16x192xf32> to vector<16xf32>
    %200 = vector.shape_cast %199 : vector<16xf32> to vector<16x1xf32>
    %cst_70 = arith.constant 1.920000e+02 : f32
    %201 = vector.broadcast %cst_70 : f32 to vector<16x1xf32>
    %202 = arith.divf %200, %201 : vector<16x1xf32>
    %203 = vector.broadcast %195 : vector<16x1xf32> to vector<16x192xf32>
    %204 = arith.subf %191, %203 : vector<16x192xf32>
    %cst_71 = arith.constant 9.99999996E-13 : f32
    %205 = vector.broadcast %cst_71 : f32 to vector<16x1xf32>
    %206 = arith.addf %202, %205 : vector<16x1xf32>
    %207 = math.rsqrt %206 : vector<16x1xf32>
    %208 = vector.broadcast %207 : vector<16x1xf32> to vector<16x192xf32>
    %209 = arith.mulf %204, %208 : vector<16x192xf32>
    %210 = vector.broadcast %21 : vector<1x192xf32> to vector<16x192xf32>
    %211 = arith.mulf %209, %210 : vector<16x192xf32>
    %212 = vector.broadcast %22 : vector<1x192xf32> to vector<16x192xf32>
    %213 = arith.addf %211, %212 : vector<16x192xf32>
    %214 = arith.truncf %213 : vector<16x192xf32> to vector<16x192xbf16>
    %cst_72 = arith.constant dense<0.000000e+00> : vector<16x768xf32>
    %215 = tpu.matmul %214, %30, %cst_72 {dimension_numbers = #tpu.dot_dimension_numbers<[1], [0], [0], [1], [0, 0, 1, 1], [], []>} : vector<16x192xbf16>, vector<192x768xbf16>, vector<16x768xf32> -> vector<16x768xf32>
    %216 = vector.broadcast %23 : vector<1x768xf32> to vector<16x768xf32>
    %217 = arith.addf %215, %216 : vector<16x768xf32>
    %cst_73 = arith.constant 5.000000e-01 : f32
    %218 = vector.broadcast %cst_73 : f32 to vector<16x768xf32>
    %219 = arith.mulf %218, %217 : vector<16x768xf32>
    %cst_74 = arith.constant 4.471500e-02 : f32
    %220 = vector.broadcast %cst_74 : f32 to vector<16x768xf32>
    %221 = arith.mulf %220, %217 : vector<16x768xf32>
    %222 = arith.mulf %221, %217 : vector<16x768xf32>
    %223 = arith.mulf %222, %217 : vector<16x768xf32>
    %224 = arith.addf %217, %223 : vector<16x768xf32>
    %cst_75 = arith.constant 0.797884583 : f32
    %225 = vector.broadcast %cst_75 : f32 to vector<16x768xf32>
    %226 = arith.mulf %225, %224 : vector<16x768xf32>
    %227 = math.tanh %226 : vector<16x768xf32>
    %cst_76 = arith.constant 1.000000e+00 : f32
    %228 = vector.broadcast %cst_76 : f32 to vector<16x768xf32>
    %229 = arith.addf %228, %227 : vector<16x768xf32>
    %230 = arith.mulf %219, %229 : vector<16x768xf32>
    %231 = arith.truncf %230 : vector<16x768xf32> to vector<16x768xbf16>
    %cst_77 = arith.constant dense<0.000000e+00> : vector<16x192xf32>
    %232 = tpu.matmul %231, %32, %cst_77 {dimension_numbers = #tpu.dot_dimension_numbers<[1], [0], [0], [1], [0, 0, 1, 1], [], []>} : vector<16x768xbf16>, vector<768x192xbf16>, vector<16x192xf32> -> vector<16x192xf32>
    %233 = arith.addf %191, %232 : vector<16x192xf32>
    %234 = vector.broadcast %24 : vector<1x192xf32> to vector<16x192xf32>
    %235 = arith.addf %233, %234 : vector<16x192xf32>
    %c0_78 = arith.constant 0 : index
    %c1 = arith.constant 1 : index
    %c0_79 = arith.constant 0 : index
    %c0_80 = arith.constant 0 : index
    %236 = vector.load %arg8[%c0_78, %c1, %c0_79, %c0_80] : memref<1x2x8x768xf32, #tpu.memory_space<vmem>>, vector<1x1x8x768xf32>
    %237 = vector.shape_cast %236 : vector<1x1x8x768xf32> to vector<8x768xf32>
    %238 = vector.extract_strided_slice %237 {offsets = [0, 0], sizes = [1, 192], strides = [1, 1]} : vector<8x768xf32> to vector<1x192xf32>
    %239 = vector.extract_strided_slice %237 {offsets = [1, 0], sizes = [1, 192], strides = [1, 1]} : vector<8x768xf32> to vector<1x192xf32>
    %240 = vector.extract_strided_slice %237 {offsets = [2, 0], sizes = [1, 576], strides = [1, 1]} : vector<8x768xf32> to vector<1x576xf32>
    %241 = vector.extract_strided_slice %237 {offsets = [3, 0], sizes = [1, 192], strides = [1, 1]} : vector<8x768xf32> to vector<1x192xf32>
    %242 = vector.extract_strided_slice %237 {offsets = [4, 0], sizes = [1, 192], strides = [1, 1]} : vector<8x768xf32> to vector<1x192xf32>
    %243 = vector.extract_strided_slice %237 {offsets = [5, 0], sizes = [1, 192], strides = [1, 1]} : vector<8x768xf32> to vector<1x192xf32>
    %244 = vector.extract_strided_slice %237 {offsets = [6, 0], sizes = [1, 768], strides = [1, 1]} : vector<8x768xf32> to vector<1x768xf32>
    %245 = vector.extract_strided_slice %237 {offsets = [7, 0], sizes = [1, 192], strides = [1, 1]} : vector<8x768xf32> to vector<1x192xf32>
    %c0_81 = arith.constant 0 : index
    %c1_82 = arith.constant 1 : index
    %c0_83 = arith.constant 0 : index
    %c0_84 = arith.constant 0 : index
    %246 = vector.load %arg4[%c0_81, %c1_82, %c0_83, %c0_84] : memref<1x2x192x576xbf16, #tpu.memory_space<vmem>>, vector<1x1x192x576xbf16>
    %247 = vector.shape_cast %246 : vector<1x1x192x576xbf16> to vector<192x576xbf16>
    %c0_85 = arith.constant 0 : index
    %c1_86 = arith.constant 1 : index
    %c0_87 = arith.constant 0 : index
    %c0_88 = arith.constant 0 : index
    %248 = vector.load %arg5[%c0_85, %c1_86, %c0_87, %c0_88] : memref<1x2x192x192xbf16, #tpu.memory_space<vmem>>, vector<1x1x192x192xbf16>
    %249 = vector.shape_cast %248 : vector<1x1x192x192xbf16> to vector<192x192xbf16>
    %c0_89 = arith.constant 0 : index
    %c1_90 = arith.constant 1 : index
    %c0_91 = arith.constant 0 : index
    %c0_92 = arith.constant 0 : index
    %250 = vector.load %arg6[%c0_89, %c1_90, %c0_91, %c0_92] : memref<1x2x192x768xbf16, #tpu.memory_space<vmem>>, vector<1x1x192x768xbf16>
    %251 = vector.shape_cast %250 : vector<1x1x192x768xbf16> to vector<192x768xbf16>
    %c0_93 = arith.constant 0 : index
    %c1_94 = arith.constant 1 : index
    %c0_95 = arith.constant 0 : index
    %c0_96 = arith.constant 0 : index
    %252 = vector.load %arg7[%c0_93, %c1_94, %c0_95, %c0_96] : memref<1x2x768x192xbf16, #tpu.memory_space<vmem>>, vector<1x1x768x192xbf16>
    %253 = vector.shape_cast %252 : vector<1x1x768x192xbf16> to vector<768x192xbf16>
    %cst_97 = arith.constant dense<0.000000e+00> : vector<16xf32>
    %254 = vector.multi_reduction <add>, %235, %cst_97 [1] : vector<16x192xf32> to vector<16xf32>
    %255 = vector.shape_cast %254 : vector<16xf32> to vector<16x1xf32>
    %cst_98 = arith.constant 1.920000e+02 : f32
    %256 = vector.broadcast %cst_98 : f32 to vector<16x1xf32>
    %257 = arith.divf %255, %256 : vector<16x1xf32>
    %258 = vector.broadcast %257 : vector<16x1xf32> to vector<16x192xf32>
    %259 = arith.subf %235, %258 : vector<16x192xf32>
    %260 = arith.mulf %259, %259 : vector<16x192xf32>
    %cst_99 = arith.constant dense<0.000000e+00> : vector<16xf32>
    %261 = vector.multi_reduction <add>, %260, %cst_99 [1] : vector<16x192xf32> to vector<16xf32>
    %262 = vector.shape_cast %261 : vector<16xf32> to vector<16x1xf32>
    %cst_100 = arith.constant 1.920000e+02 : f32
    %263 = vector.broadcast %cst_100 : f32 to vector<16x1xf32>
    %264 = arith.divf %262, %263 : vector<16x1xf32>
    %265 = vector.broadcast %257 : vector<16x1xf32> to vector<16x192xf32>
    %266 = arith.subf %235, %265 : vector<16x192xf32>
    %cst_101 = arith.constant 9.99999996E-13 : f32
    %267 = vector.broadcast %cst_101 : f32 to vector<16x1xf32>
    %268 = arith.addf %264, %267 : vector<16x1xf32>
    %269 = math.rsqrt %268 : vector<16x1xf32>
    %270 = vector.broadcast %269 : vector<16x1xf32> to vector<16x192xf32>
    %271 = arith.mulf %266, %270 : vector<16x192xf32>
    %272 = vector.broadcast %238 : vector<1x192xf32> to vector<16x192xf32>
    %273 = arith.mulf %271, %272 : vector<16x192xf32>
    %274 = vector.broadcast %239 : vector<1x192xf32> to vector<16x192xf32>
    %275 = arith.addf %273, %274 : vector<16x192xf32>
    %276 = arith.truncf %275 : vector<16x192xf32> to vector<16x192xbf16>
    %cst_102 = arith.constant dense<0.000000e+00> : vector<16x576xf32>
    %277 = tpu.matmul %276, %247, %cst_102 {dimension_numbers = #tpu.dot_dimension_numbers<[1], [0], [0], [1], [0, 0, 1, 1], [], []>} : vector<16x192xbf16>, vector<192x576xbf16>, vector<16x576xf32> -> vector<16x576xf32>
    %278 = vector.broadcast %240 : vector<1x576xf32> to vector<16x576xf32>
    %279 = arith.addf %277, %278 : vector<16x576xf32>
    %280 = vector.extract_strided_slice %279 {offsets = [0, 0], sizes = [16, 192], strides = [1, 1]} : vector<16x576xf32> to vector<16x192xf32>
    %cst_103 = arith.constant 1.250000e-01 : f32
    %281 = vector.broadcast %cst_103 : f32 to vector<16x192xf32>
    %282 = arith.mulf %280, %281 : vector<16x192xf32>
    %283 = vector.extract_strided_slice %279 {offsets = [0, 192], sizes = [16, 192], strides = [1, 1]} : vector<16x576xf32> to vector<16x192xf32>
    %284 = vector.extract_strided_slice %279 {offsets = [0, 384], sizes = [16, 192], strides = [1, 1]} : vector<16x576xf32> to vector<16x192xf32>
    %285 = vector.extract_strided_slice %282 {offsets = [0, 0], sizes = [8, 64], strides = [1, 1]} : vector<16x192xf32> to vector<8x64xf32>
    %286 = vector.extract_strided_slice %283 {offsets = [0, 0], sizes = [8, 64], strides = [1, 1]} : vector<16x192xf32> to vector<8x64xf32>
    %287 = vector.extract_strided_slice %284 {offsets = [0, 0], sizes = [8, 64], strides = [1, 1]} : vector<16x192xf32> to vector<8x64xf32>
    %cst_104 = arith.constant dense<0.000000e+00> : vector<8x8xf32>
    %288 = tpu.matmul %285, %286, %cst_104 {dimension_numbers = #tpu.dot_dimension_numbers<[1], [1], [0], [0], [0, 0, 1, 0], [], []>} : vector<8x64xf32>, vector<8x64xf32>, vector<8x8xf32> -> vector<8x8xf32>
    %289 = vector.broadcast %14 : vector<1x8xf32> to vector<8x8xf32>
    %290 = arith.addf %288, %289 : vector<8x8xf32>
    %cst_105 = arith.constant dense<0xFF800000> : vector<8xf32>
    %291 = vector.multi_reduction <maximumf>, %290, %cst_105 [1] : vector<8x8xf32> to vector<8xf32>
    %292 = vector.shape_cast %291 : vector<8xf32> to vector<8x1xf32>
    %293 = vector.broadcast %292 : vector<8x1xf32> to vector<8x8xf32>
    %294 = arith.subf %290, %293 : vector<8x8xf32>
    %295 = math.exp %294 : vector<8x8xf32>
    %cst_106 = arith.constant dense<0.000000e+00> : vector<8xf32>
    %296 = vector.multi_reduction <add>, %295, %cst_106 [1] : vector<8x8xf32> to vector<8xf32>
    %297 = vector.shape_cast %296 : vector<8xf32> to vector<8x1xf32>
    %298 = tpu.reciprocal %297 {approx = true} : vector<8x1xf32> -> vector<8x1xf32>
    %299 = vector.broadcast %298 : vector<8x1xf32> to vector<8x8xf32>
    %300 = arith.mulf %295, %299 : vector<8x8xf32>
    %cst_107 = arith.constant dense<0.000000e+00> : vector<8x64xf32>
    %301 = tpu.matmul %300, %287, %cst_107 {dimension_numbers = #tpu.dot_dimension_numbers<[1], [0], [0], [1], [0, 0, 1, 1], [], []>} : vector<8x8xf32>, vector<8x64xf32>, vector<8x64xf32> -> vector<8x64xf32>
    %302 = arith.truncf %301 : vector<8x64xf32> to vector<8x64xbf16>
    %303 = vector.extract_strided_slice %249 {offsets = [0, 0], sizes = [64, 192], strides = [1, 1]} : vector<192x192xbf16> to vector<64x192xbf16>
    %cst_108 = arith.constant dense<0.000000e+00> : vector<8x192xf32>
    %304 = tpu.matmul %302, %303, %cst_108 {dimension_numbers = #tpu.dot_dimension_numbers<[1], [0], [0], [1], [0, 0, 1, 1], [], []>} : vector<8x64xbf16>, vector<64x192xbf16>, vector<8x192xf32> -> vector<8x192xf32>
    %305 = vector.extract_strided_slice %282 {offsets = [0, 64], sizes = [8, 64], strides = [1, 1]} : vector<16x192xf32> to vector<8x64xf32>
    %306 = vector.extract_strided_slice %283 {offsets = [0, 64], sizes = [8, 64], strides = [1, 1]} : vector<16x192xf32> to vector<8x64xf32>
    %307 = vector.extract_strided_slice %284 {offsets = [0, 64], sizes = [8, 64], strides = [1, 1]} : vector<16x192xf32> to vector<8x64xf32>
    %cst_109 = arith.constant dense<0.000000e+00> : vector<8x8xf32>
    %308 = tpu.matmul %305, %306, %cst_109 {dimension_numbers = #tpu.dot_dimension_numbers<[1], [1], [0], [0], [0, 0, 1, 0], [], []>} : vector<8x64xf32>, vector<8x64xf32>, vector<8x8xf32> -> vector<8x8xf32>
    %309 = vector.broadcast %14 : vector<1x8xf32> to vector<8x8xf32>
    %310 = arith.addf %308, %309 : vector<8x8xf32>
    %cst_110 = arith.constant dense<0xFF800000> : vector<8xf32>
    %311 = vector.multi_reduction <maximumf>, %310, %cst_110 [1] : vector<8x8xf32> to vector<8xf32>
    %312 = vector.shape_cast %311 : vector<8xf32> to vector<8x1xf32>
    %313 = vector.broadcast %312 : vector<8x1xf32> to vector<8x8xf32>
    %314 = arith.subf %310, %313 : vector<8x8xf32>
    %315 = math.exp %314 : vector<8x8xf32>
    %cst_111 = arith.constant dense<0.000000e+00> : vector<8xf32>
    %316 = vector.multi_reduction <add>, %315, %cst_111 [1] : vector<8x8xf32> to vector<8xf32>
    %317 = vector.shape_cast %316 : vector<8xf32> to vector<8x1xf32>
    %318 = tpu.reciprocal %317 {approx = true} : vector<8x1xf32> -> vector<8x1xf32>
    %319 = vector.broadcast %318 : vector<8x1xf32> to vector<8x8xf32>
    %320 = arith.mulf %315, %319 : vector<8x8xf32>
    %cst_112 = arith.constant dense<0.000000e+00> : vector<8x64xf32>
    %321 = tpu.matmul %320, %307, %cst_112 {dimension_numbers = #tpu.dot_dimension_numbers<[1], [0], [0], [1], [0, 0, 1, 1], [], []>} : vector<8x8xf32>, vector<8x64xf32>, vector<8x64xf32> -> vector<8x64xf32>
    %322 = arith.truncf %321 : vector<8x64xf32> to vector<8x64xbf16>
    %323 = vector.extract_strided_slice %249 {offsets = [64, 0], sizes = [64, 192], strides = [1, 1]} : vector<192x192xbf16> to vector<64x192xbf16>
    %cst_113 = arith.constant dense<0.000000e+00> : vector<8x192xf32>
    %324 = tpu.matmul %322, %323, %cst_113 {dimension_numbers = #tpu.dot_dimension_numbers<[1], [0], [0], [1], [0, 0, 1, 1], [], []>} : vector<8x64xbf16>, vector<64x192xbf16>, vector<8x192xf32> -> vector<8x192xf32>
    %325 = arith.addf %304, %324 : vector<8x192xf32>
    %326 = vector.extract_strided_slice %282 {offsets = [0, 128], sizes = [8, 64], strides = [1, 1]} : vector<16x192xf32> to vector<8x64xf32>
    %327 = vector.extract_strided_slice %283 {offsets = [0, 128], sizes = [8, 64], strides = [1, 1]} : vector<16x192xf32> to vector<8x64xf32>
    %328 = vector.extract_strided_slice %284 {offsets = [0, 128], sizes = [8, 64], strides = [1, 1]} : vector<16x192xf32> to vector<8x64xf32>
    %cst_114 = arith.constant dense<0.000000e+00> : vector<8x8xf32>
    %329 = tpu.matmul %326, %327, %cst_114 {dimension_numbers = #tpu.dot_dimension_numbers<[1], [1], [0], [0], [0, 0, 1, 0], [], []>} : vector<8x64xf32>, vector<8x64xf32>, vector<8x8xf32> -> vector<8x8xf32>
    %330 = vector.broadcast %14 : vector<1x8xf32> to vector<8x8xf32>
    %331 = arith.addf %329, %330 : vector<8x8xf32>
    %cst_115 = arith.constant dense<0xFF800000> : vector<8xf32>
    %332 = vector.multi_reduction <maximumf>, %331, %cst_115 [1] : vector<8x8xf32> to vector<8xf32>
    %333 = vector.shape_cast %332 : vector<8xf32> to vector<8x1xf32>
    %334 = vector.broadcast %333 : vector<8x1xf32> to vector<8x8xf32>
    %335 = arith.subf %331, %334 : vector<8x8xf32>
    %336 = math.exp %335 : vector<8x8xf32>
    %cst_116 = arith.constant dense<0.000000e+00> : vector<8xf32>
    %337 = vector.multi_reduction <add>, %336, %cst_116 [1] : vector<8x8xf32> to vector<8xf32>
    %338 = vector.shape_cast %337 : vector<8xf32> to vector<8x1xf32>
    %339 = tpu.reciprocal %338 {approx = true} : vector<8x1xf32> -> vector<8x1xf32>
    %340 = vector.broadcast %339 : vector<8x1xf32> to vector<8x8xf32>
    %341 = arith.mulf %336, %340 : vector<8x8xf32>
    %cst_117 = arith.constant dense<0.000000e+00> : vector<8x64xf32>
    %342 = tpu.matmul %341, %328, %cst_117 {dimension_numbers = #tpu.dot_dimension_numbers<[1], [0], [0], [1], [0, 0, 1, 1], [], []>} : vector<8x8xf32>, vector<8x64xf32>, vector<8x64xf32> -> vector<8x64xf32>
    %343 = arith.truncf %342 : vector<8x64xf32> to vector<8x64xbf16>
    %344 = vector.extract_strided_slice %249 {offsets = [128, 0], sizes = [64, 192], strides = [1, 1]} : vector<192x192xbf16> to vector<64x192xbf16>
    %cst_118 = arith.constant dense<0.000000e+00> : vector<8x192xf32>
    %345 = tpu.matmul %343, %344, %cst_118 {dimension_numbers = #tpu.dot_dimension_numbers<[1], [0], [0], [1], [0, 0, 1, 1], [], []>} : vector<8x64xbf16>, vector<64x192xbf16>, vector<8x192xf32> -> vector<8x192xf32>
    %346 = arith.addf %325, %345 : vector<8x192xf32>
    %347 = vector.extract_strided_slice %282 {offsets = [8, 0], sizes = [8, 64], strides = [1, 1]} : vector<16x192xf32> to vector<8x64xf32>
    %348 = vector.extract_strided_slice %283 {offsets = [8, 0], sizes = [8, 64], strides = [1, 1]} : vector<16x192xf32> to vector<8x64xf32>
    %349 = vector.extract_strided_slice %284 {offsets = [8, 0], sizes = [8, 64], strides = [1, 1]} : vector<16x192xf32> to vector<8x64xf32>
    %cst_119 = arith.constant dense<0.000000e+00> : vector<8x8xf32>
    %350 = tpu.matmul %347, %348, %cst_119 {dimension_numbers = #tpu.dot_dimension_numbers<[1], [1], [0], [0], [0, 0, 1, 0], [], []>} : vector<8x64xf32>, vector<8x64xf32>, vector<8x8xf32> -> vector<8x8xf32>
    %351 = vector.broadcast %14 : vector<1x8xf32> to vector<8x8xf32>
    %352 = arith.addf %350, %351 : vector<8x8xf32>
    %cst_120 = arith.constant dense<0xFF800000> : vector<8xf32>
    %353 = vector.multi_reduction <maximumf>, %352, %cst_120 [1] : vector<8x8xf32> to vector<8xf32>
    %354 = vector.shape_cast %353 : vector<8xf32> to vector<8x1xf32>
    %355 = vector.broadcast %354 : vector<8x1xf32> to vector<8x8xf32>
    %356 = arith.subf %352, %355 : vector<8x8xf32>
    %357 = math.exp %356 : vector<8x8xf32>
    %cst_121 = arith.constant dense<0.000000e+00> : vector<8xf32>
    %358 = vector.multi_reduction <add>, %357, %cst_121 [1] : vector<8x8xf32> to vector<8xf32>
    %359 = vector.shape_cast %358 : vector<8xf32> to vector<8x1xf32>
    %360 = tpu.reciprocal %359 {approx = true} : vector<8x1xf32> -> vector<8x1xf32>
    %361 = vector.broadcast %360 : vector<8x1xf32> to vector<8x8xf32>
    %362 = arith.mulf %357, %361 : vector<8x8xf32>
    %cst_122 = arith.constant dense<0.000000e+00> : vector<8x64xf32>
    %363 = tpu.matmul %362, %349, %cst_122 {dimension_numbers = #tpu.dot_dimension_numbers<[1], [0], [0], [1], [0, 0, 1, 1], [], []>} : vector<8x8xf32>, vector<8x64xf32>, vector<8x64xf32> -> vector<8x64xf32>
    %364 = arith.truncf %363 : vector<8x64xf32> to vector<8x64xbf16>
    %365 = vector.extract_strided_slice %249 {offsets = [0, 0], sizes = [64, 192], strides = [1, 1]} : vector<192x192xbf16> to vector<64x192xbf16>
    %cst_123 = arith.constant dense<0.000000e+00> : vector<8x192xf32>
    %366 = tpu.matmul %364, %365, %cst_123 {dimension_numbers = #tpu.dot_dimension_numbers<[1], [0], [0], [1], [0, 0, 1, 1], [], []>} : vector<8x64xbf16>, vector<64x192xbf16>, vector<8x192xf32> -> vector<8x192xf32>
    %367 = vector.extract_strided_slice %282 {offsets = [8, 64], sizes = [8, 64], strides = [1, 1]} : vector<16x192xf32> to vector<8x64xf32>
    %368 = vector.extract_strided_slice %283 {offsets = [8, 64], sizes = [8, 64], strides = [1, 1]} : vector<16x192xf32> to vector<8x64xf32>
    %369 = vector.extract_strided_slice %284 {offsets = [8, 64], sizes = [8, 64], strides = [1, 1]} : vector<16x192xf32> to vector<8x64xf32>
    %cst_124 = arith.constant dense<0.000000e+00> : vector<8x8xf32>
    %370 = tpu.matmul %367, %368, %cst_124 {dimension_numbers = #tpu.dot_dimension_numbers<[1], [1], [0], [0], [0, 0, 1, 0], [], []>} : vector<8x64xf32>, vector<8x64xf32>, vector<8x8xf32> -> vector<8x8xf32>
    %371 = vector.broadcast %14 : vector<1x8xf32> to vector<8x8xf32>
    %372 = arith.addf %370, %371 : vector<8x8xf32>
    %cst_125 = arith.constant dense<0xFF800000> : vector<8xf32>
    %373 = vector.multi_reduction <maximumf>, %372, %cst_125 [1] : vector<8x8xf32> to vector<8xf32>
    %374 = vector.shape_cast %373 : vector<8xf32> to vector<8x1xf32>
    %375 = vector.broadcast %374 : vector<8x1xf32> to vector<8x8xf32>
    %376 = arith.subf %372, %375 : vector<8x8xf32>
    %377 = math.exp %376 : vector<8x8xf32>
    %cst_126 = arith.constant dense<0.000000e+00> : vector<8xf32>
    %378 = vector.multi_reduction <add>, %377, %cst_126 [1] : vector<8x8xf32> to vector<8xf32>
    %379 = vector.shape_cast %378 : vector<8xf32> to vector<8x1xf32>
    %380 = tpu.reciprocal %379 {approx = true} : vector<8x1xf32> -> vector<8x1xf32>
    %381 = vector.broadcast %380 : vector<8x1xf32> to vector<8x8xf32>
    %382 = arith.mulf %377, %381 : vector<8x8xf32>
    %cst_127 = arith.constant dense<0.000000e+00> : vector<8x64xf32>
    %383 = tpu.matmul %382, %369, %cst_127 {dimension_numbers = #tpu.dot_dimension_numbers<[1], [0], [0], [1], [0, 0, 1, 1], [], []>} : vector<8x8xf32>, vector<8x64xf32>, vector<8x64xf32> -> vector<8x64xf32>
    %384 = arith.truncf %383 : vector<8x64xf32> to vector<8x64xbf16>
    %385 = vector.extract_strided_slice %249 {offsets = [64, 0], sizes = [64, 192], strides = [1, 1]} : vector<192x192xbf16> to vector<64x192xbf16>
    %cst_128 = arith.constant dense<0.000000e+00> : vector<8x192xf32>
    %386 = tpu.matmul %384, %385, %cst_128 {dimension_numbers = #tpu.dot_dimension_numbers<[1], [0], [0], [1], [0, 0, 1, 1], [], []>} : vector<8x64xbf16>, vector<64x192xbf16>, vector<8x192xf32> -> vector<8x192xf32>
    %387 = arith.addf %366, %386 : vector<8x192xf32>
    %388 = vector.extract_strided_slice %282 {offsets = [8, 128], sizes = [8, 64], strides = [1, 1]} : vector<16x192xf32> to vector<8x64xf32>
    %389 = vector.extract_strided_slice %283 {offsets = [8, 128], sizes = [8, 64], strides = [1, 1]} : vector<16x192xf32> to vector<8x64xf32>
    %390 = vector.extract_strided_slice %284 {offsets = [8, 128], sizes = [8, 64], strides = [1, 1]} : vector<16x192xf32> to vector<8x64xf32>
    %cst_129 = arith.constant dense<0.000000e+00> : vector<8x8xf32>
    %391 = tpu.matmul %388, %389, %cst_129 {dimension_numbers = #tpu.dot_dimension_numbers<[1], [1], [0], [0], [0, 0, 1, 0], [], []>} : vector<8x64xf32>, vector<8x64xf32>, vector<8x8xf32> -> vector<8x8xf32>
    %392 = vector.broadcast %14 : vector<1x8xf32> to vector<8x8xf32>
    %393 = arith.addf %391, %392 : vector<8x8xf32>
    %cst_130 = arith.constant dense<0xFF800000> : vector<8xf32>
    %394 = vector.multi_reduction <maximumf>, %393, %cst_130 [1] : vector<8x8xf32> to vector<8xf32>
    %395 = vector.shape_cast %394 : vector<8xf32> to vector<8x1xf32>
    %396 = vector.broadcast %395 : vector<8x1xf32> to vector<8x8xf32>
    %397 = arith.subf %393, %396 : vector<8x8xf32>
    %398 = math.exp %397 : vector<8x8xf32>
    %cst_131 = arith.constant dense<0.000000e+00> : vector<8xf32>
    %399 = vector.multi_reduction <add>, %398, %cst_131 [1] : vector<8x8xf32> to vector<8xf32>
    %400 = vector.shape_cast %399 : vector<8xf32> to vector<8x1xf32>
    %401 = tpu.reciprocal %400 {approx = true} : vector<8x1xf32> -> vector<8x1xf32>
    %402 = vector.broadcast %401 : vector<8x1xf32> to vector<8x8xf32>
    %403 = arith.mulf %398, %402 : vector<8x8xf32>
    %cst_132 = arith.constant dense<0.000000e+00> : vector<8x64xf32>
    %404 = tpu.matmul %403, %390, %cst_132 {dimension_numbers = #tpu.dot_dimension_numbers<[1], [0], [0], [1], [0, 0, 1, 1], [], []>} : vector<8x8xf32>, vector<8x64xf32>, vector<8x64xf32> -> vector<8x64xf32>
    %405 = arith.truncf %404 : vector<8x64xf32> to vector<8x64xbf16>
    %406 = vector.extract_strided_slice %249 {offsets = [128, 0], sizes = [64, 192], strides = [1, 1]} : vector<192x192xbf16> to vector<64x192xbf16>
    %cst_133 = arith.constant dense<0.000000e+00> : vector<8x192xf32>
    %407 = tpu.matmul %405, %406, %cst_133 {dimension_numbers = #tpu.dot_dimension_numbers<[1], [0], [0], [1], [0, 0, 1, 1], [], []>} : vector<8x64xbf16>, vector<64x192xbf16>, vector<8x192xf32> -> vector<8x192xf32>
    %408 = arith.addf %387, %407 : vector<8x192xf32>
    %409 = tpu.concatenate %346, %408 in 0 : vector<8x192xf32>, vector<8x192xf32> -> vector<16x192xf32>
    %410 = vector.broadcast %241 : vector<1x192xf32> to vector<16x192xf32>
    %411 = arith.addf %409, %410 : vector<16x192xf32>
    %412 = arith.addf %235, %411 : vector<16x192xf32>
    %cst_134 = arith.constant dense<0.000000e+00> : vector<16xf32>
    %413 = vector.multi_reduction <add>, %412, %cst_134 [1] : vector<16x192xf32> to vector<16xf32>
    %414 = vector.shape_cast %413 : vector<16xf32> to vector<16x1xf32>
    %cst_135 = arith.constant 1.920000e+02 : f32
    %415 = vector.broadcast %cst_135 : f32 to vector<16x1xf32>
    %416 = arith.divf %414, %415 : vector<16x1xf32>
    %417 = vector.broadcast %416 : vector<16x1xf32> to vector<16x192xf32>
    %418 = arith.subf %412, %417 : vector<16x192xf32>
    %419 = arith.mulf %418, %418 : vector<16x192xf32>
    %cst_136 = arith.constant dense<0.000000e+00> : vector<16xf32>
    %420 = vector.multi_reduction <add>, %419, %cst_136 [1] : vector<16x192xf32> to vector<16xf32>
    %421 = vector.shape_cast %420 : vector<16xf32> to vector<16x1xf32>
    %cst_137 = arith.constant 1.920000e+02 : f32
    %422 = vector.broadcast %cst_137 : f32 to vector<16x1xf32>
    %423 = arith.divf %421, %422 : vector<16x1xf32>
    %424 = vector.broadcast %416 : vector<16x1xf32> to vector<16x192xf32>
    %425 = arith.subf %412, %424 : vector<16x192xf32>
    %cst_138 = arith.constant 9.99999996E-13 : f32
    %426 = vector.broadcast %cst_138 : f32 to vector<16x1xf32>
    %427 = arith.addf %423, %426 : vector<16x1xf32>
    %428 = math.rsqrt %427 : vector<16x1xf32>
    %429 = vector.broadcast %428 : vector<16x1xf32> to vector<16x192xf32>
    %430 = arith.mulf %425, %429 : vector<16x192xf32>
    %431 = vector.broadcast %242 : vector<1x192xf32> to vector<16x192xf32>
    %432 = arith.mulf %430, %431 : vector<16x192xf32>
    %433 = vector.broadcast %243 : vector<1x192xf32> to vector<16x192xf32>
    %434 = arith.addf %432, %433 : vector<16x192xf32>
    %435 = arith.truncf %434 : vector<16x192xf32> to vector<16x192xbf16>
    %cst_139 = arith.constant dense<0.000000e+00> : vector<16x768xf32>
    %436 = tpu.matmul %435, %251, %cst_139 {dimension_numbers = #tpu.dot_dimension_numbers<[1], [0], [0], [1], [0, 0, 1, 1], [], []>} : vector<16x192xbf16>, vector<192x768xbf16>, vector<16x768xf32> -> vector<16x768xf32>
    %437 = vector.broadcast %244 : vector<1x768xf32> to vector<16x768xf32>
    %438 = arith.addf %436, %437 : vector<16x768xf32>
    %cst_140 = arith.constant 5.000000e-01 : f32
    %439 = vector.broadcast %cst_140 : f32 to vector<16x768xf32>
    %440 = arith.mulf %439, %438 : vector<16x768xf32>
    %cst_141 = arith.constant 4.471500e-02 : f32
    %441 = vector.broadcast %cst_141 : f32 to vector<16x768xf32>
    %442 = arith.mulf %441, %438 : vector<16x768xf32>
    %443 = arith.mulf %442, %438 : vector<16x768xf32>
    %444 = arith.mulf %443, %438 : vector<16x768xf32>
    %445 = arith.addf %438, %444 : vector<16x768xf32>
    %cst_142 = arith.constant 0.797884583 : f32
    %446 = vector.broadcast %cst_142 : f32 to vector<16x768xf32>
    %447 = arith.mulf %446, %445 : vector<16x768xf32>
    %448 = math.tanh %447 : vector<16x768xf32>
    %cst_143 = arith.constant 1.000000e+00 : f32
    %449 = vector.broadcast %cst_143 : f32 to vector<16x768xf32>
    %450 = arith.addf %449, %448 : vector<16x768xf32>
    %451 = arith.mulf %440, %450 : vector<16x768xf32>
    %452 = arith.truncf %451 : vector<16x768xf32> to vector<16x768xbf16>
    %cst_144 = arith.constant dense<0.000000e+00> : vector<16x192xf32>
    %453 = tpu.matmul %452, %253, %cst_144 {dimension_numbers = #tpu.dot_dimension_numbers<[1], [0], [0], [1], [0, 0, 1, 1], [], []>} : vector<16x768xbf16>, vector<768x192xbf16>, vector<16x192xf32> -> vector<16x192xf32>
    %454 = arith.addf %412, %453 : vector<16x192xf32>
    %455 = vector.broadcast %245 : vector<1x192xf32> to vector<16x192xf32>
    %456 = arith.addf %454, %455 : vector<16x192xf32>
    %457 = tpu.iota {dimensions = array<i32: 0>} : vector<8x16xi32>
    %458 = tpu.iota {dimensions = array<i32: 1>} : vector<8x16xi32>
    %c8_i32 = arith.constant 8 : i32
    %459 = vector.broadcast %c8_i32 : i32 to vector<8x16xi32>
    %460 = arith.muli %457, %459 : vector<8x16xi32>
    %461 = arith.cmpi sge, %458, %460 : vector<8x16xi32>
    %c8_i32_145 = arith.constant 8 : i32
    %462 = vector.broadcast %c8_i32_145 : i32 to vector<8x16xi32>
    %463 = arith.muli %457, %462 : vector<8x16xi32>
    %c5_i32_146 = arith.constant 5 : i32
    %464 = vector.broadcast %c5_i32_146 : i32 to vector<8x16xi32>
    %465 = arith.addi %463, %464 : vector<8x16xi32>
    %466 = arith.cmpi slt, %458, %465 : vector<8x16xi32>
    %467 = arith.andi %461, %466 : vector<8x16xi1>
    %cst_147 = arith.constant 2.000000e-01 : f32
    %cst_148 = arith.constant 0.000000e+00 : f32
    %468 = vector.broadcast %cst_147 : f32 to vector<8x16xf32>
    %469 = vector.broadcast %cst_148 : f32 to vector<8x16xf32>
    %470 = arith.select %467, %468, %469 : vector<8x16xi1>, vector<8x16xf32>
    %cst_149 = arith.constant dense<0.000000e+00> : vector<8x192xf32>
    %471 = tpu.matmul %470, %456, %cst_149 {dimension_numbers = #tpu.dot_dimension_numbers<[1], [0], [0], [1], [0, 0, 1, 1], [], []>} : vector<8x16xf32>, vector<16x192xf32>, vector<8x192xf32> -> vector<8x192xf32>
    %c0_150 = arith.constant 0 : index
    %c0_151 = arith.constant 0 : index
    %c0_152 = arith.constant 0 : index
    %472 = vector.load %arg9[%c0_150, %c0_151, %c0_152] : memref<1x8x192xf32, #tpu.memory_space<vmem>>, vector<1x8x192xf32>
    %473 = vector.shape_cast %472 : vector<1x8x192xf32> to vector<8x192xf32>
    %474 = vector.shape_cast %471 : vector<8x192xf32> to vector<1x8x192xf32>
    tpu.vector_store %arg9[%c0_150, %c0_151, %c0_152], %474 {strides = array<i32>} : memref<1x8x192xf32, #tpu.memory_space<vmem>>, vector<1x8x192xf32>,
    return
  }
  func.func @transform_0(%arg0: i32) -> (i32, i32, i32) {
    %c0_i32 = arith.constant 0 : i32
    %c0_i32_0 = arith.constant 0 : i32
    %c0_i32_1 = arith.constant 0 : i32
    return %arg0, %c0_i32, %c0_i32_0 : i32, i32, i32
  }
  func.func @transform_1(%arg0: i32) -> (i32, i32, i32) {
    %c0_i32 = arith.constant 0 : i32
    %c0_i32_0 = arith.constant 0 : i32
    %c0_i32_1 = arith.constant 0 : i32
    return %arg0, %c0_i32, %c0_i32_0 : i32, i32, i32
  }
  func.func @transform_2(%arg0: i32) -> (i32, i32, i32) {
    %c0_i32 = arith.constant 0 : i32
    %c0_i32_0 = arith.constant 0 : i32
    %c0_i32_1 = arith.constant 0 : i32
    return %arg0, %c0_i32, %c0_i32_0 : i32, i32, i32
  }
  func.func @transform_3(%arg0: i32) -> (i32, i32, i32, i32) {
    %c0_i32 = arith.constant 0 : i32
    %c0_i32_0 = arith.constant 0 : i32
    %c0_i32_1 = arith.constant 0 : i32
    %c0_i32_2 = arith.constant 0 : i32
    return %arg0, %c0_i32, %c0_i32_0, %c0_i32_1 : i32, i32, i32, i32
  }
  func.func @transform_4(%arg0: i32) -> (i32, i32, i32, i32) {
    %c0_i32 = arith.constant 0 : i32
    %c0_i32_0 = arith.constant 0 : i32
    %c0_i32_1 = arith.constant 0 : i32
    %c0_i32_2 = arith.constant 0 : i32
    return %arg0, %c0_i32, %c0_i32_0, %c0_i32_1 : i32, i32, i32, i32
  }
  func.func @transform_5(%arg0: i32) -> (i32, i32, i32, i32) {
    %c0_i32 = arith.constant 0 : i32
    %c0_i32_0 = arith.constant 0 : i32
    %c0_i32_1 = arith.constant 0 : i32
    %c0_i32_2 = arith.constant 0 : i32
    return %arg0, %c0_i32, %c0_i32_0, %c0_i32_1 : i32, i32, i32, i32
  }
  func.func @transform_6(%arg0: i32) -> (i32, i32, i32, i32) {
    %c0_i32 = arith.constant 0 : i32
    %c0_i32_0 = arith.constant 0 : i32
    %c0_i32_1 = arith.constant 0 : i32
    %c0_i32_2 = arith.constant 0 : i32
    return %arg0, %c0_i32, %c0_i32_0, %c0_i32_1 : i32, i32, i32, i32
  }
  func.func @transform_7(%arg0: i32) -> (i32, i32, i32, i32) {
    %c0_i32 = arith.constant 0 : i32
    %c0_i32_0 = arith.constant 0 : i32
    %c0_i32_1 = arith.constant 0 : i32
    %c0_i32_2 = arith.constant 0 : i32
    return %arg0, %c0_i32, %c0_i32_0, %c0_i32_1 : i32, i32, i32, i32
  }
  func.func @transform_8(%arg0: i32) -> (i32, i32, i32) {
    %c0_i32 = arith.constant 0 : i32
    %c0_i32_0 = arith.constant 0 : i32
    %c0_i32_1 = arith.constant 0 : i32
    return %arg0, %c0_i32, %c0_i32_0 : i32, i32, i32
  }
}

module attributes {stable_mosaic.version = 11 : i64} {
  func.func @heads_kernel(%arg0: memref<8x384xf32, #tpu.memory_space<vmem>>, %arg1: memref<384x1024xbf16, #tpu.memory_space<vmem>>, %arg2: memref<1x1024xf32, #tpu.memory_space<vmem>>, %arg3: memref<1024x128xbf16, #tpu.memory_space<vmem>>, %arg4: memref<1x128xf32, #tpu.memory_space<vmem>>, %arg5: memref<128x128xbf16, #tpu.memory_space<vmem>>, %arg6: memref<1x128xf32, #tpu.memory_space<vmem>>, %arg7: memref<128x128xbf16, #tpu.memory_space<vmem>>, %arg8: memref<1x128xf32, #tpu.memory_space<vmem>>, %arg9: memref<8x128xf32, #tpu.memory_space<vmem>>, %arg10: memref<8x128xf32, #tpu.memory_space<vmem>>) attributes {dimension_semantics = [], scalar_prefetch = 0 : i64, scratch_operands = 0 : i64, tpu.core_type = #tpu.core_type<tc>} {
    %c0 = arith.constant 0 : index
    %c0_0 = arith.constant 0 : index
    %0 = vector.load %arg0[%c0, %c0_0] : memref<8x384xf32, #tpu.memory_space<vmem>>, vector<8x384xf32>
    %1 = arith.truncf %0 : vector<8x384xf32> to vector<8x384xbf16>
    %c0_1 = arith.constant 0 : index
    %c0_2 = arith.constant 0 : index
    %2 = vector.load %arg1[%c0_1, %c0_2] : memref<384x1024xbf16, #tpu.memory_space<vmem>>, vector<384x1024xbf16>
    %cst = arith.constant dense<0.000000e+00> : vector<8x1024xf32>
    %3 = tpu.matmul %1, %2, %cst {dimension_numbers = #tpu.dot_dimension_numbers<[1], [0], [0], [1], [0, 0, 1, 1], [], []>} : vector<8x384xbf16>, vector<384x1024xbf16>, vector<8x1024xf32> -> vector<8x1024xf32>
    %c0_3 = arith.constant 0 : index
    %c0_4 = arith.constant 0 : index
    %4 = vector.load %arg2[%c0_3, %c0_4] : memref<1x1024xf32, #tpu.memory_space<vmem>>, vector<1x1024xf32>
    %5 = vector.broadcast %4 : vector<1x1024xf32> to vector<8x1024xf32>
    %6 = arith.addf %3, %5 : vector<8x1024xf32>
    %cst_5 = arith.constant 0.000000e+00 : f32
    %7 = vector.broadcast %cst_5 : f32 to vector<8x1024xf32>
    %8 = arith.maximumf %6, %7 : vector<8x1024xf32>
    %9 = arith.truncf %8 : vector<8x1024xf32> to vector<8x1024xbf16>
    %c0_6 = arith.constant 0 : index
    %c0_7 = arith.constant 0 : index
    %10 = vector.load %arg3[%c0_6, %c0_7] : memref<1024x128xbf16, #tpu.memory_space<vmem>>, vector<1024x128xbf16>
    %cst_8 = arith.constant dense<0.000000e+00> : vector<8x128xf32>
    %11 = tpu.matmul %9, %10, %cst_8 {dimension_numbers = #tpu.dot_dimension_numbers<[1], [0], [0], [1], [0, 0, 1, 1], [], []>} : vector<8x1024xbf16>, vector<1024x128xbf16>, vector<8x128xf32> -> vector<8x128xf32>
    %c0_9 = arith.constant 0 : index
    %c0_10 = arith.constant 0 : index
    %12 = vector.load %arg4[%c0_9, %c0_10] : memref<1x128xf32, #tpu.memory_space<vmem>>, vector<1x128xf32>
    %13 = vector.broadcast %12 : vector<1x128xf32> to vector<8x128xf32>
    %14 = arith.addf %11, %13 : vector<8x128xf32>
    %15 = arith.truncf %14 : vector<8x128xf32> to vector<8x128xbf16>
    %c0_11 = arith.constant 0 : index
    %c0_12 = arith.constant 0 : index
    %16 = vector.load %arg5[%c0_11, %c0_12] : memref<128x128xbf16, #tpu.memory_space<vmem>>, vector<128x128xbf16>
    %cst_13 = arith.constant dense<0.000000e+00> : vector<8x128xf32>
    %17 = tpu.matmul %15, %16, %cst_13 {dimension_numbers = #tpu.dot_dimension_numbers<[1], [0], [0], [1], [0, 0, 1, 1], [], []>} : vector<8x128xbf16>, vector<128x128xbf16>, vector<8x128xf32> -> vector<8x128xf32>
    %c0_14 = arith.constant 0 : index
    %c0_15 = arith.constant 0 : index
    %18 = vector.load %arg6[%c0_14, %c0_15] : memref<1x128xf32, #tpu.memory_space<vmem>>, vector<1x128xf32>
    %19 = vector.broadcast %18 : vector<1x128xf32> to vector<8x128xf32>
    %20 = arith.addf %17, %19 : vector<8x128xf32>
    %cst_16 = arith.constant 0.000000e+00 : f32
    %21 = vector.broadcast %cst_16 : f32 to vector<8x128xf32>
    %22 = arith.maximumf %20, %21 : vector<8x128xf32>
    %23 = arith.truncf %22 : vector<8x128xf32> to vector<8x128xbf16>
    %c0_17 = arith.constant 0 : index
    %c0_18 = arith.constant 0 : index
    %24 = vector.load %arg7[%c0_17, %c0_18] : memref<128x128xbf16, #tpu.memory_space<vmem>>, vector<128x128xbf16>
    %cst_19 = arith.constant dense<0.000000e+00> : vector<8x128xf32>
    %25 = tpu.matmul %23, %24, %cst_19 {dimension_numbers = #tpu.dot_dimension_numbers<[1], [0], [0], [1], [0, 0, 1, 1], [], []>} : vector<8x128xbf16>, vector<128x128xbf16>, vector<8x128xf32> -> vector<8x128xf32>
    %c0_20 = arith.constant 0 : index
    %c0_21 = arith.constant 0 : index
    %26 = vector.load %arg8[%c0_20, %c0_21] : memref<1x128xf32, #tpu.memory_space<vmem>>, vector<1x128xf32>
    %27 = vector.broadcast %26 : vector<1x128xf32> to vector<8x128xf32>
    %28 = arith.addf %25, %27 : vector<8x128xf32>
    %c0_22 = arith.constant 0 : index
    %c0_23 = arith.constant 0 : index
    %29 = vector.load %arg10[%c0_22, %c0_23] : memref<8x128xf32, #tpu.memory_space<vmem>>, vector<8x128xf32>
    tpu.vector_store %arg10[%c0_22, %c0_23], %14 {strides = array<i32>} : memref<8x128xf32, #tpu.memory_space<vmem>>, vector<8x128xf32>,
    %c0_24 = arith.constant 0 : index
    %c0_25 = arith.constant 0 : index
    %30 = vector.load %arg9[%c0_24, %c0_25] : memref<8x128xf32, #tpu.memory_space<vmem>>, vector<8x128xf32>
    tpu.vector_store %arg9[%c0_24, %c0_25], %28 {strides = array<i32>} : memref<8x128xf32, #tpu.memory_space<vmem>>, vector<8x128xf32>,
    return
  }
}

</mosaic_0001>

<llo_original>
// kernel: dual_forward.3
$region0: #{dual_forward.3}
  #allocation0 [shape = 'u32[]', space=smem, size = 0x4, offset = 0x4, fixed_abs, tag = 'smem constant byte address 0x4 - core index']
  #allocation1 [shape = 'u32[144,128]{1,0:T(1,128)}', space=vmem, size = 0x12000, scoped, tag = 'internal scratch']
  %s0 = inlined_call_operand.vmem [shape: f32[8,384], index: 0, kind: input, shape index: {}]
  %s1 = inlined_call_operand.vmem [shape: bf16[384,1024], index: 1, kind: input, shape index: {}]
  %s2 = inlined_call_operand.vmem [shape: f32[1,1024], index: 2, kind: input, shape index: {}]
  %s3 = inlined_call_operand.vmem [shape: bf16[1024,128], index: 3, kind: input, shape index: {}]
  %s4 = inlined_call_operand.vmem [shape: f32[1,128], index: 4, kind: input, shape index: {}]
  %s5 = inlined_call_operand.vmem [shape: bf16[128,128], index: 5, kind: input, shape index: {}]
  %s6 = inlined_call_operand.vmem [shape: f32[1,128], index: 6, kind: input, shape index: {}]
  %s7 = inlined_call_operand.vmem [shape: bf16[128,128], index: 7, kind: input, shape index: {}]
  %s8 = inlined_call_operand.vmem [shape: f32[1,128], index: 8, kind: input, shape index: {}]
  %s9 = inlined_call_operand.vmem [shape: f32[8,128], index: 9, kind: output, shape index: {0}]
  %s10 = inlined_call_operand.vmem [shape: f32[8,128], index: 10, kind: output, shape index: {1}]
  %11 = xla_tuple %s9, %s10
  %s12 = sld [smem:[#allocation0]]
  $region54: #{dual_forward.3} parent=0
    _
  %s14 = ssub.s32 1, %s12
  %s15 = scalar_select 0, %s14, %s12
  // Predicated region
  $region2: #{dual_forward.3} parent=0 // pred_check
    _
  $region3: #{dual_forward.3} parent=0 // pred_check_branch
    %17 = sbr.rel (0) target = $region5
  $region4: #{dual_forward.3} parent=0 // pred_region
    _
  $region5: #{dual_forward.3} parent=0 // pred_fallthru
    _
  // Predicated region
  $region6: #{dual_forward.3} parent=0 // pred_check
    _
  $region7: #{dual_forward.3} parent=0 // pred_check_branch
    %19 = sbr.rel (0) target = $region9
  $region8: #{dual_forward.3} parent=0 // pred_region
    _
  $region9: #{dual_forward.3} parent=0 // pred_fallthru
    _
  // Predicated region
  $region10: #{dual_forward.3} parent=0 // pred_check
    _
  $region11: #{dual_forward.3} parent=0 // pred_check_branch
    %21 = sbr.rel (0) target = $region13
  $region12: #{dual_forward.3} parent=0 // pred_region
    _
  $region13: #{dual_forward.3} parent=0 // pred_fallthru
    _
  // Predicated region
  $region14: #{dual_forward.3} parent=0 // pred_check
    _
  $region15: #{dual_forward.3} parent=0 // pred_check_branch
    %23 = sbr.rel (0) target = $region17
  $region16: #{dual_forward.3} parent=0 // pred_region
    _
  $region17: #{dual_forward.3} parent=0 // pred_fallthru
    _
  // Predicated region
  $region18: #{dual_forward.3} parent=0 // pred_check
    _
  $region19: #{dual_forward.3} parent=0 // pred_check_branch
    %25 = sbr.rel (0) target = $region21
  $region20: #{dual_forward.3} parent=0 // pred_region
    _
  $region21: #{dual_forward.3} parent=0 // pred_fallthru
    _
  // Predicated region
  $region22: #{dual_forward.3} parent=0 // pred_check
    _
  $region23: #{dual_forward.3} parent=0 // pred_check_branch
    %27 = sbr.rel (0) target = $region25
  $region24: #{dual_forward.3} parent=0 // pred_region
    _
  $region25: #{dual_forward.3} parent=0 // pred_fallthru
    _
  // Predicated region
  $region26: #{dual_forward.3} parent=0 // pred_check
    _
  $region27: #{dual_forward.3} parent=0 // pred_check_branch
    %29 = sbr.rel (0) target = $region29
  $region28: #{dual_forward.3} parent=0 // pred_region
    _
  $region29: #{dual_forward.3} parent=0 // pred_fallthru
    _
  // Predicated region
  $region30: #{dual_forward.3} parent=0 // pred_check
    _
  $region31: #{dual_forward.3} parent=0 // pred_check_branch
    %31 = sbr.rel (0) target = $region33
  $region32: #{dual_forward.3} parent=0 // pred_region
    _
  $region33: #{dual_forward.3} parent=0 // pred_fallthru
    _
  // Predicated region
  $region34: #{dual_forward.3} parent=0 // pred_check
    _
  $region35: #{dual_forward.3} parent=0 // pred_check_branch
    %33 = sbr.rel (0) target = $region37
  $region36: #{dual_forward.3} parent=0 // pred_region
    _
  $region37: #{dual_forward.3} parent=0 // pred_fallthru
    _
  %v35 = vld [vmem:[%s0] sm:$0xff]
  %v36 = vld [vmem:[%s0 + $0x8] sm:$0xff]
  %v37 = vld [vmem:[%s0 + $0x10] sm:$0xff]
  %v38 = vpack.c.bf16 %v35, %v35
  %v39 = vpack.c.bf16 %v36, %v36
  %v40 = vpack.c.bf16 %v37, %v37
  %v41 = vld [vmem:[%s1] sm:$0xff]
  %v42 = vld [vmem:[%s1 + $0x8] sm:$0xff]
  %v43 = vld [vmem:[%s1 + $0x10] sm:$0xff]
  %v44 = vld [vmem:[%s1 + $0x18] sm:$0xff]
  %v45 = vld [vmem:[%s1 + $0x20] sm:$0xff]
  %v46 = vld [vmem:[%s1 + $0x28] sm:$0xff]
  %v47 = vld [vmem:[%s1 + $0x30] sm:$0xff]
  %v48 = vld [vmem:[%s1 + $0x38] sm:$0xff]
  %v49 = vld [vmem:[%s1 + $0x40] sm:$0xff]
  %v50 = vld [vmem:[%s1 + $0x48] sm:$0xff]
  %v51 = vld [vmem:[%s1 + $0x50] sm:$0xff]
  %v52 = vld [vmem:[%s1 + $0x58] sm:$0xff]
  %v53 = vld [vmem:[%s1 + $0x60] sm:$0xff]
  %v54 = vld [vmem:[%s1 + $0x68] sm:$0xff]
  %v55 = vld [vmem:[%s1 + $0x70] sm:$0xff]
  %v56 = vld [vmem:[%s1 + $0x78] sm:$0xff]
  %v57 = vld [vmem:[%s1 + $0x80] sm:$0xff]
  %v58 = vld [vmem:[%s1 + $0x88] sm:$0xff]
  %v59 = vld [vmem:[%s1 + $0x90] sm:$0xff]
  %v60 = vld [vmem:[%s1 + $0x98] sm:$0xff]
  %v61 = vld [vmem:[%s1 + $0xa0] sm:$0xff]
  %v62 = vld [vmem:[%s1 + $0xa8] sm:$0xff]
  %v63 = vld [vmem:[%s1 + $0xb0] sm:$0xff]
  %v64 = vld [vmem:[%s1 + $0xb8] sm:$0xff]
  %v65 = vld [vmem:[%s1 + $0xc0] sm:$0xff]
  %v66 = vld [vmem:[%s1 + $0xc8] sm:$0xff]
  %v67 = vld [vmem:[%s1 + $0xd0] sm:$0xff]
  %v68 = vld [vmem:[%s1 + $0xd8] sm:$0xff]
  %v69 = vld [vmem:[%s1 + $0xe0] sm:$0xff]
  %v70 = vld [vmem:[%s1 + $0xe8] sm:$0xff]
  %v71 = vld [vmem:[%s1 + $0xf0] sm:$0xff]
  %v72 = vld [vmem:[%s1 + $0xf8] sm:$0xff]
  %v73 = vld [vmem:[%s1 + $0x100] sm:$0xff]
  %v74 = vld [vmem:[%s1 + $0x108] sm:$0xff]
  %v75 = vld [vmem:[%s1 + $0x110] sm:$0xff]
  %v76 = vld [vmem:[%s1 + $0x118] sm:$0xff]
  %v77 = vld [vmem:[%s1 + $0x120] sm:$0xff]
  %v78 = vld [vmem:[%s1 + $0x128] sm:$0xff]
  %v79 = vld [vmem:[%s1 + $0x130] sm:$0xff]
  %v80 = vld [vmem:[%s1 + $0x138] sm:$0xff]
  %v81 = vld [vmem:[%s1 + $0x140] sm:$0xff]
  %v82 = vld [vmem:[%s1 + $0x148] sm:$0xff]
  %v83 = vld [vmem:[%s1 + $0x150] sm:$0xff]
  %v84 = vld [vmem:[%s1 + $0x158] sm:$0xff]
  %v85 = vld [vmem:[%s1 + $0x160] sm:$0xff]
  %v86 = vld [vmem:[%s1 + $0x168] sm:$0xff]
  %v87 = vld [vmem:[%s1 + $0x170] sm:$0xff]
  %v88 = vld [vmem:[%s1 + $0x178] sm:$0xff]
  %v89 = vld [vmem:[%s1 + $0x180] sm:$0xff]
  %v90 = vld [vmem:[%s1 + $0x188] sm:$0xff]
  %v91 = vld [vmem:[%s1 + $0x190] sm:$0xff]
  %v92 = vld [vmem:[%s1 + $0x198] sm:$0xff]
  %v93 = vld [vmem:[%s1 + $0x1a0] sm:$0xff]
  %v94 = vld [vmem:[%s1 + $0x1a8] sm:$0xff]
  %v95 = vld [vmem:[%s1 + $0x1b0] sm:$0xff]
  %v96 = vld [vmem:[%s1 + $0x1b8] sm:$0xff]
  %v97 = vld [vmem:[%s1 + $0x1c0] sm:$0xff]
  %v98 = vld [vmem:[%s1 + $0x1c8] sm:$0xff]
  %v99 = vld [vmem:[%s1 + $0x1d0] sm:$0xff]
  %v100 = vld [vmem:[%s1 + $0x1d8] sm:$0xff]
  %v101 = vld [vmem:[%s1 + $0x1e0] sm:$0xff]
  %v102 = vld [vmem:[%s1 + $0x1e8] sm:$0xff]
  %v103 = vld [vmem:[%s1 + $0x1f0] sm:$0xff]
  %v104 = vld [vmem:[%s1 + $0x1f8] sm:$0xff]
  %v105 = vld [vmem:[%s1 + $0x200] sm:$0xff]
  %v106 = vld [vmem:[%s1 + $0x208] sm:$0xff]
  %v107 = vld [vmem:[%s1 + $0x210] sm:$0xff]
  %v108 = vld [vmem:[%s1 + $0x218] sm:$0xff]
  %v109 = vld [vmem:[%s1 + $0x220] sm:$0xff]
  %v110 = vld [vmem:[%s1 + $0x228] sm:$0xff]
  %v111 = vld [vmem:[%s1 + $0x230] sm:$0xff]
  %v112 = vld [vmem:[%s1 + $0x238] sm:$0xff]
  %v113 = vld [vmem:[%s1 + $0x240] sm:$0xff]
  %v114 = vld [vmem:[%s1 + $0x248] sm:$0xff]
  %v115 = vld [vmem:[%s1 + $0x250] sm:$0xff]
  %v116 = vld [vmem:[%s1 + $0x258] sm:$0xff]
  %v117 = vld [vmem:[%s1 + $0x260] sm:$0xff]
  %v118 = vld [vmem:[%s1 + $0x268] sm:$0xff]
  %v119 = vld [vmem:[%s1 + $0x270] sm:$0xff]
  %v120 = vld [vmem:[%s1 + $0x278] sm:$0xff]
  %v121 = vld [vmem:[%s1 + $0x280] sm:$0xff]
  %v122 = vld [vmem:[%s1 + $0x288] sm:$0xff]
  %v123 = vld [vmem:[%s1 + $0x290] sm:$0xff]
  %v124 = vld [vmem:[%s1 + $0x298] sm:$0xff]
  %v125 = vld [vmem:[%s1 + $0x2a0] sm:$0xff]
  %v126 = vld [vmem:[%s1 + $0x2a8] sm:$0xff]
  %v127 = vld [vmem:[%s1 + $0x2b0] sm:$0xff]
  %v128 = vld [vmem:[%s1 + $0x2b8] sm:$0xff]
  %v129 = vld [vmem:[%s1 + $0x2c0] sm:$0xff]
  %v130 = vld [vmem:[%s1 + $0x2c8] sm:$0xff]
  %v131 = vld [vmem:[%s1 + $0x2d0] sm:$0xff]
  %v132 = vld [vmem:[%s1 + $0x2d8] sm:$0xff]
  %v133 = vld [vmem:[%s1 + $0x2e0] sm:$0xff]
  %v134 = vld [vmem:[%s1 + $0x2e8] sm:$0xff]
  %v135 = vld [vmem:[%s1 + $0x2f0] sm:$0xff]
  %v136 = vld [vmem:[%s1 + $0x2f8] sm:$0xff]
  %v137 = vld [vmem:[%s1 + $0x300] sm:$0xff]
  %v138 = vld [vmem:[%s1 + $0x308] sm:$0xff]
  %v139 = vld [vmem:[%s1 + $0x310] sm:$0xff]
  %v140 = vld [vmem:[%s1 + $0x318] sm:$0xff]
  %v141 = vld [vmem:[%s1 + $0x320] sm:$0xff]
  %v142 = vld [vmem:[%s1 + $0x328] sm:$0xff]
  %v143 = vld [vmem:[%s1 + $0x330] sm:$0xff]
  %v144 = vld [vmem:[%s1 + $0x338] sm:$0xff]
  %v145 = vld [vmem:[%s1 + $0x340] sm:$0xff]
  %v146 = vld [vmem:[%s1 + $0x348] sm:$0xff]
  %v147 = vld [vmem:[%s1 + $0x350] sm:$0xff]
  %v148 = vld [vmem:[%s1 + $0x358] sm:$0xff]
  %v149 = vld [vmem:[%s1 + $0x360] sm:$0xff]
  %v150 = vld [vmem:[%s1 + $0x368] sm:$0xff]
  %v151 = vld [vmem:[%s1 + $0x370] sm:$0xff]
  %v152 = vld [vmem:[%s1 + $0x378] sm:$0xff]
  %v153 = vld [vmem:[%s1 + $0x380] sm:$0xff]
  %v154 = vld [vmem:[%s1 + $0x388] sm:$0xff]
  %v155 = vld [vmem:[%s1 + $0x390] sm:$0xff]
  %v156 = vld [vmem:[%s1 + $0x398] sm:$0xff]
  %v157 = vld [vmem:[%s1 + $0x3a0] sm:$0xff]
  %v158 = vld [vmem:[%s1 + $0x3a8] sm:$0xff]
  %v159 = vld [vmem:[%s1 + $0x3b0] sm:$0xff]
  %v160 = vld [vmem:[%s1 + $0x3b8] sm:$0xff]
  %v161 = vld [vmem:[%s1 + $0x3c0] sm:$0xff]
  %v162 = vld [vmem:[%s1 + $0x3c8] sm:$0xff]
  %v163 = vld [vmem:[%s1 + $0x3d0] sm:$0xff]
  %v164 = vld [vmem:[%s1 + $0x3d8] sm:$0xff]
  %v165 = vld [vmem:[%s1 + $0x3e0] sm:$0xff]
  %v166 = vld [vmem:[%s1 + $0x3e8] sm:$0xff]
  %v167 = vld [vmem:[%s1 + $0x3f0] sm:$0xff]
  %v168 = vld [vmem:[%s1 + $0x3f8] sm:$0xff]
  %v169 = vld [vmem:[%s1 + $0x400] sm:$0xff]
  %v170 = vld [vmem:[%s1 + $0x408] sm:$0xff]
  %v171 = vld [vmem:[%s1 + $0x410] sm:$0xff]
  %v172 = vld [vmem:[%s1 + $0x418] sm:$0xff]
  %v173 = vld [vmem:[%s1 + $0x420] sm:$0xff]
  %v174 = vld [vmem:[%s1 + $0x428] sm:$0xff]
  %v175 = vld [vmem:[%s1 + $0x430] sm:$0xff]
  %v176 = vld [vmem:[%s1 + $0x438] sm:$0xff]
  %v177 = vld [vmem:[%s1 + $0x440] sm:$0xff]
  %v178 = vld [vmem:[%s1 + $0x448] sm:$0xff]
  %v179 = vld [vmem:[%s1 + $0x450] sm:$0xff]
  %v180 = vld [vmem:[%s1 + $0x458] sm:$0xff]
  %v181 = vld [vmem:[%s1 + $0x460] sm:$0xff]
  %v182 = vld [vmem:[%s1 + $0x468] sm:$0xff]
  %v183 = vld [vmem:[%s1 + $0x470] sm:$0xff]
  %v184 = vld [vmem:[%s1 + $0x478] sm:$0xff]
  %v185 = vld [vmem:[%s1 + $0x480] sm:$0xff]
  %v186 = vld [vmem:[%s1 + $0x488] sm:$0xff]
  %v187 = vld [vmem:[%s1 + $0x490] sm:$0xff]
  %v188 = vld [vmem:[%s1 + $0x498] sm:$0xff]
  %v189 = vld [vmem:[%s1 + $0x4a0] sm:$0xff]
  %v190 = vld [vmem:[%s1 + $0x4a8] sm:$0xff]
  %v191 = vld [vmem:[%s1 + $0x4b0] sm:$0xff]
  %v192 = vld [vmem:[%s1 + $0x4b8] sm:$0xff]
  %v193 = vld [vmem:[%s1 + $0x4c0] sm:$0xff]
  %v194 = vld [vmem:[%s1 + $0x4c8] sm:$0xff]
  %v195 = vld [vmem:[%s1 + $0x4d0] sm:$0xff]
  %v196 = vld [vmem:[%s1 + $0x4d8] sm:$0xff]
  %v197 = vld [vmem:[%s1 + $0x4e0] sm:$0xff]
  %v198 = vld [vmem:[%s1 + $0x4e8] sm:$0xff]
  %v199 = vld [vmem:[%s1 + $0x4f0] sm:$0xff]
  %v200 = vld [vmem:[%s1 + $0x4f8] sm:$0xff]
  %v201 = vld [vmem:[%s1 + $0x500] sm:$0xff]
  %v202 = vld [vmem:[%s1 + $0x508] sm:$0xff]
  %v203 = vld [vmem:[%s1 + $0x510] sm:$0xff]
  %v204 = vld [vmem:[%s1 + $0x518] sm:$0xff]
  %v205 = vld [vmem:[%s1 + $0x520] sm:$0xff]
  %v206 = vld [vmem:[%s1 + $0x528] sm:$0xff]
  %v207 = vld [vmem:[%s1 + $0x530] sm:$0xff]
  %v208 = vld [vmem:[%s1 + $0x538] sm:$0xff]
  %v209 = vld [vmem:[%s1 + $0x540] sm:$0xff]
  %v210 = vld [vmem:[%s1 + $0x548] sm:$0xff]
  %v211 = vld [vmem:[%s1 + $0x550] sm:$0xff]
  %v212 = vld [vmem:[%s1 + $0x558] sm:$0xff]
  %v213 = vld [vmem:[%s1 + $0x560] sm:$0xff]
  %v214 = vld [vmem:[%s1 + $0x568] sm:$0xff]
  %v215 = vld [vmem:[%s1 + $0x570] sm:$0xff]
  %v216 = vld [vmem:[%s1 + $0x578] sm:$0xff]
  %v217 = vld [vmem:[%s1 + $0x580] sm:$0xff]
  %v218 = vld [vmem:[%s1 + $0x588] sm:$0xff]
  %v219 = vld [vmem:[%s1 + $0x590] sm:$0xff]
  %v220 = vld [vmem:[%s1 + $0x598] sm:$0xff]
  %v221 = vld [vmem:[%s1 + $0x5a0] sm:$0xff]
  %v222 = vld [vmem:[%s1 + $0x5a8] sm:$0xff]
  %v223 = vld [vmem:[%s1 + $0x5b0] sm:$0xff]
  %v224 = vld [vmem:[%s1 + $0x5b8] sm:$0xff]
  %v225 = vld [vmem:[%s1 + $0x5c0] sm:$0xff]
  %v226 = vld [vmem:[%s1 + $0x5c8] sm:$0xff]
  %v227 = vld [vmem:[%s1 + $0x5d0] sm:$0xff]
  %v228 = vld [vmem:[%s1 + $0x5d8] sm:$0xff]
  %v229 = vld [vmem:[%s1 + $0x5e0] sm:$0xff]
  %v230 = vld [vmem:[%s1 + $0x5e8] sm:$0xff]
  %v231 = vld [vmem:[%s1 + $0x5f0] sm:$0xff]
  %v232 = vld [vmem:[%s1 + $0x5f8] sm:$0xff]
  %v233 = vld [vmem:[%s2] sm:$0xff]
  %v235 = vlaneseq
  %v236 = vshrl.u32 %v235, 7
  %v237 = vsub.s32 0, %v236
  %v238 = vrot.slane %v233, %v237
  %v239 = vlaneseq
  %v240 = vshrl.u32 %v239, 7
  %v241 = vsub.s32 1, %v240
  %v242 = vrot.slane %v233, %v241
  %v243 = vlaneseq
  %v244 = vshrl.u32 %v243, 7
  %v245 = vsub.s32 2, %v244
  %v246 = vrot.slane %v233, %v245
  %v247 = vlaneseq
  %v248 = vshrl.u32 %v247, 7
  %v249 = vsub.s32 3, %v248
  %v250 = vrot.slane %v233, %v249
  %v251 = vlaneseq
  %v252 = vshrl.u32 %v251, 7
  %v253 = vsub.s32 4, %v252
  %v254 = vrot.slane %v233, %v253
  %v255 = vlaneseq
  %v256 = vshrl.u32 %v255, 7
  %v257 = vsub.s32 5, %v256
  %v258 = vrot.slane %v233, %v257
  %v259 = vlaneseq
  %v260 = vshrl.u32 %v259, 7
  %v261 = vsub.s32 6, %v260
  %v262 = vrot.slane %v233, %v261
  %v263 = vlaneseq
  %v264 = vshrl.u32 %v263, 7
  %v265 = vsub.s32 7, %v264
  %v266 = vrot.slane %v233, %v265
  %v467 = vunpack.c.l.b16 %v41
  %v468 = vunpack.c.h.b16 %v41
  %v469 = vunpack.c.l.b16 %v42
  %v470 = vunpack.c.h.b16 %v42
  %v471 = vunpack.c.l.b16 %v43
  %v472 = vunpack.c.h.b16 %v43
  %v473 = vunpack.c.l.b16 %v44
  %v474 = vunpack.c.h.b16 %v44
  %v475 = vunpack.c.l.b16 %v45
  %v476 = vunpack.c.h.b16 %v45
  %v477 = vunpack.c.l.b16 %v46
  %v478 = vunpack.c.h.b16 %v46
  %v479 = vunpack.c.l.b16 %v47
  %v480 = vunpack.c.h.b16 %v47
  %v481 = vunpack.c.l.b16 %v48
  %v482 = vunpack.c.h.b16 %v48
  %v483 = vunpack.c.l.b16 %v49
  %v484 = vunpack.c.h.b16 %v49
  %v485 = vunpack.c.l.b16 %v50
  %v486 = vunpack.c.h.b16 %v50
  %v487 = vunpack.c.l.b16 %v51
  %v488 = vunpack.c.h.b16 %v51
  %v489 = vunpack.c.l.b16 %v52
  %v490 = vunpack.c.h.b16 %v52
  %v491 = vunpack.c.l.b16 %v53
  %v492 = vunpack.c.h.b16 %v53
  %v493 = vunpack.c.l.b16 %v54
  %v494 = vunpack.c.h.b16 %v54
  %v495 = vunpack.c.l.b16 %v55
  %v496 = vunpack.c.h.b16 %v55
  %v497 = vunpack.c.l.b16 %v56
  %v498 = vunpack.c.h.b16 %v56
  %v499 = vunpack.c.l.b16 %v57
  %v500 = vunpack.c.h.b16 %v57
  %v501 = vunpack.c.l.b16 %v58
  %v502 = vunpack.c.h.b16 %v58
  %v503 = vunpack.c.l.b16 %v59
  %v504 = vunpack.c.h.b16 %v59
  %v505 = vunpack.c.l.b16 %v60
  %v506 = vunpack.c.h.b16 %v60
  %v507 = vunpack.c.l.b16 %v61
  %v508 = vunpack.c.h.b16 %v61
  %v509 = vunpack.c.l.b16 %v62
  %v510 = vunpack.c.h.b16 %v62
  %v511 = vunpack.c.l.b16 %v63
  %v512 = vunpack.c.h.b16 %v63
  %v513 = vunpack.c.l.b16 %v64
  %v514 = vunpack.c.h.b16 %v64
  %v515 = vunpack.c.l.b16 %v65
  %v516 = vunpack.c.h.b16 %v65
  %v517 = vunpack.c.l.b16 %v66
  %v518 = vunpack.c.h.b16 %v66
  %v519 = vunpack.c.l.b16 %v67
  %v520 = vunpack.c.h.b16 %v67
  %v521 = vunpack.c.l.b16 %v68
  %v522 = vunpack.c.h.b16 %v68
  %v523 = vunpack.c.l.b16 %v69
  %v524 = vunpack.c.h.b16 %v69
  %v525 = vunpack.c.l.b16 %v70
  %v526 = vunpack.c.h.b16 %v70
  %v527 = vunpack.c.l.b16 %v71
  %v528 = vunpack.c.h.b16 %v71
  %v529 = vunpack.c.l.b16 %v72
  %v530 = vunpack.c.h.b16 %v72
  %v531 = vunpack.c.l.b16 %v73
  %v532 = vunpack.c.h.b16 %v73
  %v533 = vunpack.c.l.b16 %v74
  %v534 = vunpack.c.h.b16 %v74
  %v535 = vunpack.c.l.b16 %v75
  %v536 = vunpack.c.h.b16 %v75
  %v537 = vunpack.c.l.b16 %v76
  %v538 = vunpack.c.h.b16 %v76
  %v539 = vunpack.c.l.b16 %v77
  %v540 = vunpack.c.h.b16 %v77
  %v541 = vunpack.c.l.b16 %v78
  %v542 = vunpack.c.h.b16 %v78
  %v543 = vunpack.c.l.b16 %v79
  %v544 = vunpack.c.h.b16 %v79
  %v545 = vunpack.c.l.b16 %v80
  %v546 = vunpack.c.h.b16 %v80
  %v547 = vunpack.c.l.b16 %v81
  %v548 = vunpack.c.h.b16 %v81
  %v549 = vunpack.c.l.b16 %v82
  %v550 = vunpack.c.h.b16 %v82
  %v551 = vunpack.c.l.b16 %v83
  %v552 = vunpack.c.h.b16 %v83
  %v553 = vunpack.c.l.b16 %v84
  %v554 = vunpack.c.h.b16 %v84
  %v555 = vunpack.c.l.b16 %v85
  %v556 = vunpack.c.h.b16 %v85
  %v557 = vunpack.c.l.b16 %v86
  %v558 = vunpack.c.h.b16 %v86
  %v559 = vunpack.c.l.b16 %v87
  %v560 = vunpack.c.h.b16 %v87
  %v561 = vunpack.c.l.b16 %v88
  %v562 = vunpack.c.h.b16 %v88
  %v563 = vunpack.c.l.b16 %v89
  %v564 = vunpack.c.h.b16 %v89
  %v565 = vunpack.c.l.b16 %v90
  %v566 = vunpack.c.h.b16 %v90
  %v567 = vunpack.c.l.b16 %v91
  %v568 = vunpack.c.h.b16 %v91
  %v569 = vunpack.c.l.b16 %v92
  %v570 = vunpack.c.h.b16 %v92
  %v571 = vunpack.c.l.b16 %v93
  %v572 = vunpack.c.h.b16 %v93
  %v573 = vunpack.c.l.b16 %v94
  %v574 = vunpack.c.h.b16 %v94
  %v575 = vunpack.c.l.b16 %v95
  %v576 = vunpack.c.h.b16 %v95
  %v577 = vunpack.c.l.b16 %v96
  %v578 = vunpack.c.h.b16 %v96
  %v579 = vunpack.c.l.b16 %v97
  %v580 = vunpack.c.h.b16 %v97
  %v581 = vunpack.c.l.b16 %v98
  %v582 = vunpack.c.h.b16 %v98
  %v583 = vunpack.c.l.b16 %v99
  %v584 = vunpack.c.h.b16 %v99
  %v585 = vunpack.c.l.b16 %v100
  %v586 = vunpack.c.h.b16 %v100
  %v587 = vunpack.c.l.b16 %v101
  %v588 = vunpack.c.h.b16 %v101
  %v589 = vunpack.c.l.b16 %v102
  %v590 = vunpack.c.h.b16 %v102
  %v591 = vunpack.c.l.b16 %v103
  %v592 = vunpack.c.h.b16 %v103
  %v593 = vunpack.c.l.b16 %v104
  %v594 = vunpack.c.h.b16 %v104
  %v595 = vunpack.c.l.b16 %v105
  %v596 = vunpack.c.h.b16 %v105
  %v597 = vunpack.c.l.b16 %v106
  %v598 = vunpack.c.h.b16 %v106
  %v599 = vunpack.c.l.b16 %v107
  %v600 = vunpack.c.h.b16 %v107
  %v601 = vunpack.c.l.b16 %v108
  %v602 = vunpack.c.h.b16 %v108
  %v603 = vunpack.c.l.b16 %v109
  %v604 = vunpack.c.h.b16 %v109
  %v605 = vunpack.c.l.b16 %v110
  %v606 = vunpack.c.h.b16 %v110
  %v607 = vunpack.c.l.b16 %v111
  %v608 = vunpack.c.h.b16 %v111
  %v609 = vunpack.c.l.b16 %v112
  %v610 = vunpack.c.h.b16 %v112
  %v611 = vunpack.c.l.b16 %v113
  %v612 = vunpack.c.h.b16 %v113
  %v613 = vunpack.c.l.b16 %v114
  %v614 = vunpack.c.h.b16 %v114
  %v615 = vunpack.c.l.b16 %v115
  %v616 = vunpack.c.h.b16 %v115
  %v617 = vunpack.c.l.b16 %v116
  %v618 = vunpack.c.h.b16 %v116
  %v619 = vunpack.c.l.b16 %v117
  %v620 = vunpack.c.h.b16 %v117
  %v621 = vunpack.c.l.b16 %v118
  %v622 = vunpack.c.h.b16 %v118
  %v623 = vunpack.c.l.b16 %v119
  %v624 = vunpack.c.h.b16 %v119
  %v625 = vunpack.c.l.b16 %v120
  %v626 = vunpack.c.h.b16 %v120
  %v627 = vunpack.c.l.b16 %v121
  %v628 = vunpack.c.h.b16 %v121
  %v629 = vunpack.c.l.b16 %v122
  %v630 = vunpack.c.h.b16 %v122
  %v631 = vunpack.c.l.b16 %v123
  %v632 = vunpack.c.h.b16 %v123
  %v633 = vunpack.c.l.b16 %v124
  %v634 = vunpack.c.h.b16 %v124
  %v635 = vunpack.c.l.b16 %v125
  %v636 = vunpack.c.h.b16 %v125
  %v637 = vunpack.c.l.b16 %v126
  %v638 = vunpack.c.h.b16 %v126
  %v639 = vunpack.c.l.b16 %v127
  %v640 = vunpack.c.h.b16 %v127
  %v641 = vunpack.c.l.b16 %v128
  %v642 = vunpack.c.h.b16 %v128
  %v643 = vunpack.c.l.b16 %v129
  %v644 = vunpack.c.h.b16 %v129
  %v645 = vunpack.c.l.b16 %v130
  %v646 = vunpack.c.h.b16 %v130
  %v647 = vunpack.c.l.b16 %v131
  %v648 = vunpack.c.h.b16 %v131
  %v649 = vunpack.c.l.b16 %v132
  %v650 = vunpack.c.h.b16 %v132
  %v651 = vunpack.c.l.b16 %v133
  %v652 = vunpack.c.h.b16 %v133
  %v653 = vunpack.c.l.b16 %v134
  %v654 = vunpack.c.h.b16 %v134
  %v655 = vunpack.c.l.b16 %v135
  %v656 = vunpack.c.h.b16 %v135
  %v657 = vunpack.c.l.b16 %v136
  %v658 = vunpack.c.h.b16 %v136
  %v659 = vunpack.c.l.b16 %v137
  %v660 = vunpack.c.h.b16 %v137
  %v661 = vunpack.c.l.b16 %v138
  %v662 = vunpack.c.h.b16 %v138
  %v663 = vunpack.c.l.b16 %v139
  %v664 = vunpack.c.h.b16 %v139
  %v665 = vunpack.c.l.b16 %v140
  %v666 = vunpack.c.h.b16 %v140
  %v667 = vunpack.c.l.b16 %v141
  %v668 = vunpack.c.h.b16 %v141
  %v669 = vunpack.c.l.b16 %v142
  %v670 = vunpack.c.h.b16 %v142
  %v671 = vunpack.c.l.b16 %v143
  %v672 = vunpack.c.h.b16 %v143
  %v673 = vunpack.c.l.b16 %v144
  %v674 = vunpack.c.h.b16 %v144
  %v675 = vunpack.c.l.b16 %v145
  %v676 = vunpack.c.h.b16 %v145
  %v677 = vunpack.c.l.b16 %v146
  %v678 = vunpack.c.h.b16 %v146
  %v679 = vunpack.c.l.b16 %v147
  %v680 = vunpack.c.h.b16 %v147
  %v681 = vunpack.c.l.b16 %v148
  %v682 = vunpack.c.h.b16 %v148
  %v683 = vunpack.c.l.b16 %v149
  %v684 = vunpack.c.h.b16 %v149
  %v685 = vunpack.c.l.b16 %v150
  %v686 = vunpack.c.h.b16 %v150
  %v687 = vunpack.c.l.b16 %v151
  %v688 = vunpack.c.h.b16 %v151
  %v689 = vunpack.c.l.b16 %v152
  %v690 = vunpack.c.h.b16 %v152
  %v691 = vunpack.c.l.b16 %v153
  %v692 = vunpack.c.h.b16 %v153
  %v693 = vunpack.c.l.b16 %v154
  %v694 = vunpack.c.h.b16 %v154
  %v695 = vunpack.c.l.b16 %v155
  %v696 = vunpack.c.h.b16 %v155
  %v697 = vunpack.c.l.b16 %v156
  %v698 = vunpack.c.h.b16 %v156
  %v699 = vunpack.c.l.b16 %v157
  %v700 = vunpack.c.h.b16 %v157
  %v701 = vunpack.c.l.b16 %v158
  %v702 = vunpack.c.h.b16 %v158
  %v703 = vunpack.c.l.b16 %v159
  %v704 = vunpack.c.h.b16 %v159
  %v705 = vunpack.c.l.b16 %v160
  %v706 = vunpack.c.h.b16 %v160
  %v707 = vunpack.c.l.b16 %v161
  %v708 = vunpack.c.h.b16 %v161
  %v709 = vunpack.c.l.b16 %v162
  %v710 = vunpack.c.h.b16 %v162
  %v711 = vunpack.c.l.b16 %v163
  %v712 = vunpack.c.h.b16 %v163
  %v713 = vunpack.c.l.b16 %v164
  %v714 = vunpack.c.h.b16 %v164
  %v715 = vunpack.c.l.b16 %v165
  %v716 = vunpack.c.h.b16 %v165
  %v717 = vunpack.c.l.b16 %v166
  %v718 = vunpack.c.h.b16 %v166
  %v719 = vunpack.c.l.b16 %v167
  %v720 = vunpack.c.h.b16 %v167
  %v721 = vunpack.c.l.b16 %v168
  %v722 = vunpack.c.h.b16 %v168
  %v723 = vunpack.c.l.b16 %v169
  %v724 = vunpack.c.h.b16 %v169
  %v725 = vunpack.c.l.b16 %v170
  %v726 = vunpack.c.h.b16 %v170
  %v727 = vunpack.c.l.b16 %v171
  %v728 = vunpack.c.h.b16 %v171
  %v729 = vunpack.c.l.b16 %v172
  %v730 = vunpack.c.h.b16 %v172
  %v731 = vunpack.c.l.b16 %v173
  %v732 = vunpack.c.h.b16 %v173
  %v733 = vunpack.c.l.b16 %v174
  %v734 = vunpack.c.h.b16 %v174
  %v735 = vunpack.c.l.b16 %v175
  %v736 = vunpack.c.h.b16 %v175
  %v737 = vunpack.c.l.b16 %v176
  %v738 = vunpack.c.h.b16 %v176
  %v739 = vunpack.c.l.b16 %v177
  %v740 = vunpack.c.h.b16 %v177
  %v741 = vunpack.c.l.b16 %v178
  %v742 = vunpack.c.h.b16 %v178
  %v743 = vunpack.c.l.b16 %v179
  %v744 = vunpack.c.h.b16 %v179
  %v745 = vunpack.c.l.b16 %v180
  %v746 = vunpack.c.h.b16 %v180
  %v747 = vunpack.c.l.b16 %v181
  %v748 = vunpack.c.h.b16 %v181
  %v749 = vunpack.c.l.b16 %v182
  %v750 = vunpack.c.h.b16 %v182
  %v751 = vunpack.c.l.b16 %v183
  %v752 = vunpack.c.h.b16 %v183
  %v753 = vunpack.c.l.b16 %v184
  %v754 = vunpack.c.h.b16 %v184
  %v755 = vunpack.c.l.b16 %v185
  %v756 = vunpack.c.h.b16 %v185
  %v757 = vunpack.c.l.b16 %v186
  %v758 = vunpack.c.h.b16 %v186
  %v759 = vunpack.c.l.b16 %v187
  %v760 = vunpack.c.h.b16 %v187
  %v761 = vunpack.c.l.b16 %v188
  %v762 = vunpack.c.h.b16 %v188
  %v763 = vunpack.c.l.b16 %v189
  %v764 = vunpack.c.h.b16 %v189
  %v765 = vunpack.c.l.b16 %v190
  %v766 = vunpack.c.h.b16 %v190
  %v767 = vunpack.c.l.b16 %v191
  %v768 = vunpack.c.h.b16 %v191
  %v769 = vunpack.c.l.b16 %v192
  %v770 = vunpack.c.h.b16 %v192
  %v771 = vunpack.c.l.b16 %v193
  %v772 = vunpack.c.h.b16 %v193
  %v773 = vunpack.c.l.b16 %v194
  %v774 = vunpack.c.h.b16 %v194
  %v775 = vunpack.c.l.b16 %v195
  %v776 = vunpack.c.h.b16 %v195
  %v777 = vunpack.c.l.b16 %v196
  %v778 = vunpack.c.h.b16 %v196
  %v779 = vunpack.c.l.b16 %v197
  %v780 = vunpack.c.h.b16 %v197
  %v781 = vunpack.c.l.b16 %v198
  %v782 = vunpack.c.h.b16 %v198
  %v783 = vunpack.c.l.b16 %v199
  %v784 = vunpack.c.h.b16 %v199
  %v785 = vunpack.c.l.b16 %v200
  %v786 = vunpack.c.h.b16 %v200
  %v787 = vunpack.c.l.b16 %v201
  %v788 = vunpack.c.h.b16 %v201
  %v789 = vunpack.c.l.b16 %v202
  %v790 = vunpack.c.h.b16 %v202
  %v791 = vunpack.c.l.b16 %v203
  %v792 = vunpack.c.h.b16 %v203
  %v793 = vunpack.c.l.b16 %v204
  %v794 = vunpack.c.h.b16 %v204
  %v795 = vunpack.c.l.b16 %v205
  %v796 = vunpack.c.h.b16 %v205
  %v797 = vunpack.c.l.b16 %v206
  %v798 = vunpack.c.h.b16 %v206
  %v799 = vunpack.c.l.b16 %v207
  %v800 = vunpack.c.h.b16 %v207
  %v801 = vunpack.c.l.b16 %v208
  %v802 = vunpack.c.h.b16 %v208
  %v803 = vunpack.c.l.b16 %v209
  %v804 = vunpack.c.h.b16 %v209
  %v805 = vunpack.c.l.b16 %v210
  %v806 = vunpack.c.h.b16 %v210
  %v807 = vunpack.c.l.b16 %v211
  %v808 = vunpack.c.h.b16 %v211
  %v809 = vunpack.c.l.b16 %v212
  %v810 = vunpack.c.h.b16 %v212
  %v811 = vunpack.c.l.b16 %v213
  %v812 = vunpack.c.h.b16 %v213
  %v813 = vunpack.c.l.b16 %v214
  %v814 = vunpack.c.h.b16 %v214
  %v815 = vunpack.c.l.b16 %v215
  %v816 = vunpack.c.h.b16 %v215
  %v817 = vunpack.c.l.b16 %v216
  %v818 = vunpack.c.h.b16 %v216
  %v819 = vunpack.c.l.b16 %v217
  %v820 = vunpack.c.h.b16 %v217
  %v821 = vunpack.c.l.b16 %v218
  %v822 = vunpack.c.h.b16 %v218
  %v823 = vunpack.c.l.b16 %v219
  %v824 = vunpack.c.h.b16 %v219
  %v825 = vunpack.c.l.b16 %v220
  %v826 = vunpack.c.h.b16 %v220
  %v827 = vunpack.c.l.b16 %v221
  %v828 = vunpack.c.h.b16 %v221
  %v829 = vunpack.c.l.b16 %v222
  %v830 = vunpack.c.h.b16 %v222
  %v831 = vunpack.c.l.b16 %v223
  %v832 = vunpack.c.h.b16 %v223
  %v833 = vunpack.c.l.b16 %v224
  %v834 = vunpack.c.h.b16 %v224
  %v835 = vunpack.c.l.b16 %v225
  %v836 = vunpack.c.h.b16 %v225
  %v837 = vunpack.c.l.b16 %v226
  %v838 = vunpack.c.h.b16 %v226
  %v839 = vunpack.c.l.b16 %v227
  %v840 = vunpack.c.h.b16 %v227
  %v841 = vunpack.c.l.b16 %v228
  %v842 = vunpack.c.h.b16 %v228
  %v843 = vunpack.c.l.b16 %v229
  %v844 = vunpack.c.h.b16 %v229
  %v845 = vunpack.c.l.b16 %v230
  %v846 = vunpack.c.h.b16 %v230
  %v847 = vunpack.c.l.b16 %v231
  %v848 = vunpack.c.h.b16 %v231
  %v849 = vunpack.c.l.b16 %v232
  %v850 = vunpack.c.h.b16 %v232
  %v851 = vpack.c.b16 %v475, %v467
  %v852 = vpack.c.b16 %v476, %v468
  %v853 = vpack.c.b16 %v477, %v469
  %v854 = vpack.c.b16 %v478, %v470
  %v855 = vpack.c.b16 %v479, %v471
  %v856 = vpack.c.b16 %v480, %v472
  %v857 = vpack.c.b16 %v481, %v473
  %v858 = vpack.c.b16 %v482, %v474
  %v859 = vpack.c.b16 %v491, %v483
  %v860 = vpack.c.b16 %v492, %v484
  %v861 = vpack.c.b16 %v493, %v485
  %v862 = vpack.c.b16 %v494, %v486
  %v863 = vpack.c.b16 %v495, %v487
  %v864 = vpack.c.b16 %v496, %v488
  %v865 = vpack.c.b16 %v497, %v489
  %v866 = vpack.c.b16 %v498, %v490
  %v867 = vpack.c.b16 %v507, %v499
  %v868 = vpack.c.b16 %v508, %v500
  %v869 = vpack.c.b16 %v509, %v501
  %v870 = vpack.c.b16 %v510, %v502
  %v871 = vpack.c.b16 %v511, %v503
  %v872 = vpack.c.b16 %v512, %v504
  %v873 = vpack.c.b16 %v513, %v505
  %v874 = vpack.c.b16 %v514, %v506
  %v875 = vpack.c.b16 %v523, %v515
  %v876 = vpack.c.b16 %v524, %v516
  %v877 = vpack.c.b16 %v525, %v517
  %v878 = vpack.c.b16 %v526, %v518
  %v879 = vpack.c.b16 %v527, %v519
  %v880 = vpack.c.b16 %v528, %v520
  %v881 = vpack.c.b16 %v529, %v521
  %v882 = vpack.c.b16 %v530, %v522
  %v883 = vpack.c.b16 %v539, %v531
  %v884 = vpack.c.b16 %v540, %v532
  %v885 = vpack.c.b16 %v541, %v533
  %v886 = vpack.c.b16 %v542, %v534
  %v887 = vpack.c.b16 %v543, %v535
  %v888 = vpack.c.b16 %v544, %v536
  %v889 = vpack.c.b16 %v545, %v537
  %v890 = vpack.c.b16 %v546, %v538
  %v891 = vpack.c.b16 %v555, %v547
  %v892 = vpack.c.b16 %v556, %v548
  %v893 = vpack.c.b16 %v557, %v549
  %v894 = vpack.c.b16 %v558, %v550
  %v895 = vpack.c.b16 %v559, %v551
  %v896 = vpack.c.b16 %v560, %v552
  %v897 = vpack.c.b16 %v561, %v553
  %v898 = vpack.c.b16 %v562, %v554
  %v899 = vpack.c.b16 %v571, %v563
  %v900 = vpack.c.b16 %v572, %v564
  %v901 = vpack.c.b16 %v573, %v565
  %v902 = vpack.c.b16 %v574, %v566
  %v903 = vpack.c.b16 %v575, %v567
  %v904 = vpack.c.b16 %v576, %v568
  %v905 = vpack.c.b16 %v577, %v569
  %v906 = vpack.c.b16 %v578, %v570
  %v907 = vpack.c.b16 %v587, %v579
  %v908 = vpack.c.b16 %v588, %v580
  %v909 = vpack.c.b16 %v589, %v581
  %v910 = vpack.c.b16 %v590, %v582
  %v911 = vpack.c.b16 %v591, %v583
  %v912 = vpack.c.b16 %v592, %v584
  %v913 = vpack.c.b16 %v593, %v585
  %v914 = vpack.c.b16 %v594, %v586
  %v915 = vpack.c.b16 %v603, %v595
  %v916 = vpack.c.b16 %v604, %v596
  %v917 = vpack.c.b16 %v605, %v597
  %v918 = vpack.c.b16 %v606, %v598
  %v919 = vpack.c.b16 %v607, %v599
  %v920 = vpack.c.b16 %v608, %v600
  %v921 = vpack.c.b16 %v609, %v601
  %v922 = vpack.c.b16 %v610, %v602
  %v923 = vpack.c.b16 %v619, %v611
  %v924 = vpack.c.b16 %v620, %v612
  %v925 = vpack.c.b16 %v621, %v613
  %v926 = vpack.c.b16 %v622, %v614
  %v927 = vpack.c.b16 %v623, %v615
  %v928 = vpack.c.b16 %v624, %v616
  %v929 = vpack.c.b16 %v625, %v617
  %v930 = vpack.c.b16 %v626, %v618
  %v931 = vpack.c.b16 %v635, %v627
  %v932 = vpack.c.b16 %v636, %v628
  %v933 = vpack.c.b16 %v637, %v629
  %v934 = vpack.c.b16 %v638, %v630
  %v935 = vpack.c.b16 %v639, %v631
  %v936 = vpack.c.b16 %v640, %v632
  %v937 = vpack.c.b16 %v641, %v633
  %v938 = vpack.c.b16 %v642, %v634
  %v939 = vpack.c.b16 %v651, %v643
  %v940 = vpack.c.b16 %v652, %v644
  %v941 = vpack.c.b16 %v653, %v645
  %v942 = vpack.c.b16 %v654, %v646
  %v943 = vpack.c.b16 %v655, %v647
  %v944 = vpack.c.b16 %v656, %v648
  %v945 = vpack.c.b16 %v657, %v649
  %v946 = vpack.c.b16 %v658, %v650
  %v947 = vpack.c.b16 %v667, %v659
  %v948 = vpack.c.b16 %v668, %v660
  %v949 = vpack.c.b16 %v669, %v661
  %v950 = vpack.c.b16 %v670, %v662
  %v951 = vpack.c.b16 %v671, %v663
  %v952 = vpack.c.b16 %v672, %v664
  %v953 = vpack.c.b16 %v673, %v665
  %v954 = vpack.c.b16 %v674, %v666
  %v955 = vpack.c.b16 %v683, %v675
  %v956 = vpack.c.b16 %v684, %v676
  %v957 = vpack.c.b16 %v685, %v677
  %v958 = vpack.c.b16 %v686, %v678
  %v959 = vpack.c.b16 %v687, %v679
  %v960 = vpack.c.b16 %v688, %v680
  %v961 = vpack.c.b16 %v689, %v681
  %v962 = vpack.c.b16 %v690, %v682
  %v963 = vpack.c.b16 %v699, %v691
  %v964 = vpack.c.b16 %v700, %v692
  %v965 = vpack.c.b16 %v701, %v693
  %v966 = vpack.c.b16 %v702, %v694
  %v967 = vpack.c.b16 %v703, %v695
  %v968 = vpack.c.b16 %v704, %v696
  %v969 = vpack.c.b16 %v705, %v697
  %v970 = vpack.c.b16 %v706, %v698
  %v971 = vpack.c.b16 %v715, %v707
  %v972 = vpack.c.b16 %v716, %v708
  %v973 = vpack.c.b16 %v717, %v709
  %v974 = vpack.c.b16 %v718, %v710
  %v975 = vpack.c.b16 %v719, %v711
  %v976 = vpack.c.b16 %v720, %v712
  %v977 = vpack.c.b16 %v721, %v713
  %v978 = vpack.c.b16 %v722, %v714
  %v979 = vpack.c.b16 %v731, %v723
  %v980 = vpack.c.b16 %v732, %v724
  %v981 = vpack.c.b16 %v733, %v725
  %v982 = vpack.c.b16 %v734, %v726
  %v983 = vpack.c.b16 %v735, %v727
  %v984 = vpack.c.b16 %v736, %v728
  %v985 = vpack.c.b16 %v737, %v729
  %v986 = vpack.c.b16 %v738, %v730
  %v987 = vpack.c.b16 %v747, %v739
  %v988 = vpack.c.b16 %v748, %v740
  %v989 = vpack.c.b16 %v749, %v741
  %v990 = vpack.c.b16 %v750, %v742
  %v991 = vpack.c.b16 %v751, %v743
  %v992 = vpack.c.b16 %v752, %v744
  %v993 = vpack.c.b16 %v753, %v745
  %v994 = vpack.c.b16 %v754, %v746
  %v995 = vpack.c.b16 %v763, %v755
  %v996 = vpack.c.b16 %v764, %v756
  %v997 = vpack.c.b16 %v765, %v757
  %v998 = vpack.c.b16 %v766, %v758
  %v999 = vpack.c.b16 %v767, %v759
  %v1000 = vpack.c.b16 %v768, %v760
  %v1001 = vpack.c.b16 %v769, %v761
  %v1002 = vpack.c.b16 %v770, %v762
  %v1003 = vpack.c.b16 %v779, %v771
  %v1004 = vpack.c.b16 %v780, %v772
  %v1005 = vpack.c.b16 %v781, %v773
  %v1006 = vpack.c.b16 %v782, %v774
  %v1007 = vpack.c.b16 %v783, %v775
  %v1008 = vpack.c.b16 %v784, %v776
  %v1009 = vpack.c.b16 %v785, %v777
  %v1010 = vpack.c.b16 %v786, %v778
  %v1011 = vpack.c.b16 %v795, %v787
  %v1012 = vpack.c.b16 %v796, %v788
  %v1013 = vpack.c.b16 %v797, %v789
  %v1014 = vpack.c.b16 %v798, %v790
  %v1015 = vpack.c.b16 %v799, %v791
  %v1016 = vpack.c.b16 %v800, %v792
  %v1017 = vpack.c.b16 %v801, %v793
  %v1018 = vpack.c.b16 %v802, %v794
  %v1019 = vpack.c.b16 %v811, %v803
  %v1020 = vpack.c.b16 %v812, %v804
  %v1021 = vpack.c.b16 %v813, %v805
  %v1022 = vpack.c.b16 %v814, %v806
  %v1023 = vpack.c.b16 %v815, %v807
  %v1024 = vpack.c.b16 %v816, %v808
  %v1025 = vpack.c.b16 %v817, %v809
  %v1026 = vpack.c.b16 %v818, %v810
  %v1027 = vpack.c.b16 %v827, %v819
  %v1028 = vpack.c.b16 %v828, %v820
  %v1029 = vpack.c.b16 %v829, %v821
  %v1030 = vpack.c.b16 %v830, %v822
  %v1031 = vpack.c.b16 %v831, %v823
  %v1032 = vpack.c.b16 %v832, %v824
  %v1033 = vpack.c.b16 %v833, %v825
  %v1034 = vpack.c.b16 %v834, %v826
  %v1035 = vpack.c.b16 %v843, %v835
  %v1036 = vpack.c.b16 %v844, %v836
  %v1037 = vpack.c.b16 %v845, %v837
  %v1038 = vpack.c.b16 %v846, %v838
  %v1039 = vpack.c.b16 %v847, %v839
  %v1040 = vpack.c.b16 %v848, %v840
  %v1041 = vpack.c.b16 %v849, %v841
  %v1042 = vpack.c.b16 %v850, %v842
  %1235 = vmatprep.subr.bf16.mxu0 %v852
  %1236 = vmatpush1.bf16.msra.mxu0 %v851
  %1237 = vmatprep.subr.bf16.mxu0 %v860
  %1238 = vmatpush1.bf16.msra.mxu0 %v859
  %1239 = vmatprep.subr.bf16.mxu0 %v868
  %1240 = vmatpush1.bf16.msra.mxu0 %v867
  %1241 = vmatprep.subr.bf16.mxu0 %v876
  %1242 = vmatpush1.bf16.msra.mxu0 %v875
  %1243 = vmatprep.subr.bf16.mxu0 %v884
  %1244 = vmatpush1.bf16.msra.mxu0 %v883
  %1245 = vmatprep.subr.bf16.mxu0 %v892
  %1246 = vmatpush1.bf16.msra.mxu0 %v891
  %1247 = vmatprep.subr.bf16.mxu0 %v900
  %1248 = vmatpush1.bf16.msra.mxu0 %v899
  %1249 = vmatprep.subr.bf16.mxu0 %v908
  %1250 = vmatpush1.bf16.msra.mxu0 %v907
  %1251 = vmatprep.subr.bf16.mxu0 %v916
  %1252 = vmatpush1.bf16.msra.mxu0 %v915
  %1253 = vmatprep.subr.bf16.mxu0 %v924
  %1254 = vmatpush1.bf16.msra.mxu0 %v923
  %1255 = vmatprep.subr.bf16.mxu0 %v932
  %1256 = vmatpush1.bf16.msra.mxu0 %v931
  %1257 = vmatprep.subr.bf16.mxu0 %v940
  %1258 = vmatpush1.bf16.msra.mxu0 %v939
  %1259 = vmatprep.subr.bf16.mxu0 %v948
  %1260 = vmatpush1.bf16.msra.mxu0 %v947
  %1261 = vmatprep.subr.bf16.mxu0 %v956
  %1262 = vmatpush1.bf16.msra.mxu0 %v955
  %1263 = vmatprep.subr.bf16.mxu0 %v964
  %1264 = vmatpush1.bf16.msra.mxu0 %v963
  %1265 = vmatprep.subr.bf16.mxu0 %v972
  %1266 = vmatpush1.bf16.msra.mxu0 %v971
  %1267 = vmatprep.mubr.bf16.mxu0 %v39
  %1268 = vmatmul.mubr.bf16.gmra.mrb[0].mxu0 %v38
  %v1269 = vpop.f32.mrb[0].mxu0
  %v1270 = vadd.f32 %v238, %v1269
  %v1271 = vpop.f32.mrb[0].mxu0
  %v1272 = vadd.f32 %v242, %v1271
  %v1273 = vpop.f32.mrb[0].mxu0
  %v1274 = vpop.f32.mrb[0].mxu0
  %1275 = vdwg.mxu0
  %1276 = vmatprep.subr.bf16.mxu0 %v980
  %1277 = vmatpush1.bf16.msra.mxu0 %v979
  %1278 = vmatprep.subr.bf16.mxu0 %v988
  %1279 = vmatpush1.bf16.msra.mxu0 %v987
  %1280 = vmatprep.subr.bf16.mxu0 %v996
  %1281 = vmatpush1.bf16.msra.mxu0 %v995
  %1282 = vmatprep.subr.bf16.mxu0 %v1004
  %1283 = vmatpush1.bf16.msra.mxu0 %v1003
  %1284 = vmatprep.subr.bf16.mxu0 %v1012
  %1285 = vmatpush1.bf16.msra.mxu0 %v1011
  %1286 = vmatprep.subr.bf16.mxu0 %v1020
  %1287 = vmatpush1.bf16.msra.mxu0 %v1019
  %1288 = vmatprep.subr.bf16.mxu0 %v1028
  %1289 = vmatpush1.bf16.msra.mxu0 %v1027
  %1290 = vmatprep.subr.bf16.mxu0 %v1036
  %1291 = vmatpush1.bf16.msra.mxu0 %v1035
  %1292 = vmatprep.subr.bf16.mxu0 0
  %1293 = vmatpush1.bf16.msra.mxu0 0
  %1294 = vmatprep.subr.bf16.mxu0 0
  %1295 = vmatpush1.bf16.msra.mxu0 0
  %1296 = vmatprep.subr.bf16.mxu0 0
  %1297 = vmatpush1.bf16.msra.mxu0 0
  %1298 = vmatprep.subr.bf16.mxu0 0
  %1299 = vmatpush1.bf16.msra.mxu0 0
  %1300 = vmatprep.subr.bf16.mxu0 0
  %1301 = vmatpush1.bf16.msra.mxu0 0
  %1302 = vmatprep.subr.bf16.mxu0 0
  %1303 = vmatpush1.bf16.msra.mxu0 0
  %1304 = vmatprep.subr.bf16.mxu0 0
  %1305 = vmatpush1.bf16.msra.mxu0 0
  %1306 = vmatprep.subr.bf16.mxu0 0
  %1307 = vmatpush1.bf16.msra.mxu0 0
  %1308 = vmatprep.mubr.bf16.mxu0 0
  %1309 = vmatmul.mubr.bf16.gmra.mrb[0].mxu0 %v40
  %v1310 = vpop.f32.mrb[0].mxu0
  %v1311 = vadd.f32 %v1270, %v1310
  %v1312 = vpop.f32.mrb[0].mxu0
  %v1313 = vadd.f32 %v1272, %v1312
  %v1314 = vpop.f32.mrb[0].mxu0
  %v1315 = vpop.f32.mrb[0].mxu0
  %1316 = vdwg.mxu0
  %1317 = vmatprep.subr.bf16.mxu0 %v854
  %1318 = vmatpush1.bf16.msra.mxu0 %v853
  %1319 = vmatprep.subr.bf16.mxu0 %v862
  %1320 = vmatpush1.bf16.msra.mxu0 %v861
  %1321 = vmatprep.subr.bf16.mxu0 %v870
  %1322 = vmatpush1.bf16.msra.mxu0 %v869
  %1323 = vmatprep.subr.bf16.mxu0 %v878
  %1324 = vmatpush1.bf16.msra.mxu0 %v877
  %1325 = vmatprep.subr.bf16.mxu0 %v886
  %1326 = vmatpush1.bf16.msra.mxu0 %v885
  %1327 = vmatprep.subr.bf16.mxu0 %v894
  %1328 = vmatpush1.bf16.msra.mxu0 %v893
  %1329 = vmatprep.subr.bf16.mxu0 %v902
  %1330 = vmatpush1.bf16.msra.mxu0 %v901
  %1331 = vmatprep.subr.bf16.mxu0 %v910
  %1332 = vmatpush1.bf16.msra.mxu0 %v909
  %1333 = vmatprep.subr.bf16.mxu0 %v918
  %1334 = vmatpush1.bf16.msra.mxu0 %v917
  %1335 = vmatprep.subr.bf16.mxu0 %v926
  %1336 = vmatpush1.bf16.msra.mxu0 %v925
  %1337 = vmatprep.subr.bf16.mxu0 %v934
  %1338 = vmatpush1.bf16.msra.mxu0 %v933
  %1339 = vmatprep.subr.bf16.mxu0 %v942
  %1340 = vmatpush1.bf16.msra.mxu0 %v941
  %1341 = vmatprep.subr.bf16.mxu0 %v950
  %1342 = vmatpush1.bf16.msra.mxu0 %v949
  %1343 = vmatprep.subr.bf16.mxu0 %v958
  %1344 = vmatpush1.bf16.msra.mxu0 %v957
  %1345 = vmatprep.subr.bf16.mxu0 %v966
  %1346 = vmatpush1.bf16.msra.mxu0 %v965
  %1347 = vmatprep.subr.bf16.mxu0 %v974
  %1348 = vmatpush1.bf16.msra.mxu0 %v973
  %1349 = vmatprep.mubr.bf16.mxu0 %v39
  %1350 = vmatmul.mubr.bf16.gmra.mrb[0].mxu0 %v38
  %v1351 = vpop.f32.mrb[0].mxu0
  %v1352 = vadd.f32 %v246, %v1351
  %v1353 = vpop.f32.mrb[0].mxu0
  %v1354 = vadd.f32 %v250, %v1353
  %v1355 = vpop.f32.mrb[0].mxu0
  %v1356 = vpop.f32.mrb[0].mxu0
  %1357 = vdwg.mxu0
  %1358 = vmatprep.subr.bf16.mxu0 %v982
  %1359 = vmatpush1.bf16.msra.mxu0 %v981
  %1360 = vmatprep.subr.bf16.mxu0 %v990
  %1361 = vmatpush1.bf16.msra.mxu0 %v989
  %1362 = vmatprep.subr.bf16.mxu0 %v998
  %1363 = vmatpush1.bf16.msra.mxu0 %v997
  %1364 = vmatprep.subr.bf16.mxu0 %v1006
  %1365 = vmatpush1.bf16.msra.mxu0 %v1005
  %1366 = vmatprep.subr.bf16.mxu0 %v1014
  %1367 = vmatpush1.bf16.msra.mxu0 %v1013
  %1368 = vmatprep.subr.bf16.mxu0 %v1022
  %1369 = vmatpush1.bf16.msra.mxu0 %v1021
  %1370 = vmatprep.subr.bf16.mxu0 %v1030
  %1371 = vmatpush1.bf16.msra.mxu0 %v1029
  %1372 = vmatprep.subr.bf16.mxu0 %v1038
  %1373 = vmatpush1.bf16.msra.mxu0 %v1037
  %1374 = vmatprep.subr.bf16.mxu0 0
  %1375 = vmatpush1.bf16.msra.mxu0 0
  %1376 = vmatprep.subr.bf16.mxu0 0
  %1377 = vmatpush1.bf16.msra.mxu0 0
  %1378 = vmatprep.subr.bf16.mxu0 0
  %1379 = vmatpush1.bf16.msra.mxu0 0
  %1380 = vmatprep.subr.bf16.mxu0 0
  %1381 = vmatpush1.bf16.msra.mxu0 0
  %1382 = vmatprep.subr.bf16.mxu0 0
  %1383 = vmatpush1.bf16.msra.mxu0 0
  %1384 = vmatprep.subr.bf16.mxu0 0
  %1385 = vmatpush1.bf16.msra.mxu0 0
  %1386 = vmatprep.subr.bf16.mxu0 0
  %1387 = vmatpush1.bf16.msra.mxu0 0
  %1388 = vmatprep.subr.bf16.mxu0 0
  %1389 = vmatpush1.bf16.msra.mxu0 0
  %1390 = vmatprep.mubr.bf16.mxu0 0
  %1391 = vmatmul.mubr.bf16.gmra.mrb[0].mxu0 %v40
  %v1392 = vpop.f32.mrb[0].mxu0
  %v1393 = vadd.f32 %v1352, %v1392
  %v1394 = vpop.f32.mrb[0].mxu0
  %v1395 = vadd.f32 %v1354, %v1394
  %v1396 = vpop.f32.mrb[0].mxu0
  %v1397 = vpop.f32.mrb[0].mxu0
  %1398 = vdwg.mxu0
  %1399 = vmatprep.subr.bf16.mxu0 %v856
  %1400 = vmatpush1.bf16.msra.mxu0 %v855
  %1401 = vmatprep.subr.bf16.mxu0 %v864
  %1402 = vmatpush1.bf16.msra.mxu0 %v863
  %1403 = vmatprep.subr.bf16.mxu0 %v872
  %1404 = vmatpush1.bf16.msra.mxu0 %v871
  %1405 = vmatprep.subr.bf16.mxu0 %v880
  %1406 = vmatpush1.bf16.msra.mxu0 %v879
  %1407 = vmatprep.subr.bf16.mxu0 %v888
  %1408 = vmatpush1.bf16.msra.mxu0 %v887
  %1409 = vmatprep.subr.bf16.mxu0 %v896
  %1410 = vmatpush1.bf16.msra.mxu0 %v895
  %1411 = vmatprep.subr.bf16.mxu0 %v904
  %1412 = vmatpush1.bf16.msra.mxu0 %v903
  %1413 = vmatprep.subr.bf16.mxu0 %v912
  %1414 = vmatpush1.bf16.msra.mxu0 %v911
  %1415 = vmatprep.subr.bf16.mxu0 %v920
  %1416 = vmatpush1.bf16.msra.mxu0 %v919
  %1417 = vmatprep.subr.bf16.mxu0 %v928
  %1418 = vmatpush1.bf16.msra.mxu0 %v927
  %1419 = vmatprep.subr.bf16.mxu0 %v936
  %1420 = vmatpush1.bf16.msra.mxu0 %v935
  %1421 = vmatprep.subr.bf16.mxu0 %v944
  %1422 = vmatpush1.bf16.msra.mxu0 %v943
  %1423 = vmatprep.subr.bf16.mxu0 %v952
  %1424 = vmatpush1.bf16.msra.mxu0 %v951
  %1425 = vmatprep.subr.bf16.mxu0 %v960
  %1426 = vmatpush1.bf16.msra.mxu0 %v959
  %1427 = vmatprep.subr.bf16.mxu0 %v968
  %1428 = vmatpush1.bf16.msra.mxu0 %v967
  %1429 = vmatprep.subr.bf16.mxu0 %v976
  %1430 = vmatpush1.bf16.msra.mxu0 %v975
  %1431 = vmatprep.mubr.bf16.mxu0 %v39
  %1432 = vmatmul.mubr.bf16.gmra.mrb[0].mxu0 %v38
  %v1433 = vpop.f32.mrb[0].mxu0
  %v1434 = vadd.f32 %v254, %v1433
  %v1435 = vpop.f32.mrb[0].mxu0
  %v1436 = vadd.f32 %v258, %v1435
  %v1437 = vpop.f32.mrb[0].mxu0
  %v1438 = vpop.f32.mrb[0].mxu0
  %1439 = vdwg.mxu0
  %1440 = vmatprep.subr.bf16.mxu0 %v984
  %1441 = vmatpush1.bf16.msra.mxu0 %v983
  %1442 = vmatprep.subr.bf16.mxu0 %v992
  %1443 = vmatpush1.bf16.msra.mxu0 %v991
  %1444 = vmatprep.subr.bf16.mxu0 %v1000
  %1445 = vmatpush1.bf16.msra.mxu0 %v999
  %1446 = vmatprep.subr.bf16.mxu0 %v1008
  %1447 = vmatpush1.bf16.msra.mxu0 %v1007
  %1448 = vmatprep.subr.bf16.mxu0 %v1016
  %1449 = vmatpush1.bf16.msra.mxu0 %v1015
  %1450 = vmatprep.subr.bf16.mxu0 %v1024
  %1451 = vmatpush1.bf16.msra.mxu0 %v1023
  %1452 = vmatprep.subr.bf16.mxu0 %v1032
  %1453 = vmatpush1.bf16.msra.mxu0 %v1031
  %1454 = vmatprep.subr.bf16.mxu0 %v1040
  %1455 = vmatpush1.bf16.msra.mxu0 %v1039
  %1456 = vmatprep.subr.bf16.mxu0 0
  %1457 = vmatpush1.bf16.msra.mxu0 0
  %1458 = vmatprep.subr.bf16.mxu0 0
  %1459 = vmatpush1.bf16.msra.mxu0 0
  %1460 = vmatprep.subr.bf16.mxu0 0
  %1461 = vmatpush1.bf16.msra.mxu0 0
  %1462 = vmatprep.subr.bf16.mxu0 0
  %1463 = vmatpush1.bf16.msra.mxu0 0
  %1464 = vmatprep.subr.bf16.mxu0 0
  %1465 = vmatpush1.bf16.msra.mxu0 0
  %1466 = vmatprep.subr.bf16.mxu0 0
  %1467 = vmatpush1.bf16.msra.mxu0 0
  %1468 = vmatprep.subr.bf16.mxu0 0
  %1469 = vmatpush1.bf16.msra.mxu0 0
  %1470 = vmatprep.subr.bf16.mxu0 0
  %1471 = vmatpush1.bf16.msra.mxu0 0
  %1472 = vmatprep.mubr.bf16.mxu0 0
  %1473 = vmatmul.mubr.bf16.gmra.mrb[0].mxu0 %v40
  %v1474 = vpop.f32.mrb[0].mxu0
  %v1475 = vadd.f32 %v1434, %v1474
  %v1476 = vpop.f32.mrb[0].mxu0
  %v1477 = vadd.f32 %v1436, %v1476
  %v1478 = vpop.f32.mrb[0].mxu0
  %v1479 = vpop.f32.mrb[0].mxu0
  %1480 = vdwg.mxu0
  %1481 = vmatprep.subr.bf16.mxu0 %v858
  %1482 = vmatpush1.bf16.msra.mxu0 %v857
  %1483 = vmatprep.subr.bf16.mxu0 %v866
  %1484 = vmatpush1.bf16.msra.mxu0 %v865
  %1485 = vmatprep.subr.bf16.mxu0 %v874
  %1486 = vmatpush1.bf16.msra.mxu0 %v873
  %1487 = vmatprep.subr.bf16.mxu0 %v882
  %1488 = vmatpush1.bf16.msra.mxu0 %v881
  %1489 = vmatprep.subr.bf16.mxu0 %v890
  %1490 = vmatpush1.bf16.msra.mxu0 %v889
  %1491 = vmatprep.subr.bf16.mxu0 %v898
  %1492 = vmatpush1.bf16.msra.mxu0 %v897
  %1493 = vmatprep.subr.bf16.mxu0 %v906
  %1494 = vmatpush1.bf16.msra.mxu0 %v905
  %1495 = vmatprep.subr.bf16.mxu0 %v914
  %1496 = vmatpush1.bf16.msra.mxu0 %v913
  %1497 = vmatprep.subr.bf16.mxu0 %v922
  %1498 = vmatpush1.bf16.msra.mxu0 %v921
  %1499 = vmatprep.subr.bf16.mxu0 %v930
  %1500 = vmatpush1.bf16.msra.mxu0 %v929
  %1501 = vmatprep.subr.bf16.mxu0 %v938
  %1502 = vmatpush1.bf16.msra.mxu0 %v937
  %1503 = vmatprep.subr.bf16.mxu0 %v946
  %1504 = vmatpush1.bf16.msra.mxu0 %v945
  %1505 = vmatprep.subr.bf16.mxu0 %v954
  %1506 = vmatpush1.bf16.msra.mxu0 %v953
  %1507 = vmatprep.subr.bf16.mxu0 %v962
  %1508 = vmatpush1.bf16.msra.mxu0 %v961
  %1509 = vmatprep.subr.bf16.mxu0 %v970
  %1510 = vmatpush1.bf16.msra.mxu0 %v969
  %1511 = vmatprep.subr.bf16.mxu0 %v978
  %1512 = vmatpush1.bf16.msra.mxu0 %v977
  %1513 = vmatprep.mubr.bf16.mxu0 %v39
  %1514 = vmatmul.mubr.bf16.gmra.mrb[0].mxu0 %v38
  %v1515 = vpop.f32.mrb[0].mxu0
  %v1516 = vadd.f32 %v262, %v1515
  %v1517 = vpop.f32.mrb[0].mxu0
  %v1518 = vadd.f32 %v266, %v1517
  %v1519 = vpop.f32.mrb[0].mxu0
  %v1520 = vpop.f32.mrb[0].mxu0
  %1521 = vdwg.mxu0
  %1522 = vmatprep.subr.bf16.mxu0 %v986
  %1523 = vmatpush1.bf16.msra.mxu0 %v985
  %1524 = vmatprep.subr.bf16.mxu0 %v994
  %1525 = vmatpush1.bf16.msra.mxu0 %v993
  %1526 = vmatprep.subr.bf16.mxu0 %v1002
  %1527 = vmatpush1.bf16.msra.mxu0 %v1001
  %1528 = vmatprep.subr.bf16.mxu0 %v1010
  %1529 = vmatpush1.bf16.msra.mxu0 %v1009
  %1530 = vmatprep.subr.bf16.mxu0 %v1018
  %1531 = vmatpush1.bf16.msra.mxu0 %v1017
  %1532 = vmatprep.subr.bf16.mxu0 %v1026
  %1533 = vmatpush1.bf16.msra.mxu0 %v1025
  %1534 = vmatprep.subr.bf16.mxu0 %v1034
  %1535 = vmatpush1.bf16.msra.mxu0 %v1033
  %1536 = vmatprep.subr.bf16.mxu0 %v1042
  %1537 = vmatpush1.bf16.msra.mxu0 %v1041
  %1538 = vmatprep.subr.bf16.mxu0 0
  %1539 = vmatpush1.bf16.msra.mxu0 0
  %1540 = vmatprep.subr.bf16.mxu0 0
  %1541 = vmatpush1.bf16.msra.mxu0 0
  %1542 = vmatprep.subr.bf16.mxu0 0
  %1543 = vmatpush1.bf16.msra.mxu0 0
  %1544 = vmatprep.subr.bf16.mxu0 0
  %1545 = vmatpush1.bf16.msra.mxu0 0
  %1546 = vmatprep.subr.bf16.mxu0 0
  %1547 = vmatpush1.bf16.msra.mxu0 0
  %1548 = vmatprep.subr.bf16.mxu0 0
  %1549 = vmatpush1.bf16.msra.mxu0 0
  %1550 = vmatprep.subr.bf16.mxu0 0
  %1551 = vmatpush1.bf16.msra.mxu0 0
  %1552 = vmatprep.subr.bf16.mxu0 0
  %1553 = vmatpush1.bf16.msra.mxu0 0
  %1554 = vmatprep.mubr.bf16.mxu0 0
  %1555 = vmatmul.mubr.bf16.gmra.mrb[0].mxu0 %v40
  %v1556 = vpop.f32.mrb[0].mxu0
  %v1557 = vadd.f32 %v1516, %v1556
  %v1558 = vpop.f32.mrb[0].mxu0
  %v1559 = vadd.f32 %v1518, %v1558
  %v1560 = vpop.f32.mrb[0].mxu0
  %v1561 = vpop.f32.mrb[0].mxu0
  %1562 = vdwg.mxu0
  %v1563 = vmax.f32 %v1311, 0.0
  %v1564 = vmax.f32 %v1313, 0.0
  %v1565 = vmax.f32 %v1393, 0.0
  %v1566 = vmax.f32 %v1395, 0.0
  %v1567 = vmax.f32 %v1475, 0.0
  %v1568 = vmax.f32 %v1477, 0.0
  %v1569 = vmax.f32 %v1557, 0.0
  %v1570 = vmax.f32 %v1559, 0.0
  %v1571 = vpack.c.bf16 %v1563, %v1563
  %v1572 = vpack.c.bf16 %v1564, %v1564
  %v1573 = vpack.c.bf16 %v1565, %v1565
  %v1574 = vpack.c.bf16 %v1566, %v1566
  %v1575 = vpack.c.bf16 %v1567, %v1567
  %v1576 = vpack.c.bf16 %v1568, %v1568
  %v1577 = vpack.c.bf16 %v1569, %v1569
  %v1578 = vpack.c.bf16 %v1570, %v1570
  %v1579 = vld [vmem:[%s3] sm:$0xf]
  %v1580 = vld [vmem:[%s3 + $0x4] sm:$0xf]
  %v1581 = vld [vmem:[%s3 + $0x8] sm:$0xf]
  %v1582 = vld [vmem:[%s3 + $0xc] sm:$0xf]
  %v1583 = vld [vmem:[%s3 + $0x10] sm:$0xf]
  %v1584 = vld [vmem:[%s3 + $0x14] sm:$0xf]
  %v1585 = vld [vmem:[%s3 + $0x18] sm:$0xf]
  %v1586 = vld [vmem:[%s3 + $0x1c] sm:$0xf]
  %v1587 = vld [vmem:[%s3 + $0x20] sm:$0xf]
  %v1588 = vld [vmem:[%s3 + $0x24] sm:$0xf]
  %v1589 = vld [vmem:[%s3 + $0x28] sm:$0xf]
  %v1590 = vld [vmem:[%s3 + $0x2c] sm:$0xf]
  %v1591 = vld [vmem:[%s3 + $0x30] sm:$0xf]
  %v1592 = vld [vmem:[%s3 + $0x34] sm:$0xf]
  %v1593 = vld [vmem:[%s3 + $0x38] sm:$0xf]
  %v1594 = vld [vmem:[%s3 + $0x3c] sm:$0xf]
  %v1595 = vld [vmem:[%s3 + $0x40] sm:$0xf]
  %v1596 = vld [vmem:[%s3 + $0x44] sm:$0xf]
  %v1597 = vld [vmem:[%s3 + $0x48] sm:$0xf]
  %v1598 = vld [vmem:[%s3 + $0x4c] sm:$0xf]
  %v1599 = vld [vmem:[%s3 + $0x50] sm:$0xf]
  %v1600 = vld [vmem:[%s3 + $0x54] sm:$0xf]
  %v1601 = vld [vmem:[%s3 + $0x58] sm:$0xf]
  %v1602 = vld [vmem:[%s3 + $0x5c] sm:$0xf]
  %v1603 = vld [vmem:[%s3 + $0x60] sm:$0xf]
  %v1604 = vld [vmem:[%s3 + $0x64] sm:$0xf]
  %v1605 = vld [vmem:[%s3 + $0x68] sm:$0xf]
  %v1606 = vld [vmem:[%s3 + $0x6c] sm:$0xf]
  %v1607 = vld [vmem:[%s3 + $0x70] sm:$0xf]
  %v1608 = vld [vmem:[%s3 + $0x74] sm:$0xf]
  %v1609 = vld [vmem:[%s3 + $0x78] sm:$0xf]
  %v1610 = vld [vmem:[%s3 + $0x7c] sm:$0xf]
  %v1611 = vld [vmem:[%s3 + $0x80] sm:$0xf]
  %v1612 = vld [vmem:[%s3 + $0x84] sm:$0xf]
  %v1613 = vld [vmem:[%s3 + $0x88] sm:$0xf]
  %v1614 = vld [vmem:[%s3 + $0x8c] sm:$0xf]
  %v1615 = vld [vmem:[%s3 + $0x90] sm:$0xf]
  %v1616 = vld [vmem:[%s3 + $0x94] sm:$0xf]
  %v1617 = vld [vmem:[%s3 + $0x98] sm:$0xf]
  %v1618 = vld [vmem:[%s3 + $0x9c] sm:$0xf]
  %v1619 = vld [vmem:[%s3 + $0xa0] sm:$0xf]
  %v1620 = vld [vmem:[%s3 + $0xa4] sm:$0xf]
  %v1621 = vld [vmem:[%s3 + $0xa8] sm:$0xf]
  %v1622 = vld [vmem:[%s3 + $0xac] sm:$0xf]
  %v1623 = vld [vmem:[%s3 + $0xb0] sm:$0xf]
  %v1624 = vld [vmem:[%s3 + $0xb4] sm:$0xf]
  %v1625 = vld [vmem:[%s3 + $0xb8] sm:$0xf]
  %v1626 = vld [vmem:[%s3 + $0xbc] sm:$0xf]
  %v1627 = vld [vmem:[%s3 + $0xc0] sm:$0xf]
  %v1628 = vld [vmem:[%s3 + $0xc4] sm:$0xf]
  %v1629 = vld [vmem:[%s3 + $0xc8] sm:$0xf]
  %v1630 = vld [vmem:[%s3 + $0xcc] sm:$0xf]
  %v1631 = vld [vmem:[%s3 + $0xd0] sm:$0xf]
  %v1632 = vld [vmem:[%s3 + $0xd4] sm:$0xf]
  %v1633 = vld [vmem:[%s3 + $0xd8] sm:$0xf]
  %v1634 = vld [vmem:[%s3 + $0xdc] sm:$0xf]
  %v1635 = vld [vmem:[%s3 + $0xe0] sm:$0xf]
  %v1636 = vld [vmem:[%s3 + $0xe4] sm:$0xf]
  %v1637 = vld [vmem:[%s3 + $0xe8] sm:$0xf]
  %v1638 = vld [vmem:[%s3 + $0xec] sm:$0xf]
  %v1639 = vld [vmem:[%s3 + $0xf0] sm:$0xf]
  %v1640 = vld [vmem:[%s3 + $0xf4] sm:$0xf]
  %v1641 = vld [vmem:[%s3 + $0xf8] sm:$0xf]
  %v1642 = vld [vmem:[%s3 + $0xfc] sm:$0xf]
  %v1643 = vld [vmem:[%s3 + $0x100] sm:$0xf]
  %v1644 = vld [vmem:[%s3 + $0x104] sm:$0xf]
  %v1645 = vld [vmem:[%s3 + $0x108] sm:$0xf]
  %v1646 = vld [vmem:[%s3 + $0x10c] sm:$0xf]
  %v1647 = vld [vmem:[%s3 + $0x110] sm:$0xf]
  %v1648 = vld [vmem:[%s3 + $0x114] sm:$0xf]
  %v1649 = vld [vmem:[%s3 + $0x118] sm:$0xf]
  %v1650 = vld [vmem:[%s3 + $0x11c] sm:$0xf]
  %v1651 = vld [vmem:[%s3 + $0x120] sm:$0xf]
  %v1652 = vld [vmem:[%s3 + $0x124] sm:$0xf]
  %v1653 = vld [vmem:[%s3 + $0x128] sm:$0xf]
  %v1654 = vld [vmem:[%s3 + $0x12c] sm:$0xf]
  %v1655 = vld [vmem:[%s3 + $0x130] sm:$0xf]
  %v1656 = vld [vmem:[%s3 + $0x134] sm:$0xf]
  %v1657 = vld [vmem:[%s3 + $0x138] sm:$0xf]
  %v1658 = vld [vmem:[%s3 + $0x13c] sm:$0xf]
  %v1659 = vld [vmem:[%s3 + $0x140] sm:$0xf]
  %v1660 = vld [vmem:[%s3 + $0x144] sm:$0xf]
  %v1661 = vld [vmem:[%s3 + $0x148] sm:$0xf]
  %v1662 = vld [vmem:[%s3 + $0x14c] sm:$0xf]
  %v1663 = vld [vmem:[%s3 + $0x150] sm:$0xf]
  %v1664 = vld [vmem:[%s3 + $0x154] sm:$0xf]
  %v1665 = vld [vmem:[%s3 + $0x158] sm:$0xf]
  %v1666 = vld [vmem:[%s3 + $0x15c] sm:$0xf]
  %v1667 = vld [vmem:[%s3 + $0x160] sm:$0xf]
  %v1668 = vld [vmem:[%s3 + $0x164] sm:$0xf]
  %v1669 = vld [vmem:[%s3 + $0x168] sm:$0xf]
  %v1670 = vld [vmem:[%s3 + $0x16c] sm:$0xf]
  %v1671 = vld [vmem:[%s3 + $0x170] sm:$0xf]
  %v1672 = vld [vmem:[%s3 + $0x174] sm:$0xf]
  %v1673 = vld [vmem:[%s3 + $0x178] sm:$0xf]
  %v1674 = vld [vmem:[%s3 + $0x17c] sm:$0xf]
  %v1675 = vld [vmem:[%s3 + $0x180] sm:$0xf]
  %v1676 = vld [vmem:[%s3 + $0x184] sm:$0xf]
  %v1677 = vld [vmem:[%s3 + $0x188] sm:$0xf]
  %v1678 = vld [vmem:[%s3 + $0x18c] sm:$0xf]
  %v1679 = vld [vmem:[%s3 + $0x190] sm:$0xf]
  %v1680 = vld [vmem:[%s3 + $0x194] sm:$0xf]
  %v1681 = vld [vmem:[%s3 + $0x198] sm:$0xf]
  %v1682 = vld [vmem:[%s3 + $0x19c] sm:$0xf]
  %v1683 = vld [vmem:[%s3 + $0x1a0] sm:$0xf]
  %v1684 = vld [vmem:[%s3 + $0x1a4] sm:$0xf]
  %v1685 = vld [vmem:[%s3 + $0x1a8] sm:$0xf]
  %v1686 = vld [vmem:[%s3 + $0x1ac] sm:$0xf]
  %v1687 = vld [vmem:[%s3 + $0x1b0] sm:$0xf]
  %v1688 = vld [vmem:[%s3 + $0x1b4] sm:$0xf]
  %v1689 = vld [vmem:[%s3 + $0x1b8] sm:$0xf]
  %v1690 = vld [vmem:[%s3 + $0x1bc] sm:$0xf]
  %v1691 = vld [vmem:[%s3 + $0x1c0] sm:$0xf]
  %v1692 = vld [vmem:[%s3 + $0x1c4] sm:$0xf]
  %v1693 = vld [vmem:[%s3 + $0x1c8] sm:$0xf]
  %v1694 = vld [vmem:[%s3 + $0x1cc] sm:$0xf]
  %v1695 = vld [vmem:[%s3 + $0x1d0] sm:$0xf]
  %v1696 = vld [vmem:[%s3 + $0x1d4] sm:$0xf]
  %v1697 = vld [vmem:[%s3 + $0x1d8] sm:$0xf]
  %v1698 = vld [vmem:[%s3 + $0x1dc] sm:$0xf]
  %v1699 = vld [vmem:[%s3 + $0x1e0] sm:$0xf]
  %v1700 = vld [vmem:[%s3 + $0x1e4] sm:$0xf]
  %v1701 = vld [vmem:[%s3 + $0x1e8] sm:$0xf]
  %v1702 = vld [vmem:[%s3 + $0x1ec] sm:$0xf]
  %v1703 = vld [vmem:[%s3 + $0x1f0] sm:$0xf]
  %v1704 = vld [vmem:[%s3 + $0x1f4] sm:$0xf]
  %v1705 = vld [vmem:[%s3 + $0x1f8] sm:$0xf]
  %v1706 = vld [vmem:[%s3 + $0x1fc] sm:$0xf]
  %v1707 = vld [vmem:[%s4] sm:$0x1]
  %v1709 = vlaneseq
  %v1710 = vshrl.u32 %v1709, 7
  %v1711 = vsub.s32 0, %v1710
  %v1712 = vrot.slane %v1707, %v1711
  %v1842 = vunpack.c.l.b16 %v1579
  %v1843 = vunpack.c.l.b16 %v1580
  %v1844 = vunpack.c.l.b16 %v1581
  %v1845 = vunpack.c.l.b16 %v1582
  %v1846 = vunpack.c.l.b16 %v1583
  %v1847 = vunpack.c.l.b16 %v1584
  %v1848 = vunpack.c.l.b16 %v1585
  %v1849 = vunpack.c.l.b16 %v1586
  %v1850 = vunpack.c.l.b16 %v1587
  %v1851 = vunpack.c.l.b16 %v1588
  %v1852 = vunpack.c.l.b16 %v1589
  %v1853 = vunpack.c.l.b16 %v1590
  %v1854 = vunpack.c.l.b16 %v1591
  %v1855 = vunpack.c.l.b16 %v1592
  %v1856 = vunpack.c.l.b16 %v1593
  %v1857 = vunpack.c.l.b16 %v1594
  %v1858 = vunpack.c.l.b16 %v1595
  %v1859 = vunpack.c.l.b16 %v1596
  %v1860 = vunpack.c.l.b16 %v1597
  %v1861 = vunpack.c.l.b16 %v1598
  %v1862 = vunpack.c.l.b16 %v1599
  %v1863 = vunpack.c.l.b16 %v1600
  %v1864 = vunpack.c.l.b16 %v1601
  %v1865 = vunpack.c.l.b16 %v1602
  %v1866 = vunpack.c.l.b16 %v1603
  %v1867 = vunpack.c.l.b16 %v1604
  %v1868 = vunpack.c.l.b16 %v1605
  %v1869 = vunpack.c.l.b16 %v1606
  %v1870 = vunpack.c.l.b16 %v1607
  %v1871 = vunpack.c.l.b16 %v1608
  %v1872 = vunpack.c.l.b16 %v1609
  %v1873 = vunpack.c.l.b16 %v1610
  %v1874 = vunpack.c.l.b16 %v1611
  %v1875 = vunpack.c.l.b16 %v1612
  %v1876 = vunpack.c.l.b16 %v1613
  %v1877 = vunpack.c.l.b16 %v1614
  %v1878 = vunpack.c.l.b16 %v1615
  %v1879 = vunpack.c.l.b16 %v1616
  %v1880 = vunpack.c.l.b16 %v1617
  %v1881 = vunpack.c.l.b16 %v1618
  %v1882 = vunpack.c.l.b16 %v1619
  %v1883 = vunpack.c.l.b16 %v1620
  %v1884 = vunpack.c.l.b16 %v1621
  %v1885 = vunpack.c.l.b16 %v1622
  %v1886 = vunpack.c.l.b16 %v1623
  %v1887 = vunpack.c.l.b16 %v1624
  %v1888 = vunpack.c.l.b16 %v1625
  %v1889 = vunpack.c.l.b16 %v1626
  %v1890 = vunpack.c.l.b16 %v1627
  %v1891 = vunpack.c.l.b16 %v1628
  %v1892 = vunpack.c.l.b16 %v1629
  %v1893 = vunpack.c.l.b16 %v1630
  %v1894 = vunpack.c.l.b16 %v1631
  %v1895 = vunpack.c.l.b16 %v1632
  %v1896 = vunpack.c.l.b16 %v1633
  %v1897 = vunpack.c.l.b16 %v1634
  %v1898 = vunpack.c.l.b16 %v1635
  %v1899 = vunpack.c.l.b16 %v1636
  %v1900 = vunpack.c.l.b16 %v1637
  %v1901 = vunpack.c.l.b16 %v1638
  %v1902 = vunpack.c.l.b16 %v1639
  %v1903 = vunpack.c.l.b16 %v1640
  %v1904 = vunpack.c.l.b16 %v1641
  %v1905 = vunpack.c.l.b16 %v1642
  %v1906 = vunpack.c.l.b16 %v1643
  %v1907 = vunpack.c.l.b16 %v1644
  %v1908 = vunpack.c.l.b16 %v1645
  %v1909 = vunpack.c.l.b16 %v1646
  %v1910 = vunpack.c.l.b16 %v1647
  %v1911 = vunpack.c.l.b16 %v1648
  %v1912 = vunpack.c.l.b16 %v1649
  %v1913 = vunpack.c.l.b16 %v1650
  %v1914 = vunpack.c.l.b16 %v1651
  %v1915 = vunpack.c.l.b16 %v1652
  %v1916 = vunpack.c.l.b16 %v1653
  %v1917 = vunpack.c.l.b16 %v1654
  %v1918 = vunpack.c.l.b16 %v1655
  %v1919 = vunpack.c.l.b16 %v1656
  %v1920 = vunpack.c.l.b16 %v1657
  %v1921 = vunpack.c.l.b16 %v1658
  %v1922 = vunpack.c.l.b16 %v1659
  %v1923 = vunpack.c.l.b16 %v1660
  %v1924 = vunpack.c.l.b16 %v1661
  %v1925 = vunpack.c.l.b16 %v1662
  %v1926 = vunpack.c.l.b16 %v1663
  %v1927 = vunpack.c.l.b16 %v1664
  %v1928 = vunpack.c.l.b16 %v1665
  %v1929 = vunpack.c.l.b16 %v1666
  %v1930 = vunpack.c.l.b16 %v1667
  %v1931 = vunpack.c.l.b16 %v1668
  %v1932 = vunpack.c.l.b16 %v1669
  %v1933 = vunpack.c.l.b16 %v1670
  %v1934 = vunpack.c.l.b16 %v1671
  %v1935 = vunpack.c.l.b16 %v1672
  %v1936 = vunpack.c.l.b16 %v1673
  %v1937 = vunpack.c.l.b16 %v1674
  %v1938 = vunpack.c.l.b16 %v1675
  %v1939 = vunpack.c.l.b16 %v1676
  %v1940 = vunpack.c.l.b16 %v1677
  %v1941 = vunpack.c.l.b16 %v1678
  %v1942 = vunpack.c.l.b16 %v1679
  %v1943 = vunpack.c.l.b16 %v1680
  %v1944 = vunpack.c.l.b16 %v1681
  %v1945 = vunpack.c.l.b16 %v1682
  %v1946 = vunpack.c.l.b16 %v1683
  %v1947 = vunpack.c.l.b16 %v1684
  %v1948 = vunpack.c.l.b16 %v1685
  %v1949 = vunpack.c.l.b16 %v1686
  %v1950 = vunpack.c.l.b16 %v1687
  %v1951 = vunpack.c.l.b16 %v1688
  %v1952 = vunpack.c.l.b16 %v1689
  %v1953 = vunpack.c.l.b16 %v1690
  %v1954 = vunpack.c.l.b16 %v1691
  %v1955 = vunpack.c.l.b16 %v1692
  %v1956 = vunpack.c.l.b16 %v1693
  %v1957 = vunpack.c.l.b16 %v1694
  %v1958 = vunpack.c.l.b16 %v1695
  %v1959 = vunpack.c.l.b16 %v1696
  %v1960 = vunpack.c.l.b16 %v1697
  %v1961 = vunpack.c.l.b16 %v1698
  %v1962 = vunpack.c.l.b16 %v1699
  %v1963 = vunpack.c.l.b16 %v1700
  %v1964 = vunpack.c.l.b16 %v1701
  %v1965 = vunpack.c.l.b16 %v1702
  %v1966 = vunpack.c.l.b16 %v1703
  %v1967 = vunpack.c.l.b16 %v1704
  %v1968 = vunpack.c.l.b16 %v1705
  %v1969 = vunpack.c.l.b16 %v1706
  %v1970 = vpack.c.b16 %v1843, %v1842
  %v1971 = vpack.c.b16 %v1845, %v1844
  %v1972 = vpack.c.b16 %v1847, %v1846
  %v1973 = vpack.c.b16 %v1849, %v1848
  %v1974 = vpack.c.b16 %v1851, %v1850
  %v1975 = vpack.c.b16 %v1853, %v1852
  %v1976 = vpack.c.b16 %v1855, %v1854
  %v1977 = vpack.c.b16 %v1857, %v1856
  %v1978 = vpack.c.b16 %v1859, %v1858
  %v1979 = vpack.c.b16 %v1861, %v1860
  %v1980 = vpack.c.b16 %v1863, %v1862
  %v1981 = vpack.c.b16 %v1865, %v1864
  %v1982 = vpack.c.b16 %v1867, %v1866
  %v1983 = vpack.c.b16 %v1869, %v1868
  %v1984 = vpack.c.b16 %v1871, %v1870
  %v1985 = vpack.c.b16 %v1873, %v1872
  %v1986 = vpack.c.b16 %v1875, %v1874
  %v1987 = vpack.c.b16 %v1877, %v1876
  %v1988 = vpack.c.b16 %v1879, %v1878
  %v1989 = vpack.c.b16 %v1881, %v1880
  %v1990 = vpack.c.b16 %v1883, %v1882
  %v1991 = vpack.c.b16 %v1885, %v1884
  %v1992 = vpack.c.b16 %v1887, %v1886
  %v1993 = vpack.c.b16 %v1889, %v1888
  %v1994 = vpack.c.b16 %v1891, %v1890
  %v1995 = vpack.c.b16 %v1893, %v1892
  %v1996 = vpack.c.b16 %v1895, %v1894
  %v1997 = vpack.c.b16 %v1897, %v1896
  %v1998 = vpack.c.b16 %v1899, %v1898
  %v1999 = vpack.c.b16 %v1901, %v1900
  %v2000 = vpack.c.b16 %v1903, %v1902
  %v2001 = vpack.c.b16 %v1905, %v1904
  %v2002 = vpack.c.b16 %v1907, %v1906
  %v2003 = vpack.c.b16 %v1909, %v1908
  %v2004 = vpack.c.b16 %v1911, %v1910
  %v2005 = vpack.c.b16 %v1913, %v1912
  %v2006 = vpack.c.b16 %v1915, %v1914
  %v2007 = vpack.c.b16 %v1917, %v1916
  %v2008 = vpack.c.b16 %v1919, %v1918
  %v2009 = vpack.c.b16 %v1921, %v1920
  %v2010 = vpack.c.b16 %v1923, %v1922
  %v2011 = vpack.c.b16 %v1925, %v1924
  %v2012 = vpack.c.b16 %v1927, %v1926
  %v2013 = vpack.c.b16 %v1929, %v1928
  %v2014 = vpack.c.b16 %v1931, %v1930
  %v2015 = vpack.c.b16 %v1933, %v1932
  %v2016 = vpack.c.b16 %v1935, %v1934
  %v2017 = vpack.c.b16 %v1937, %v1936
  %v2018 = vpack.c.b16 %v1939, %v1938
  %v2019 = vpack.c.b16 %v1941, %v1940
  %v2020 = vpack.c.b16 %v1943, %v1942
  %v2021 = vpack.c.b16 %v1945, %v1944
  %v2022 = vpack.c.b16 %v1947, %v1946
  %v2023 = vpack.c.b16 %v1949, %v1948
  %v2024 = vpack.c.b16 %v1951, %v1950
  %v2025 = vpack.c.b16 %v1953, %v1952
  %v2026 = vpack.c.b16 %v1955, %v1954
  %v2027 = vpack.c.b16 %v1957, %v1956
  %v2028 = vpack.c.b16 %v1959, %v1958
  %v2029 = vpack.c.b16 %v1961, %v1960
  %v2030 = vpack.c.b16 %v1963, %v1962
  %v2031 = vpack.c.b16 %v1965, %v1964
  %v2032 = vpack.c.b16 %v1967, %v1966
  %v2033 = vpack.c.b16 %v1969, %v1968
  %2098 = vmatprep.subr.bf16.mxu0 0
  %2099 = vmatpush1.bf16.msra.mxu0 %v1970
  %2100 = vmatprep.subr.bf16.mxu0 0
  %2101 = vmatpush1.bf16.msra.mxu0 %v1971
  %2102 = vmatprep.subr.bf16.mxu0 0
  %2103 = vmatpush1.bf16.msra.mxu0 %v1972
  %2104 = vmatprep.subr.bf16.mxu0 0
  %2105 = vmatpush1.bf16.msra.mxu0 %v1973
  %2106 = vmatprep.subr.bf16.mxu0 0
  %2107 = vmatpush1.bf16.msra.mxu0 %v1974
  %2108 = vmatprep.subr.bf16.mxu0 0
  %2109 = vmatpush1.bf16.msra.mxu0 %v1975
  %2110 = vmatprep.subr.bf16.mxu0 0
  %2111 = vmatpush1.bf16.msra.mxu0 %v1976
  %2112 = vmatprep.subr.bf16.mxu0 0
  %2113 = vmatpush1.bf16.msra.mxu0 %v1977
  %2114 = vmatprep.subr.bf16.mxu0 0
  %2115 = vmatpush1.bf16.msra.mxu0 %v1978
  %2116 = vmatprep.subr.bf16.mxu0 0
  %2117 = vmatpush1.bf16.msra.mxu0 %v1979
  %2118 = vmatprep.subr.bf16.mxu0 0
  %2119 = vmatpush1.bf16.msra.mxu0 %v1980
  %2120 = vmatprep.subr.bf16.mxu0 0
  %2121 = vmatpush1.bf16.msra.mxu0 %v1981
  %2122 = vmatprep.subr.bf16.mxu0 0
  %2123 = vmatpush1.bf16.msra.mxu0 %v1982
  %2124 = vmatprep.subr.bf16.mxu0 0
  %2125 = vmatpush1.bf16.msra.mxu0 %v1983
  %2126 = vmatprep.subr.bf16.mxu0 0
  %2127 = vmatpush1.bf16.msra.mxu0 %v1984
  %2128 = vmatprep.subr.bf16.mxu0 0
  %2129 = vmatpush1.bf16.msra.mxu0 %v1985
  %2130 = vmatprep.mubr.bf16.mxu0 %v1572
  %2131 = vmatmul.mubr.bf16.gmra.mrb[0].mxu0 %v1571
  %v2132 = vpop.f32.mrb[0].mxu0
  %v2133 = vadd.f32 %v1712, %v2132
  %v2134 = vpop.f32.mrb[0].mxu0
  %v2135 = vpop.f32.mrb[0].mxu0
  %v2136 = vpop.f32.mrb[0].mxu0
  %2137 = vdwg.mxu0
  %2138 = vmatprep.subr.bf16.mxu0 0
  %2139 = vmatpush1.bf16.msra.mxu0 %v1986
  %2140 = vmatprep.subr.bf16.mxu0 0
  %2141 = vmatpush1.bf16.msra.mxu0 %v1987
  %2142 = vmatprep.subr.bf16.mxu0 0
  %2143 = vmatpush1.bf16.msra.mxu0 %v1988
  %2144 = vmatprep.subr.bf16.mxu0 0
  %2145 = vmatpush1.bf16.msra.mxu0 %v1989
  %2146 = vmatprep.subr.bf16.mxu0 0
  %2147 = vmatpush1.bf16.msra.mxu0 %v1990
  %2148 = vmatprep.subr.bf16.mxu0 0
  %2149 = vmatpush1.bf16.msra.mxu0 %v1991
  %2150 = vmatprep.subr.bf16.mxu0 0
  %2151 = vmatpush1.bf16.msra.mxu0 %v1992
  %2152 = vmatprep.subr.bf16.mxu0 0
  %2153 = vmatpush1.bf16.msra.mxu0 %v1993
  %2154 = vmatprep.subr.bf16.mxu0 0
  %2155 = vmatpush1.bf16.msra.mxu0 %v1994
  %2156 = vmatprep.subr.bf16.mxu0 0
  %2157 = vmatpush1.bf16.msra.mxu0 %v1995
  %2158 = vmatprep.subr.bf16.mxu0 0
  %2159 = vmatpush1.bf16.msra.mxu0 %v1996
  %2160 = vmatprep.subr.bf16.mxu0 0
  %2161 = vmatpush1.bf16.msra.mxu0 %v1997
  %2162 = vmatprep.subr.bf16.mxu0 0
  %2163 = vmatpush1.bf16.msra.mxu0 %v1998
  %2164 = vmatprep.subr.bf16.mxu0 0
  %2165 = vmatpush1.bf16.msra.mxu0 %v1999
  %2166 = vmatprep.subr.bf16.mxu0 0
  %2167 = vmatpush1.bf16.msra.mxu0 %v2000
  %2168 = vmatprep.subr.bf16.mxu0 0
  %2169 = vmatpush1.bf16.msra.mxu0 %v2001
  %2170 = vmatprep.mubr.bf16.mxu0 %v1574
  %2171 = vmatmul.mubr.bf16.gmra.mrb[0].mxu0 %v1573
  %v2172 = vpop.f32.mrb[0].mxu0
  %v2173 = vadd.f32 %v2133, %v2172
  %v2174 = vpop.f32.mrb[0].mxu0
  %v2175 = vpop.f32.mrb[0].mxu0
  %v2176 = vpop.f32.mrb[0].mxu0
  %2177 = vdwg.mxu0
  %2178 = vmatprep.subr.bf16.mxu0 0
  %2179 = vmatpush1.bf16.msra.mxu0 %v2002
  %2180 = vmatprep.subr.bf16.mxu0 0
  %2181 = vmatpush1.bf16.msra.mxu0 %v2003
  %2182 = vmatprep.subr.bf16.mxu0 0
  %2183 = vmatpush1.bf16.msra.mxu0 %v2004
  %2184 = vmatprep.subr.bf16.mxu0 0
  %2185 = vmatpush1.bf16.msra.mxu0 %v2005
  %2186 = vmatprep.subr.bf16.mxu0 0
  %2187 = vmatpush1.bf16.msra.mxu0 %v2006
  %2188 = vmatprep.subr.bf16.mxu0 0
  %2189 = vmatpush1.bf16.msra.mxu0 %v2007
  %2190 = vmatprep.subr.bf16.mxu0 0
  %2191 = vmatpush1.bf16.msra.mxu0 %v2008
  %2192 = vmatprep.subr.bf16.mxu0 0
  %2193 = vmatpush1.bf16.msra.mxu0 %v2009
  %2194 = vmatprep.subr.bf16.mxu0 0
  %2195 = vmatpush1.bf16.msra.mxu0 %v2010
  %2196 = vmatprep.subr.bf16.mxu0 0
  %2197 = vmatpush1.bf16.msra.mxu0 %v2011
  %2198 = vmatprep.subr.bf16.mxu0 0
  %2199 = vmatpush1.bf16.msra.mxu0 %v2012
  %2200 = vmatprep.subr.bf16.mxu0 0
  %2201 = vmatpush1.bf16.msra.mxu0 %v2013
  %2202 = vmatprep.subr.bf16.mxu0 0
  %2203 = vmatpush1.bf16.msra.mxu0 %v2014
  %2204 = vmatprep.subr.bf16.mxu0 0
  %2205 = vmatpush1.bf16.msra.mxu0 %v2015
  %2206 = vmatprep.subr.bf16.mxu0 0
  %2207 = vmatpush1.bf16.msra.mxu0 %v2016
  %2208 = vmatprep.subr.bf16.mxu0 0
  %2209 = vmatpush1.bf16.msra.mxu0 %v2017
  %2210 = vmatprep.mubr.bf16.mxu0 %v1576
  %2211 = vmatmul.mubr.bf16.gmra.mrb[0].mxu0 %v1575
  %v2212 = vpop.f32.mrb[0].mxu0
  %v2213 = vadd.f32 %v2173, %v2212
  %v2214 = vpop.f32.mrb[0].mxu0
  %v2215 = vpop.f32.mrb[0].mxu0
  %v2216 = vpop.f32.mrb[0].mxu0
  %2217 = vdwg.mxu0
  %2218 = vmatprep.subr.bf16.mxu0 0
  %2219 = vmatpush1.bf16.msra.mxu0 %v2018
  %2220 = vmatprep.subr.bf16.mxu0 0
  %2221 = vmatpush1.bf16.msra.mxu0 %v2019
  %2222 = vmatprep.subr.bf16.mxu0 0
  %2223 = vmatpush1.bf16.msra.mxu0 %v2020
  %2224 = vmatprep.subr.bf16.mxu0 0
  %2225 = vmatpush1.bf16.msra.mxu0 %v2021
  %2226 = vmatprep.subr.bf16.mxu0 0
  %2227 = vmatpush1.bf16.msra.mxu0 %v2022
  %2228 = vmatprep.subr.bf16.mxu0 0
  %2229 = vmatpush1.bf16.msra.mxu0 %v2023
  %2230 = vmatprep.subr.bf16.mxu0 0
  %2231 = vmatpush1.bf16.msra.mxu0 %v2024
  %2232 = vmatprep.subr.bf16.mxu0 0
  %2233 = vmatpush1.bf16.msra.mxu0 %v2025
  %2234 = vmatprep.subr.bf16.mxu0 0
  %2235 = vmatpush1.bf16.msra.mxu0 %v2026
  %2236 = vmatprep.subr.bf16.mxu0 0
  %2237 = vmatpush1.bf16.msra.mxu0 %v2027
  %2238 = vmatprep.subr.bf16.mxu0 0
  %2239 = vmatpush1.bf16.msra.mxu0 %v2028
  %2240 = vmatprep.subr.bf16.mxu0 0
  %2241 = vmatpush1.bf16.msra.mxu0 %v2029
  %2242 = vmatprep.subr.bf16.mxu0 0
  %2243 = vmatpush1.bf16.msra.mxu0 %v2030
  %2244 = vmatprep.subr.bf16.mxu0 0
  %2245 = vmatpush1.bf16.msra.mxu0 %v2031
  %2246 = vmatprep.subr.bf16.mxu0 0
  %2247 = vmatpush1.bf16.msra.mxu0 %v2032
  %2248 = vmatprep.subr.bf16.mxu0 0
  %2249 = vmatpush1.bf16.msra.mxu0 %v2033
  %2250 = vmatprep.mubr.bf16.mxu0 %v1578
  %2251 = vmatmul.mubr.bf16.gmra.mrb[0].mxu0 %v1577
  %v2252 = vpop.f32.mrb[0].mxu0
  %v2253 = vadd.f32 %v2213, %v2252
  %v2254 = vpop.f32.mrb[0].mxu0
  %v2255 = vpop.f32.mrb[0].mxu0
  %v2256 = vpop.f32.mrb[0].mxu0
  %2257 = vdwg.mxu0
  %v2258 = vpack.c.bf16 %v2253, %v2253
  %v2259 = vld [vmem:[%s5] sm:$0xf]
  %v2260 = vld [vmem:[%s5 + $0x4] sm:$0xf]
  %v2261 = vld [vmem:[%s5 + $0x8] sm:$0xf]
  %v2262 = vld [vmem:[%s5 + $0xc] sm:$0xf]
  %v2263 = vld [vmem:[%s5 + $0x10] sm:$0xf]
  %v2264 = vld [vmem:[%s5 + $0x14] sm:$0xf]
  %v2265 = vld [vmem:[%s5 + $0x18] sm:$0xf]
  %v2266 = vld [vmem:[%s5 + $0x1c] sm:$0xf]
  %v2267 = vld [vmem:[%s5 + $0x20] sm:$0xf]
  %v2268 = vld [vmem:[%s5 + $0x24] sm:$0xf]
  %v2269 = vld [vmem:[%s5 + $0x28] sm:$0xf]
  %v2270 = vld [vmem:[%s5 + $0x2c] sm:$0xf]
  %v2271 = vld [vmem:[%s5 + $0x30] sm:$0xf]
  %v2272 = vld [vmem:[%s5 + $0x34] sm:$0xf]
  %v2273 = vld [vmem:[%s5 + $0x38] sm:$0xf]
  %v2274 = vld [vmem:[%s5 + $0x3c] sm:$0xf]
  %v2275 = vld [vmem:[%s6] sm:$0x1]
  %v2277 = vlaneseq
  %v2278 = vshrl.u32 %v2277, 7
  %v2279 = vsub.s32 0, %v2278
  %v2280 = vrot.slane %v2275, %v2279
  %v2298 = vunpack.c.l.b16 %v2259
  %v2299 = vunpack.c.l.b16 %v2260
  %v2300 = vunpack.c.l.b16 %v2261
  %v2301 = vunpack.c.l.b16 %v2262
  %v2302 = vunpack.c.l.b16 %v2263
  %v2303 = vunpack.c.l.b16 %v2264
  %v2304 = vunpack.c.l.b16 %v2265
  %v2305 = vunpack.c.l.b16 %v2266
  %v2306 = vunpack.c.l.b16 %v2267
  %v2307 = vunpack.c.l.b16 %v2268
  %v2308 = vunpack.c.l.b16 %v2269
  %v2309 = vunpack.c.l.b16 %v2270
  %v2310 = vunpack.c.l.b16 %v2271
  %v2311 = vunpack.c.l.b16 %v2272
  %v2312 = vunpack.c.l.b16 %v2273
  %v2313 = vunpack.c.l.b16 %v2274
  %v2314 = vpack.c.b16 %v2299, %v2298
  %v2315 = vpack.c.b16 %v2301, %v2300
  %v2316 = vpack.c.b16 %v2303, %v2302
  %v2317 = vpack.c.b16 %v2305, %v2304
  %v2318 = vpack.c.b16 %v2307, %v2306
  %v2319 = vpack.c.b16 %v2309, %v2308
  %v2320 = vpack.c.b16 %v2311, %v2310
  %v2321 = vpack.c.b16 %v2313, %v2312
  %2330 = vmatprep.subr.bf16.mxu0 0
  %2331 = vmatpush1.bf16.msra.mxu0 %v2314
  %2332 = vmatprep.subr.bf16.mxu0 0
  %2333 = vmatpush1.bf16.msra.mxu0 %v2315
  %2334 = vmatprep.subr.bf16.mxu0 0
  %2335 = vmatpush1.bf16.msra.mxu0 %v2316
  %2336 = vmatprep.subr.bf16.mxu0 0
  %2337 = vmatpush1.bf16.msra.mxu0 %v2317
  %2338 = vmatprep.subr.bf16.mxu0 0
  %2339 = vmatpush1.bf16.msra.mxu0 %v2318
  %2340 = vmatprep.subr.bf16.mxu0 0
  %2341 = vmatpush1.bf16.msra.mxu0 %v2319
  %2342 = vmatprep.subr.bf16.mxu0 0
  %2343 = vmatpush1.bf16.msra.mxu0 %v2320
  %2344 = vmatprep.subr.bf16.mxu0 0
  %2345 = vmatpush1.bf16.msra.mxu0 %v2321
  %2346 = vmatprep.subr.bf16.mxu0 0
  %2347 = vmatpush1.bf16.msra.mxu0 0
  %2348 = vmatprep.subr.bf16.mxu0 0
  %2349 = vmatpush1.bf16.msra.mxu0 0
  %2350 = vmatprep.subr.bf16.mxu0 0
  %2351 = vmatpush1.bf16.msra.mxu0 0
  %2352 = vmatprep.subr.bf16.mxu0 0
  %2353 = vmatpush1.bf16.msra.mxu0 0
  %2354 = vmatprep.subr.bf16.mxu0 0
  %2355 = vmatpush1.bf16.msra.mxu0 0
  %2356 = vmatprep.subr.bf16.mxu0 0
  %2357 = vmatpush1.bf16.msra.mxu0 0
  %2358 = vmatprep.subr.bf16.mxu0 0
  %2359 = vmatpush1.bf16.msra.mxu0 0
  %2360 = vmatprep.subr.bf16.mxu0 0
  %2361 = vmatpush1.bf16.msra.mxu0 0
  %2362 = vmatprep.mubr.bf16.mxu0 0
  %2363 = vmatmul.mubr.bf16.gmra.mrb[0].mxu0 %v2258
  %v2364 = vpop.f32.mrb[0].mxu0
  %v2365 = vadd.f32 %v2280, %v2364
  %v2366 = vpop.f32.mrb[0].mxu0
  %v2367 = vpop.f32.mrb[0].mxu0
  %v2368 = vpop.f32.mrb[0].mxu0
  %2369 = vdwg.mxu0
  %v2370 = vmax.f32 %v2365, 0.0
  %v2371 = vpack.c.bf16 %v2370, %v2370
  %v2372 = vld [vmem:[%s7] sm:$0xf]
  %v2373 = vld [vmem:[%s7 + $0x4] sm:$0xf]
  %v2374 = vld [vmem:[%s7 + $0x8] sm:$0xf]
  %v2375 = vld [vmem:[%s7 + $0xc] sm:$0xf]
  %v2376 = vld [vmem:[%s7 + $0x10] sm:$0xf]
  %v2377 = vld [vmem:[%s7 + $0x14] sm:$0xf]
  %v2378 = vld [vmem:[%s7 + $0x18] sm:$0xf]
  %v2379 = vld [vmem:[%s7 + $0x1c] sm:$0xf]
  %v2380 = vld [vmem:[%s7 + $0x20] sm:$0xf]
  %v2381 = vld [vmem:[%s7 + $0x24] sm:$0xf]
  %v2382 = vld [vmem:[%s7 + $0x28] sm:$0xf]
  %v2383 = vld [vmem:[%s7 + $0x2c] sm:$0xf]
  %v2384 = vld [vmem:[%s7 + $0x30] sm:$0xf]
  %v2385 = vld [vmem:[%s7 + $0x34] sm:$0xf]
  %v2386 = vld [vmem:[%s7 + $0x38] sm:$0xf]
  %v2387 = vld [vmem:[%s7 + $0x3c] sm:$0xf]
  %v2388 = vld [vmem:[%s8] sm:$0x1]
  %v2390 = vlaneseq
  %v2391 = vshrl.u32 %v2390, 7
  %v2392 = vsub.s32 0, %v2391
  %v2393 = vrot.slane %v2388, %v2392
  %v2411 = vunpack.c.l.b16 %v2372
  %v2412 = vunpack.c.l.b16 %v2373
  %v2413 = vunpack.c.l.b16 %v2374
  %v2414 = vunpack.c.l.b16 %v2375
  %v2415 = vunpack.c.l.b16 %v2376
  %v2416 = vunpack.c.l.b16 %v2377
  %v2417 = vunpack.c.l.b16 %v2378
  %v2418 = vunpack.c.l.b16 %v2379
  %v2419 = vunpack.c.l.b16 %v2380
  %v2420 = vunpack.c.l.b16 %v2381
  %v2421 = vunpack.c.l.b16 %v2382
  %v2422 = vunpack.c.l.b16 %v2383
  %v2423 = vunpack.c.l.b16 %v2384
  %v2424 = vunpack.c.l.b16 %v2385
  %v2425 = vunpack.c.l.b16 %v2386
  %v2426 = vunpack.c.l.b16 %v2387
  %v2427 = vpack.c.b16 %v2412, %v2411
  %v2428 = vpack.c.b16 %v2414, %v2413
  %v2429 = vpack.c.b16 %v2416, %v2415
  %v2430 = vpack.c.b16 %v2418, %v2417
  %v2431 = vpack.c.b16 %v2420, %v2419
  %v2432 = vpack.c.b16 %v2422, %v2421
  %v2433 = vpack.c.b16 %v2424, %v2423
  %v2434 = vpack.c.b16 %v2426, %v2425
  %2443 = vmatprep.subr.bf16.mxu0 0
  %2444 = vmatpush1.bf16.msra.mxu0 %v2427
  %2445 = vmatprep.subr.bf16.mxu0 0
  %2446 = vmatpush1.bf16.msra.mxu0 %v2428
  %2447 = vmatprep.subr.bf16.mxu0 0
  %2448 = vmatpush1.bf16.msra.mxu0 %v2429
  %2449 = vmatprep.subr.bf16.mxu0 0
  %2450 = vmatpush1.bf16.msra.mxu0 %v2430
  %2451 = vmatprep.subr.bf16.mxu0 0
  %2452 = vmatpush1.bf16.msra.mxu0 %v2431
  %2453 = vmatprep.subr.bf16.mxu0 0
  %2454 = vmatpush1.bf16.msra.mxu0 %v2432
  %2455 = vmatprep.subr.bf16.mxu0 0
  %2456 = vmatpush1.bf16.msra.mxu0 %v2433
  %2457 = vmatprep.subr.bf16.mxu0 0
  %2458 = vmatpush1.bf16.msra.mxu0 %v2434
  %2459 = vmatprep.subr.bf16.mxu0 0
  %2460 = vmatpush1.bf16.msra.mxu0 0
  %2461 = vmatprep.subr.bf16.mxu0 0
  %2462 = vmatpush1.bf16.msra.mxu0 0
  %2463 = vmatprep.subr.bf16.mxu0 0
  %2464 = vmatpush1.bf16.msra.mxu0 0
  %2465 = vmatprep.subr.bf16.mxu0 0
  %2466 = vmatpush1.bf16.msra.mxu0 0
  %2467 = vmatprep.subr.bf16.mxu0 0
  %2468 = vmatpush1.bf16.msra.mxu0 0
  %2469 = vmatprep.subr.bf16.mxu0 0
  %2470 = vmatpush1.bf16.msra.mxu0 0
  %2471 = vmatprep.subr.bf16.mxu0 0
  %2472 = vmatpush1.bf16.msra.mxu0 0
  %2473 = vmatprep.subr.bf16.mxu0 0
  %2474 = vmatpush1.bf16.msra.mxu0 0
  %2475 = vmatprep.mubr.bf16.mxu0 0
  %2476 = vmatmul.mubr.bf16.gmra.mrb[0].mxu0 %v2371
  %v2477 = vpop.f32.mrb[0].mxu0
  %v2478 = vadd.f32 %v2393, %v2477
  %v2479 = vpop.f32.mrb[0].mxu0
  %v2480 = vpop.f32.mrb[0].mxu0
  %v2481 = vpop.f32.mrb[0].mxu0
  %2482 = vdwg.mxu0
  %2483 = vst [vmem:[%s10] sm:$0xff] %v2253
  %2484 = vst [vmem:[%s9] sm:$0xff] %v2478
  // Predicated region
  $region38: #{dual_forward.3} parent=0 // pred_check
    _
  $region39: #{dual_forward.3} parent=0 // pred_check_branch
    %2486 = sbr.rel (0) target = $region41
  $region40: #{dual_forward.3} parent=0 // pred_region
    _
  $region41: #{dual_forward.3} parent=0 // pred_fallthru
    _
  // Predicated region
  $region42: #{dual_forward.3} parent=0 // pred_check
    _
  $region43: #{dual_forward.3} parent=0 // pred_check_branch
    %2488 = sbr.rel (0) target = $region45
  $region44: #{dual_forward.3} parent=0 // pred_region
    _
  $region45: #{dual_forward.3} parent=0 // pred_fallthru
    _
  // Predicated region
  $region46: #{dual_forward.3} parent=0 // pred_check
    _
  $region47: #{dual_forward.3} parent=0 // pred_check_branch
    %2490 = sbr.rel (0) target = $region49
  $region48: #{dual_forward.3} parent=0 // pred_region
    _
  $region49: #{dual_forward.3} parent=0 // pred_fallthru
    _
  // Predicated region
  $region50: #{dual_forward.3} parent=0 // pred_check
    _
  $region51: #{dual_forward.3} parent=0 // pred_check_branch
    %2492 = sbr.rel (0) target = $region53
  $region52: #{dual_forward.3} parent=0 // pred_region
    _
  $region53: #{dual_forward.3} parent=0 // pred_fallthru
    _

// kernel: dual_forward.2
$region0: #{dual_forward.2}
  #allocation0 [shape = 'u32[]', space=smem, size = 0x4, offset = 0x4, fixed_abs, tag = 'smem constant byte address 0x4 - core index']
  #allocation1 [shape = 'u32[144,128]{1,0:T(1,128)}', space=vmem, size = 0x12000, scoped, tag = 'internal scratch']
  %s0 = inlined_call_operand.vmem [shape: f32[4,16,768], index: 0, kind: input, shape index: {}]
  %s1 = inlined_call_operand.vmem [shape: bf16[4,768,192], index: 1, kind: input, shape index: {}]
  %s2 = inlined_call_operand.vmem [shape: f32[4,16,192], index: 2, kind: input, shape index: {}]
  %s3 = inlined_call_operand.vmem [shape: bf16[4,2,192,576], index: 3, kind: input, shape index: {}]
  %s4 = inlined_call_operand.vmem [shape: bf16[4,2,192,192], index: 4, kind: input, shape index: {}]
  %s5 = inlined_call_operand.vmem [shape: bf16[4,2,192,768], index: 5, kind: input, shape index: {}]
  %s6 = inlined_call_operand.vmem [shape: bf16[4,2,768,192], index: 6, kind: input, shape index: {}]
  %s7 = inlined_call_operand.vmem [shape: f32[4,2,8,768], index: 7, kind: input, shape index: {}]
  %s8 = inlined_call_operand.vmem [shape: f32[4,8,192], index: 8, kind: output, shape index: {}]
  %s9 = sld [smem:[#allocation0]]
  $region65: #{dual_forward.2} parent=0
    _
  %s11 = ssub.s32 1, %s9
  %s12 = scalar_select 0, %s11, %s9
  loop: start=0, step=1, limit=6
  $region2: #{dual_forward.2} parent=0 // loop_pre_header
    _
  $region3: #{dual_forward.2} parent=0 // loop_header
    %s14 = sphi 0, %s18
    %p15 = scmp.ge.s32.totalorder %s14, 6
    %s24 = sphi 0, %s26
    %s27 = sphi 0, %s24
    %s28 = sphi 0, %s27
    %s44 = sphi 0, %s28
    %s50 = sphi 0, %s52
    %s53 = sphi 0, %s50
    %s54 = sphi 0, %s53
    %s70 = sphi 0, %s54
    %s76 = sphi 0, %s78
    %s79 = sphi 0, %s76
    %s80 = sphi 0, %s79
    %s96 = sphi 0, %s80
    %s102 = sphi 0, %s104
    %s105 = sphi 0, %s102
    %s106 = sphi 0, %s105
    %s122 = sphi 0, %s106
    %s128 = sphi 0, %s130
    %s131 = sphi 0, %s128
    %s132 = sphi 0, %s131
    %s148 = sphi 0, %s132
    %s154 = sphi 0, %s156
    %s157 = sphi 0, %s154
    %s158 = sphi 0, %s157
    %s174 = sphi 0, %s158
    %s180 = sphi 0, %s182
    %s183 = sphi 0, %s180
    %s184 = sphi 0, %s183
    %s200 = sphi 0, %s184
    %s206 = sphi 0, %s208
    %s209 = sphi 0, %s206
    %s210 = sphi 0, %s209
    %s226 = sphi 0, %s210
    %s232 = sphi 0, %s234
    %s235 = sphi 0, %s232
    %s236 = sphi 0, %s235
    %s252 = sphi 0, %s236
  $region4: #{dual_forward.2} parent=0 // loop_header_branch
    %17 = sbr.rel (%p15) target = $region8
  $region5: #{dual_forward.2} parent=0 // loop_body
    %s19 = ssub.s32 %s14, 1
    %s20 = ssub.s32 %s14, 2
    %s21 = sadd.s32 %s14, 1
    %s22 = ssub.s32 %s14, %s21
    %p23 = scmp.eq.s32.totalorder %s22, 0
    %s25 = sadd.s32 %s24, 1
    %s26 = scalar_select %p23, %s24, %s25
    %p29 = pneg %p23
    %p30 = scmp.eq.s32.totalorder %s14, 3
    %p31 = por %p29, %p30
    %p32 = scmp.ne.s32.totalorder %s24, %s27
    %p33 = scmp.eq.s32.totalorder %s14, 0
    %p34 = por %p32, %p33
    %p35 = scmp.ne.s32.totalorder %s24, %s27
    %p36 = scmp.eq.s32.totalorder %s19, 3
    %p37 = por %p35, %p36
    %p38 = scmp.ne.s32.totalorder %s27, %s28
    %p39 = scmp.eq.s32.totalorder %s19, 0
    %p40 = por %p38, %p39
    %p41 = scmp.ne.s32.totalorder %s27, %s28
    %p42 = scmp.eq.s32.totalorder %s20, 3
    %p43 = por %p41, %p42
    %p45 = scmp.ne.s32.totalorder %s28, %s44
    %p46 = scmp.eq.s32.totalorder %s20, 0
    %p47 = por %p45, %p46
    %s48 = ssub.s32 %s14, %s21
    %p49 = scmp.eq.s32.totalorder %s48, 0
    %s51 = sadd.s32 %s50, 1
    %s52 = scalar_select %p49, %s50, %s51
    %p55 = pneg %p49
    %p56 = scmp.eq.s32.totalorder %s14, 3
    %p57 = por %p55, %p56
    %p58 = scmp.ne.s32.totalorder %s50, %s53
    %p59 = scmp.eq.s32.totalorder %s14, 0
    %p60 = por %p58, %p59
    %p61 = scmp.ne.s32.totalorder %s50, %s53
    %p62 = scmp.eq.s32.totalorder %s19, 3
    %p63 = por %p61, %p62
    %p64 = scmp.ne.s32.totalorder %s53, %s54
    %p65 = scmp.eq.s32.totalorder %s19, 0
    %p66 = por %p64, %p65
    %p67 = scmp.ne.s32.totalorder %s53, %s54
    %p68 = scmp.eq.s32.totalorder %s20, 3
    %p69 = por %p67, %p68
    %p71 = scmp.ne.s32.totalorder %s54, %s70
    %p72 = scmp.eq.s32.totalorder %s20, 0
    %p73 = por %p71, %p72
    %s74 = ssub.s32 %s14, %s21
    %p75 = scmp.eq.s32.totalorder %s74, 0
    %s77 = sadd.s32 %s76, 1
    %s78 = scalar_select %p75, %s76, %s77
    %p81 = pneg %p75
    %p82 = scmp.eq.s32.totalorder %s14, 3
    %p83 = por %p81, %p82
    %p84 = scmp.ne.s32.totalorder %s76, %s79
    %p85 = scmp.eq.s32.totalorder %s14, 0
    %p86 = por %p84, %p85
    %p87 = scmp.ne.s32.totalorder %s76, %s79
    %p88 = scmp.eq.s32.totalorder %s19, 3
    %p89 = por %p87, %p88
    %p90 = scmp.ne.s32.totalorder %s79, %s80
    %p91 = scmp.eq.s32.totalorder %s19, 0
    %p92 = por %p90, %p91
    %p93 = scmp.ne.s32.totalorder %s79, %s80
    %p94 = scmp.eq.s32.totalorder %s20, 3
    %p95 = por %p93, %p94
    %p97 = scmp.ne.s32.totalorder %s80, %s96
    %p98 = scmp.eq.s32.totalorder %s20, 0
    %p99 = por %p97, %p98
    %s100 = ssub.s32 %s14, %s21
    %p101 = scmp.eq.s32.totalorder %s100, 0
    %s103 = sadd.s32 %s102, 1
    %s104 = scalar_select %p101, %s102, %s103
    %p107 = pneg %p101
    %p108 = scmp.eq.s32.totalorder %s14, 3
    %p109 = por %p107, %p108
    %p110 = scmp.ne.s32.totalorder %s102, %s105
    %p111 = scmp.eq.s32.totalorder %s14, 0
    %p112 = por %p110, %p111
    %p113 = scmp.ne.s32.totalorder %s102, %s105
    %p114 = scmp.eq.s32.totalorder %s19, 3
    %p115 = por %p113, %p114
    %p116 = scmp.ne.s32.totalorder %s105, %s106
    %p117 = scmp.eq.s32.totalorder %s19, 0
    %p118 = por %p116, %p117
    %p119 = scmp.ne.s32.totalorder %s105, %s106
    %p120 = scmp.eq.s32.totalorder %s20, 3
    %p121 = por %p119, %p120
    %p123 = scmp.ne.s32.totalorder %s106, %s122
    %p124 = scmp.eq.s32.totalorder %s20, 0
    %p125 = por %p123, %p124
    %s126 = ssub.s32 %s14, %s21
    %p127 = scmp.eq.s32.totalorder %s126, 0
    %s129 = sadd.s32 %s128, 1
    %s130 = scalar_select %p127, %s128, %s129
    %p133 = pneg %p127
    %p134 = scmp.eq.s32.totalorder %s14, 3
    %p135 = por %p133, %p134
    %p136 = scmp.ne.s32.totalorder %s128, %s131
    %p137 = scmp.eq.s32.totalorder %s14, 0
    %p138 = por %p136, %p137
    %p139 = scmp.ne.s32.totalorder %s128, %s131
    %p140 = scmp.eq.s32.totalorder %s19, 3
    %p141 = por %p139, %p140
    %p142 = scmp.ne.s32.totalorder %s131, %s132
    %p143 = scmp.eq.s32.totalorder %s19, 0
    %p144 = por %p142, %p143
    %p145 = scmp.ne.s32.totalorder %s131, %s132
    %p146 = scmp.eq.s32.totalorder %s20, 3
    %p147 = por %p145, %p146
    %p149 = scmp.ne.s32.totalorder %s132, %s148
    %p150 = scmp.eq.s32.totalorder %s20, 0
    %p151 = por %p149, %p150
    %s152 = ssub.s32 %s14, %s21
    %p153 = scmp.eq.s32.totalorder %s152, 0
    %s155 = sadd.s32 %s154, 1
    %s156 = scalar_select %p153, %s154, %s155
    %p159 = pneg %p153
    %p160 = scmp.eq.s32.totalorder %s14, 3
    %p161 = por %p159, %p160
    %p162 = scmp.ne.s32.totalorder %s154, %s157
    %p163 = scmp.eq.s32.totalorder %s14, 0
    %p164 = por %p162, %p163
    %p165 = scmp.ne.s32.totalorder %s154, %s157
    %p166 = scmp.eq.s32.totalorder %s19, 3
    %p167 = por %p165, %p166
    %p168 = scmp.ne.s32.totalorder %s157, %s158
    %p169 = scmp.eq.s32.totalorder %s19, 0
    %p170 = por %p168, %p169
    %p171 = scmp.ne.s32.totalorder %s157, %s158
    %p172 = scmp.eq.s32.totalorder %s20, 3
    %p173 = por %p171, %p172
    %p175 = scmp.ne.s32.totalorder %s158, %s174
    %p176 = scmp.eq.s32.totalorder %s20, 0
    %p177 = por %p175, %p176
    %s178 = ssub.s32 %s14, %s21
    %p179 = scmp.eq.s32.totalorder %s178, 0
    %s181 = sadd.s32 %s180, 1
    %s182 = scalar_select %p179, %s180, %s181
    %p185 = pneg %p179
    %p186 = scmp.eq.s32.totalorder %s14, 3
    %p187 = por %p185, %p186
    %p188 = scmp.ne.s32.totalorder %s180, %s183
    %p189 = scmp.eq.s32.totalorder %s14, 0
    %p190 = por %p188, %p189
    %p191 = scmp.ne.s32.totalorder %s180, %s183
    %p192 = scmp.eq.s32.totalorder %s19, 3
    %p193 = por %p191, %p192
    %p194 = scmp.ne.s32.totalorder %s183, %s184
    %p195 = scmp.eq.s32.totalorder %s19, 0
    %p196 = por %p194, %p195
    %p197 = scmp.ne.s32.totalorder %s183, %s184
    %p198 = scmp.eq.s32.totalorder %s20, 3
    %p199 = por %p197, %p198
    %p201 = scmp.ne.s32.totalorder %s184, %s200
    %p202 = scmp.eq.s32.totalorder %s20, 0
    %p203 = por %p201, %p202
    %s204 = ssub.s32 %s14, %s21
    %p205 = scmp.eq.s32.totalorder %s204, 0
    %s207 = sadd.s32 %s206, 1
    %s208 = scalar_select %p205, %s206, %s207
    %p211 = pneg %p205
    %p212 = scmp.eq.s32.totalorder %s14, 3
    %p213 = por %p211, %p212
    %p214 = scmp.ne.s32.totalorder %s206, %s209
    %p215 = scmp.eq.s32.totalorder %s14, 0
    %p216 = por %p214, %p215
    %p217 = scmp.ne.s32.totalorder %s206, %s209
    %p218 = scmp.eq.s32.totalorder %s19, 3
    %p219 = por %p217, %p218
    %p220 = scmp.ne.s32.totalorder %s209, %s210
    %p221 = scmp.eq.s32.totalorder %s19, 0
    %p222 = por %p220, %p221
    %p223 = scmp.ne.s32.totalorder %s209, %s210
    %p224 = scmp.eq.s32.totalorder %s20, 3
    %p225 = por %p223, %p224
    %p227 = scmp.ne.s32.totalorder %s210, %s226
    %p228 = scmp.eq.s32.totalorder %s20, 0
    %p229 = por %p227, %p228
    %s230 = ssub.s32 %s14, %s21
    %p231 = scmp.eq.s32.totalorder %s230, 0
    %s233 = sadd.s32 %s232, 1
    %s234 = scalar_select %p231, %s232, %s233
    %p237 = pneg %p231
    %p238 = scmp.eq.s32.totalorder %s14, 3
    %p239 = por %p237, %p238
    %p240 = scmp.ne.s32.totalorder %s232, %s235
    %p241 = scmp.eq.s32.totalorder %s14, 0
    %p242 = por %p240, %p241
    %p243 = scmp.ne.s32.totalorder %s232, %s235
    %p244 = scmp.eq.s32.totalorder %s19, 3
    %p245 = por %p243, %p244
    %p246 = scmp.ne.s32.totalorder %s235, %s236
    %p247 = scmp.eq.s32.totalorder %s19, 0
    %p248 = por %p246, %p247
    %p249 = scmp.ne.s32.totalorder %s235, %s236
    %p250 = scmp.eq.s32.totalorder %s20, 3
    %p251 = por %p249, %p250
    %p253 = scmp.ne.s32.totalorder %s236, %s252
    %p254 = scmp.eq.s32.totalorder %s20, 0
    %p255 = por %p253, %p254
    %p256 = scmp.le.s32.totalorder 1, %s14
    %p257 = scmp.lt.s32.totalorder %s14, 5
    %p258 = pnand %p256, %p257
    %p259 = pneg %p258
    // Predicated region
    $region9: #{dual_forward.2} parent=5 // pred_check
      _
    $region10: #{dual_forward.2} parent=5 // pred_check_branch
      %261 = sbr.rel (%p258) target = $region12
    $region11: #{dual_forward.2} parent=5 // pred_region
      %s262 = ssub.s32 %s14, 1
    $region12: #{dual_forward.2} parent=5 // pred_fallthru
      _
    %p263 = scmp.lt.s32.totalorder %s14, 4
    // Predicated region
    $region13: #{dual_forward.2} parent=5 // pred_check
      %p264 = pneg %p263
    $region14: #{dual_forward.2} parent=5 // pred_check_branch
      %266 = sbr.rel (%p264) target = $region16
    $region15: #{dual_forward.2} parent=5 // pred_region
      // Predicated region
      $region17: #{dual_forward.2} parent=15 // pred_check
        %p267 = pneg %p34
      $region18: #{dual_forward.2} parent=15 // pred_check_branch
        %269 = sbr.rel (%p267) target = $region20
      $region19: #{dual_forward.2} parent=15 // pred_region
        %p270 = scmp.lt.s32.totalorder %s14, 3
        %s271 = scalar_select %p270, %s14, 3
        %s272 = smul.addr %s271, 12
        %s273 = smul.addr %s272, 8
        %s274 = scalar_lea.vmem %s0, %s273
      $region20: #{dual_forward.2} parent=15 // pred_fallthru
        _
      // Predicated region
      $region21: #{dual_forward.2} parent=15 // pred_check
        %p275 = pneg %p60
      $region22: #{dual_forward.2} parent=15 // pred_check_branch
        %277 = sbr.rel (%p275) target = $region24
      $region23: #{dual_forward.2} parent=15 // pred_region
        %p278 = scmp.lt.s32.totalorder %s14, 3
        %s279 = scalar_select %p278, %s14, 3
        %s280 = smul.addr %s279, 192
        %s281 = smul.addr %s280, 4
        %s282 = scalar_lea.vmem %s1, %s281
      $region24: #{dual_forward.2} parent=15 // pred_fallthru
        _
      // Predicated region
      $region25: #{dual_forward.2} parent=15 // pred_check
        %p283 = pneg %p86
      $region26: #{dual_forward.2} parent=15 // pred_check_branch
        %285 = sbr.rel (%p283) target = $region28
      $region27: #{dual_forward.2} parent=15 // pred_region
        %p286 = scmp.lt.s32.totalorder %s14, 3
        %s287 = scalar_select %p286, %s14, 3
        %s288 = smul.addr %s287, 4
        %s289 = smul.addr %s288, 8
        %s290 = scalar_lea.vmem %s2, %s289
      $region28: #{dual_forward.2} parent=15 // pred_fallthru
        _
      // Predicated region
      $region29: #{dual_forward.2} parent=15 // pred_check
        %p291 = pneg %p112
      $region30: #{dual_forward.2} parent=15 // pred_check_branch
        %293 = sbr.rel (%p291) target = $region32
      $region31: #{dual_forward.2} parent=15 // pred_region
        %p294 = scmp.lt.s32.totalorder %s14, 3
        %s295 = scalar_select %p294, %s14, 3
        %s296 = smul.addr %s295, 240
        %s297 = smul.addr %s296, 4
        %s298 = scalar_lea.vmem %s3, %s297
      $region32: #{dual_forward.2} parent=15 // pred_fallthru
        _
      // Predicated region
      $region33: #{dual_forward.2} parent=15 // pred_check
        %p299 = pneg %p138
      $region34: #{dual_forward.2} parent=15 // pred_check_branch
        %301 = sbr.rel (%p299) target = $region36
      $region35: #{dual_forward.2} parent=15 // pred_region
        %p302 = scmp.lt.s32.totalorder %s14, 3
        %s303 = scalar_select %p302, %s14, 3
        %s304 = smul.addr %s303, 96
        %s305 = smul.addr %s304, 4
        %s306 = scalar_lea.vmem %s4, %s305
      $region36: #{dual_forward.2} parent=15 // pred_fallthru
        _
      // Predicated region
      $region37: #{dual_forward.2} parent=15 // pred_check
        %p307 = pneg %p164
      $region38: #{dual_forward.2} parent=15 // pred_check_branch
        %309 = sbr.rel (%p307) target = $region40
      $region39: #{dual_forward.2} parent=15 // pred_region
        %p310 = scmp.lt.s32.totalorder %s14, 3
        %s311 = scalar_select %p310, %s14, 3
        %s312 = smul.addr %s311, 288
        %s313 = smul.addr %s312, 4
        %s314 = scalar_lea.vmem %s5, %s313
      $region40: #{dual_forward.2} parent=15 // pred_fallthru
        _
      // Predicated region
      $region41: #{dual_forward.2} parent=15 // pred_check
        %p315 = pneg %p190
      $region42: #{dual_forward.2} parent=15 // pred_check_branch
        %317 = sbr.rel (%p315) target = $region44
      $region43: #{dual_forward.2} parent=15 // pred_region
        %p318 = scmp.lt.s32.totalorder %s14, 3
        %s319 = scalar_select %p318, %s14, 3
        %s320 = smul.addr %s319, 384
        %s321 = smul.addr %s320, 4
        %s322 = scalar_lea.vmem %s6, %s321
      $region44: #{dual_forward.2} parent=15 // pred_fallthru
        _
      // Predicated region
      $region45: #{dual_forward.2} parent=15 // pred_check
        %p323 = pneg %p216
      $region46: #{dual_forward.2} parent=15 // pred_check_branch
        %325 = sbr.rel (%p323) target = $region48
      $region47: #{dual_forward.2} parent=15 // pred_region
        %p326 = scmp.lt.s32.totalorder %s14, 3
        %s327 = scalar_select %p326, %s14, 3
        %s328 = smul.addr %s327, 12
        %s329 = smul.addr %s328, 8
        %s330 = scalar_lea.vmem %s7, %s329
      $region48: #{dual_forward.2} parent=15 // pred_fallthru
        _
    $region16: #{dual_forward.2} parent=5 // pred_fallthru
      _
    %p331 = scmp.le.s32.totalorder 1, %s14
    %p332 = scmp.lt.s32.totalorder %s14, 5
    %p333 = pnand %p331, %p332
    %p334 = pneg %p333
    // Predicated region
    $region49: #{dual_forward.2} parent=5 // pred_check
      _
    $region50: #{dual_forward.2} parent=5 // pred_check_branch
      %336 = sbr.rel (%p333) target = $region52
    $region51: #{dual_forward.2} parent=5 // pred_region
      %s337 = ssub.s32 %s14, 1
      %p338 = scmp.lt.s32.totalorder %s19, 3
      %s339 = scalar_select %p338, %s19, 3
      %s340 = smul.addr %s339, 12
      %s341 = smul.addr %s340, 8
      %s342 = scalar_lea.vmem %s0, %s341
      %p343 = pneg %p40
      %p344 = pneg %p37
      %p345 = scmp.lt.s32.totalorder %s19, 3
      %s346 = scalar_select %p345, %s19, 3
      %s347 = smul.addr %s346, 192
      %s348 = smul.addr %s347, 4
      %s349 = scalar_lea.vmem %s1, %s348
      %p350 = pneg %p66
      %p351 = pneg %p63
      %p352 = scmp.lt.s32.totalorder %s19, 3
      %s353 = scalar_select %p352, %s19, 3
      %s354 = smul.addr %s353, 4
      %s355 = smul.addr %s354, 8
      %s356 = scalar_lea.vmem %s2, %s355
      %p357 = pneg %p92
      %p358 = pneg %p89
      %p359 = scmp.lt.s32.totalorder %s19, 3
      %s360 = scalar_select %p359, %s19, 3
      %s361 = smul.addr %s360, 240
      %s362 = smul.addr %s361, 4
      %s363 = scalar_lea.vmem %s3, %s362
      %p364 = pneg %p118
      %p365 = pneg %p115
      %p366 = scmp.lt.s32.totalorder %s19, 3
      %s367 = scalar_select %p366, %s19, 3
      %s368 = smul.addr %s367, 96
      %s369 = smul.addr %s368, 4
      %s370 = scalar_lea.vmem %s4, %s369
      %p371 = pneg %p144
      %p372 = pneg %p141
      %p373 = scmp.lt.s32.totalorder %s19, 3
      %s374 = scalar_select %p373, %s19, 3
      %s375 = smul.addr %s374, 288
      %s376 = smul.addr %s375, 4
      %s377 = scalar_lea.vmem %s5, %s376
      %p378 = pneg %p170
      %p379 = pneg %p167
      %p380 = scmp.lt.s32.totalorder %s19, 3
      %s381 = scalar_select %p380, %s19, 3
      %s382 = smul.addr %s381, 384
      %s383 = smul.addr %s382, 4
      %s384 = scalar_lea.vmem %s6, %s383
      %p385 = pneg %p196
      %p386 = pneg %p193
      %p387 = scmp.lt.s32.totalorder %s19, 3
      %s388 = scalar_select %p387, %s19, 3
      %s389 = smul.addr %s388, 12
      %s390 = smul.addr %s389, 8
      %s391 = scalar_lea.vmem %s7, %s390
      %p392 = pneg %p222
      %p393 = pneg %p219
      %p394 = pneg %p248
      %p395 = pneg %p245
      %p396 = scmp.lt.s32.totalorder %s19, 3
      %s397 = scalar_select %p396, %s19, 3
      %s398 = smul.addr %s397, 2
      %s399 = smul.addr %s398, 8
      %s400 = scalar_lea.vmem %s8, %s399
      %p401 = scmp.lt.s32.totalorder %s19, 3
      %s402 = scalar_select %p401, %s19, 3
      %s403 = smul.addr %s402, 12
      %s404 = smul.addr %s403, 8
      %s405 = scalar_lea.vmem %s0, %s404
      %p406 = scmp.lt.s32.totalorder %s19, 3
      %s407 = scalar_select %p406, %s19, 3
      %s408 = smul.addr %s407, 192
      %s409 = smul.addr %s408, 4
      %s410 = scalar_lea.vmem %s1, %s409
      %p411 = scmp.lt.s32.totalorder %s19, 3
      %s412 = scalar_select %p411, %s19, 3
      %s413 = smul.addr %s412, 4
      %s414 = smul.addr %s413, 8
      %s415 = scalar_lea.vmem %s2, %s414
      %p416 = scmp.lt.s32.totalorder %s19, 3
      %s417 = scalar_select %p416, %s19, 3
      %s418 = smul.addr %s417, 240
      %s419 = smul.addr %s418, 4
      %s420 = scalar_lea.vmem %s3, %s419
      %p421 = scmp.lt.s32.totalorder %s19, 3
      %s422 = scalar_select %p421, %s19, 3
      %s423 = smul.addr %s422, 96
      %s424 = smul.addr %s423, 4
      %s425 = scalar_lea.vmem %s4, %s424
      %p426 = scmp.lt.s32.totalorder %s19, 3
      %s427 = scalar_select %p426, %s19, 3
      %s428 = smul.addr %s427, 288
      %s429 = smul.addr %s428, 4
      %s430 = scalar_lea.vmem %s5, %s429
      %p431 = scmp.lt.s32.totalorder %s19, 3
      %s432 = scalar_select %p431, %s19, 3
      %s433 = smul.addr %s432, 384
      %s434 = smul.addr %s433, 4
      %s435 = scalar_lea.vmem %s6, %s434
      %p436 = scmp.lt.s32.totalorder %s19, 3
      %s437 = scalar_select %p436, %s19, 3
      %s438 = smul.addr %s437, 12
      %s439 = smul.addr %s438, 8
      %s440 = scalar_lea.vmem %s7, %s439
      %p441 = scmp.lt.s32.totalorder %s19, 3
      %s442 = scalar_select %p441, %s19, 3
      %s443 = smul.addr %s442, 2
      %s444 = smul.addr %s443, 8
      %s445 = scalar_lea.vmem %s8, %s444
      %v447 = vld [vmem:[%s405] sm:$0xff]
      %v448 = vld [vmem:[%s405 + $0x8] sm:$0xff]
      %v449 = vld [vmem:[%s405 + $0x10] sm:$0xff]
      %v450 = vld [vmem:[%s405 + $0x18] sm:$0xff]
      %v451 = vld [vmem:[%s405 + $0x20] sm:$0xff]
      %v452 = vld [vmem:[%s405 + $0x28] sm:$0xff]
      %v453 = vld [vmem:[%s405 + $0x30] sm:$0xff]
      %v454 = vld [vmem:[%s405 + $0x38] sm:$0xff]
      %v455 = vld [vmem:[%s405 + $0x40] sm:$0xff]
      %v456 = vld [vmem:[%s405 + $0x48] sm:$0xff]
      %v457 = vld [vmem:[%s405 + $0x50] sm:$0xff]
      %v458 = vld [vmem:[%s405 + $0x58] sm:$0xff]
      %v459 = vpack.c.bf16 %v453, %v447
      %v460 = vpack.c.bf16 %v454, %v448
      %v461 = vpack.c.bf16 %v455, %v449
      %v462 = vpack.c.bf16 %v456, %v450
      %v463 = vpack.c.bf16 %v457, %v451
      %v464 = vpack.c.bf16 %v458, %v452
      %v465 = vld [vmem:[%s410] sm:$0xff]
      %v466 = vld [vmem:[%s410 + $0x8] sm:$0xff]
      %v467 = vld [vmem:[%s410 + $0x10] sm:$0xff]
      %v468 = vld [vmem:[%s410 + $0x18] sm:$0xff]
      %v469 = vld [vmem:[%s410 + $0x20] sm:$0xff]
      %v470 = vld [vmem:[%s410 + $0x28] sm:$0xff]
      %v471 = vld [vmem:[%s410 + $0x30] sm:$0xff]
      %v472 = vld [vmem:[%s410 + $0x38] sm:$0xff]
      %v473 = vld [vmem:[%s410 + $0x40] sm:$0xff]
      %v474 = vld [vmem:[%s410 + $0x48] sm:$0xff]
      %v475 = vld [vmem:[%s410 + $0x50] sm:$0xff]
      %v476 = vld [vmem:[%s410 + $0x58] sm:$0xff]
      %v477 = vld [vmem:[%s410 + $0x60] sm:$0xff]
      %v478 = vld [vmem:[%s410 + $0x68] sm:$0xff]
      %v479 = vld [vmem:[%s410 + $0x70] sm:$0xff]
      %v480 = vld [vmem:[%s410 + $0x78] sm:$0xff]
      %v481 = vld [vmem:[%s410 + $0x80] sm:$0xff]
      %v482 = vld [vmem:[%s410 + $0x88] sm:$0xff]
      %v483 = vld [vmem:[%s410 + $0x90] sm:$0xff]
      %v484 = vld [vmem:[%s410 + $0x98] sm:$0xff]
      %v485 = vld [vmem:[%s410 + $0xa0] sm:$0xff]
      %v486 = vld [vmem:[%s410 + $0xa8] sm:$0xff]
      %v487 = vld [vmem:[%s410 + $0xb0] sm:$0xff]
      %v488 = vld [vmem:[%s410 + $0xb8] sm:$0xff]
      %v489 = vld [vmem:[%s410 + $0xc0] sm:$0xff]
      %v490 = vld [vmem:[%s410 + $0xc8] sm:$0xff]
      %v491 = vld [vmem:[%s410 + $0xd0] sm:$0xff]
      %v492 = vld [vmem:[%s410 + $0xd8] sm:$0xff]
      %v493 = vld [vmem:[%s410 + $0xe0] sm:$0xff]
      %v494 = vld [vmem:[%s410 + $0xe8] sm:$0xff]
      %v495 = vld [vmem:[%s410 + $0xf0] sm:$0xff]
      %v496 = vld [vmem:[%s410 + $0xf8] sm:$0xff]
      %v497 = vld [vmem:[%s410 + $0x100] sm:$0xff]
      %v498 = vld [vmem:[%s410 + $0x108] sm:$0xff]
      %v499 = vld [vmem:[%s410 + $0x110] sm:$0xff]
      %v500 = vld [vmem:[%s410 + $0x118] sm:$0xff]
      %v501 = vld [vmem:[%s410 + $0x120] sm:$0xff]
      %v502 = vld [vmem:[%s410 + $0x128] sm:$0xff]
      %v503 = vld [vmem:[%s410 + $0x130] sm:$0xff]
      %v504 = vld [vmem:[%s410 + $0x138] sm:$0xff]
      %v505 = vld [vmem:[%s410 + $0x140] sm:$0xff]
      %v506 = vld [vmem:[%s410 + $0x148] sm:$0xff]
      %v507 = vld [vmem:[%s410 + $0x150] sm:$0xff]
      %v508 = vld [vmem:[%s410 + $0x158] sm:$0xff]
      %v509 = vld [vmem:[%s410 + $0x160] sm:$0xff]
      %v510 = vld [vmem:[%s410 + $0x168] sm:$0xff]
      %v511 = vld [vmem:[%s410 + $0x170] sm:$0xff]
      %v512 = vld [vmem:[%s410 + $0x178] sm:$0xff]
      %v513 = vld [vmem:[%s410 + $0x180] sm:$0xff]
      %v514 = vld [vmem:[%s410 + $0x188] sm:$0xff]
      %v515 = vld [vmem:[%s410 + $0x190] sm:$0xff]
      %v516 = vld [vmem:[%s410 + $0x198] sm:$0xff]
      %v517 = vld [vmem:[%s410 + $0x1a0] sm:$0xff]
      %v518 = vld [vmem:[%s410 + $0x1a8] sm:$0xff]
      %v519 = vld [vmem:[%s410 + $0x1b0] sm:$0xff]
      %v520 = vld [vmem:[%s410 + $0x1b8] sm:$0xff]
      %v521 = vld [vmem:[%s410 + $0x1c0] sm:$0xff]
      %v522 = vld [vmem:[%s410 + $0x1c8] sm:$0xff]
      %v523 = vld [vmem:[%s410 + $0x1d0] sm:$0xff]
      %v524 = vld [vmem:[%s410 + $0x1d8] sm:$0xff]
      %v525 = vld [vmem:[%s410 + $0x1e0] sm:$0xff]
      %v526 = vld [vmem:[%s410 + $0x1e8] sm:$0xff]
      %v527 = vld [vmem:[%s410 + $0x1f0] sm:$0xff]
      %v528 = vld [vmem:[%s410 + $0x1f8] sm:$0xff]
      %v529 = vld [vmem:[%s410 + $0x200] sm:$0xff]
      %v530 = vld [vmem:[%s410 + $0x208] sm:$0xff]
      %v531 = vld [vmem:[%s410 + $0x210] sm:$0xff]
      %v532 = vld [vmem:[%s410 + $0x218] sm:$0xff]
      %v533 = vld [vmem:[%s410 + $0x220] sm:$0xff]
      %v534 = vld [vmem:[%s410 + $0x228] sm:$0xff]
      %v535 = vld [vmem:[%s410 + $0x230] sm:$0xff]
      %v536 = vld [vmem:[%s410 + $0x238] sm:$0xff]
      %v537 = vld [vmem:[%s410 + $0x240] sm:$0xff]
      %v538 = vld [vmem:[%s410 + $0x248] sm:$0xff]
      %v539 = vld [vmem:[%s410 + $0x250] sm:$0xff]
      %v540 = vld [vmem:[%s410 + $0x258] sm:$0xff]
      %v541 = vld [vmem:[%s410 + $0x260] sm:$0xff]
      %v542 = vld [vmem:[%s410 + $0x268] sm:$0xff]
      %v543 = vld [vmem:[%s410 + $0x270] sm:$0xff]
      %v544 = vld [vmem:[%s410 + $0x278] sm:$0xff]
      %v545 = vld [vmem:[%s410 + $0x280] sm:$0xff]
      %v546 = vld [vmem:[%s410 + $0x288] sm:$0xff]
      %v547 = vld [vmem:[%s410 + $0x290] sm:$0xff]
      %v548 = vld [vmem:[%s410 + $0x298] sm:$0xff]
      %v549 = vld [vmem:[%s410 + $0x2a0] sm:$0xff]
      %v550 = vld [vmem:[%s410 + $0x2a8] sm:$0xff]
      %v551 = vld [vmem:[%s410 + $0x2b0] sm:$0xff]
      %v552 = vld [vmem:[%s410 + $0x2b8] sm:$0xff]
      %v553 = vld [vmem:[%s410 + $0x2c0] sm:$0xff]
      %v554 = vld [vmem:[%s410 + $0x2c8] sm:$0xff]
      %v555 = vld [vmem:[%s410 + $0x2d0] sm:$0xff]
      %v556 = vld [vmem:[%s410 + $0x2d8] sm:$0xff]
      %v557 = vld [vmem:[%s410 + $0x2e0] sm:$0xff]
      %v558 = vld [vmem:[%s410 + $0x2e8] sm:$0xff]
      %v559 = vld [vmem:[%s410 + $0x2f0] sm:$0xff]
      %v560 = vld [vmem:[%s410 + $0x2f8] sm:$0xff]
      %v561 = vld [vmem:[%s415] sm:$0xff]
      %v562 = vld [vmem:[%s415 + $0x8] sm:$0xff]
      %v563 = vld [vmem:[%s415 + $0x10] sm:$0xff]
      %v564 = vld [vmem:[%s415 + $0x18] sm:$0xff]
      %v661 = vunpack.c.l.b16 %v465
      %v662 = vunpack.c.h.b16 %v465
      %v663 = vunpack.c.l.b16 %v466
      %v664 = vunpack.c.h.b16 %v466
      %v665 = vunpack.c.l.b16 %v467
      %v666 = vunpack.c.h.b16 %v467
      %v667 = vunpack.c.l.b16 %v468
      %v668 = vunpack.c.h.b16 %v468
      %v669 = vunpack.c.l.b16 %v469
      %v670 = vunpack.c.h.b16 %v469
      %v671 = vunpack.c.l.b16 %v470
      %v672 = vunpack.c.h.b16 %v470
      %v673 = vunpack.c.l.b16 %v471
      %v674 = vunpack.c.h.b16 %v471
      %v675 = vunpack.c.l.b16 %v472
      %v676 = vunpack.c.h.b16 %v472
      %v677 = vunpack.c.l.b16 %v473
      %v678 = vunpack.c.h.b16 %v473
      %v679 = vunpack.c.l.b16 %v474
      %v680 = vunpack.c.h.b16 %v474
      %v681 = vunpack.c.l.b16 %v475
      %v682 = vunpack.c.h.b16 %v475
      %v683 = vunpack.c.l.b16 %v476
      %v684 = vunpack.c.h.b16 %v476
      %v685 = vunpack.c.l.b16 %v477
      %v686 = vunpack.c.h.b16 %v477
      %v687 = vunpack.c.l.b16 %v478
      %v688 = vunpack.c.h.b16 %v478
      %v689 = vunpack.c.l.b16 %v479
      %v690 = vunpack.c.h.b16 %v479
      %v691 = vunpack.c.l.b16 %v480
      %v692 = vunpack.c.h.b16 %v480
      %v693 = vunpack.c.l.b16 %v481
      %v694 = vunpack.c.h.b16 %v481
      %v695 = vunpack.c.l.b16 %v482
      %v696 = vunpack.c.h.b16 %v482
      %v697 = vunpack.c.l.b16 %v483
      %v698 = vunpack.c.h.b16 %v483
      %v699 = vunpack.c.l.b16 %v484
      %v700 = vunpack.c.h.b16 %v484
      %v701 = vunpack.c.l.b16 %v485
      %v702 = vunpack.c.h.b16 %v485
      %v703 = vunpack.c.l.b16 %v486
      %v704 = vunpack.c.h.b16 %v486
      %v705 = vunpack.c.l.b16 %v487
      %v706 = vunpack.c.h.b16 %v487
      %v707 = vunpack.c.l.b16 %v488
      %v708 = vunpack.c.h.b16 %v488
      %v709 = vunpack.c.l.b16 %v489
      %v710 = vunpack.c.h.b16 %v489
      %v711 = vunpack.c.l.b16 %v490
      %v712 = vunpack.c.h.b16 %v490
      %v713 = vunpack.c.l.b16 %v491
      %v714 = vunpack.c.h.b16 %v491
      %v715 = vunpack.c.l.b16 %v492
      %v716 = vunpack.c.h.b16 %v492
      %v717 = vunpack.c.l.b16 %v493
      %v718 = vunpack.c.h.b16 %v493
      %v719 = vunpack.c.l.b16 %v494
      %v720 = vunpack.c.h.b16 %v494
      %v721 = vunpack.c.l.b16 %v495
      %v722 = vunpack.c.h.b16 %v495
      %v723 = vunpack.c.l.b16 %v496
      %v724 = vunpack.c.h.b16 %v496
      %v725 = vunpack.c.l.b16 %v497
      %v726 = vunpack.c.h.b16 %v497
      %v727 = vunpack.c.l.b16 %v498
      %v728 = vunpack.c.h.b16 %v498
      %v729 = vunpack.c.l.b16 %v499
      %v730 = vunpack.c.h.b16 %v499
      %v731 = vunpack.c.l.b16 %v500
      %v732 = vunpack.c.h.b16 %v500
      %v733 = vunpack.c.l.b16 %v501
      %v734 = vunpack.c.h.b16 %v501
      %v735 = vunpack.c.l.b16 %v502
      %v736 = vunpack.c.h.b16 %v502
      %v737 = vunpack.c.l.b16 %v503
      %v738 = vunpack.c.h.b16 %v503
      %v739 = vunpack.c.l.b16 %v504
      %v740 = vunpack.c.h.b16 %v504
      %v741 = vunpack.c.l.b16 %v505
      %v742 = vunpack.c.h.b16 %v505
      %v743 = vunpack.c.l.b16 %v506
      %v744 = vunpack.c.h.b16 %v506
      %v745 = vunpack.c.l.b16 %v507
      %v746 = vunpack.c.h.b16 %v507
      %v747 = vunpack.c.l.b16 %v508
      %v748 = vunpack.c.h.b16 %v508
      %v749 = vunpack.c.l.b16 %v509
      %v750 = vunpack.c.h.b16 %v509
      %v751 = vunpack.c.l.b16 %v510
      %v752 = vunpack.c.h.b16 %v510
      %v753 = vunpack.c.l.b16 %v511
      %v754 = vunpack.c.h.b16 %v511
      %v755 = vunpack.c.l.b16 %v512
      %v756 = vunpack.c.h.b16 %v512
      %v757 = vunpack.c.l.b16 %v513
      %v758 = vunpack.c.h.b16 %v513
      %v759 = vunpack.c.l.b16 %v514
      %v760 = vunpack.c.h.b16 %v514
      %v761 = vunpack.c.l.b16 %v515
      %v762 = vunpack.c.h.b16 %v515
      %v763 = vunpack.c.l.b16 %v516
      %v764 = vunpack.c.h.b16 %v516
      %v765 = vunpack.c.l.b16 %v517
      %v766 = vunpack.c.h.b16 %v517
      %v767 = vunpack.c.l.b16 %v518
      %v768 = vunpack.c.h.b16 %v518
      %v769 = vunpack.c.l.b16 %v519
      %v770 = vunpack.c.h.b16 %v519
      %v771 = vunpack.c.l.b16 %v520
      %v772 = vunpack.c.h.b16 %v520
      %v773 = vunpack.c.l.b16 %v521
      %v774 = vunpack.c.h.b16 %v521
      %v775 = vunpack.c.l.b16 %v522
      %v776 = vunpack.c.h.b16 %v522
      %v777 = vunpack.c.l.b16 %v523
      %v778 = vunpack.c.h.b16 %v523
      %v779 = vunpack.c.l.b16 %v524
      %v780 = vunpack.c.h.b16 %v524
      %v781 = vunpack.c.l.b16 %v525
      %v782 = vunpack.c.h.b16 %v525
      %v783 = vunpack.c.l.b16 %v526
      %v784 = vunpack.c.h.b16 %v526
      %v785 = vunpack.c.l.b16 %v527
      %v786 = vunpack.c.h.b16 %v527
      %v787 = vunpack.c.l.b16 %v528
      %v788 = vunpack.c.h.b16 %v528
      %v789 = vunpack.c.l.b16 %v529
      %v790 = vunpack.c.h.b16 %v529
      %v791 = vunpack.c.l.b16 %v530
      %v792 = vunpack.c.h.b16 %v530
      %v793 = vunpack.c.l.b16 %v531
      %v794 = vunpack.c.h.b16 %v531
      %v795 = vunpack.c.l.b16 %v532
      %v796 = vunpack.c.h.b16 %v532
      %v797 = vunpack.c.l.b16 %v533
      %v798 = vunpack.c.h.b16 %v533
      %v799 = vunpack.c.l.b16 %v534
      %v800 = vunpack.c.h.b16 %v534
      %v801 = vunpack.c.l.b16 %v535
      %v802 = vunpack.c.h.b16 %v535
      %v803 = vunpack.c.l.b16 %v536
      %v804 = vunpack.c.h.b16 %v536
      %v805 = vunpack.c.l.b16 %v537
      %v806 = vunpack.c.h.b16 %v537
      %v807 = vunpack.c.l.b16 %v538
      %v808 = vunpack.c.h.b16 %v538
      %v809 = vunpack.c.l.b16 %v539
      %v810 = vunpack.c.h.b16 %v539
      %v811 = vunpack.c.l.b16 %v540
      %v812 = vunpack.c.h.b16 %v540
      %v813 = vunpack.c.l.b16 %v541
      %v814 = vunpack.c.h.b16 %v541
      %v815 = vunpack.c.l.b16 %v542
      %v816 = vunpack.c.h.b16 %v542
      %v817 = vunpack.c.l.b16 %v543
      %v818 = vunpack.c.h.b16 %v543
      %v819 = vunpack.c.l.b16 %v544
      %v820 = vunpack.c.h.b16 %v544
      %v821 = vunpack.c.l.b16 %v545
      %v822 = vunpack.c.h.b16 %v545
      %v823 = vunpack.c.l.b16 %v546
      %v824 = vunpack.c.h.b16 %v546
      %v825 = vunpack.c.l.b16 %v547
      %v826 = vunpack.c.h.b16 %v547
      %v827 = vunpack.c.l.b16 %v548
      %v828 = vunpack.c.h.b16 %v548
      %v829 = vunpack.c.l.b16 %v549
      %v830 = vunpack.c.h.b16 %v549
      %v831 = vunpack.c.l.b16 %v550
      %v832 = vunpack.c.h.b16 %v550
      %v833 = vunpack.c.l.b16 %v551
      %v834 = vunpack.c.h.b16 %v551
      %v835 = vunpack.c.l.b16 %v552
      %v836 = vunpack.c.h.b16 %v552
      %v837 = vunpack.c.l.b16 %v553
      %v838 = vunpack.c.h.b16 %v553
      %v839 = vunpack.c.l.b16 %v554
      %v840 = vunpack.c.h.b16 %v554
      %v841 = vunpack.c.l.b16 %v555
      %v842 = vunpack.c.h.b16 %v555
      %v843 = vunpack.c.l.b16 %v556
      %v844 = vunpack.c.h.b16 %v556
      %v845 = vunpack.c.l.b16 %v557
      %v846 = vunpack.c.h.b16 %v557
      %v847 = vunpack.c.l.b16 %v558
      %v848 = vunpack.c.h.b16 %v558
      %v849 = vunpack.c.l.b16 %v559
      %v850 = vunpack.c.h.b16 %v559
      %v851 = vunpack.c.l.b16 %v560
      %v852 = vunpack.c.h.b16 %v560
      %v853 = vpack.c.b16 %v663, %v661
      %v854 = vpack.c.b16 %v664, %v662
      %v855 = vpack.c.b16 %v667, %v665
      %v856 = vpack.c.b16 %v668, %v666
      %v857 = vpack.c.b16 %v671, %v669
      %v858 = vpack.c.b16 %v672, %v670
      %v859 = vpack.c.b16 %v675, %v673
      %v860 = vpack.c.b16 %v676, %v674
      %v861 = vpack.c.b16 %v679, %v677
      %v862 = vpack.c.b16 %v680, %v678
      %v863 = vpack.c.b16 %v683, %v681
      %v864 = vpack.c.b16 %v684, %v682
      %v865 = vpack.c.b16 %v687, %v685
      %v866 = vpack.c.b16 %v688, %v686
      %v867 = vpack.c.b16 %v691, %v689
      %v868 = vpack.c.b16 %v692, %v690
      %v869 = vpack.c.b16 %v695, %v693
      %v870 = vpack.c.b16 %v696, %v694
      %v871 = vpack.c.b16 %v699, %v697
      %v872 = vpack.c.b16 %v700, %v698
      %v873 = vpack.c.b16 %v703, %v701
      %v874 = vpack.c.b16 %v704, %v702
      %v875 = vpack.c.b16 %v707, %v705
      %v876 = vpack.c.b16 %v708, %v706
      %v877 = vpack.c.b16 %v711, %v709
      %v878 = vpack.c.b16 %v712, %v710
      %v879 = vpack.c.b16 %v715, %v713
      %v880 = vpack.c.b16 %v716, %v714
      %v881 = vpack.c.b16 %v719, %v717
      %v882 = vpack.c.b16 %v720, %v718
      %v883 = vpack.c.b16 %v723, %v721
      %v884 = vpack.c.b16 %v724, %v722
      %v885 = vpack.c.b16 %v727, %v725
      %v886 = vpack.c.b16 %v728, %v726
      %v887 = vpack.c.b16 %v731, %v729
      %v888 = vpack.c.b16 %v732, %v730
      %v889 = vpack.c.b16 %v735, %v733
      %v890 = vpack.c.b16 %v736, %v734
      %v891 = vpack.c.b16 %v739, %v737
      %v892 = vpack.c.b16 %v740, %v738
      %v893 = vpack.c.b16 %v743, %v741
      %v894 = vpack.c.b16 %v744, %v742
      %v895 = vpack.c.b16 %v747, %v745
      %v896 = vpack.c.b16 %v748, %v746
      %v897 = vpack.c.b16 %v751, %v749
      %v898 = vpack.c.b16 %v752, %v750
      %v899 = vpack.c.b16 %v755, %v753
      %v900 = vpack.c.b16 %v756, %v754
      %v901 = vpack.c.b16 %v759, %v757
      %v902 = vpack.c.b16 %v760, %v758
      %v903 = vpack.c.b16 %v763, %v761
      %v904 = vpack.c.b16 %v764, %v762
      %v905 = vpack.c.b16 %v767, %v765
      %v906 = vpack.c.b16 %v768, %v766
      %v907 = vpack.c.b16 %v771, %v769
      %v908 = vpack.c.b16 %v772, %v770
      %v909 = vpack.c.b16 %v775, %v773
      %v910 = vpack.c.b16 %v776, %v774
      %v911 = vpack.c.b16 %v779, %v777
      %v912 = vpack.c.b16 %v780, %v778
      %v913 = vpack.c.b16 %v783, %v781
      %v914 = vpack.c.b16 %v784, %v782
      %v915 = vpack.c.b16 %v787, %v785
      %v916 = vpack.c.b16 %v788, %v786
      %v917 = vpack.c.b16 %v791, %v789
      %v918 = vpack.c.b16 %v792, %v790
      %v919 = vpack.c.b16 %v795, %v793
      %v920 = vpack.c.b16 %v796, %v794
      %v921 = vpack.c.b16 %v799, %v797
      %v922 = vpack.c.b16 %v800, %v798
      %v923 = vpack.c.b16 %v803, %v801
      %v924 = vpack.c.b16 %v804, %v802
      %v925 = vpack.c.b16 %v807, %v805
      %v926 = vpack.c.b16 %v808, %v806
      %v927 = vpack.c.b16 %v811, %v809
      %v928 = vpack.c.b16 %v812, %v810
      %v929 = vpack.c.b16 %v815, %v813
      %v930 = vpack.c.b16 %v816, %v814
      %v931 = vpack.c.b16 %v819, %v817
      %v932 = vpack.c.b16 %v820, %v818
      %v933 = vpack.c.b16 %v823, %v821
      %v934 = vpack.c.b16 %v824, %v822
      %v935 = vpack.c.b16 %v827, %v825
      %v936 = vpack.c.b16 %v828, %v826
      %v937 = vpack.c.b16 %v831, %v829
      %v938 = vpack.c.b16 %v832, %v830
      %v939 = vpack.c.b16 %v835, %v833
      %v940 = vpack.c.b16 %v836, %v834
      %v941 = vpack.c.b16 %v839, %v837
      %v942 = vpack.c.b16 %v840, %v838
      %v943 = vpack.c.b16 %v843, %v841
      %v944 = vpack.c.b16 %v844, %v842
      %v945 = vpack.c.b16 %v847, %v845
      %v946 = vpack.c.b16 %v848, %v846
      %v947 = vpack.c.b16 %v851, %v849
      %v948 = vpack.c.b16 %v852, %v850
      %1045 = vmatprep.subr.bf16.mxu0 %v854
      %1046 = vmatpush1.bf16.msra.mxu0 %v853
      %1047 = vmatprep.subr.bf16.mxu0 %v856
      %1048 = vmatpush1.bf16.msra.mxu0 %v855
      %1049 = vmatprep.subr.bf16.mxu0 %v858
      %1050 = vmatpush1.bf16.msra.mxu0 %v857
      %1051 = vmatprep.subr.bf16.mxu0 %v860
      %1052 = vmatpush1.bf16.msra.mxu0 %v859
      %1053 = vmatprep.subr.bf16.mxu0 %v862
      %1054 = vmatpush1.bf16.msra.mxu0 %v861
      %1055 = vmatprep.subr.bf16.mxu0 %v864
      %1056 = vmatpush1.bf16.msra.mxu0 %v863
      %1057 = vmatprep.subr.bf16.mxu0 %v866
      %1058 = vmatpush1.bf16.msra.mxu0 %v865
      %1059 = vmatprep.subr.bf16.mxu0 %v868
      %1060 = vmatpush1.bf16.msra.mxu0 %v867
      %1061 = vmatprep.subr.bf16.mxu0 %v870
      %1062 = vmatpush1.bf16.msra.mxu0 %v869
      %1063 = vmatprep.subr.bf16.mxu0 %v872
      %1064 = vmatpush1.bf16.msra.mxu0 %v871
      %1065 = vmatprep.subr.bf16.mxu0 %v874
      %1066 = vmatpush1.bf16.msra.mxu0 %v873
      %1067 = vmatprep.subr.bf16.mxu0 %v876
      %1068 = vmatpush1.bf16.msra.mxu0 %v875
      %1069 = vmatprep.subr.bf16.mxu0 %v878
      %1070 = vmatpush1.bf16.msra.mxu0 %v877
      %1071 = vmatprep.subr.bf16.mxu0 %v880
      %1072 = vmatpush1.bf16.msra.mxu0 %v879
      %1073 = vmatprep.subr.bf16.mxu0 %v882
      %1074 = vmatpush1.bf16.msra.mxu0 %v881
      %1075 = vmatprep.subr.bf16.mxu0 %v884
      %1076 = vmatpush1.bf16.msra.mxu0 %v883
      %1077 = vmatprep.mubr.bf16.mxu0 %v460
      %1078 = vmatmul.mubr.bf16.gmra.mrb[0].mxu0 %v459
      %v1079 = vpop.f32.mrb[0].mxu0
      %v1080 = vadd.f32 %v561, %v1079
      %v1081 = vpop.f32.mrb[0].mxu0
      %v1082 = vadd.f32 %v562, %v1081
      %v1083 = vpop.f32.mrb[0].mxu0
      %v1084 = vadd.f32 %v563, %v1083
      %v1085 = vpop.f32.mrb[0].mxu0
      %v1086 = vadd.f32 %v564, %v1085
      %1087 = vdwg.mxu0
      %1088 = vmatprep.subr.bf16.mxu0 %v886
      %1089 = vmatpush1.bf16.msra.mxu0 %v885
      %1090 = vmatprep.subr.bf16.mxu0 %v888
      %1091 = vmatpush1.bf16.msra.mxu0 %v887
      %1092 = vmatprep.subr.bf16.mxu0 %v890
      %1093 = vmatpush1.bf16.msra.mxu0 %v889
      %1094 = vmatprep.subr.bf16.mxu0 %v892
      %1095 = vmatpush1.bf16.msra.mxu0 %v891
      %1096 = vmatprep.subr.bf16.mxu0 %v894
      %1097 = vmatpush1.bf16.msra.mxu0 %v893
      %1098 = vmatprep.subr.bf16.mxu0 %v896
      %1099 = vmatpush1.bf16.msra.mxu0 %v895
      %1100 = vmatprep.subr.bf16.mxu0 %v898
      %1101 = vmatpush1.bf16.msra.mxu0 %v897
      %1102 = vmatprep.subr.bf16.mxu0 %v900
      %1103 = vmatpush1.bf16.msra.mxu0 %v899
      %1104 = vmatprep.subr.bf16.mxu0 %v902
      %1105 = vmatpush1.bf16.msra.mxu0 %v901
      %1106 = vmatprep.subr.bf16.mxu0 %v904
      %1107 = vmatpush1.bf16.msra.mxu0 %v903
      %1108 = vmatprep.subr.bf16.mxu0 %v906
      %1109 = vmatpush1.bf16.msra.mxu0 %v905
      %1110 = vmatprep.subr.bf16.mxu0 %v908
      %1111 = vmatpush1.bf16.msra.mxu0 %v907
      %1112 = vmatprep.subr.bf16.mxu0 %v910
      %1113 = vmatpush1.bf16.msra.mxu0 %v909
      %1114 = vmatprep.subr.bf16.mxu0 %v912
      %1115 = vmatpush1.bf16.msra.mxu0 %v911
      %1116 = vmatprep.subr.bf16.mxu0 %v914
      %1117 = vmatpush1.bf16.msra.mxu0 %v913
      %1118 = vmatprep.subr.bf16.mxu0 %v916
      %1119 = vmatpush1.bf16.msra.mxu0 %v915
      %1120 = vmatprep.mubr.bf16.mxu0 %v462
      %1121 = vmatmul.mubr.bf16.gmra.mrb[0].mxu0 %v461
      %v1122 = vpop.f32.mrb[0].mxu0
      %v1123 = vadd.f32 %v1080, %v1122
      %v1124 = vpop.f32.mrb[0].mxu0
      %v1125 = vadd.f32 %v1082, %v1124
      %v1126 = vpop.f32.mrb[0].mxu0
      %v1127 = vadd.f32 %v1084, %v1126
      %v1128 = vpop.f32.mrb[0].mxu0
      %v1129 = vadd.f32 %v1086, %v1128
      %1130 = vdwg.mxu0
      %1131 = vmatprep.subr.bf16.mxu0 %v918
      %1132 = vmatpush1.bf16.msra.mxu0 %v917
      %1133 = vmatprep.subr.bf16.mxu0 %v920
      %1134 = vmatpush1.bf16.msra.mxu0 %v919
      %1135 = vmatprep.subr.bf16.mxu0 %v922
      %1136 = vmatpush1.bf16.msra.mxu0 %v921
      %1137 = vmatprep.subr.bf16.mxu0 %v924
      %1138 = vmatpush1.bf16.msra.mxu0 %v923
      %1139 = vmatprep.subr.bf16.mxu0 %v926
      %1140 = vmatpush1.bf16.msra.mxu0 %v925
      %1141 = vmatprep.subr.bf16.mxu0 %v928
      %1142 = vmatpush1.bf16.msra.mxu0 %v927
      %1143 = vmatprep.subr.bf16.mxu0 %v930
      %1144 = vmatpush1.bf16.msra.mxu0 %v929
      %1145 = vmatprep.subr.bf16.mxu0 %v932
      %1146 = vmatpush1.bf16.msra.mxu0 %v931
      %1147 = vmatprep.subr.bf16.mxu0 %v934
      %1148 = vmatpush1.bf16.msra.mxu0 %v933
      %1149 = vmatprep.subr.bf16.mxu0 %v936
      %1150 = vmatpush1.bf16.msra.mxu0 %v935
      %1151 = vmatprep.subr.bf16.mxu0 %v938
      %1152 = vmatpush1.bf16.msra.mxu0 %v937
      %1153 = vmatprep.subr.bf16.mxu0 %v940
      %1154 = vmatpush1.bf16.msra.mxu0 %v939
      %1155 = vmatprep.subr.bf16.mxu0 %v942
      %1156 = vmatpush1.bf16.msra.mxu0 %v941
      %1157 = vmatprep.subr.bf16.mxu0 %v944
      %1158 = vmatpush1.bf16.msra.mxu0 %v943
      %1159 = vmatprep.subr.bf16.mxu0 %v946
      %1160 = vmatpush1.bf16.msra.mxu0 %v945
      %1161 = vmatprep.subr.bf16.mxu0 %v948
      %1162 = vmatpush1.bf16.msra.mxu0 %v947
      %1163 = vmatprep.mubr.bf16.mxu0 %v464
      %1164 = vmatmul.mubr.bf16.gmra.mrb[0].mxu0 %v463
      %v1165 = vpop.f32.mrb[0].mxu0
      %v1166 = vadd.f32 %v1123, %v1165
      %v1167 = vpop.f32.mrb[0].mxu0
      %v1168 = vadd.f32 %v1125, %v1167
      %v1169 = vpop.f32.mrb[0].mxu0
      %v1170 = vadd.f32 %v1127, %v1169
      %v1171 = vpop.f32.mrb[0].mxu0
      %v1172 = vadd.f32 %v1129, %v1171
      %1173 = vdwg.mxu0
      %v1174 = vlaneseq
      %v1175 = vand.u32 %v1174, 127
      %vm1176 = vcmp.lt.s32.totalorder %v1175, 5
      %v1177 = vsel %vm1176, 0.0, -1e+30
      %v1178 = vld [vmem:[%s440] sm:$0xff]
      %v1179 = vld [vmem:[%s440 + $0x8] sm:$0xff]
      %v1180 = vld [vmem:[%s440 + $0x10] sm:$0xff]
      %v1181 = vld [vmem:[%s440 + $0x18] sm:$0xff]
      %v1182 = vld [vmem:[%s440 + $0x20] sm:$0xff]
      %v1183 = vld [vmem:[%s440 + $0x28] sm:$0xff]
      %v1184 = vld [vmem:[%s420] sm:$0xff]
      %v1185 = vld [vmem:[%s420 + $0x8] sm:$0xff]
      %v1186 = vld [vmem:[%s420 + $0x10] sm:$0xf]
      %v1187 = vld [vmem:[%s420 + $0x14] sm:$0xff]
      %v1188 = vld [vmem:[%s420 + $0x1c] sm:$0xff]
      %v1189 = vld [vmem:[%s420 + $0x24] sm:$0xf]
      %v1190 = vld [vmem:[%s420 + $0x28] sm:$0xff]
      %v1191 = vld [vmem:[%s420 + $0x30] sm:$0xff]
      %v1192 = vld [vmem:[%s420 + $0x38] sm:$0xf]
      %v1193 = vld [vmem:[%s420 + $0x3c] sm:$0xff]
      %v1194 = vld [vmem:[%s420 + $0x44] sm:$0xff]
      %v1195 = vld [vmem:[%s420 + $0x4c] sm:$0xf]
      %v1196 = vld [vmem:[%s420 + $0x50] sm:$0xff]
      %v1197 = vld [vmem:[%s420 + $0x58] sm:$0xff]
      %v1198 = vld [vmem:[%s420 + $0x60] sm:$0xf]
      %v1199 = vld [vmem:[%s420 + $0x64] sm:$0xff]
      %v1200 = vld [vmem:[%s420 + $0x6c] sm:$0xff]
      %v1201 = vld [vmem:[%s420 + $0x74] sm:$0xf]
      %v1202 = vld [vmem:[%s420 + $0x78] sm:$0xff]
      %v1203 = vld [vmem:[%s420 + $0x80] sm:$0xff]
      %v1204 = vld [vmem:[%s420 + $0x88] sm:$0xf]
      %v1205 = vld [vmem:[%s420 + $0x8c] sm:$0xff]
      %v1206 = vld [vmem:[%s420 + $0x94] sm:$0xff]
      %v1207 = vld [vmem:[%s420 + $0x9c] sm:$0xf]
      %v1208 = vld [vmem:[%s420 + $0xa0] sm:$0xff]
      %v1209 = vld [vmem:[%s420 + $0xa8] sm:$0xff]
      %v1210 = vld [vmem:[%s420 + $0xb0] sm:$0xf]
      %v1211 = vld [vmem:[%s420 + $0xb4] sm:$0xff]
      %v1212 = vld [vmem:[%s420 + $0xbc] sm:$0xff]
      %v1213 = vld [vmem:[%s420 + $0xc4] sm:$0xf]
      %v1214 = vld [vmem:[%s420 + $0xc8] sm:$0xff]
      %v1215 = vld [vmem:[%s420 + $0xd0] sm:$0xff]
      %v1216 = vld [vmem:[%s420 + $0xd8] sm:$0xf]
      %v1217 = vld [vmem:[%s420 + $0xdc] sm:$0xff]
      %v1218 = vld [vmem:[%s420 + $0xe4] sm:$0xff]
      %v1219 = vld [vmem:[%s420 + $0xec] sm:$0xf]
      %v1220 = vld [vmem:[%s420 + $0xf0] sm:$0xff]
      %v1221 = vld [vmem:[%s420 + $0xf8] sm:$0xff]
      %v1222 = vld [vmem:[%s420 + $0x100] sm:$0xf]
      %v1223 = vld [vmem:[%s420 + $0x104] sm:$0xff]
      %v1224 = vld [vmem:[%s420 + $0x10c] sm:$0xff]
      %v1225 = vld [vmem:[%s420 + $0x114] sm:$0xf]
      %v1226 = vld [vmem:[%s420 + $0x118] sm:$0xff]
      %v1227 = vld [vmem:[%s420 + $0x120] sm:$0xff]
      %v1228 = vld [vmem:[%s420 + $0x128] sm:$0xf]
      %v1229 = vld [vmem:[%s420 + $0x12c] sm:$0xff]
      %v1230 = vld [vmem:[%s420 + $0x134] sm:$0xff]
      %v1231 = vld [vmem:[%s420 + $0x13c] sm:$0xf]
      %v1232 = vld [vmem:[%s420 + $0x140] sm:$0xff]
      %v1233 = vld [vmem:[%s420 + $0x148] sm:$0xff]
      %v1234 = vld [vmem:[%s420 + $0x150] sm:$0xf]
      %v1235 = vld [vmem:[%s420 + $0x154] sm:$0xff]
      %v1236 = vld [vmem:[%s420 + $0x15c] sm:$0xff]
      %v1237 = vld [vmem:[%s420 + $0x164] sm:$0xf]
      %v1238 = vld [vmem:[%s420 + $0x168] sm:$0xff]
      %v1239 = vld [vmem:[%s420 + $0x170] sm:$0xff]
      %v1240 = vld [vmem:[%s420 + $0x178] sm:$0xf]
      %v1241 = vld [vmem:[%s420 + $0x17c] sm:$0xff]
      %v1242 = vld [vmem:[%s420 + $0x184] sm:$0xff]
      %v1243 = vld [vmem:[%s420 + $0x18c] sm:$0xf]
      %v1244 = vld [vmem:[%s420 + $0x190] sm:$0xff]
      %v1245 = vld [vmem:[%s420 + $0x198] sm:$0xff]
      %v1246 = vld [vmem:[%s420 + $0x1a0] sm:$0xf]
      %v1247 = vld [vmem:[%s420 + $0x1a4] sm:$0xff]
      %v1248 = vld [vmem:[%s420 + $0x1ac] sm:$0xff]
      %v1249 = vld [vmem:[%s420 + $0x1b4] sm:$0xf]
      %v1250 = vld [vmem:[%s420 + $0x1b8] sm:$0xff]
      %v1251 = vld [vmem:[%s420 + $0x1c0] sm:$0xff]
      %v1252 = vld [vmem:[%s420 + $0x1c8] sm:$0xf]
      %v1253 = vld [vmem:[%s420 + $0x1cc] sm:$0xff]
      %v1254 = vld [vmem:[%s420 + $0x1d4] sm:$0xff]
      %v1255 = vld [vmem:[%s420 + $0x1dc] sm:$0xf]
      %v1256 = vld [vmem:[%s425] sm:$0xff]
      %v1257 = vld [vmem:[%s425 + $0x8] sm:$0xff]
      %v1258 = vld [vmem:[%s425 + $0x10] sm:$0xff]
      %v1259 = vld [vmem:[%s425 + $0x18] sm:$0xff]
      %v1260 = vld [vmem:[%s425 + $0x20] sm:$0xff]
      %v1261 = vld [vmem:[%s425 + $0x28] sm:$0xff]
      %v1262 = vld [vmem:[%s425 + $0x30] sm:$0xff]
      %v1263 = vld [vmem:[%s425 + $0x38] sm:$0xff]
      %v1264 = vld [vmem:[%s425 + $0x40] sm:$0xff]
      %v1265 = vld [vmem:[%s425 + $0x48] sm:$0xff]
      %v1266 = vld [vmem:[%s425 + $0x50] sm:$0xff]
      %v1267 = vld [vmem:[%s425 + $0x58] sm:$0xff]
      %v1268 = vld [vmem:[%s425 + $0x60] sm:$0xff]
      %v1269 = vld [vmem:[%s425 + $0x68] sm:$0xff]
      %v1270 = vld [vmem:[%s425 + $0x70] sm:$0xff]
      %v1271 = vld [vmem:[%s425 + $0x78] sm:$0xff]
      %v1272 = vld [vmem:[%s425 + $0x80] sm:$0xff]
      %v1273 = vld [vmem:[%s425 + $0x88] sm:$0xff]
      %v1274 = vld [vmem:[%s425 + $0x90] sm:$0xff]
      %v1275 = vld [vmem:[%s425 + $0x98] sm:$0xff]
      %v1276 = vld [vmem:[%s425 + $0xa0] sm:$0xff]
      %v1277 = vld [vmem:[%s425 + $0xa8] sm:$0xff]
      %v1278 = vld [vmem:[%s425 + $0xb0] sm:$0xff]
      %v1279 = vld [vmem:[%s425 + $0xb8] sm:$0xff]
      %v1280 = vld [vmem:[%s430] sm:$0xff]
      %v1281 = vld [vmem:[%s430 + $0x8] sm:$0xff]
      %v1282 = vld [vmem:[%s430 + $0x10] sm:$0xff]
      %v1283 = vld [vmem:[%s430 + $0x18] sm:$0xff]
      %v1284 = vld [vmem:[%s430 + $0x20] sm:$0xff]
      %v1285 = vld [vmem:[%s430 + $0x28] sm:$0xff]
      %v1286 = vld [vmem:[%s430 + $0x30] sm:$0xff]
      %v1287 = vld [vmem:[%s430 + $0x38] sm:$0xff]
      %v1288 = vld [vmem:[%s430 + $0x40] sm:$0xff]
      %v1289 = vld [vmem:[%s430 + $0x48] sm:$0xff]
      %v1290 = vld [vmem:[%s430 + $0x50] sm:$0xff]
      %v1291 = vld [vmem:[%s430 + $0x58] sm:$0xff]
      %v1292 = vld [vmem:[%s430 + $0x60] sm:$0xff]
      %v1293 = vld [vmem:[%s430 + $0x68] sm:$0xff]
      %v1294 = vld [vmem:[%s430 + $0x70] sm:$0xff]
      %v1295 = vld [vmem:[%s430 + $0x78] sm:$0xff]
      %v1296 = vld [vmem:[%s430 + $0x80] sm:$0xff]
      %v1297 = vld [vmem:[%s430 + $0x88] sm:$0xff]
      %v1298 = vld [vmem:[%s430 + $0x90] sm:$0xff]
      %v1299 = vld [vmem:[%s430 + $0x98] sm:$0xff]
      %v1300 = vld [vmem:[%s430 + $0xa0] sm:$0xff]
      %v1301 = vld [vmem:[%s430 + $0xa8] sm:$0xff]
      %v1302 = vld [vmem:[%s430 + $0xb0] sm:$0xff]
      %v1303 = vld [vmem:[%s430 + $0xb8] sm:$0xff]
      %v1304 = vld [vmem:[%s430 + $0xc0] sm:$0xff]
      %v1305 = vld [vmem:[%s430 + $0xc8] sm:$0xff]
      %v1306 = vld [vmem:[%s430 + $0xd0] sm:$0xff]
      %v1307 = vld [vmem:[%s430 + $0xd8] sm:$0xff]
      %v1308 = vld [vmem:[%s430 + $0xe0] sm:$0xff]
      %v1309 = vld [vmem:[%s430 + $0xe8] sm:$0xff]
      %v1310 = vld [vmem:[%s430 + $0xf0] sm:$0xff]
      %v1311 = vld [vmem:[%s430 + $0xf8] sm:$0xff]
      %v1312 = vld [vmem:[%s430 + $0x100] sm:$0xff]
      %v1313 = vld [vmem:[%s430 + $0x108] sm:$0xff]
      %v1314 = vld [vmem:[%s430 + $0x110] sm:$0xff]
      %v1315 = vld [vmem:[%s430 + $0x118] sm:$0xff]
      %v1316 = vld [vmem:[%s430 + $0x120] sm:$0xff]
      %v1317 = vld [vmem:[%s430 + $0x128] sm:$0xff]
      %v1318 = vld [vmem:[%s430 + $0x130] sm:$0xff]
      %v1319 = vld [vmem:[%s430 + $0x138] sm:$0xff]
      %v1320 = vld [vmem:[%s430 + $0x140] sm:$0xff]
      %v1321 = vld [vmem:[%s430 + $0x148] sm:$0xff]
      %v1322 = vld [vmem:[%s430 + $0x150] sm:$0xff]
      %v1323 = vld [vmem:[%s430 + $0x158] sm:$0xff]
      %v1324 = vld [vmem:[%s430 + $0x160] sm:$0xff]
      %v1325 = vld [vmem:[%s430 + $0x168] sm:$0xff]
      %v1326 = vld [vmem:[%s430 + $0x170] sm:$0xff]
      %v1327 = vld [vmem:[%s430 + $0x178] sm:$0xff]
      %v1328 = vld [vmem:[%s430 + $0x180] sm:$0xff]
      %v1329 = vld [vmem:[%s430 + $0x188] sm:$0xff]
      %v1330 = vld [vmem:[%s430 + $0x190] sm:$0xff]
      %v1331 = vld [vmem:[%s430 + $0x198] sm:$0xff]
      %v1332 = vld [vmem:[%s430 + $0x1a0] sm:$0xff]
      %v1333 = vld [vmem:[%s430 + $0x1a8] sm:$0xff]
      %v1334 = vld [vmem:[%s430 + $0x1b0] sm:$0xff]
      %v1335 = vld [vmem:[%s430 + $0x1b8] sm:$0xff]
      %v1336 = vld [vmem:[%s430 + $0x1c0] sm:$0xff]
      %v1337 = vld [vmem:[%s430 + $0x1c8] sm:$0xff]
      %v1338 = vld [vmem:[%s430 + $0x1d0] sm:$0xff]
      %v1339 = vld [vmem:[%s430 + $0x1d8] sm:$0xff]
      %v1340 = vld [vmem:[%s430 + $0x1e0] sm:$0xff]
      %v1341 = vld [vmem:[%s430 + $0x1e8] sm:$0xff]
      %v1342 = vld [vmem:[%s430 + $0x1f0] sm:$0xff]
      %v1343 = vld [vmem:[%s430 + $0x1f8] sm:$0xff]
      %v1344 = vld [vmem:[%s430 + $0x200] sm:$0xff]
      %v1345 = vld [vmem:[%s430 + $0x208] sm:$0xff]
      %v1346 = vld [vmem:[%s430 + $0x210] sm:$0xff]
      %v1347 = vld [vmem:[%s430 + $0x218] sm:$0xff]
      %v1348 = vld [vmem:[%s430 + $0x220] sm:$0xff]
      %v1349 = vld [vmem:[%s430 + $0x228] sm:$0xff]
      %v1350 = vld [vmem:[%s430 + $0x230] sm:$0xff]
      %v1351 = vld [vmem:[%s430 + $0x238] sm:$0xff]
      %v1352 = vld [vmem:[%s435] sm:$0xff]
      %v1353 = vld [vmem:[%s435 + $0x8] sm:$0xff]
      %v1354 = vld [vmem:[%s435 + $0x10] sm:$0xff]
      %v1355 = vld [vmem:[%s435 + $0x18] sm:$0xff]
      %v1356 = vld [vmem:[%s435 + $0x20] sm:$0xff]
      %v1357 = vld [vmem:[%s435 + $0x28] sm:$0xff]
      %v1358 = vld [vmem:[%s435 + $0x30] sm:$0xff]
      %v1359 = vld [vmem:[%s435 + $0x38] sm:$0xff]
      %v1360 = vld [vmem:[%s435 + $0x40] sm:$0xff]
      %v1361 = vld [vmem:[%s435 + $0x48] sm:$0xff]
      %v1362 = vld [vmem:[%s435 + $0x50] sm:$0xff]
      %v1363 = vld [vmem:[%s435 + $0x58] sm:$0xff]
      %v1364 = vld [vmem:[%s435 + $0x60] sm:$0xff]
      %v1365 = vld [vmem:[%s435 + $0x68] sm:$0xff]
      %v1366 = vld [vmem:[%s435 + $0x70] sm:$0xff]
      %v1367 = vld [vmem:[%s435 + $0x78] sm:$0xff]
      %v1368 = vld [vmem:[%s435 + $0x80] sm:$0xff]
      %v1369 = vld [vmem:[%s435 + $0x88] sm:$0xff]
      %v1370 = vld [vmem:[%s435 + $0x90] sm:$0xff]
      %v1371 = vld [vmem:[%s435 + $0x98] sm:$0xff]
      %v1372 = vld [vmem:[%s435 + $0xa0] sm:$0xff]
      %v1373 = vld [vmem:[%s435 + $0xa8] sm:$0xff]
      %v1374 = vld [vmem:[%s435 + $0xb0] sm:$0xff]
      %v1375 = vld [vmem:[%s435 + $0xb8] sm:$0xff]
      %v1376 = vld [vmem:[%s435 + $0xc0] sm:$0xff]
      %v1377 = vld [vmem:[%s435 + $0xc8] sm:$0xff]
      %v1378 = vld [vmem:[%s435 + $0xd0] sm:$0xff]
      %v1379 = vld [vmem:[%s435 + $0xd8] sm:$0xff]
      %v1380 = vld [vmem:[%s435 + $0xe0] sm:$0xff]
      %v1381 = vld [vmem:[%s435 + $0xe8] sm:$0xff]
      %v1382 = vld [vmem:[%s435 + $0xf0] sm:$0xff]
      %v1383 = vld [vmem:[%s435 + $0xf8] sm:$0xff]
      %v1384 = vld [vmem:[%s435 + $0x100] sm:$0xff]
      %v1385 = vld [vmem:[%s435 + $0x108] sm:$0xff]
      %v1386 = vld [vmem:[%s435 + $0x110] sm:$0xff]
      %v1387 = vld [vmem:[%s435 + $0x118] sm:$0xff]
      %v1388 = vld [vmem:[%s435 + $0x120] sm:$0xff]
      %v1389 = vld [vmem:[%s435 + $0x128] sm:$0xff]
      %v1390 = vld [vmem:[%s435 + $0x130] sm:$0xff]
      %v1391 = vld [vmem:[%s435 + $0x138] sm:$0xff]
      %v1392 = vld [vmem:[%s435 + $0x140] sm:$0xff]
      %v1393 = vld [vmem:[%s435 + $0x148] sm:$0xff]
      %v1394 = vld [vmem:[%s435 + $0x150] sm:$0xff]
      %v1395 = vld [vmem:[%s435 + $0x158] sm:$0xff]
      %v1396 = vld [vmem:[%s435 + $0x160] sm:$0xff]
      %v1397 = vld [vmem:[%s435 + $0x168] sm:$0xff]
      %v1398 = vld [vmem:[%s435 + $0x170] sm:$0xff]
      %v1399 = vld [vmem:[%s435 + $0x178] sm:$0xff]
      %v1400 = vld [vmem:[%s435 + $0x180] sm:$0xff]
      %v1401 = vld [vmem:[%s435 + $0x188] sm:$0xff]
      %v1402 = vld [vmem:[%s435 + $0x190] sm:$0xff]
      %v1403 = vld [vmem:[%s435 + $0x198] sm:$0xff]
      %v1404 = vld [vmem:[%s435 + $0x1a0] sm:$0xff]
      %v1405 = vld [vmem:[%s435 + $0x1a8] sm:$0xff]
      %v1406 = vld [vmem:[%s435 + $0x1b0] sm:$0xff]
      %v1407 = vld [vmem:[%s435 + $0x1b8] sm:$0xff]
      %v1408 = vld [vmem:[%s435 + $0x1c0] sm:$0xff]
      %v1409 = vld [vmem:[%s435 + $0x1c8] sm:$0xff]
      %v1410 = vld [vmem:[%s435 + $0x1d0] sm:$0xff]
      %v1411 = vld [vmem:[%s435 + $0x1d8] sm:$0xff]
      %v1412 = vld [vmem:[%s435 + $0x1e0] sm:$0xff]
      %v1413 = vld [vmem:[%s435 + $0x1e8] sm:$0xff]
      %v1414 = vld [vmem:[%s435 + $0x1f0] sm:$0xff]
      %v1415 = vld [vmem:[%s435 + $0x1f8] sm:$0xff]
      %v1416 = vld [vmem:[%s435 + $0x200] sm:$0xff]
      %v1417 = vld [vmem:[%s435 + $0x208] sm:$0xff]
      %v1418 = vld [vmem:[%s435 + $0x210] sm:$0xff]
      %v1419 = vld [vmem:[%s435 + $0x218] sm:$0xff]
      %v1420 = vld [vmem:[%s435 + $0x220] sm:$0xff]
      %v1421 = vld [vmem:[%s435 + $0x228] sm:$0xff]
      %v1422 = vld [vmem:[%s435 + $0x230] sm:$0xff]
      %v1423 = vld [vmem:[%s435 + $0x238] sm:$0xff]
      %v1424 = vld [vmem:[%s435 + $0x240] sm:$0xff]
      %v1425 = vld [vmem:[%s435 + $0x248] sm:$0xff]
      %v1426 = vld [vmem:[%s435 + $0x250] sm:$0xff]
      %v1427 = vld [vmem:[%s435 + $0x258] sm:$0xff]
      %v1428 = vld [vmem:[%s435 + $0x260] sm:$0xff]
      %v1429 = vld [vmem:[%s435 + $0x268] sm:$0xff]
      %v1430 = vld [vmem:[%s435 + $0x270] sm:$0xff]
      %v1431 = vld [vmem:[%s435 + $0x278] sm:$0xff]
      %v1432 = vld [vmem:[%s435 + $0x280] sm:$0xff]
      %v1433 = vld [vmem:[%s435 + $0x288] sm:$0xff]
      %v1434 = vld [vmem:[%s435 + $0x290] sm:$0xff]
      %v1435 = vld [vmem:[%s435 + $0x298] sm:$0xff]
      %v1436 = vld [vmem:[%s435 + $0x2a0] sm:$0xff]
      %v1437 = vld [vmem:[%s435 + $0x2a8] sm:$0xff]
      %v1438 = vld [vmem:[%s435 + $0x2b0] sm:$0xff]
      %v1439 = vld [vmem:[%s435 + $0x2b8] sm:$0xff]
      %v1440 = vld [vmem:[%s435 + $0x2c0] sm:$0xff]
      %v1441 = vld [vmem:[%s435 + $0x2c8] sm:$0xff]
      %v1442 = vld [vmem:[%s435 + $0x2d0] sm:$0xff]
      %v1443 = vld [vmem:[%s435 + $0x2d8] sm:$0xff]
      %v1444 = vld [vmem:[%s435 + $0x2e0] sm:$0xff]
      %v1445 = vld [vmem:[%s435 + $0x2e8] sm:$0xff]
      %v1446 = vld [vmem:[%s435 + $0x2f0] sm:$0xff]
      %v1447 = vld [vmem:[%s435 + $0x2f8] sm:$0xff]
      %vm1448 = vcmask 523264
      %v1449 = vsel %vm1448, %v1168, 0.0
      %v1450 = vadd.f32 %v1166, %v1449
      %1451 = vadd.xlane.f32.xlu0 %v1450
      %v1452 = vpop.xlane.xlu0 %1451
      %v1453 = vsel %vm1448, %v1172, 0.0
      %v1454 = vadd.f32 %v1170, %v1453
      %1455 = vadd.xlane.f32.xlu0 %v1454
      %v1456 = vpop.xlane.xlu0 %1455
      %v1457 = vrcp.pop 192.0
      %v1458 = vmul.f32 %v1452, %v1457
      %v1459 = vmul.f32 %v1456, %v1457
      %v1460 = vsub.f32 %v1166, %v1458
      %v1461 = vsub.f32 %v1168, %v1458
      %v1462 = vsub.f32 %v1170, %v1459
      %v1463 = vsub.f32 %v1172, %v1459
      %v1464 = vmul.f32 %v1460, %v1460
      %v1465 = vmul.f32 %v1461, %v1461
      %v1466 = vmul.f32 %v1462, %v1462
      %v1467 = vmul.f32 %v1463, %v1463
      %v1468 = vsel %vm1448, %v1465, 0.0
      %v1469 = vadd.f32 %v1464, %v1468
      %1470 = vadd.xlane.f32.xlu0 %v1469
      %v1471 = vpop.xlane.xlu0 %1470
      %v1472 = vsel %vm1448, %v1467, 0.0
      %v1473 = vadd.f32 %v1466, %v1472
      %1474 = vadd.xlane.f32.xlu0 %v1473
      %v1475 = vpop.xlane.xlu0 %1474
      %v1476 = vmul.f32 %v1471, %v1457
      %v1477 = vmul.f32 %v1475, %v1457
      %v1478 = vadd.f32 %v1476, 1e-12
      %v1479 = vadd.f32 %v1477, 1e-12
      %v1480 = vrsqrt.pop %v1478
      %v1481 = vrsqrt.pop %v1479
      %v1482 = vmul.f32 %v1460, %v1480
      %v1483 = vmul.f32 %v1461, %v1480
      %v1484 = vmul.f32 %v1462, %v1481
      %v1485 = vmul.f32 %v1463, %v1481
      %v1486 = vlaneseq
      %v1487 = vshrl.u32 %v1486, 7
      %v1488 = vsub.s32 0, %v1487
      %v1489 = vrot.slane %v1178, %v1488
      %v1490 = vlaneseq
      %v1491 = vshrl.u32 %v1490, 7
      %v1492 = vsub.s32 0, %v1491
      %v1493 = vrot.slane %v1179, %v1492
      %v1494 = vmul.f32 %v1482, %v1489
      %v1495 = vmul.f32 %v1483, %v1493
      %v1496 = vmul.f32 %v1484, %v1489
      %v1497 = vmul.f32 %v1485, %v1493
      %v1498 = vlaneseq
      %v1499 = vshrl.u32 %v1498, 7
      %v1500 = vsub.s32 1, %v1499
      %v1501 = vrot.slane %v1178, %v1500
      %v1502 = vlaneseq
      %v1503 = vshrl.u32 %v1502, 7
      %v1504 = vsub.s32 1, %v1503
      %v1505 = vrot.slane %v1179, %v1504
      %v1506 = vadd.f32 %v1494, %v1501
      %v1507 = vadd.f32 %v1495, %v1505
      %v1508 = vadd.f32 %v1496, %v1501
      %v1509 = vadd.f32 %v1497, %v1505
      %v1510 = vpack.c.bf16 %v1508, %v1506
      %v1511 = vpack.c.bf16 %v1509, %v1507
      %v1512 = vlaneseq
      %v1513 = vshrl.u32 %v1512, 7
      %v1514 = vsub.s32 2, %v1513
      %v1515 = vrot.slane %v1178, %v1514
      %v1516 = vlaneseq
      %v1517 = vshrl.u32 %v1516, 7
      %v1518 = vsub.s32 2, %v1517
      %v1519 = vrot.slane %v1179, %v1518
      %v1520 = vlaneseq
      %v1521 = vshrl.u32 %v1520, 7
      %v1522 = vsub.s32 2, %v1521
      %v1523 = vrot.slane %v1180, %v1522
      %v1524 = vlaneseq
      %v1525 = vshrl.u32 %v1524, 7
      %v1526 = vsub.s32 2, %v1525
      %v1527 = vrot.slane %v1181, %v1526
      %v1528 = vlaneseq
      %v1529 = vshrl.u32 %v1528, 7
      %v1530 = vsub.s32 2, %v1529
      %v1531 = vrot.slane %v1182, %v1530
      %v1604 = vunpack.c.l.b16 %v1184
      %v1605 = vunpack.c.h.b16 %v1184
      %v1606 = vunpack.c.l.b16 %v1185
      %v1607 = vunpack.c.h.b16 %v1185
      %v1608 = vunpack.c.l.b16 %v1186
      %v1609 = vunpack.c.l.b16 %v1187
      %v1610 = vunpack.c.h.b16 %v1187
      %v1611 = vunpack.c.l.b16 %v1188
      %v1612 = vunpack.c.h.b16 %v1188
      %v1613 = vunpack.c.l.b16 %v1189
      %v1614 = vunpack.c.l.b16 %v1190
      %v1615 = vunpack.c.h.b16 %v1190
      %v1616 = vunpack.c.l.b16 %v1191
      %v1617 = vunpack.c.h.b16 %v1191
      %v1618 = vunpack.c.l.b16 %v1192
      %v1619 = vunpack.c.l.b16 %v1193
      %v1620 = vunpack.c.h.b16 %v1193
      %v1621 = vunpack.c.l.b16 %v1194
      %v1622 = vunpack.c.h.b16 %v1194
      %v1623 = vunpack.c.l.b16 %v1195
      %v1624 = vunpack.c.l.b16 %v1196
      %v1625 = vunpack.c.h.b16 %v1196
      %v1626 = vunpack.c.l.b16 %v1197
      %v1627 = vunpack.c.h.b16 %v1197
      %v1628 = vunpack.c.l.b16 %v1198
      %v1629 = vunpack.c.l.b16 %v1199
      %v1630 = vunpack.c.h.b16 %v1199
      %v1631 = vunpack.c.l.b16 %v1200
      %v1632 = vunpack.c.h.b16 %v1200
      %v1633 = vunpack.c.l.b16 %v1201
      %v1634 = vunpack.c.l.b16 %v1202
      %v1635 = vunpack.c.h.b16 %v1202
      %v1636 = vunpack.c.l.b16 %v1203
      %v1637 = vunpack.c.h.b16 %v1203
      %v1638 = vunpack.c.l.b16 %v1204
      %v1639 = vunpack.c.l.b16 %v1205
      %v1640 = vunpack.c.h.b16 %v1205
      %v1641 = vunpack.c.l.b16 %v1206
      %v1642 = vunpack.c.h.b16 %v1206
      %v1643 = vunpack.c.l.b16 %v1207
      %v1644 = vunpack.c.l.b16 %v1208
      %v1645 = vunpack.c.h.b16 %v1208
      %v1646 = vunpack.c.l.b16 %v1209
      %v1647 = vunpack.c.h.b16 %v1209
      %v1648 = vunpack.c.l.b16 %v1210
      %v1649 = vunpack.c.l.b16 %v1211
      %v1650 = vunpack.c.h.b16 %v1211
      %v1651 = vunpack.c.l.b16 %v1212
      %v1652 = vunpack.c.h.b16 %v1212
      %v1653 = vunpack.c.l.b16 %v1213
      %v1654 = vunpack.c.l.b16 %v1214
      %v1655 = vunpack.c.h.b16 %v1214
      %v1656 = vunpack.c.l.b16 %v1215
      %v1657 = vunpack.c.h.b16 %v1215
      %v1658 = vunpack.c.l.b16 %v1216
      %v1659 = vunpack.c.l.b16 %v1217
      %v1660 = vunpack.c.h.b16 %v1217
      %v1661 = vunpack.c.l.b16 %v1218
      %v1662 = vunpack.c.h.b16 %v1218
      %v1663 = vunpack.c.l.b16 %v1219
      %v1664 = vunpack.c.l.b16 %v1220
      %v1665 = vunpack.c.h.b16 %v1220
      %v1666 = vunpack.c.l.b16 %v1221
      %v1667 = vunpack.c.h.b16 %v1221
      %v1668 = vunpack.c.l.b16 %v1222
      %v1669 = vunpack.c.l.b16 %v1223
      %v1670 = vunpack.c.h.b16 %v1223
      %v1671 = vunpack.c.l.b16 %v1224
      %v1672 = vunpack.c.h.b16 %v1224
      %v1673 = vunpack.c.l.b16 %v1225
      %v1674 = vunpack.c.l.b16 %v1226
      %v1675 = vunpack.c.h.b16 %v1226
      %v1676 = vunpack.c.l.b16 %v1227
      %v1677 = vunpack.c.h.b16 %v1227
      %v1678 = vunpack.c.l.b16 %v1228
      %v1679 = vunpack.c.l.b16 %v1229
      %v1680 = vunpack.c.h.b16 %v1229
      %v1681 = vunpack.c.l.b16 %v1230
      %v1682 = vunpack.c.h.b16 %v1230
      %v1683 = vunpack.c.l.b16 %v1231
      %v1684 = vunpack.c.l.b16 %v1232
      %v1685 = vunpack.c.h.b16 %v1232
      %v1686 = vunpack.c.l.b16 %v1233
      %v1687 = vunpack.c.h.b16 %v1233
      %v1688 = vunpack.c.l.b16 %v1234
      %v1689 = vunpack.c.l.b16 %v1235
      %v1690 = vunpack.c.h.b16 %v1235
      %v1691 = vunpack.c.l.b16 %v1236
      %v1692 = vunpack.c.h.b16 %v1236
      %v1693 = vunpack.c.l.b16 %v1237
      %v1694 = vunpack.c.l.b16 %v1238
      %v1695 = vunpack.c.h.b16 %v1238
      %v1696 = vunpack.c.l.b16 %v1239
      %v1697 = vunpack.c.h.b16 %v1239
      %v1698 = vunpack.c.l.b16 %v1240
      %v1699 = vunpack.c.l.b16 %v1241
      %v1700 = vunpack.c.h.b16 %v1241
      %v1701 = vunpack.c.l.b16 %v1242
      %v1702 = vunpack.c.h.b16 %v1242
      %v1703 = vunpack.c.l.b16 %v1243
      %v1704 = vunpack.c.l.b16 %v1244
      %v1705 = vunpack.c.h.b16 %v1244
      %v1706 = vunpack.c.l.b16 %v1245
      %v1707 = vunpack.c.h.b16 %v1245
      %v1708 = vunpack.c.l.b16 %v1246
      %v1709 = vunpack.c.l.b16 %v1247
      %v1710 = vunpack.c.h.b16 %v1247
      %v1711 = vunpack.c.l.b16 %v1248
      %v1712 = vunpack.c.h.b16 %v1248
      %v1713 = vunpack.c.l.b16 %v1249
      %v1714 = vunpack.c.l.b16 %v1250
      %v1715 = vunpack.c.h.b16 %v1250
      %v1716 = vunpack.c.l.b16 %v1251
      %v1717 = vunpack.c.h.b16 %v1251
      %v1718 = vunpack.c.l.b16 %v1252
      %v1719 = vunpack.c.l.b16 %v1253
      %v1720 = vunpack.c.h.b16 %v1253
      %v1721 = vunpack.c.l.b16 %v1254
      %v1722 = vunpack.c.h.b16 %v1254
      %v1723 = vunpack.c.l.b16 %v1255
      %v1724 = vpack.c.b16 %v1609, %v1604
      %v1725 = vpack.c.b16 %v1610, %v1605
      %v1726 = vpack.c.b16 %v1611, %v1606
      %v1727 = vpack.c.b16 %v1612, %v1607
      %v1728 = vpack.c.b16 %v1613, %v1608
      %v1729 = vpack.c.b16 %v1619, %v1614
      %v1730 = vpack.c.b16 %v1620, %v1615
      %v1731 = vpack.c.b16 %v1621, %v1616
      %v1732 = vpack.c.b16 %v1622, %v1617
      %v1733 = vpack.c.b16 %v1623, %v1618
      %v1734 = vpack.c.b16 %v1629, %v1624
      %v1735 = vpack.c.b16 %v1630, %v1625
      %v1736 = vpack.c.b16 %v1631, %v1626
      %v1737 = vpack.c.b16 %v1632, %v1627
      %v1738 = vpack.c.b16 %v1633, %v1628
      %v1739 = vpack.c.b16 %v1639, %v1634
      %v1740 = vpack.c.b16 %v1640, %v1635
      %v1741 = vpack.c.b16 %v1641, %v1636
      %v1742 = vpack.c.b16 %v1642, %v1637
      %v1743 = vpack.c.b16 %v1643, %v1638
      %v1744 = vpack.c.b16 %v1649, %v1644
      %v1745 = vpack.c.b16 %v1650, %v1645
      %v1746 = vpack.c.b16 %v1651, %v1646
      %v1747 = vpack.c.b16 %v1652, %v1647
      %v1748 = vpack.c.b16 %v1653, %v1648
      %v1749 = vpack.c.b16 %v1659, %v1654
      %v1750 = vpack.c.b16 %v1660, %v1655
      %v1751 = vpack.c.b16 %v1661, %v1656
      %v1752 = vpack.c.b16 %v1662, %v1657
      %v1753 = vpack.c.b16 %v1663, %v1658
      %v1754 = vpack.c.b16 %v1669, %v1664
      %v1755 = vpack.c.b16 %v1670, %v1665
      %v1756 = vpack.c.b16 %v1671, %v1666
      %v1757 = vpack.c.b16 %v1672, %v1667
      %v1758 = vpack.c.b16 %v1673, %v1668
      %v1759 = vpack.c.b16 %v1679, %v1674
      %v1760 = vpack.c.b16 %v1680, %v1675
      %v1761 = vpack.c.b16 %v1681, %v1676
      %v1762 = vpack.c.b16 %v1682, %v1677
      %v1763 = vpack.c.b16 %v1683, %v1678
      %v1764 = vpack.c.b16 %v1689, %v1684
      %v1765 = vpack.c.b16 %v1690, %v1685
      %v1766 = vpack.c.b16 %v1691, %v1686
      %v1767 = vpack.c.b16 %v1692, %v1687
      %v1768 = vpack.c.b16 %v1693, %v1688
      %v1769 = vpack.c.b16 %v1699, %v1694
      %v1770 = vpack.c.b16 %v1700, %v1695
      %v1771 = vpack.c.b16 %v1701, %v1696
      %v1772 = vpack.c.b16 %v1702, %v1697
      %v1773 = vpack.c.b16 %v1703, %v1698
      %v1774 = vpack.c.b16 %v1709, %v1704
      %v1775 = vpack.c.b16 %v1710, %v1705
      %v1776 = vpack.c.b16 %v1711, %v1706
      %v1777 = vpack.c.b16 %v1712, %v1707
      %v1778 = vpack.c.b16 %v1713, %v1708
      %v1779 = vpack.c.b16 %v1719, %v1714
      %v1780 = vpack.c.b16 %v1720, %v1715
      %v1781 = vpack.c.b16 %v1721, %v1716
      %v1782 = vpack.c.b16 %v1722, %v1717
      %v1783 = vpack.c.b16 %v1723, %v1718
      %v1845 = vsel %vm1448, %v1511, 0
      %1847 = vmatprep.subr.bf16.mxu0 %v1725
      %1848 = vmatpush1.bf16.msra.mxu0 %v1724
      %1849 = vmatprep.subr.bf16.mxu0 %v1730
      %1850 = vmatpush1.bf16.msra.mxu0 %v1729
      %1851 = vmatprep.subr.bf16.mxu0 %v1735
      %1852 = vmatpush1.bf16.msra.mxu0 %v1734
      %1853 = vmatprep.subr.bf16.mxu0 %v1740
      %1854 = vmatpush1.bf16.msra.mxu0 %v1739
      %1855 = vmatprep.subr.bf16.mxu0 %v1745
      %1856 = vmatpush1.bf16.msra.mxu0 %v1744
      %1857 = vmatprep.subr.bf16.mxu0 %v1750
      %1858 = vmatpush1.bf16.msra.mxu0 %v1749
      %1859 = vmatprep.subr.bf16.mxu0 %v1755
      %1860 = vmatpush1.bf16.msra.mxu0 %v1754
      %1861 = vmatprep.subr.bf16.mxu0 %v1760
      %1862 = vmatpush1.bf16.msra.mxu0 %v1759
      %1863 = vmatprep.subr.bf16.mxu0 %v1765
      %1864 = vmatpush1.bf16.msra.mxu0 %v1764
      %1865 = vmatprep.subr.bf16.mxu0 %v1770
      %1866 = vmatpush1.bf16.msra.mxu0 %v1769
      %1867 = vmatprep.subr.bf16.mxu0 %v1775
      %1868 = vmatpush1.bf16.msra.mxu0 %v1774
      %1869 = vmatprep.subr.bf16.mxu0 %v1780
      %1870 = vmatpush1.bf16.msra.mxu0 %v1779
      %1871 = vmatprep.subr.bf16.mxu0 0
      %1872 = vmatpush1.bf16.msra.mxu0 0
      %1873 = vmatprep.subr.bf16.mxu0 0
      %1874 = vmatpush1.bf16.msra.mxu0 0
      %1875 = vmatprep.subr.bf16.mxu0 0
      %1876 = vmatpush1.bf16.msra.mxu0 0
      %1877 = vmatprep.subr.bf16.mxu0 0
      %1878 = vmatpush1.bf16.msra.mxu0 0
      %1879 = vmatprep.mubr.bf16.mxu0 %v1845
      %1880 = vmatmul.mubr.bf16.gmra.mrb[0].mxu0 %v1510
      %v1881 = vpop.f32.mrb[0].mxu0
      %v1882 = vadd.f32 %v1515, %v1881
      %v1883 = vpop.f32.mrb[0].mxu0
      %v1884 = vadd.f32 %v1519, %v1883
      %v1885 = vpop.f32.mrb[0].mxu0
      %v1886 = vadd.f32 %v1515, %v1885
      %v1887 = vpop.f32.mrb[0].mxu0
      %v1888 = vadd.f32 %v1519, %v1887
      %1889 = vdwg.mxu0
      %1890 = vmatprep.subr.bf16.mxu0 %v1727
      %1891 = vmatpush1.bf16.msra.mxu0 %v1726
      %1892 = vmatprep.subr.bf16.mxu0 %v1732
      %1893 = vmatpush1.bf16.msra.mxu0 %v1731
      %1894 = vmatprep.subr.bf16.mxu0 %v1737
      %1895 = vmatpush1.bf16.msra.mxu0 %v1736
      %1896 = vmatprep.subr.bf16.mxu0 %v1742
      %1897 = vmatpush1.bf16.msra.mxu0 %v1741
      %1898 = vmatprep.subr.bf16.mxu0 %v1747
      %1899 = vmatpush1.bf16.msra.mxu0 %v1746
      %1900 = vmatprep.subr.bf16.mxu0 %v1752
      %1901 = vmatpush1.bf16.msra.mxu0 %v1751
      %1902 = vmatprep.subr.bf16.mxu0 %v1757
      %1903 = vmatpush1.bf16.msra.mxu0 %v1756
      %1904 = vmatprep.subr.bf16.mxu0 %v1762
      %1905 = vmatpush1.bf16.msra.mxu0 %v1761
      %1906 = vmatprep.subr.bf16.mxu0 %v1767
      %1907 = vmatpush1.bf16.msra.mxu0 %v1766
      %1908 = vmatprep.subr.bf16.mxu0 %v1772
      %1909 = vmatpush1.bf16.msra.mxu0 %v1771
      %1910 = vmatprep.subr.bf16.mxu0 %v1777
      %1911 = vmatpush1.bf16.msra.mxu0 %v1776
      %1912 = vmatprep.subr.bf16.mxu0 %v1782
      %1913 = vmatpush1.bf16.msra.mxu0 %v1781
      %1914 = vmatprep.subr.bf16.mxu0 0
      %1915 = vmatpush1.bf16.msra.mxu0 0
      %1916 = vmatprep.subr.bf16.mxu0 0
      %1917 = vmatpush1.bf16.msra.mxu0 0
      %1918 = vmatprep.subr.bf16.mxu0 0
      %1919 = vmatpush1.bf16.msra.mxu0 0
      %1920 = vmatprep.subr.bf16.mxu0 0
      %1921 = vmatpush1.bf16.msra.mxu0 0
      %1922 = vmatprep.mubr.bf16.mxu0 %v1845
      %1923 = vmatmul.mubr.bf16.gmra.mrb[0].mxu0 %v1510
      %v1924 = vpop.f32.mrb[0].mxu0
      %v1925 = vadd.f32 %v1523, %v1924
      %v1926 = vpop.f32.mrb[0].mxu0
      %v1927 = vadd.f32 %v1527, %v1926
      %v1928 = vpop.f32.mrb[0].mxu0
      %v1929 = vadd.f32 %v1523, %v1928
      %v1930 = vpop.f32.mrb[0].mxu0
      %v1931 = vadd.f32 %v1527, %v1930
      %1932 = vdwg.mxu0
      %1933 = vmatprep.subr.bf16.mxu0 0
      %1934 = vmatpush1.bf16.msra.mxu0 %v1728
      %1935 = vmatprep.subr.bf16.mxu0 0
      %1936 = vmatpush1.bf16.msra.mxu0 %v1733
      %1937 = vmatprep.subr.bf16.mxu0 0
      %1938 = vmatpush1.bf16.msra.mxu0 %v1738
      %1939 = vmatprep.subr.bf16.mxu0 0
      %1940 = vmatpush1.bf16.msra.mxu0 %v1743
      %1941 = vmatprep.subr.bf16.mxu0 0
      %1942 = vmatpush1.bf16.msra.mxu0 %v1748
      %1943 = vmatprep.subr.bf16.mxu0 0
      %1944 = vmatpush1.bf16.msra.mxu0 %v1753
      %1945 = vmatprep.subr.bf16.mxu0 0
      %1946 = vmatpush1.bf16.msra.mxu0 %v1758
      %1947 = vmatprep.subr.bf16.mxu0 0
      %1948 = vmatpush1.bf16.msra.mxu0 %v1763
      %1949 = vmatprep.subr.bf16.mxu0 0
      %1950 = vmatpush1.bf16.msra.mxu0 %v1768
      %1951 = vmatprep.subr.bf16.mxu0 0
      %1952 = vmatpush1.bf16.msra.mxu0 %v1773
      %1953 = vmatprep.subr.bf16.mxu0 0
      %1954 = vmatpush1.bf16.msra.mxu0 %v1778
      %1955 = vmatprep.subr.bf16.mxu0 0
      %1956 = vmatpush1.bf16.msra.mxu0 %v1783
      %1957 = vmatprep.subr.bf16.mxu0 0
      %1958 = vmatpush1.bf16.msra.mxu0 0
      %1959 = vmatprep.subr.bf16.mxu0 0
      %1960 = vmatpush1.bf16.msra.mxu0 0
      %1961 = vmatprep.subr.bf16.mxu0 0
      %1962 = vmatpush1.bf16.msra.mxu0 0
      %1963 = vmatprep.subr.bf16.mxu0 0
      %1964 = vmatpush1.bf16.msra.mxu0 0
      %1965 = vmatprep.mubr.bf16.mxu0 %v1845
      %1966 = vmatmul.mubr.bf16.gmra.mrb[0].mxu0 %v1510
      %v1967 = vpop.f32.mrb[0].mxu0
      %v1968 = vadd.f32 %v1531, %v1967
      %v1969 = vpop.f32.mrb[0].mxu0
      %v1970 = vpop.f32.mrb[0].mxu0
      %v1971 = vadd.f32 %v1531, %v1970
      %v1972 = vpop.f32.mrb[0].mxu0
      %1973 = vdwg.mxu0
      %v1974 = vmul.f32 %v1882, 0.125
      %v1975 = vmul.f32 %v1884, 0.125
      %v1976 = vmul.f32 %v1886, 0.125
      %v1977 = vmul.f32 %v1888, 0.125
      %1979 = vrot.lane.b32.xlu0 %v1884, 64
      %v1980 = vpop.permute.xlu0 %1979
      %v1982 = vsel %vm1448, %v1974, 0
      %v1984 = vsel %vm1448, %v1980, 0
      %1986 = vmatprep.subr.mxu0 0.0
      %1987 = vmatpush1.xpose.msra.mxu0 %v1984
      %1988 = vmatprep.subr.mxu0 0.0
      %1989 = vmatpush1.xpose.msra.mxu0 0.0
      %1990 = vmatprep.subr.mxu0 0.0
      %1991 = vmatpush1.xpose.msra.mxu0 0.0
      %1992 = vmatprep.subr.mxu0 0.0
      %1993 = vmatpush1.xpose.msra.mxu0 0.0
      %1994 = vmatprep.subr.mxu0 0.0
      %1995 = vmatpush1.xpose.msra.mxu0 0.0
      %1996 = vmatprep.subr.mxu0 0.0
      %1997 = vmatpush1.xpose.msra.mxu0 0.0
      %1998 = vmatprep.subr.mxu0 0.0
      %1999 = vmatpush1.xpose.msra.mxu0 0.0
      %2000 = vmatprep.subr.mxu0 0.0
      %2001 = vmatpush1.xpose.msra.mxu0 0.0
      %2002 = vmatprep.subr.mxu0 0.0
      %2003 = vmatpush1.xpose.msra.mxu0 0.0
      %2004 = vmatprep.subr.mxu0 0.0
      %2005 = vmatpush1.xpose.msra.mxu0 0.0
      %2006 = vmatprep.subr.mxu0 0.0
      %2007 = vmatpush1.xpose.msra.mxu0 0.0
      %2008 = vmatprep.subr.mxu0 0.0
      %2009 = vmatpush1.xpose.msra.mxu0 0.0
      %2010 = vmatprep.subr.mxu0 0.0
      %2011 = vmatpush1.xpose.msra.mxu0 0.0
      %2012 = vmatprep.subr.mxu0 0.0
      %2013 = vmatpush1.xpose.msra.mxu0 0.0
      %2014 = vmatprep.subr.mxu0 0.0
      %2015 = vmatpush1.xpose.msra.mxu0 0.0
      %2016 = vmatprep.subr.mxu0 0.0
      %2017 = vmatpush1.xpose.msra.mxu0 0.0
      %2018 = vmatprep.subr.mxu0 0.0
      %2019 = vmatpush1.xpose.msra.mxu0 0.0
      %2020 = vmatprep.subr.mxu0 0.0
      %2021 = vmatpush1.xpose.msra.mxu0 0.0
      %2022 = vmatprep.subr.mxu0 0.0
      %2023 = vmatpush1.xpose.msra.mxu0 0.0
      %2024 = vmatprep.subr.mxu0 0.0
      %2025 = vmatpush1.xpose.msra.mxu0 0.0
      %2026 = vmatprep.subr.mxu0 0.0
      %2027 = vmatpush1.xpose.msra.mxu0 0.0
      %2028 = vmatprep.subr.mxu0 0.0
      %2029 = vmatpush1.xpose.msra.mxu0 0.0
      %2030 = vmatprep.subr.mxu0 0.0
      %2031 = vmatpush1.xpose.msra.mxu0 0.0
      %2032 = vmatprep.subr.mxu0 0.0
      %2033 = vmatpush1.xpose.msra.mxu0 0.0
      %2034 = vmatprep.subr.mxu0 0.0
      %2035 = vmatpush1.xpose.msra.mxu0 0.0
      %2036 = vmatprep.subr.mxu0 0.0
      %2037 = vmatpush1.xpose.msra.mxu0 0.0
      %2038 = vmatprep.subr.mxu0 0.0
      %2039 = vmatpush1.xpose.msra.mxu0 0.0
      %2040 = vmatprep.subr.mxu0 0.0
      %2041 = vmatpush1.xpose.msra.mxu0 0.0
      %2042 = vmatprep.subr.mxu0 0.0
      %2043 = vmatpush1.xpose.msra.mxu0 0.0
      %2044 = vmatprep.subr.mxu0 0.0
      %2045 = vmatpush1.xpose.msra.mxu0 0.0
      %2046 = vmatprep.subr.mxu0 0.0
      %2047 = vmatpush1.xpose.msra.mxu0 0.0
      %2048 = vmatprep.subr.mxu0 0.0
      %2049 = vmatpush1.xpose.msra.mxu0 0.0
      %2050 = vmatprep.mubr.f32.mxu0 0.0
      %2051 = vmatmul.mubr.f32.gmra.mrb[0].mxu0 %v1982
      %v2052 = vpop.f32.mrb[0].mxu0
      %v2053 = vadd.f32 %v1177, %v2052
      %v2054 = vpop.f32.mrb[0].mxu0
      %2055 = vdwg.mxu0
      %vm2056 = vcmask 64512
      %v2057 = vsel %vm2056, %v2053, -inf
      %2058 = vmax.xlane.f32.xlu0 %v2057
      %v2059 = vpop.xlane.xlu0 %2058
      %v2060 = vsub.f32 %v2053, %v2059
      %v2061 = vmul.f32 %v2060, 1.442695
      %v2062 = vpow.pop %v2061
      %v2063 = vsel %vm2056, %v2062, 0.0
      %2064 = vadd.xlane.f32.xlu0 %v2063
      %v2065 = vpop.xlane.xlu0 %2064
      %v2066 = vrcp.pop %v2065
      %v2067 = vmul.f32 %v2062, %v2066
      %v2069 = vsel %vm2056, %v2067, 0
      %2071 = vmatprep.subr.mxu0 0.0
      %2072 = vmatpush1.msra.mxu0 %v1927
      %2073 = vmatprep.subr.mxu0 0.0
      %2074 = vmatpush1.msra.mxu0 0.0
      %2075 = vmatprep.subr.mxu0 0.0
      %2076 = vmatpush1.msra.mxu0 0.0
      %2077 = vmatprep.subr.mxu0 0.0
      %2078 = vmatpush1.msra.mxu0 0.0
      %2079 = vmatprep.subr.mxu0 0.0
      %2080 = vmatpush1.msra.mxu0 0.0
      %2081 = vmatprep.subr.mxu0 0.0
      %2082 = vmatpush1.msra.mxu0 0.0
      %2083 = vmatprep.subr.mxu0 0.0
      %2084 = vmatpush1.msra.mxu0 0.0
      %2085 = vmatprep.subr.mxu0 0.0
      %2086 = vmatpush1.msra.mxu0 0.0
      %2087 = vmatprep.subr.mxu0 0.0
      %2088 = vmatpush1.msra.mxu0 0.0
      %2089 = vmatprep.subr.mxu0 0.0
      %2090 = vmatpush1.msra.mxu0 0.0
      %2091 = vmatprep.subr.mxu0 0.0
      %2092 = vmatpush1.msra.mxu0 0.0
      %2093 = vmatprep.subr.mxu0 0.0
      %2094 = vmatpush1.msra.mxu0 0.0
      %2095 = vmatprep.subr.mxu0 0.0
      %2096 = vmatpush1.msra.mxu0 0.0
      %2097 = vmatprep.subr.mxu0 0.0
      %2098 = vmatpush1.msra.mxu0 0.0
      %2099 = vmatprep.subr.mxu0 0.0
      %2100 = vmatpush1.msra.mxu0 0.0
      %2101 = vmatprep.subr.mxu0 0.0
      %2102 = vmatpush1.msra.mxu0 0.0
      %2103 = vmatprep.subr.mxu0 0.0
      %2104 = vmatpush1.msra.mxu0 0.0
      %2105 = vmatprep.subr.mxu0 0.0
      %2106 = vmatpush1.msra.mxu0 0.0
      %2107 = vmatprep.subr.mxu0 0.0
      %2108 = vmatpush1.msra.mxu0 0.0
      %2109 = vmatprep.subr.mxu0 0.0
      %2110 = vmatpush1.msra.mxu0 0.0
      %2111 = vmatprep.subr.mxu0 0.0
      %2112 = vmatpush1.msra.mxu0 0.0
      %2113 = vmatprep.subr.mxu0 0.0
      %2114 = vmatpush1.msra.mxu0 0.0
      %2115 = vmatprep.subr.mxu0 0.0
      %2116 = vmatpush1.msra.mxu0 0.0
      %2117 = vmatprep.subr.mxu0 0.0
      %2118 = vmatpush1.msra.mxu0 0.0
      %2119 = vmatprep.subr.mxu0 0.0
      %2120 = vmatpush1.msra.mxu0 0.0
      %2121 = vmatprep.subr.mxu0 0.0
      %2122 = vmatpush1.msra.mxu0 0.0
      %2123 = vmatprep.subr.mxu0 0.0
      %2124 = vmatpush1.msra.mxu0 0.0
      %2125 = vmatprep.subr.mxu0 0.0
      %2126 = vmatpush1.msra.mxu0 0.0
      %2127 = vmatprep.subr.mxu0 0.0
      %2128 = vmatpush1.msra.mxu0 0.0
      %2129 = vmatprep.subr.mxu0 0.0
      %2130 = vmatpush1.msra.mxu0 0.0
      %2131 = vmatprep.subr.mxu0 0.0
      %2132 = vmatpush1.msra.mxu0 0.0
      %2133 = vmatprep.subr.mxu0 0.0
      %2134 = vmatpush1.msra.mxu0 0.0
      %2135 = vmatprep.mubr.f32.mxu0 0.0
      %2136 = vmatmul.mubr.f32.gmra.mrb[0].mxu0 %v2069
      %v2137 = vpop.f32.mrb[0].mxu0
      %v2138 = vadd.f32 0.0, %v2137
      %v2139 = vpop.f32.mrb[0].mxu0
      %2140 = vdwg.mxu0
      %v2141 = vpack.c.bf16 %v2138, %v2138
      %2142 = vrot.lane.b32.xlu0 %v1974, 64
      %v2143 = vpop.permute.xlu0 %2142
      %v2144 = vsel %vm1448, %v2143, 0
      %v2147 = vsel %vm1448, %v1925, 0
      %2149 = vmatprep.subr.mxu0 0.0
      %2150 = vmatpush1.xpose.msra.mxu0 %v2147
      %2151 = vmatprep.subr.mxu0 0.0
      %2152 = vmatpush1.xpose.msra.mxu0 0.0
      %2153 = vmatprep.subr.mxu0 0.0
      %2154 = vmatpush1.xpose.msra.mxu0 0.0
      %2155 = vmatprep.subr.mxu0 0.0
      %2156 = vmatpush1.xpose.msra.mxu0 0.0
      %2157 = vmatprep.subr.mxu0 0.0
      %2158 = vmatpush1.xpose.msra.mxu0 0.0
      %2159 = vmatprep.subr.mxu0 0.0
      %2160 = vmatpush1.xpose.msra.mxu0 0.0
      %2161 = vmatprep.subr.mxu0 0.0
      %2162 = vmatpush1.xpose.msra.mxu0 0.0
      %2163 = vmatprep.subr.mxu0 0.0
      %2164 = vmatpush1.xpose.msra.mxu0 0.0
      %2165 = vmatprep.subr.mxu0 0.0
      %2166 = vmatpush1.xpose.msra.mxu0 0.0
      %2167 = vmatprep.subr.mxu0 0.0
      %2168 = vmatpush1.xpose.msra.mxu0 0.0
      %2169 = vmatprep.subr.mxu0 0.0
      %2170 = vmatpush1.xpose.msra.mxu0 0.0
      %2171 = vmatprep.subr.mxu0 0.0
      %2172 = vmatpush1.xpose.msra.mxu0 0.0
      %2173 = vmatprep.subr.mxu0 0.0
      %2174 = vmatpush1.xpose.msra.mxu0 0.0
      %2175 = vmatprep.subr.mxu0 0.0
      %2176 = vmatpush1.xpose.msra.mxu0 0.0
      %2177 = vmatprep.subr.mxu0 0.0
      %2178 = vmatpush1.xpose.msra.mxu0 0.0
      %2179 = vmatprep.subr.mxu0 0.0
      %2180 = vmatpush1.xpose.msra.mxu0 0.0
      %2181 = vmatprep.subr.mxu0 0.0
      %2182 = vmatpush1.xpose.msra.mxu0 0.0
      %2183 = vmatprep.subr.mxu0 0.0
      %2184 = vmatpush1.xpose.msra.mxu0 0.0
      %2185 = vmatprep.subr.mxu0 0.0
      %2186 = vmatpush1.xpose.msra.mxu0 0.0
      %2187 = vmatprep.subr.mxu0 0.0
      %2188 = vmatpush1.xpose.msra.mxu0 0.0
      %2189 = vmatprep.subr.mxu0 0.0
      %2190 = vmatpush1.xpose.msra.mxu0 0.0
      %2191 = vmatprep.subr.mxu0 0.0
      %2192 = vmatpush1.xpose.msra.mxu0 0.0
      %2193 = vmatprep.subr.mxu0 0.0
      %2194 = vmatpush1.xpose.msra.mxu0 0.0
      %2195 = vmatprep.subr.mxu0 0.0
      %2196 = vmatpush1.xpose.msra.mxu0 0.0
      %2197 = vmatprep.subr.mxu0 0.0
      %2198 = vmatpush1.xpose.msra.mxu0 0.0
      %2199 = vmatprep.subr.mxu0 0.0
      %2200 = vmatpush1.xpose.msra.mxu0 0.0
      %2201 = vmatprep.subr.mxu0 0.0
      %2202 = vmatpush1.xpose.msra.mxu0 0.0
      %2203 = vmatprep.subr.mxu0 0.0
      %2204 = vmatpush1.xpose.msra.mxu0 0.0
      %2205 = vmatprep.subr.mxu0 0.0
      %2206 = vmatpush1.xpose.msra.mxu0 0.0
      %2207 = vmatprep.subr.mxu0 0.0
      %2208 = vmatpush1.xpose.msra.mxu0 0.0
      %2209 = vmatprep.subr.mxu0 0.0
      %2210 = vmatpush1.xpose.msra.mxu0 0.0
      %2211 = vmatprep.subr.mxu0 0.0
      %2212 = vmatpush1.xpose.msra.mxu0 0.0
      %2213 = vmatprep.mubr.f32.mxu0 0.0
      %2214 = vmatmul.mubr.f32.gmra.mrb[0].mxu0 %v2144
      %v2215 = vpop.f32.mrb[0].mxu0
      %v2216 = vadd.f32 %v1177, %v2215
      %v2217 = vpop.f32.mrb[0].mxu0
      %2218 = vdwg.mxu0
      %v2219 = vsel %vm2056, %v2216, -inf
      %2220 = vmax.xlane.f32.xlu0 %v2219
      %v2221 = vpop.xlane.xlu0 %2220
      %v2222 = vsub.f32 %v2216, %v2221
      %v2223 = vmul.f32 %v2222, 1.442695
      %v2224 = vpow.pop %v2223
      %v2225 = vsel %vm2056, %v2224, 0.0
      %2226 = vadd.xlane.f32.xlu0 %v2225
      %v2227 = vpop.xlane.xlu0 %2226
      %v2228 = vrcp.pop %v2227
      %v2229 = vmul.f32 %v2224, %v2228
      %2231 = vrot.lane.b32.xlu0 %v1927, 64
      %v2232 = vpop.permute.xlu0 %2231
      %v2235 = vsel %vm2056, %v2229, 0
      %2237 = vmatprep.subr.mxu0 0.0
      %2238 = vmatpush1.msra.mxu0 %v2232
      %2239 = vmatprep.subr.mxu0 0.0
      %2240 = vmatpush1.msra.mxu0 0.0
      %2241 = vmatprep.subr.mxu0 0.0
      %2242 = vmatpush1.msra.mxu0 0.0
      %2243 = vmatprep.subr.mxu0 0.0
      %2244 = vmatpush1.msra.mxu0 0.0
      %2245 = vmatprep.subr.mxu0 0.0
      %2246 = vmatpush1.msra.mxu0 0.0
      %2247 = vmatprep.subr.mxu0 0.0
      %2248 = vmatpush1.msra.mxu0 0.0
      %2249 = vmatprep.subr.mxu0 0.0
      %2250 = vmatpush1.msra.mxu0 0.0
      %2251 = vmatprep.subr.mxu0 0.0
      %2252 = vmatpush1.msra.mxu0 0.0
      %2253 = vmatprep.subr.mxu0 0.0
      %2254 = vmatpush1.msra.mxu0 0.0
      %2255 = vmatprep.subr.mxu0 0.0
      %2256 = vmatpush1.msra.mxu0 0.0
      %2257 = vmatprep.subr.mxu0 0.0
      %2258 = vmatpush1.msra.mxu0 0.0
      %2259 = vmatprep.subr.mxu0 0.0
      %2260 = vmatpush1.msra.mxu0 0.0
      %2261 = vmatprep.subr.mxu0 0.0
      %2262 = vmatpush1.msra.mxu0 0.0
      %2263 = vmatprep.subr.mxu0 0.0
      %2264 = vmatpush1.msra.mxu0 0.0
      %2265 = vmatprep.subr.mxu0 0.0
      %2266 = vmatpush1.msra.mxu0 0.0
      %2267 = vmatprep.subr.mxu0 0.0
      %2268 = vmatpush1.msra.mxu0 0.0
      %2269 = vmatprep.subr.mxu0 0.0
      %2270 = vmatpush1.msra.mxu0 0.0
      %2271 = vmatprep.subr.mxu0 0.0
      %2272 = vmatpush1.msra.mxu0 0.0
      %2273 = vmatprep.subr.mxu0 0.0
      %2274 = vmatpush1.msra.mxu0 0.0
      %2275 = vmatprep.subr.mxu0 0.0
      %2276 = vmatpush1.msra.mxu0 0.0
      %2277 = vmatprep.subr.mxu0 0.0
      %2278 = vmatpush1.msra.mxu0 0.0
      %2279 = vmatprep.subr.mxu0 0.0
      %2280 = vmatpush1.msra.mxu0 0.0
      %2281 = vmatprep.subr.mxu0 0.0
      %2282 = vmatpush1.msra.mxu0 0.0
      %2283 = vmatprep.subr.mxu0 0.0
      %2284 = vmatpush1.msra.mxu0 0.0
      %2285 = vmatprep.subr.mxu0 0.0
      %2286 = vmatpush1.msra.mxu0 0.0
      %2287 = vmatprep.subr.mxu0 0.0
      %2288 = vmatpush1.msra.mxu0 0.0
      %2289 = vmatprep.subr.mxu0 0.0
      %2290 = vmatpush1.msra.mxu0 0.0
      %2291 = vmatprep.subr.mxu0 0.0
      %2292 = vmatpush1.msra.mxu0 0.0
      %2293 = vmatprep.subr.mxu0 0.0
      %2294 = vmatpush1.msra.mxu0 0.0
      %2295 = vmatprep.subr.mxu0 0.0
      %2296 = vmatpush1.msra.mxu0 0.0
      %2297 = vmatprep.subr.mxu0 0.0
      %2298 = vmatpush1.msra.mxu0 0.0
      %2299 = vmatprep.subr.mxu0 0.0
      %2300 = vmatpush1.msra.mxu0 0.0
      %2301 = vmatprep.mubr.f32.mxu0 0.0
      %2302 = vmatmul.mubr.f32.gmra.mrb[0].mxu0 %v2235
      %v2303 = vpop.f32.mrb[0].mxu0
      %v2304 = vadd.f32 0.0, %v2303
      %v2305 = vpop.f32.mrb[0].mxu0
      %2306 = vdwg.mxu0
      %v2307 = vpack.c.bf16 %v2304, %v2304
      %v2316 = vunpack.c.l.b16 %v1264
      %v2317 = vunpack.c.h.b16 %v1264
      %v2318 = vunpack.c.l.b16 %v1265
      %v2319 = vunpack.c.h.b16 %v1265
      %v2320 = vunpack.c.l.b16 %v1266
      %v2321 = vunpack.c.h.b16 %v1266
      %v2322 = vunpack.c.l.b16 %v1267
      %v2323 = vunpack.c.h.b16 %v1267
      %v2324 = vunpack.c.l.b16 %v1268
      %v2325 = vunpack.c.h.b16 %v1268
      %v2326 = vunpack.c.l.b16 %v1269
      %v2327 = vunpack.c.h.b16 %v1269
      %v2328 = vunpack.c.l.b16 %v1270
      %v2329 = vunpack.c.h.b16 %v1270
      %v2330 = vunpack.c.l.b16 %v1271
      %v2331 = vunpack.c.h.b16 %v1271
      %v2332 = vpack.c.b16 %v2318, %v2316
      %v2333 = vpack.c.b16 %v2319, %v2317
      %v2334 = vpack.c.b16 %v2322, %v2320
      %v2335 = vpack.c.b16 %v2323, %v2321
      %v2336 = vpack.c.b16 %v2326, %v2324
      %v2337 = vpack.c.b16 %v2327, %v2325
      %v2338 = vpack.c.b16 %v2330, %v2328
      %v2339 = vpack.c.b16 %v2331, %v2329
      %v2349 = vsel %vm1448, %v2307, 0
      %2351 = vmatprep.subr.bf16.mxu0 %v2333
      %2352 = vmatpush1.bf16.msra.mxu0 %v2332
      %2353 = vmatprep.subr.bf16.mxu0 %v2335
      %2354 = vmatpush1.bf16.msra.mxu0 %v2334
      %2355 = vmatprep.subr.bf16.mxu0 %v2337
      %2356 = vmatpush1.bf16.msra.mxu0 %v2336
      %2357 = vmatprep.subr.bf16.mxu0 %v2339
      %2358 = vmatpush1.bf16.msra.mxu0 %v2338
      %2359 = vmatprep.subr.bf16.mxu0 0
      %2360 = vmatpush1.bf16.msra.mxu0 0
      %2361 = vmatprep.subr.bf16.mxu0 0
      %2362 = vmatpush1.bf16.msra.mxu0 0
      %2363 = vmatprep.subr.bf16.mxu0 0
      %2364 = vmatpush1.bf16.msra.mxu0 0
      %2365 = vmatprep.subr.bf16.mxu0 0
      %2366 = vmatpush1.bf16.msra.mxu0 0
      %2367 = vmatprep.subr.bf16.mxu0 0
      %2368 = vmatpush1.bf16.msra.mxu0 0
      %2369 = vmatprep.subr.bf16.mxu0 0
      %2370 = vmatpush1.bf16.msra.mxu0 0
      %2371 = vmatprep.subr.bf16.mxu0 0
      %2372 = vmatpush1.bf16.msra.mxu0 0
      %2373 = vmatprep.subr.bf16.mxu0 0
      %2374 = vmatpush1.bf16.msra.mxu0 0
      %2375 = vmatprep.subr.bf16.mxu0 0
      %2376 = vmatpush1.bf16.msra.mxu0 0
      %2377 = vmatprep.subr.bf16.mxu0 0
      %2378 = vmatpush1.bf16.msra.mxu0 0
      %2379 = vmatprep.subr.bf16.mxu0 0
      %2380 = vmatpush1.bf16.msra.mxu0 0
      %2381 = vmatprep.subr.bf16.mxu0 0
      %2382 = vmatpush1.bf16.msra.mxu0 0
      %2383 = vmatprep.mubr.bf16.mxu0 0
      %2384 = vmatmul.mubr.bf16.gmra.mrb[0].mxu0 %v2349
      %v2385 = vpop.f32.mrb[0].mxu0
      %v2386 = vadd.f32 0.0, %v2385
      %v2387 = vpop.f32.mrb[0].mxu0
      %v2388 = vadd.f32 0.0, %v2387
      %v2389 = vpop.f32.mrb[0].mxu0
      %v2390 = vpop.f32.mrb[0].mxu0
      %2391 = vdwg.mxu0
      %v2400 = vunpack.c.l.b16 %v1256
      %v2401 = vunpack.c.h.b16 %v1256
      %v2402 = vunpack.c.l.b16 %v1257
      %v2403 = vunpack.c.h.b16 %v1257
      %v2404 = vunpack.c.l.b16 %v1258
      %v2405 = vunpack.c.h.b16 %v1258
      %v2406 = vunpack.c.l.b16 %v1259
      %v2407 = vunpack.c.h.b16 %v1259
      %v2408 = vunpack.c.l.b16 %v1260
      %v2409 = vunpack.c.h.b16 %v1260
      %v2410 = vunpack.c.l.b16 %v1261
      %v2411 = vunpack.c.h.b16 %v1261
      %v2412 = vunpack.c.l.b16 %v1262
      %v2413 = vunpack.c.h.b16 %v1262
      %v2414 = vunpack.c.l.b16 %v1263
      %v2415 = vunpack.c.h.b16 %v1263
      %v2416 = vpack.c.b16 %v2402, %v2400
      %v2417 = vpack.c.b16 %v2403, %v2401
      %v2418 = vpack.c.b16 %v2406, %v2404
      %v2419 = vpack.c.b16 %v2407, %v2405
      %v2420 = vpack.c.b16 %v2410, %v2408
      %v2421 = vpack.c.b16 %v2411, %v2409
      %v2422 = vpack.c.b16 %v2414, %v2412
      %v2423 = vpack.c.b16 %v2415, %v2413
      %v2433 = vsel %vm1448, %v2141, 0
      %2435 = vmatprep.subr.bf16.mxu0 %v2417
      %2436 = vmatpush1.bf16.msra.mxu0 %v2416
      %2437 = vmatprep.subr.bf16.mxu0 %v2419
      %2438 = vmatpush1.bf16.msra.mxu0 %v2418
      %2439 = vmatprep.subr.bf16.mxu0 %v2421
      %2440 = vmatpush1.bf16.msra.mxu0 %v2420
      %2441 = vmatprep.subr.bf16.mxu0 %v2423
      %2442 = vmatpush1.bf16.msra.mxu0 %v2422
      %2443 = vmatprep.subr.bf16.mxu0 0
      %2444 = vmatpush1.bf16.msra.mxu0 0
      %2445 = vmatprep.subr.bf16.mxu0 0
      %2446 = vmatpush1.bf16.msra.mxu0 0
      %2447 = vmatprep.subr.bf16.mxu0 0
      %2448 = vmatpush1.bf16.msra.mxu0 0
      %2449 = vmatprep.subr.bf16.mxu0 0
      %2450 = vmatpush1.bf16.msra.mxu0 0
      %2451 = vmatprep.subr.bf16.mxu0 0
      %2452 = vmatpush1.bf16.msra.mxu0 0
      %2453 = vmatprep.subr.bf16.mxu0 0
      %2454 = vmatpush1.bf16.msra.mxu0 0
      %2455 = vmatprep.subr.bf16.mxu0 0
      %2456 = vmatpush1.bf16.msra.mxu0 0
      %2457 = vmatprep.subr.bf16.mxu0 0
      %2458 = vmatpush1.bf16.msra.mxu0 0
      %2459 = vmatprep.subr.bf16.mxu0 0
      %2460 = vmatpush1.bf16.msra.mxu0 0
      %2461 = vmatprep.subr.bf16.mxu0 0
      %2462 = vmatpush1.bf16.msra.mxu0 0
      %2463 = vmatprep.subr.bf16.mxu0 0
      %2464 = vmatpush1.bf16.msra.mxu0 0
      %2465 = vmatprep.subr.bf16.mxu0 0
      %2466 = vmatpush1.bf16.msra.mxu0 0
      %2467 = vmatprep.mubr.bf16.mxu0 0
      %2468 = vmatmul.mubr.bf16.gmra.mrb[0].mxu0 %v2433
      %v2469 = vpop.f32.mrb[0].mxu0
      %v2470 = vadd.f32 %v2386, %v2469
      %v2471 = vpop.f32.mrb[0].mxu0
      %v2472 = vadd.f32 %v2388, %v2471
      %v2473 = vpop.f32.mrb[0].mxu0
      %v2474 = vpop.f32.mrb[0].mxu0
      %2475 = vdwg.mxu0
      %2476 = vrot.lane.b32.xlu0 %v1925, 64
      %v2477 = vpop.permute.xlu0 %2476
      %v2479 = vsel %vm1448, %v1975, 0
      %v2481 = vsel %vm1448, %v2477, 0
      %2483 = vmatprep.subr.mxu0 0.0
      %2484 = vmatpush1.xpose.msra.mxu0 %v2481
      %2485 = vmatprep.subr.mxu0 0.0
      %2486 = vmatpush1.xpose.msra.mxu0 0.0
      %2487 = vmatprep.subr.mxu0 0.0
      %2488 = vmatpush1.xpose.msra.mxu0 0.0
      %2489 = vmatprep.subr.mxu0 0.0
      %2490 = vmatpush1.xpose.msra.mxu0 0.0
      %2491 = vmatprep.subr.mxu0 0.0
      %2492 = vmatpush1.xpose.msra.mxu0 0.0
      %2493 = vmatprep.subr.mxu0 0.0
      %2494 = vmatpush1.xpose.msra.mxu0 0.0
      %2495 = vmatprep.subr.mxu0 0.0
      %2496 = vmatpush1.xpose.msra.mxu0 0.0
      %2497 = vmatprep.subr.mxu0 0.0
      %2498 = vmatpush1.xpose.msra.mxu0 0.0
      %2499 = vmatprep.subr.mxu0 0.0
      %2500 = vmatpush1.xpose.msra.mxu0 0.0
      %2501 = vmatprep.subr.mxu0 0.0
      %2502 = vmatpush1.xpose.msra.mxu0 0.0
      %2503 = vmatprep.subr.mxu0 0.0
      %2504 = vmatpush1.xpose.msra.mxu0 0.0
      %2505 = vmatprep.subr.mxu0 0.0
      %2506 = vmatpush1.xpose.msra.mxu0 0.0
      %2507 = vmatprep.subr.mxu0 0.0
      %2508 = vmatpush1.xpose.msra.mxu0 0.0
      %2509 = vmatprep.subr.mxu0 0.0
      %2510 = vmatpush1.xpose.msra.mxu0 0.0
      %2511 = vmatprep.subr.mxu0 0.0
      %2512 = vmatpush1.xpose.msra.mxu0 0.0
      %2513 = vmatprep.subr.mxu0 0.0
      %2514 = vmatpush1.xpose.msra.mxu0 0.0
      %2515 = vmatprep.subr.mxu0 0.0
      %2516 = vmatpush1.xpose.msra.mxu0 0.0
      %2517 = vmatprep.subr.mxu0 0.0
      %2518 = vmatpush1.xpose.msra.mxu0 0.0
      %2519 = vmatprep.subr.mxu0 0.0
      %2520 = vmatpush1.xpose.msra.mxu0 0.0
      %2521 = vmatprep.subr.mxu0 0.0
      %2522 = vmatpush1.xpose.msra.mxu0 0.0
      %2523 = vmatprep.subr.mxu0 0.0
      %2524 = vmatpush1.xpose.msra.mxu0 0.0
      %2525 = vmatprep.subr.mxu0 0.0
      %2526 = vmatpush1.xpose.msra.mxu0 0.0
      %2527 = vmatprep.subr.mxu0 0.0
      %2528 = vmatpush1.xpose.msra.mxu0 0.0
      %2529 = vmatprep.subr.mxu0 0.0
      %2530 = vmatpush1.xpose.msra.mxu0 0.0
      %2531 = vmatprep.subr.mxu0 0.0
      %2532 = vmatpush1.xpose.msra.mxu0 0.0
      %2533 = vmatprep.subr.mxu0 0.0
      %2534 = vmatpush1.xpose.msra.mxu0 0.0
      %2535 = vmatprep.subr.mxu0 0.0
      %2536 = vmatpush1.xpose.msra.mxu0 0.0
      %2537 = vmatprep.subr.mxu0 0.0
      %2538 = vmatpush1.xpose.msra.mxu0 0.0
      %2539 = vmatprep.subr.mxu0 0.0
      %2540 = vmatpush1.xpose.msra.mxu0 0.0
      %2541 = vmatprep.subr.mxu0 0.0
      %2542 = vmatpush1.xpose.msra.mxu0 0.0
      %2543 = vmatprep.subr.mxu0 0.0
      %2544 = vmatpush1.xpose.msra.mxu0 0.0
      %2545 = vmatprep.subr.mxu0 0.0
      %2546 = vmatpush1.xpose.msra.mxu0 0.0
      %2547 = vmatprep.mubr.f32.mxu0 0.0
      %2548 = vmatmul.mubr.f32.gmra.mrb[0].mxu0 %v2479
      %v2549 = vpop.f32.mrb[0].mxu0
      %v2550 = vadd.f32 %v1177, %v2549
      %v2551 = vpop.f32.mrb[0].mxu0
      %2552 = vdwg.mxu0
      %v2553 = vsel %vm2056, %v2550, -inf
      %2554 = vmax.xlane.f32.xlu0 %v2553
      %v2555 = vpop.xlane.xlu0 %2554
      %v2556 = vsub.f32 %v2550, %v2555
      %v2557 = vmul.f32 %v2556, 1.442695
      %v2558 = vpow.pop %v2557
      %v2559 = vsel %vm2056, %v2558, 0.0
      %2560 = vadd.xlane.f32.xlu0 %v2559
      %v2561 = vpop.xlane.xlu0 %2560
      %v2562 = vrcp.pop %v2561
      %v2563 = vmul.f32 %v2558, %v2562
      %v2565 = vsel %vm2056, %v2563, 0
      %2567 = vmatprep.subr.mxu0 0.0
      %2568 = vmatpush1.msra.mxu0 %v1968
      %2569 = vmatprep.subr.mxu0 0.0
      %2570 = vmatpush1.msra.mxu0 0.0
      %2571 = vmatprep.subr.mxu0 0.0
      %2572 = vmatpush1.msra.mxu0 0.0
      %2573 = vmatprep.subr.mxu0 0.0
      %2574 = vmatpush1.msra.mxu0 0.0
      %2575 = vmatprep.subr.mxu0 0.0
      %2576 = vmatpush1.msra.mxu0 0.0
      %2577 = vmatprep.subr.mxu0 0.0
      %2578 = vmatpush1.msra.mxu0 0.0
      %2579 = vmatprep.subr.mxu0 0.0
      %2580 = vmatpush1.msra.mxu0 0.0
      %2581 = vmatprep.subr.mxu0 0.0
      %2582 = vmatpush1.msra.mxu0 0.0
      %2583 = vmatprep.subr.mxu0 0.0
      %2584 = vmatpush1.msra.mxu0 0.0
      %2585 = vmatprep.subr.mxu0 0.0
      %2586 = vmatpush1.msra.mxu0 0.0
      %2587 = vmatprep.subr.mxu0 0.0
      %2588 = vmatpush1.msra.mxu0 0.0
      %2589 = vmatprep.subr.mxu0 0.0
      %2590 = vmatpush1.msra.mxu0 0.0
      %2591 = vmatprep.subr.mxu0 0.0
      %2592 = vmatpush1.msra.mxu0 0.0
      %2593 = vmatprep.subr.mxu0 0.0
      %2594 = vmatpush1.msra.mxu0 0.0
      %2595 = vmatprep.subr.mxu0 0.0
      %2596 = vmatpush1.msra.mxu0 0.0
      %2597 = vmatprep.subr.mxu0 0.0
      %2598 = vmatpush1.msra.mxu0 0.0
      %2599 = vmatprep.subr.mxu0 0.0
      %2600 = vmatpush1.msra.mxu0 0.0
      %2601 = vmatprep.subr.mxu0 0.0
      %2602 = vmatpush1.msra.mxu0 0.0
      %2603 = vmatprep.subr.mxu0 0.0
      %2604 = vmatpush1.msra.mxu0 0.0
      %2605 = vmatprep.subr.mxu0 0.0
      %2606 = vmatpush1.msra.mxu0 0.0
      %2607 = vmatprep.subr.mxu0 0.0
      %2608 = vmatpush1.msra.mxu0 0.0
      %2609 = vmatprep.subr.mxu0 0.0
      %2610 = vmatpush1.msra.mxu0 0.0
      %2611 = vmatprep.subr.mxu0 0.0
      %2612 = vmatpush1.msra.mxu0 0.0
      %2613 = vmatprep.subr.mxu0 0.0
      %2614 = vmatpush1.msra.mxu0 0.0
      %2615 = vmatprep.subr.mxu0 0.0
      %2616 = vmatpush1.msra.mxu0 0.0
      %2617 = vmatprep.subr.mxu0 0.0
      %2618 = vmatpush1.msra.mxu0 0.0
      %2619 = vmatprep.subr.mxu0 0.0
      %2620 = vmatpush1.msra.mxu0 0.0
      %2621 = vmatprep.subr.mxu0 0.0
      %2622 = vmatpush1.msra.mxu0 0.0
      %2623 = vmatprep.subr.mxu0 0.0
      %2624 = vmatpush1.msra.mxu0 0.0
      %2625 = vmatprep.subr.mxu0 0.0
      %2626 = vmatpush1.msra.mxu0 0.0
      %2627 = vmatprep.subr.mxu0 0.0
      %2628 = vmatpush1.msra.mxu0 0.0
      %2629 = vmatprep.subr.mxu0 0.0
      %2630 = vmatpush1.msra.mxu0 0.0
      %2631 = vmatprep.mubr.f32.mxu0 0.0
      %2632 = vmatmul.mubr.f32.gmra.mrb[0].mxu0 %v2565
      %v2633 = vpop.f32.mrb[0].mxu0
      %v2634 = vadd.f32 0.0, %v2633
      %v2635 = vpop.f32.mrb[0].mxu0
      %2636 = vdwg.mxu0
      %v2637 = vpack.c.bf16 %v2634, %v2634
      %v2646 = vunpack.c.l.b16 %v1272
      %v2647 = vunpack.c.h.b16 %v1272
      %v2648 = vunpack.c.l.b16 %v1273
      %v2649 = vunpack.c.h.b16 %v1273
      %v2650 = vunpack.c.l.b16 %v1274
      %v2651 = vunpack.c.h.b16 %v1274
      %v2652 = vunpack.c.l.b16 %v1275
      %v2653 = vunpack.c.h.b16 %v1275
      %v2654 = vunpack.c.l.b16 %v1276
      %v2655 = vunpack.c.h.b16 %v1276
      %v2656 = vunpack.c.l.b16 %v1277
      %v2657 = vunpack.c.h.b16 %v1277
      %v2658 = vunpack.c.l.b16 %v1278
      %v2659 = vunpack.c.h.b16 %v1278
      %v2660 = vunpack.c.l.b16 %v1279
      %v2661 = vunpack.c.h.b16 %v1279
      %v2662 = vpack.c.b16 %v2648, %v2646
      %v2663 = vpack.c.b16 %v2649, %v2647
      %v2664 = vpack.c.b16 %v2652, %v2650
      %v2665 = vpack.c.b16 %v2653, %v2651
      %v2666 = vpack.c.b16 %v2656, %v2654
      %v2667 = vpack.c.b16 %v2657, %v2655
      %v2668 = vpack.c.b16 %v2660, %v2658
      %v2669 = vpack.c.b16 %v2661, %v2659
      %v2679 = vsel %vm1448, %v2637, 0
      %2681 = vmatprep.subr.bf16.mxu0 %v2663
      %2682 = vmatpush1.bf16.msra.mxu0 %v2662
      %2683 = vmatprep.subr.bf16.mxu0 %v2665
      %2684 = vmatpush1.bf16.msra.mxu0 %v2664
      %2685 = vmatprep.subr.bf16.mxu0 %v2667
      %2686 = vmatpush1.bf16.msra.mxu0 %v2666
      %2687 = vmatprep.subr.bf16.mxu0 %v2669
      %2688 = vmatpush1.bf16.msra.mxu0 %v2668
      %2689 = vmatprep.subr.bf16.mxu0 0
      %2690 = vmatpush1.bf16.msra.mxu0 0
      %2691 = vmatprep.subr.bf16.mxu0 0
      %2692 = vmatpush1.bf16.msra.mxu0 0
      %2693 = vmatprep.subr.bf16.mxu0 0
      %2694 = vmatpush1.bf16.msra.mxu0 0
      %2695 = vmatprep.subr.bf16.mxu0 0
      %2696 = vmatpush1.bf16.msra.mxu0 0
      %2697 = vmatprep.subr.bf16.mxu0 0
      %2698 = vmatpush1.bf16.msra.mxu0 0
      %2699 = vmatprep.subr.bf16.mxu0 0
      %2700 = vmatpush1.bf16.msra.mxu0 0
      %2701 = vmatprep.subr.bf16.mxu0 0
      %2702 = vmatpush1.bf16.msra.mxu0 0
      %2703 = vmatprep.subr.bf16.mxu0 0
      %2704 = vmatpush1.bf16.msra.mxu0 0
      %2705 = vmatprep.subr.bf16.mxu0 0
      %2706 = vmatpush1.bf16.msra.mxu0 0
      %2707 = vmatprep.subr.bf16.mxu0 0
      %2708 = vmatpush1.bf16.msra.mxu0 0
      %2709 = vmatprep.subr.bf16.mxu0 0
      %2710 = vmatpush1.bf16.msra.mxu0 0
      %2711 = vmatprep.subr.bf16.mxu0 0
      %2712 = vmatpush1.bf16.msra.mxu0 0
      %2713 = vmatprep.mubr.bf16.mxu0 0
      %2714 = vmatmul.mubr.bf16.gmra.mrb[0].mxu0 %v2679
      %v2715 = vpop.f32.mrb[0].mxu0
      %v2716 = vadd.f32 0.0, %v2715
      %v2717 = vpop.f32.mrb[0].mxu0
      %v2718 = vadd.f32 0.0, %v2717
      %v2719 = vpop.f32.mrb[0].mxu0
      %v2720 = vpop.f32.mrb[0].mxu0
      %2721 = vdwg.mxu0
      %v2722 = vadd.f32 %v2470, %v2716
      %v2723 = vadd.f32 %v2472, %v2718
      %2725 = vrot.lane.b32.xlu0 %v1888, 64
      %v2726 = vpop.permute.xlu0 %2725
      %v2728 = vsel %vm1448, %v1976, 0
      %v2730 = vsel %vm1448, %v2726, 0
      %2732 = vmatprep.subr.mxu0 0.0
      %2733 = vmatpush1.xpose.msra.mxu0 %v2730
      %2734 = vmatprep.subr.mxu0 0.0
      %2735 = vmatpush1.xpose.msra.mxu0 0.0
      %2736 = vmatprep.subr.mxu0 0.0
      %2737 = vmatpush1.xpose.msra.mxu0 0.0
      %2738 = vmatprep.subr.mxu0 0.0
      %2739 = vmatpush1.xpose.msra.mxu0 0.0
      %2740 = vmatprep.subr.mxu0 0.0
      %2741 = vmatpush1.xpose.msra.mxu0 0.0
      %2742 = vmatprep.subr.mxu0 0.0
      %2743 = vmatpush1.xpose.msra.mxu0 0.0
      %2744 = vmatprep.subr.mxu0 0.0
      %2745 = vmatpush1.xpose.msra.mxu0 0.0
      %2746 = vmatprep.subr.mxu0 0.0
      %2747 = vmatpush1.xpose.msra.mxu0 0.0
      %2748 = vmatprep.subr.mxu0 0.0
      %2749 = vmatpush1.xpose.msra.mxu0 0.0
      %2750 = vmatprep.subr.mxu0 0.0
      %2751 = vmatpush1.xpose.msra.mxu0 0.0
      %2752 = vmatprep.subr.mxu0 0.0
      %2753 = vmatpush1.xpose.msra.mxu0 0.0
      %2754 = vmatprep.subr.mxu0 0.0
      %2755 = vmatpush1.xpose.msra.mxu0 0.0
      %2756 = vmatprep.subr.mxu0 0.0
      %2757 = vmatpush1.xpose.msra.mxu0 0.0
      %2758 = vmatprep.subr.mxu0 0.0
      %2759 = vmatpush1.xpose.msra.mxu0 0.0
      %2760 = vmatprep.subr.mxu0 0.0
      %2761 = vmatpush1.xpose.msra.mxu0 0.0
      %2762 = vmatprep.subr.mxu0 0.0
      %2763 = vmatpush1.xpose.msra.mxu0 0.0
      %2764 = vmatprep.subr.mxu0 0.0
      %2765 = vmatpush1.xpose.msra.mxu0 0.0
      %2766 = vmatprep.subr.mxu0 0.0
      %2767 = vmatpush1.xpose.msra.mxu0 0.0
      %2768 = vmatprep.subr.mxu0 0.0
      %2769 = vmatpush1.xpose.msra.mxu0 0.0
      %2770 = vmatprep.subr.mxu0 0.0
      %2771 = vmatpush1.xpose.msra.mxu0 0.0
      %2772 = vmatprep.subr.mxu0 0.0
      %2773 = vmatpush1.xpose.msra.mxu0 0.0
      %2774 = vmatprep.subr.mxu0 0.0
      %2775 = vmatpush1.xpose.msra.mxu0 0.0
      %2776 = vmatprep.subr.mxu0 0.0
      %2777 = vmatpush1.xpose.msra.mxu0 0.0
      %2778 = vmatprep.subr.mxu0 0.0
      %2779 = vmatpush1.xpose.msra.mxu0 0.0
      %2780 = vmatprep.subr.mxu0 0.0
      %2781 = vmatpush1.xpose.msra.mxu0 0.0
      %2782 = vmatprep.subr.mxu0 0.0
      %2783 = vmatpush1.xpose.msra.mxu0 0.0
      %2784 = vmatprep.subr.mxu0 0.0
      %2785 = vmatpush1.xpose.msra.mxu0 0.0
      %2786 = vmatprep.subr.mxu0 0.0
      %2787 = vmatpush1.xpose.msra.mxu0 0.0
      %2788 = vmatprep.subr.mxu0 0.0
      %2789 = vmatpush1.xpose.msra.mxu0 0.0
      %2790 = vmatprep.subr.mxu0 0.0
      %2791 = vmatpush1.xpose.msra.mxu0 0.0
      %2792 = vmatprep.subr.mxu0 0.0
      %2793 = vmatpush1.xpose.msra.mxu0 0.0
      %2794 = vmatprep.subr.mxu0 0.0
      %2795 = vmatpush1.xpose.msra.mxu0 0.0
      %2796 = vmatprep.mubr.f32.mxu0 0.0
      %2797 = vmatmul.mubr.f32.gmra.mrb[0].mxu0 %v2728
      %v2798 = vpop.f32.mrb[0].mxu0
      %v2799 = vadd.f32 %v1177, %v2798
      %v2800 = vpop.f32.mrb[0].mxu0
      %2801 = vdwg.mxu0
      %v2802 = vsel %vm2056, %v2799, -inf
      %2803 = vmax.xlane.f32.xlu0 %v2802
      %v2804 = vpop.xlane.xlu0 %2803
      %v2805 = vsub.f32 %v2799, %v2804
      %v2806 = vmul.f32 %v2805, 1.442695
      %v2807 = vpow.pop %v2806
      %v2808 = vsel %vm2056, %v2807, 0.0
      %2809 = vadd.xlane.f32.xlu0 %v2808
      %v2810 = vpop.xlane.xlu0 %2809
      %v2811 = vrcp.pop %v2810
      %v2812 = vmul.f32 %v2807, %v2811
      %v2814 = vsel %vm2056, %v2812, 0
      %2816 = vmatprep.subr.mxu0 0.0
      %2817 = vmatpush1.msra.mxu0 %v1931
      %2818 = vmatprep.subr.mxu0 0.0
      %2819 = vmatpush1.msra.mxu0 0.0
      %2820 = vmatprep.subr.mxu0 0.0
      %2821 = vmatpush1.msra.mxu0 0.0
      %2822 = vmatprep.subr.mxu0 0.0
      %2823 = vmatpush1.msra.mxu0 0.0
      %2824 = vmatprep.subr.mxu0 0.0
      %2825 = vmatpush1.msra.mxu0 0.0
      %2826 = vmatprep.subr.mxu0 0.0
      %2827 = vmatpush1.msra.mxu0 0.0
      %2828 = vmatprep.subr.mxu0 0.0
      %2829 = vmatpush1.msra.mxu0 0.0
      %2830 = vmatprep.subr.mxu0 0.0
      %2831 = vmatpush1.msra.mxu0 0.0
      %2832 = vmatprep.subr.mxu0 0.0
      %2833 = vmatpush1.msra.mxu0 0.0
      %2834 = vmatprep.subr.mxu0 0.0
      %2835 = vmatpush1.msra.mxu0 0.0
      %2836 = vmatprep.subr.mxu0 0.0
      %2837 = vmatpush1.msra.mxu0 0.0
      %2838 = vmatprep.subr.mxu0 0.0
      %2839 = vmatpush1.msra.mxu0 0.0
      %2840 = vmatprep.subr.mxu0 0.0
      %2841 = vmatpush1.msra.mxu0 0.0
      %2842 = vmatprep.subr.mxu0 0.0
      %2843 = vmatpush1.msra.mxu0 0.0
      %2844 = vmatprep.subr.mxu0 0.0
      %2845 = vmatpush1.msra.mxu0 0.0
      %2846 = vmatprep.subr.mxu0 0.0
      %2847 = vmatpush1.msra.mxu0 0.0
      %2848 = vmatprep.subr.mxu0 0.0
      %2849 = vmatpush1.msra.mxu0 0.0
      %2850 = vmatprep.subr.mxu0 0.0
      %2851 = vmatpush1.msra.mxu0 0.0
      %2852 = vmatprep.subr.mxu0 0.0
      %2853 = vmatpush1.msra.mxu0 0.0
      %2854 = vmatprep.subr.mxu0 0.0
      %2855 = vmatpush1.msra.mxu0 0.0
      %2856 = vmatprep.subr.mxu0 0.0
      %2857 = vmatpush1.msra.mxu0 0.0
      %2858 = vmatprep.subr.mxu0 0.0
      %2859 = vmatpush1.msra.mxu0 0.0
      %2860 = vmatprep.subr.mxu0 0.0
      %2861 = vmatpush1.msra.mxu0 0.0
      %2862 = vmatprep.subr.mxu0 0.0
      %2863 = vmatpush1.msra.mxu0 0.0
      %2864 = vmatprep.subr.mxu0 0.0
      %2865 = vmatpush1.msra.mxu0 0.0
      %2866 = vmatprep.subr.mxu0 0.0
      %2867 = vmatpush1.msra.mxu0 0.0
      %2868 = vmatprep.subr.mxu0 0.0
      %2869 = vmatpush1.msra.mxu0 0.0
      %2870 = vmatprep.subr.mxu0 0.0
      %2871 = vmatpush1.msra.mxu0 0.0
      %2872 = vmatprep.subr.mxu0 0.0
      %2873 = vmatpush1.msra.mxu0 0.0
      %2874 = vmatprep.subr.mxu0 0.0
      %2875 = vmatpush1.msra.mxu0 0.0
      %2876 = vmatprep.subr.mxu0 0.0
      %2877 = vmatpush1.msra.mxu0 0.0
      %2878 = vmatprep.subr.mxu0 0.0
      %2879 = vmatpush1.msra.mxu0 0.0
      %2880 = vmatprep.mubr.f32.mxu0 0.0
      %2881 = vmatmul.mubr.f32.gmra.mrb[0].mxu0 %v2814
      %v2882 = vpop.f32.mrb[0].mxu0
      %v2883 = vadd.f32 0.0, %v2882
      %v2884 = vpop.f32.mrb[0].mxu0
      %2885 = vdwg.mxu0
      %v2886 = vpack.c.bf16 %v2883, %v2883
      %2887 = vrot.lane.b32.xlu0 %v1976, 64
      %v2888 = vpop.permute.xlu0 %2887
      %v2889 = vsel %vm1448, %v2888, 0
      %v2892 = vsel %vm1448, %v1929, 0
      %2894 = vmatprep.subr.mxu0 0.0
      %2895 = vmatpush1.xpose.msra.mxu0 %v2892
      %2896 = vmatprep.subr.mxu0 0.0
      %2897 = vmatpush1.xpose.msra.mxu0 0.0
      %2898 = vmatprep.subr.mxu0 0.0
      %2899 = vmatpush1.xpose.msra.mxu0 0.0
      %2900 = vmatprep.subr.mxu0 0.0
      %2901 = vmatpush1.xpose.msra.mxu0 0.0
      %2902 = vmatprep.subr.mxu0 0.0
      %2903 = vmatpush1.xpose.msra.mxu0 0.0
      %2904 = vmatprep.subr.mxu0 0.0
      %2905 = vmatpush1.xpose.msra.mxu0 0.0
      %2906 = vmatprep.subr.mxu0 0.0
      %2907 = vmatpush1.xpose.msra.mxu0 0.0
      %2908 = vmatprep.subr.mxu0 0.0
      %2909 = vmatpush1.xpose.msra.mxu0 0.0
      %2910 = vmatprep.subr.mxu0 0.0
      %2911 = vmatpush1.xpose.msra.mxu0 0.0
      %2912 = vmatprep.subr.mxu0 0.0
      %2913 = vmatpush1.xpose.msra.mxu0 0.0
      %2914 = vmatprep.subr.mxu0 0.0
      %2915 = vmatpush1.xpose.msra.mxu0 0.0
      %2916 = vmatprep.subr.mxu0 0.0
      %2917 = vmatpush1.xpose.msra.mxu0 0.0
      %2918 = vmatprep.subr.mxu0 0.0
      %2919 = vmatpush1.xpose.msra.mxu0 0.0
      %2920 = vmatprep.subr.mxu0 0.0
      %2921 = vmatpush1.xpose.msra.mxu0 0.0
      %2922 = vmatprep.subr.mxu0 0.0
      %2923 = vmatpush1.xpose.msra.mxu0 0.0
      %2924 = vmatprep.subr.mxu0 0.0
      %2925 = vmatpush1.xpose.msra.mxu0 0.0
      %2926 = vmatprep.subr.mxu0 0.0
      %2927 = vmatpush1.xpose.msra.mxu0 0.0
      %2928 = vmatprep.subr.mxu0 0.0
      %2929 = vmatpush1.xpose.msra.mxu0 0.0
      %2930 = vmatprep.subr.mxu0 0.0
      %2931 = vmatpush1.xpose.msra.mxu0 0.0
      %2932 = vmatprep.subr.mxu0 0.0
      %2933 = vmatpush1.xpose.msra.mxu0 0.0
      %2934 = vmatprep.subr.mxu0 0.0
      %2935 = vmatpush1.xpose.msra.mxu0 0.0
      %2936 = vmatprep.subr.mxu0 0.0
      %2937 = vmatpush1.xpose.msra.mxu0 0.0
      %2938 = vmatprep.subr.mxu0 0.0
      %2939 = vmatpush1.xpose.msra.mxu0 0.0
      %2940 = vmatprep.subr.mxu0 0.0
      %2941 = vmatpush1.xpose.msra.mxu0 0.0
      %2942 = vmatprep.subr.mxu0 0.0
      %2943 = vmatpush1.xpose.msra.mxu0 0.0
      %2944 = vmatprep.subr.mxu0 0.0
      %2945 = vmatpush1.xpose.msra.mxu0 0.0
      %2946 = vmatprep.subr.mxu0 0.0
      %2947 = vmatpush1.xpose.msra.mxu0 0.0
      %2948 = vmatprep.subr.mxu0 0.0
      %2949 = vmatpush1.xpose.msra.mxu0 0.0
      %2950 = vmatprep.subr.mxu0 0.0
      %2951 = vmatpush1.xpose.msra.mxu0 0.0
      %2952 = vmatprep.subr.mxu0 0.0
      %2953 = vmatpush1.xpose.msra.mxu0 0.0
      %2954 = vmatprep.subr.mxu0 0.0
      %2955 = vmatpush1.xpose.msra.mxu0 0.0
      %2956 = vmatprep.subr.mxu0 0.0
      %2957 = vmatpush1.xpose.msra.mxu0 0.0
      %2958 = vmatprep.mubr.f32.mxu0 0.0
      %2959 = vmatmul.mubr.f32.gmra.mrb[0].mxu0 %v2889
      %v2960 = vpop.f32.mrb[0].mxu0
      %v2961 = vadd.f32 %v1177, %v2960
      %v2962 = vpop.f32.mrb[0].mxu0
      %2963 = vdwg.mxu0
      %v2964 = vsel %vm2056, %v2961, -inf
      %2965 = vmax.xlane.f32.xlu0 %v2964
      %v2966 = vpop.xlane.xlu0 %2965
      %v2967 = vsub.f32 %v2961, %v2966
      %v2968 = vmul.f32 %v2967, 1.442695
      %v2969 = vpow.pop %v2968
      %v2970 = vsel %vm2056, %v2969, 0.0
      %2971 = vadd.xlane.f32.xlu0 %v2970
      %v2972 = vpop.xlane.xlu0 %2971
      %v2973 = vrcp.pop %v2972
      %v2974 = vmul.f32 %v2969, %v2973
      %2976 = vrot.lane.b32.xlu0 %v1931, 64
      %v2977 = vpop.permute.xlu0 %2976
      %v2980 = vsel %vm2056, %v2974, 0
      %2982 = vmatprep.subr.mxu0 0.0
      %2983 = vmatpush1.msra.mxu0 %v2977
      %2984 = vmatprep.subr.mxu0 0.0
      %2985 = vmatpush1.msra.mxu0 0.0
      %2986 = vmatprep.subr.mxu0 0.0
      %2987 = vmatpush1.msra.mxu0 0.0
      %2988 = vmatprep.subr.mxu0 0.0
      %2989 = vmatpush1.msra.mxu0 0.0
      %2990 = vmatprep.subr.mxu0 0.0
      %2991 = vmatpush1.msra.mxu0 0.0
      %2992 = vmatprep.subr.mxu0 0.0
      %2993 = vmatpush1.msra.mxu0 0.0
      %2994 = vmatprep.subr.mxu0 0.0
      %2995 = vmatpush1.msra.mxu0 0.0
      %2996 = vmatprep.subr.mxu0 0.0
      %2997 = vmatpush1.msra.mxu0 0.0
      %2998 = vmatprep.subr.mxu0 0.0
      %2999 = vmatpush1.msra.mxu0 0.0
      %3000 = vmatprep.subr.mxu0 0.0
      %3001 = vmatpush1.msra.mxu0 0.0
      %3002 = vmatprep.subr.mxu0 0.0
      %3003 = vmatpush1.msra.mxu0 0.0
      %3004 = vmatprep.subr.mxu0 0.0
      %3005 = vmatpush1.msra.mxu0 0.0
      %3006 = vmatprep.subr.mxu0 0.0
      %3007 = vmatpush1.msra.mxu0 0.0
      %3008 = vmatprep.subr.mxu0 0.0
      %3009 = vmatpush1.msra.mxu0 0.0
      %3010 = vmatprep.subr.mxu0 0.0
      %3011 = vmatpush1.msra.mxu0 0.0
      %3012 = vmatprep.subr.mxu0 0.0
      %3013 = vmatpush1.msra.mxu0 0.0
      %3014 = vmatprep.subr.mxu0 0.0
      %3015 = vmatpush1.msra.mxu0 0.0
      %3016 = vmatprep.subr.mxu0 0.0
      %3017 = vmatpush1.msra.mxu0 0.0
      %3018 = vmatprep.subr.mxu0 0.0
      %3019 = vmatpush1.msra.mxu0 0.0
      %3020 = vmatprep.subr.mxu0 0.0
      %3021 = vmatpush1.msra.mxu0 0.0
      %3022 = vmatprep.subr.mxu0 0.0
      %3023 = vmatpush1.msra.mxu0 0.0
      %3024 = vmatprep.subr.mxu0 0.0
      %3025 = vmatpush1.msra.mxu0 0.0
      %3026 = vmatprep.subr.mxu0 0.0
      %3027 = vmatpush1.msra.mxu0 0.0
      %3028 = vmatprep.subr.mxu0 0.0
      %3029 = vmatpush1.msra.mxu0 0.0
      %3030 = vmatprep.subr.mxu0 0.0
      %3031 = vmatpush1.msra.mxu0 0.0
      %3032 = vmatprep.subr.mxu0 0.0
      %3033 = vmatpush1.msra.mxu0 0.0
      %3034 = vmatprep.subr.mxu0 0.0
      %3035 = vmatpush1.msra.mxu0 0.0
      %3036 = vmatprep.subr.mxu0 0.0
      %3037 = vmatpush1.msra.mxu0 0.0
      %3038 = vmatprep.subr.mxu0 0.0
      %3039 = vmatpush1.msra.mxu0 0.0
      %3040 = vmatprep.subr.mxu0 0.0
      %3041 = vmatpush1.msra.mxu0 0.0
      %3042 = vmatprep.subr.mxu0 0.0
      %3043 = vmatpush1.msra.mxu0 0.0
      %3044 = vmatprep.subr.mxu0 0.0
      %3045 = vmatpush1.msra.mxu0 0.0
      %3046 = vmatprep.mubr.f32.mxu0 0.0
      %3047 = vmatmul.mubr.f32.gmra.mrb[0].mxu0 %v2980
      %v3048 = vpop.f32.mrb[0].mxu0
      %v3049 = vadd.f32 0.0, %v3048
      %v3050 = vpop.f32.mrb[0].mxu0
      %3051 = vdwg.mxu0
      %v3052 = vpack.c.bf16 %v3049, %v3049
      %v3054 = vsel %vm1448, %v3052, 0
      %3056 = vmatprep.subr.bf16.mxu0 %v2333
      %3057 = vmatpush1.bf16.msra.mxu0 %v2332
      %3058 = vmatprep.subr.bf16.mxu0 %v2335
      %3059 = vmatpush1.bf16.msra.mxu0 %v2334
      %3060 = vmatprep.subr.bf16.mxu0 %v2337
      %3061 = vmatpush1.bf16.msra.mxu0 %v2336
      %3062 = vmatprep.subr.bf16.mxu0 %v2339
      %3063 = vmatpush1.bf16.msra.mxu0 %v2338
      %3064 = vmatprep.subr.bf16.mxu0 0
      %3065 = vmatpush1.bf16.msra.mxu0 0
      %3066 = vmatprep.subr.bf16.mxu0 0
      %3067 = vmatpush1.bf16.msra.mxu0 0
      %3068 = vmatprep.subr.bf16.mxu0 0
      %3069 = vmatpush1.bf16.msra.mxu0 0
      %3070 = vmatprep.subr.bf16.mxu0 0
      %3071 = vmatpush1.bf16.msra.mxu0 0
      %3072 = vmatprep.subr.bf16.mxu0 0
      %3073 = vmatpush1.bf16.msra.mxu0 0
      %3074 = vmatprep.subr.bf16.mxu0 0
      %3075 = vmatpush1.bf16.msra.mxu0 0
      %3076 = vmatprep.subr.bf16.mxu0 0
      %3077 = vmatpush1.bf16.msra.mxu0 0
      %3078 = vmatprep.subr.bf16.mxu0 0
      %3079 = vmatpush1.bf16.msra.mxu0 0
      %3080 = vmatprep.subr.bf16.mxu0 0
      %3081 = vmatpush1.bf16.msra.mxu0 0
      %3082 = vmatprep.subr.bf16.mxu0 0
      %3083 = vmatpush1.bf16.msra.mxu0 0
      %3084 = vmatprep.subr.bf16.mxu0 0
      %3085 = vmatpush1.bf16.msra.mxu0 0
      %3086 = vmatprep.subr.bf16.mxu0 0
      %3087 = vmatpush1.bf16.msra.mxu0 0
      %3088 = vmatprep.mubr.bf16.mxu0 0
      %3089 = vmatmul.mubr.bf16.gmra.mrb[0].mxu0 %v3054
      %v3090 = vpop.f32.mrb[0].mxu0
      %v3091 = vadd.f32 0.0, %v3090
      %v3092 = vpop.f32.mrb[0].mxu0
      %v3093 = vadd.f32 0.0, %v3092
      %v3094 = vpop.f32.mrb[0].mxu0
      %v3095 = vpop.f32.mrb[0].mxu0
      %3096 = vdwg.mxu0
      %v3098 = vsel %vm1448, %v2886, 0
      %3100 = vmatprep.subr.bf16.mxu0 %v2417
      %3101 = vmatpush1.bf16.msra.mxu0 %v2416
      %3102 = vmatprep.subr.bf16.mxu0 %v2419
      %3103 = vmatpush1.bf16.msra.mxu0 %v2418
      %3104 = vmatprep.subr.bf16.mxu0 %v2421
      %3105 = vmatpush1.bf16.msra.mxu0 %v2420
      %3106 = vmatprep.subr.bf16.mxu0 %v2423
      %3107 = vmatpush1.bf16.msra.mxu0 %v2422
      %3108 = vmatprep.subr.bf16.mxu0 0
      %3109 = vmatpush1.bf16.msra.mxu0 0
      %3110 = vmatprep.subr.bf16.mxu0 0
      %3111 = vmatpush1.bf16.msra.mxu0 0
      %3112 = vmatprep.subr.bf16.mxu0 0
      %3113 = vmatpush1.bf16.msra.mxu0 0
      %3114 = vmatprep.subr.bf16.mxu0 0
      %3115 = vmatpush1.bf16.msra.mxu0 0
      %3116 = vmatprep.subr.bf16.mxu0 0
      %3117 = vmatpush1.bf16.msra.mxu0 0
      %3118 = vmatprep.subr.bf16.mxu0 0
      %3119 = vmatpush1.bf16.msra.mxu0 0
      %3120 = vmatprep.subr.bf16.mxu0 0
      %3121 = vmatpush1.bf16.msra.mxu0 0
      %3122 = vmatprep.subr.bf16.mxu0 0
      %3123 = vmatpush1.bf16.msra.mxu0 0
      %3124 = vmatprep.subr.bf16.mxu0 0
      %3125 = vmatpush1.bf16.msra.mxu0 0
      %3126 = vmatprep.subr.bf16.mxu0 0
      %3127 = vmatpush1.bf16.msra.mxu0 0
      %3128 = vmatprep.subr.bf16.mxu0 0
      %3129 = vmatpush1.bf16.msra.mxu0 0
      %3130 = vmatprep.subr.bf16.mxu0 0
      %3131 = vmatpush1.bf16.msra.mxu0 0
      %3132 = vmatprep.mubr.bf16.mxu0 0
      %3133 = vmatmul.mubr.bf16.gmra.mrb[0].mxu0 %v3098
      %v3134 = vpop.f32.mrb[0].mxu0
      %v3135 = vadd.f32 %v3091, %v3134
      %v3136 = vpop.f32.mrb[0].mxu0
      %v3137 = vadd.f32 %v3093, %v3136
      %v3138 = vpop.f32.mrb[0].mxu0
      %v3139 = vpop.f32.mrb[0].mxu0
      %3140 = vdwg.mxu0
      %3141 = vrot.lane.b32.xlu0 %v1929, 64
      %v3142 = vpop.permute.xlu0 %3141
      %v3144 = vsel %vm1448, %v1977, 0
      %v3146 = vsel %vm1448, %v3142, 0
      %3148 = vmatprep.subr.mxu0 0.0
      %3149 = vmatpush1.xpose.msra.mxu0 %v3146
      %3150 = vmatprep.subr.mxu0 0.0
      %3151 = vmatpush1.xpose.msra.mxu0 0.0
      %3152 = vmatprep.subr.mxu0 0.0
      %3153 = vmatpush1.xpose.msra.mxu0 0.0
      %3154 = vmatprep.subr.mxu0 0.0
      %3155 = vmatpush1.xpose.msra.mxu0 0.0
      %3156 = vmatprep.subr.mxu0 0.0
      %3157 = vmatpush1.xpose.msra.mxu0 0.0
      %3158 = vmatprep.subr.mxu0 0.0
      %3159 = vmatpush1.xpose.msra.mxu0 0.0
      %3160 = vmatprep.subr.mxu0 0.0
      %3161 = vmatpush1.xpose.msra.mxu0 0.0
      %3162 = vmatprep.subr.mxu0 0.0
      %3163 = vmatpush1.xpose.msra.mxu0 0.0
      %3164 = vmatprep.subr.mxu0 0.0
      %3165 = vmatpush1.xpose.msra.mxu0 0.0
      %3166 = vmatprep.subr.mxu0 0.0
      %3167 = vmatpush1.xpose.msra.mxu0 0.0
      %3168 = vmatprep.subr.mxu0 0.0
      %3169 = vmatpush1.xpose.msra.mxu0 0.0
      %3170 = vmatprep.subr.mxu0 0.0
      %3171 = vmatpush1.xpose.msra.mxu0 0.0
      %3172 = vmatprep.subr.mxu0 0.0
      %3173 = vmatpush1.xpose.msra.mxu0 0.0
      %3174 = vmatprep.subr.mxu0 0.0
      %3175 = vmatpush1.xpose.msra.mxu0 0.0
      %3176 = vmatprep.subr.mxu0 0.0
      %3177 = vmatpush1.xpose.msra.mxu0 0.0
      %3178 = vmatprep.subr.mxu0 0.0
      %3179 = vmatpush1.xpose.msra.mxu0 0.0
      %3180 = vmatprep.subr.mxu0 0.0
      %3181 = vmatpush1.xpose.msra.mxu0 0.0
      %3182 = vmatprep.subr.mxu0 0.0
      %3183 = vmatpush1.xpose.msra.mxu0 0.0
      %3184 = vmatprep.subr.mxu0 0.0
      %3185 = vmatpush1.xpose.msra.mxu0 0.0
      %3186 = vmatprep.subr.mxu0 0.0
      %3187 = vmatpush1.xpose.msra.mxu0 0.0
      %3188 = vmatprep.subr.mxu0 0.0
      %3189 = vmatpush1.xpose.msra.mxu0 0.0
      %3190 = vmatprep.subr.mxu0 0.0
      %3191 = vmatpush1.xpose.msra.mxu0 0.0
      %3192 = vmatprep.subr.mxu0 0.0
      %3193 = vmatpush1.xpose.msra.mxu0 0.0
      %3194 = vmatprep.subr.mxu0 0.0
      %3195 = vmatpush1.xpose.msra.mxu0 0.0
      %3196 = vmatprep.subr.mxu0 0.0
      %3197 = vmatpush1.xpose.msra.mxu0 0.0
      %3198 = vmatprep.subr.mxu0 0.0
      %3199 = vmatpush1.xpose.msra.mxu0 0.0
      %3200 = vmatprep.subr.mxu0 0.0
      %3201 = vmatpush1.xpose.msra.mxu0 0.0
      %3202 = vmatprep.subr.mxu0 0.0
      %3203 = vmatpush1.xpose.msra.mxu0 0.0
      %3204 = vmatprep.subr.mxu0 0.0
      %3205 = vmatpush1.xpose.msra.mxu0 0.0
      %3206 = vmatprep.subr.mxu0 0.0
      %3207 = vmatpush1.xpose.msra.mxu0 0.0
      %3208 = vmatprep.subr.mxu0 0.0
      %3209 = vmatpush1.xpose.msra.mxu0 0.0
      %3210 = vmatprep.subr.mxu0 0.0
      %3211 = vmatpush1.xpose.msra.mxu0 0.0
      %3212 = vmatprep.mubr.f32.mxu0 0.0
      %3213 = vmatmul.mubr.f32.gmra.mrb[0].mxu0 %v3144
      %v3214 = vpop.f32.mrb[0].mxu0
      %v3215 = vadd.f32 %v1177, %v3214
      %v3216 = vpop.f32.mrb[0].mxu0
      %3217 = vdwg.mxu0
      %v3218 = vsel %vm2056, %v3215, -inf
      %3219 = vmax.xlane.f32.xlu0 %v3218
      %v3220 = vpop.xlane.xlu0 %3219
      %v3221 = vsub.f32 %v3215, %v3220
      %v3222 = vmul.f32 %v3221, 1.442695
      %v3223 = vpow.pop %v3222
      %v3224 = vsel %vm2056, %v3223, 0.0
      %3225 = vadd.xlane.f32.xlu0 %v3224
      %v3226 = vpop.xlane.xlu0 %3225
      %v3227 = vrcp.pop %v3226
      %v3228 = vmul.f32 %v3223, %v3227
      %v3230 = vsel %vm2056, %v3228, 0
      %3232 = vmatprep.subr.mxu0 0.0
      %3233 = vmatpush1.msra.mxu0 %v1971
      %3234 = vmatprep.subr.mxu0 0.0
      %3235 = vmatpush1.msra.mxu0 0.0
      %3236 = vmatprep.subr.mxu0 0.0
      %3237 = vmatpush1.msra.mxu0 0.0
      %3238 = vmatprep.subr.mxu0 0.0
      %3239 = vmatpush1.msra.mxu0 0.0
      %3240 = vmatprep.subr.mxu0 0.0
      %3241 = vmatpush1.msra.mxu0 0.0
      %3242 = vmatprep.subr.mxu0 0.0
      %3243 = vmatpush1.msra.mxu0 0.0
      %3244 = vmatprep.subr.mxu0 0.0
      %3245 = vmatpush1.msra.mxu0 0.0
      %3246 = vmatprep.subr.mxu0 0.0
      %3247 = vmatpush1.msra.mxu0 0.0
      %3248 = vmatprep.subr.mxu0 0.0
      %3249 = vmatpush1.msra.mxu0 0.0
      %3250 = vmatprep.subr.mxu0 0.0
      %3251 = vmatpush1.msra.mxu0 0.0
      %3252 = vmatprep.subr.mxu0 0.0
      %3253 = vmatpush1.msra.mxu0 0.0
      %3254 = vmatprep.subr.mxu0 0.0
      %3255 = vmatpush1.msra.mxu0 0.0
      %3256 = vmatprep.subr.mxu0 0.0
      %3257 = vmatpush1.msra.mxu0 0.0
      %3258 = vmatprep.subr.mxu0 0.0
      %3259 = vmatpush1.msra.mxu0 0.0
      %3260 = vmatprep.subr.mxu0 0.0
      %3261 = vmatpush1.msra.mxu0 0.0
      %3262 = vmatprep.subr.mxu0 0.0
      %3263 = vmatpush1.msra.mxu0 0.0
      %3264 = vmatprep.subr.mxu0 0.0
      %3265 = vmatpush1.msra.mxu0 0.0
      %3266 = vmatprep.subr.mxu0 0.0
      %3267 = vmatpush1.msra.mxu0 0.0
      %3268 = vmatprep.subr.mxu0 0.0
      %3269 = vmatpush1.msra.mxu0 0.0
      %3270 = vmatprep.subr.mxu0 0.0
      %3271 = vmatpush1.msra.mxu0 0.0
      %3272 = vmatprep.subr.mxu0 0.0
      %3273 = vmatpush1.msra.mxu0 0.0
      %3274 = vmatprep.subr.mxu0 0.0
      %3275 = vmatpush1.msra.mxu0 0.0
      %3276 = vmatprep.subr.mxu0 0.0
      %3277 = vmatpush1.msra.mxu0 0.0
      %3278 = vmatprep.subr.mxu0 0.0
      %3279 = vmatpush1.msra.mxu0 0.0
      %3280 = vmatprep.subr.mxu0 0.0
      %3281 = vmatpush1.msra.mxu0 0.0
      %3282 = vmatprep.subr.mxu0 0.0
      %3283 = vmatpush1.msra.mxu0 0.0
      %3284 = vmatprep.subr.mxu0 0.0
      %3285 = vmatpush1.msra.mxu0 0.0
      %3286 = vmatprep.subr.mxu0 0.0
      %3287 = vmatpush1.msra.mxu0 0.0
      %3288 = vmatprep.subr.mxu0 0.0
      %3289 = vmatpush1.msra.mxu0 0.0
      %3290 = vmatprep.subr.mxu0 0.0
      %3291 = vmatpush1.msra.mxu0 0.0
      %3292 = vmatprep.subr.mxu0 0.0
      %3293 = vmatpush1.msra.mxu0 0.0
      %3294 = vmatprep.subr.mxu0 0.0
      %3295 = vmatpush1.msra.mxu0 0.0
      %3296 = vmatprep.mubr.f32.mxu0 0.0
      %3297 = vmatmul.mubr.f32.gmra.mrb[0].mxu0 %v3230
      %v3298 = vpop.f32.mrb[0].mxu0
      %v3299 = vadd.f32 0.0, %v3298
      %v3300 = vpop.f32.mrb[0].mxu0
      %3301 = vdwg.mxu0
      %v3302 = vpack.c.bf16 %v3299, %v3299
      %v3304 = vsel %vm1448, %v3302, 0
      %3306 = vmatprep.subr.bf16.mxu0 %v2663
      %3307 = vmatpush1.bf16.msra.mxu0 %v2662
      %3308 = vmatprep.subr.bf16.mxu0 %v2665
      %3309 = vmatpush1.bf16.msra.mxu0 %v2664
      %3310 = vmatprep.subr.bf16.mxu0 %v2667
      %3311 = vmatpush1.bf16.msra.mxu0 %v2666
      %3312 = vmatprep.subr.bf16.mxu0 %v2669
      %3313 = vmatpush1.bf16.msra.mxu0 %v2668
      %3314 = vmatprep.subr.bf16.mxu0 0
      %3315 = vmatpush1.bf16.msra.mxu0 0
      %3316 = vmatprep.subr.bf16.mxu0 0
      %3317 = vmatpush1.bf16.msra.mxu0 0
      %3318 = vmatprep.subr.bf16.mxu0 0
      %3319 = vmatpush1.bf16.msra.mxu0 0
      %3320 = vmatprep.subr.bf16.mxu0 0
      %3321 = vmatpush1.bf16.msra.mxu0 0
      %3322 = vmatprep.subr.bf16.mxu0 0
      %3323 = vmatpush1.bf16.msra.mxu0 0
      %3324 = vmatprep.subr.bf16.mxu0 0
      %3325 = vmatpush1.bf16.msra.mxu0 0
      %3326 = vmatprep.subr.bf16.mxu0 0
      %3327 = vmatpush1.bf16.msra.mxu0 0
      %3328 = vmatprep.subr.bf16.mxu0 0
      %3329 = vmatpush1.bf16.msra.mxu0 0
      %3330 = vmatprep.subr.bf16.mxu0 0
      %3331 = vmatpush1.bf16.msra.mxu0 0
      %3332 = vmatprep.subr.bf16.mxu0 0
      %3333 = vmatpush1.bf16.msra.mxu0 0
      %3334 = vmatprep.subr.bf16.mxu0 0
      %3335 = vmatpush1.bf16.msra.mxu0 0
      %3336 = vmatprep.subr.bf16.mxu0 0
      %3337 = vmatpush1.bf16.msra.mxu0 0
      %3338 = vmatprep.mubr.bf16.mxu0 0
      %3339 = vmatmul.mubr.bf16.gmra.mrb[0].mxu0 %v3304
      %v3340 = vpop.f32.mrb[0].mxu0
      %v3341 = vadd.f32 0.0, %v3340
      %v3342 = vpop.f32.mrb[0].mxu0
      %v3343 = vadd.f32 0.0, %v3342
      %v3344 = vpop.f32.mrb[0].mxu0
      %v3345 = vpop.f32.mrb[0].mxu0
      %3346 = vdwg.mxu0
      %v3347 = vadd.f32 %v3135, %v3341
      %v3348 = vadd.f32 %v3137, %v3343
      %v3349 = vlaneseq
      %v3350 = vshrl.u32 %v3349, 7
      %v3351 = vsub.s32 3, %v3350
      %v3352 = vrot.slane %v1178, %v3351
      %v3353 = vlaneseq
      %v3354 = vshrl.u32 %v3353, 7
      %v3355 = vsub.s32 3, %v3354
      %v3356 = vrot.slane %v1179, %v3355
      %v3357 = vadd.f32 %v2722, %v3352
      %v3358 = vadd.f32 %v2723, %v3356
      %v3359 = vadd.f32 %v3347, %v3352
      %v3360 = vadd.f32 %v3348, %v3356
      %v3361 = vadd.f32 %v1166, %v3357
      %v3362 = vadd.f32 %v1168, %v3358
      %v3363 = vadd.f32 %v1170, %v3359
      %v3364 = vadd.f32 %v1172, %v3360
      %v3365 = vsel %vm1448, %v3362, 0.0
      %v3366 = vadd.f32 %v3361, %v3365
      %3367 = vadd.xlane.f32.xlu0 %v3366
      %v3368 = vpop.xlane.xlu0 %3367
      %v3369 = vsel %vm1448, %v3364, 0.0
      %v3370 = vadd.f32 %v3363, %v3369
      %3371 = vadd.xlane.f32.xlu0 %v3370
      %v3372 = vpop.xlane.xlu0 %3371
      %v3373 = vmul.f32 %v3368, %v1457
      %v3374 = vmul.f32 %v3372, %v1457
      %v3375 = vsub.f32 %v3361, %v3373
      %v3376 = vsub.f32 %v3362, %v3373
      %v3377 = vsub.f32 %v3363, %v3374
      %v3378 = vsub.f32 %v3364, %v3374
      %v3379 = vmul.f32 %v3375, %v3375
      %v3380 = vmul.f32 %v3376, %v3376
      %v3381 = vmul.f32 %v3377, %v3377
      %v3382 = vmul.f32 %v3378, %v3378
      %v3383 = vsel %vm1448, %v3380, 0.0
      %v3384 = vadd.f32 %v3379, %v3383
      %3385 = vadd.xlane.f32.xlu0 %v3384
      %v3386 = vpop.xlane.xlu0 %3385
      %v3387 = vsel %vm1448, %v3382, 0.0
      %v3388 = vadd.f32 %v3381, %v3387
      %3389 = vadd.xlane.f32.xlu0 %v3388
      %v3390 = vpop.xlane.xlu0 %3389
      %v3391 = vmul.f32 %v3386, %v1457
      %v3392 = vmul.f32 %v3390, %v1457
      %v3393 = vadd.f32 %v3391, 1e-12
      %v3394 = vadd.f32 %v3392, 1e-12
      %v3395 = vrsqrt.pop %v3393
      %v3396 = vrsqrt.pop %v3394
      %v3397 = vmul.f32 %v3375, %v3395
      %v3398 = vmul.f32 %v3376, %v3395
      %v3399 = vmul.f32 %v3377, %v3396
      %v3400 = vmul.f32 %v3378, %v3396
      %v3401 = vlaneseq
      %v3402 = vshrl.u32 %v3401, 7
      %v3403 = vsub.s32 4, %v3402
      %v3404 = vrot.slane %v1178, %v3403
      %v3405 = vlaneseq
      %v3406 = vshrl.u32 %v3405, 7
      %v3407 = vsub.s32 4, %v3406
      %v3408 = vrot.slane %v1179, %v3407
      %v3409 = vmul.f32 %v3397, %v3404
      %v3410 = vmul.f32 %v3398, %v3408
      %v3411 = vmul.f32 %v3399, %v3404
      %v3412 = vmul.f32 %v3400, %v3408
      %v3413 = vlaneseq
      %v3414 = vshrl.u32 %v3413, 7
      %v3415 = vsub.s32 5, %v3414
      %v3416 = vrot.slane %v1178, %v3415
      %v3417 = vlaneseq
      %v3418 = vshrl.u32 %v3417, 7
      %v3419 = vsub.s32 5, %v3418
      %v3420 = vrot.slane %v1179, %v3419
      %v3421 = vadd.f32 %v3409, %v3416
      %v3422 = vadd.f32 %v3410, %v3420
      %v3423 = vadd.f32 %v3411, %v3416
      %v3424 = vadd.f32 %v3412, %v3420
      %v3425 = vpack.c.bf16 %v3423, %v3421
      %v3426 = vpack.c.bf16 %v3424, %v3422
      %v3427 = vlaneseq
      %v3428 = vshrl.u32 %v3427, 7
      %v3429 = vsub.s32 6, %v3428
      %v3430 = vrot.slane %v1178, %v3429
      %v3431 = vlaneseq
      %v3432 = vshrl.u32 %v3431, 7
      %v3433 = vsub.s32 6, %v3432
      %v3434 = vrot.slane %v1179, %v3433
      %v3435 = vlaneseq
      %v3436 = vshrl.u32 %v3435, 7
      %v3437 = vsub.s32 6, %v3436
      %v3438 = vrot.slane %v1180, %v3437
      %v3439 = vlaneseq
      %v3440 = vshrl.u32 %v3439, 7
      %v3441 = vsub.s32 6, %v3440
      %v3442 = vrot.slane %v1181, %v3441
      %v3443 = vlaneseq
      %v3444 = vshrl.u32 %v3443, 7
      %v3445 = vsub.s32 6, %v3444
      %v3446 = vrot.slane %v1182, %v3445
      %v3447 = vlaneseq
      %v3448 = vshrl.u32 %v3447, 7
      %v3449 = vsub.s32 6, %v3448
      %v3450 = vrot.slane %v1183, %v3449
      %v3523 = vunpack.c.l.b16 %v1280
      %v3524 = vunpack.c.h.b16 %v1280
      %v3525 = vunpack.c.l.b16 %v1281
      %v3526 = vunpack.c.h.b16 %v1281
      %v3527 = vunpack.c.l.b16 %v1282
      %v3528 = vunpack.c.h.b16 %v1282
      %v3529 = vunpack.c.l.b16 %v1283
      %v3530 = vunpack.c.h.b16 %v1283
      %v3531 = vunpack.c.l.b16 %v1284
      %v3532 = vunpack.c.h.b16 %v1284
      %v3533 = vunpack.c.l.b16 %v1285
      %v3534 = vunpack.c.h.b16 %v1285
      %v3535 = vunpack.c.l.b16 %v1286
      %v3536 = vunpack.c.h.b16 %v1286
      %v3537 = vunpack.c.l.b16 %v1287
      %v3538 = vunpack.c.h.b16 %v1287
      %v3539 = vunpack.c.l.b16 %v1288
      %v3540 = vunpack.c.h.b16 %v1288
      %v3541 = vunpack.c.l.b16 %v1289
      %v3542 = vunpack.c.h.b16 %v1289
      %v3543 = vunpack.c.l.b16 %v1290
      %v3544 = vunpack.c.h.b16 %v1290
      %v3545 = vunpack.c.l.b16 %v1291
      %v3546 = vunpack.c.h.b16 %v1291
      %v3547 = vunpack.c.l.b16 %v1292
      %v3548 = vunpack.c.h.b16 %v1292
      %v3549 = vunpack.c.l.b16 %v1293
      %v3550 = vunpack.c.h.b16 %v1293
      %v3551 = vunpack.c.l.b16 %v1294
      %v3552 = vunpack.c.h.b16 %v1294
      %v3553 = vunpack.c.l.b16 %v1295
      %v3554 = vunpack.c.h.b16 %v1295
      %v3555 = vunpack.c.l.b16 %v1296
      %v3556 = vunpack.c.h.b16 %v1296
      %v3557 = vunpack.c.l.b16 %v1297
      %v3558 = vunpack.c.h.b16 %v1297
      %v3559 = vunpack.c.l.b16 %v1298
      %v3560 = vunpack.c.h.b16 %v1298
      %v3561 = vunpack.c.l.b16 %v1299
      %v3562 = vunpack.c.h.b16 %v1299
      %v3563 = vunpack.c.l.b16 %v1300
      %v3564 = vunpack.c.h.b16 %v1300
      %v3565 = vunpack.c.l.b16 %v1301
      %v3566 = vunpack.c.h.b16 %v1301
      %v3567 = vunpack.c.l.b16 %v1302
      %v3568 = vunpack.c.h.b16 %v1302
      %v3569 = vunpack.c.l.b16 %v1303
      %v3570 = vunpack.c.h.b16 %v1303
      %v3571 = vunpack.c.l.b16 %v1304
      %v3572 = vunpack.c.h.b16 %v1304
      %v3573 = vunpack.c.l.b16 %v1305
      %v3574 = vunpack.c.h.b16 %v1305
      %v3575 = vunpack.c.l.b16 %v1306
      %v3576 = vunpack.c.h.b16 %v1306
      %v3577 = vunpack.c.l.b16 %v1307
      %v3578 = vunpack.c.h.b16 %v1307
      %v3579 = vunpack.c.l.b16 %v1308
      %v3580 = vunpack.c.h.b16 %v1308
      %v3581 = vunpack.c.l.b16 %v1309
      %v3582 = vunpack.c.h.b16 %v1309
      %v3583 = vunpack.c.l.b16 %v1310
      %v3584 = vunpack.c.h.b16 %v1310
      %v3585 = vunpack.c.l.b16 %v1311
      %v3586 = vunpack.c.h.b16 %v1311
      %v3587 = vunpack.c.l.b16 %v1312
      %v3588 = vunpack.c.h.b16 %v1312
      %v3589 = vunpack.c.l.b16 %v1313
      %v3590 = vunpack.c.h.b16 %v1313
      %v3591 = vunpack.c.l.b16 %v1314
      %v3592 = vunpack.c.h.b16 %v1314
      %v3593 = vunpack.c.l.b16 %v1315
      %v3594 = vunpack.c.h.b16 %v1315
      %v3595 = vunpack.c.l.b16 %v1316
      %v3596 = vunpack.c.h.b16 %v1316
      %v3597 = vunpack.c.l.b16 %v1317
      %v3598 = vunpack.c.h.b16 %v1317
      %v3599 = vunpack.c.l.b16 %v1318
      %v3600 = vunpack.c.h.b16 %v1318
      %v3601 = vunpack.c.l.b16 %v1319
      %v3602 = vunpack.c.h.b16 %v1319
      %v3603 = vunpack.c.l.b16 %v1320
      %v3604 = vunpack.c.h.b16 %v1320
      %v3605 = vunpack.c.l.b16 %v1321
      %v3606 = vunpack.c.h.b16 %v1321
      %v3607 = vunpack.c.l.b16 %v1322
      %v3608 = vunpack.c.h.b16 %v1322
      %v3609 = vunpack.c.l.b16 %v1323
      %v3610 = vunpack.c.h.b16 %v1323
      %v3611 = vunpack.c.l.b16 %v1324
      %v3612 = vunpack.c.h.b16 %v1324
      %v3613 = vunpack.c.l.b16 %v1325
      %v3614 = vunpack.c.h.b16 %v1325
      %v3615 = vunpack.c.l.b16 %v1326
      %v3616 = vunpack.c.h.b16 %v1326
      %v3617 = vunpack.c.l.b16 %v1327
      %v3618 = vunpack.c.h.b16 %v1327
      %v3619 = vunpack.c.l.b16 %v1328
      %v3620 = vunpack.c.h.b16 %v1328
      %v3621 = vunpack.c.l.b16 %v1329
      %v3622 = vunpack.c.h.b16 %v1329
      %v3623 = vunpack.c.l.b16 %v1330
      %v3624 = vunpack.c.h.b16 %v1330
      %v3625 = vunpack.c.l.b16 %v1331
      %v3626 = vunpack.c.h.b16 %v1331
      %v3627 = vunpack.c.l.b16 %v1332
      %v3628 = vunpack.c.h.b16 %v1332
      %v3629 = vunpack.c.l.b16 %v1333
      %v3630 = vunpack.c.h.b16 %v1333
      %v3631 = vunpack.c.l.b16 %v1334
      %v3632 = vunpack.c.h.b16 %v1334
      %v3633 = vunpack.c.l.b16 %v1335
      %v3634 = vunpack.c.h.b16 %v1335
      %v3635 = vunpack.c.l.b16 %v1336
      %v3636 = vunpack.c.h.b16 %v1336
      %v3637 = vunpack.c.l.b16 %v1337
      %v3638 = vunpack.c.h.b16 %v1337
      %v3639 = vunpack.c.l.b16 %v1338
      %v3640 = vunpack.c.h.b16 %v1338
      %v3641 = vunpack.c.l.b16 %v1339
      %v3642 = vunpack.c.h.b16 %v1339
      %v3643 = vunpack.c.l.b16 %v1340
      %v3644 = vunpack.c.h.b16 %v1340
      %v3645 = vunpack.c.l.b16 %v1341
      %v3646 = vunpack.c.h.b16 %v1341
      %v3647 = vunpack.c.l.b16 %v1342
      %v3648 = vunpack.c.h.b16 %v1342
      %v3649 = vunpack.c.l.b16 %v1343
      %v3650 = vunpack.c.h.b16 %v1343
      %v3651 = vunpack.c.l.b16 %v1344
      %v3652 = vunpack.c.h.b16 %v1344
      %v3653 = vunpack.c.l.b16 %v1345
      %v3654 = vunpack.c.h.b16 %v1345
      %v3655 = vunpack.c.l.b16 %v1346
      %v3656 = vunpack.c.h.b16 %v1346
      %v3657 = vunpack.c.l.b16 %v1347
      %v3658 = vunpack.c.h.b16 %v1347
      %v3659 = vunpack.c.l.b16 %v1348
      %v3660 = vunpack.c.h.b16 %v1348
      %v3661 = vunpack.c.l.b16 %v1349
      %v3662 = vunpack.c.h.b16 %v1349
      %v3663 = vunpack.c.l.b16 %v1350
      %v3664 = vunpack.c.h.b16 %v1350
      %v3665 = vunpack.c.l.b16 %v1351
      %v3666 = vunpack.c.h.b16 %v1351
      %v3667 = vpack.c.b16 %v3529, %v3523
      %v3668 = vpack.c.b16 %v3530, %v3524
      %v3669 = vpack.c.b16 %v3531, %v3525
      %v3670 = vpack.c.b16 %v3532, %v3526
      %v3671 = vpack.c.b16 %v3533, %v3527
      %v3672 = vpack.c.b16 %v3534, %v3528
      %v3673 = vpack.c.b16 %v3541, %v3535
      %v3674 = vpack.c.b16 %v3542, %v3536
      %v3675 = vpack.c.b16 %v3543, %v3537
      %v3676 = vpack.c.b16 %v3544, %v3538
      %v3677 = vpack.c.b16 %v3545, %v3539
      %v3678 = vpack.c.b16 %v3546, %v3540
      %v3679 = vpack.c.b16 %v3553, %v3547
      %v3680 = vpack.c.b16 %v3554, %v3548
      %v3681 = vpack.c.b16 %v3555, %v3549
      %v3682 = vpack.c.b16 %v3556, %v3550
      %v3683 = vpack.c.b16 %v3557, %v3551
      %v3684 = vpack.c.b16 %v3558, %v3552
      %v3685 = vpack.c.b16 %v3565, %v3559
      %v3686 = vpack.c.b16 %v3566, %v3560
      %v3687 = vpack.c.b16 %v3567, %v3561
      %v3688 = vpack.c.b16 %v3568, %v3562
      %v3689 = vpack.c.b16 %v3569, %v3563
      %v3690 = vpack.c.b16 %v3570, %v3564
      %v3691 = vpack.c.b16 %v3577, %v3571
      %v3692 = vpack.c.b16 %v3578, %v3572
      %v3693 = vpack.c.b16 %v3579, %v3573
      %v3694 = vpack.c.b16 %v3580, %v3574
      %v3695 = vpack.c.b16 %v3581, %v3575
      %v3696 = vpack.c.b16 %v3582, %v3576
      %v3697 = vpack.c.b16 %v3589, %v3583
      %v3698 = vpack.c.b16 %v3590, %v3584
      %v3699 = vpack.c.b16 %v3591, %v3585
      %v3700 = vpack.c.b16 %v3592, %v3586
      %v3701 = vpack.c.b16 %v3593, %v3587
      %v3702 = vpack.c.b16 %v3594, %v3588
      %v3703 = vpack.c.b16 %v3601, %v3595
      %v3704 = vpack.c.b16 %v3602, %v3596
      %v3705 = vpack.c.b16 %v3603, %v3597
      %v3706 = vpack.c.b16 %v3604, %v3598
      %v3707 = vpack.c.b16 %v3605, %v3599
      %v3708 = vpack.c.b16 %v3606, %v3600
      %v3709 = vpack.c.b16 %v3613, %v3607
      %v3710 = vpack.c.b16 %v3614, %v3608
      %v3711 = vpack.c.b16 %v3615, %v3609
      %v3712 = vpack.c.b16 %v3616, %v3610
      %v3713 = vpack.c.b16 %v3617, %v3611
      %v3714 = vpack.c.b16 %v3618, %v3612
      %v3715 = vpack.c.b16 %v3625, %v3619
      %v3716 = vpack.c.b16 %v3626, %v3620
      %v3717 = vpack.c.b16 %v3627, %v3621
      %v3718 = vpack.c.b16 %v3628, %v3622
      %v3719 = vpack.c.b16 %v3629, %v3623
      %v3720 = vpack.c.b16 %v3630, %v3624
      %v3721 = vpack.c.b16 %v3637, %v3631
      %v3722 = vpack.c.b16 %v3638, %v3632
      %v3723 = vpack.c.b16 %v3639, %v3633
      %v3724 = vpack.c.b16 %v3640, %v3634
      %v3725 = vpack.c.b16 %v3641, %v3635
      %v3726 = vpack.c.b16 %v3642, %v3636
      %v3727 = vpack.c.b16 %v3649, %v3643
      %v3728 = vpack.c.b16 %v3650, %v3644
      %v3729 = vpack.c.b16 %v3651, %v3645
      %v3730 = vpack.c.b16 %v3652, %v3646
      %v3731 = vpack.c.b16 %v3653, %v3647
      %v3732 = vpack.c.b16 %v3654, %v3648
      %v3733 = vpack.c.b16 %v3661, %v3655
      %v3734 = vpack.c.b16 %v3662, %v3656
      %v3735 = vpack.c.b16 %v3663, %v3657
      %v3736 = vpack.c.b16 %v3664, %v3658
      %v3737 = vpack.c.b16 %v3665, %v3659
      %v3738 = vpack.c.b16 %v3666, %v3660
      %v3812 = vsel %vm1448, %v3426, 0
      %3814 = vmatprep.subr.bf16.mxu0 %v3668
      %3815 = vmatpush1.bf16.msra.mxu0 %v3667
      %3816 = vmatprep.subr.bf16.mxu0 %v3674
      %3817 = vmatpush1.bf16.msra.mxu0 %v3673
      %3818 = vmatprep.subr.bf16.mxu0 %v3680
      %3819 = vmatpush1.bf16.msra.mxu0 %v3679
      %3820 = vmatprep.subr.bf16.mxu0 %v3686
      %3821 = vmatpush1.bf16.msra.mxu0 %v3685
      %3822 = vmatprep.subr.bf16.mxu0 %v3692
      %3823 = vmatpush1.bf16.msra.mxu0 %v3691
      %3824 = vmatprep.subr.bf16.mxu0 %v3698
      %3825 = vmatpush1.bf16.msra.mxu0 %v3697
      %3826 = vmatprep.subr.bf16.mxu0 %v3704
      %3827 = vmatpush1.bf16.msra.mxu0 %v3703
      %3828 = vmatprep.subr.bf16.mxu0 %v3710
      %3829 = vmatpush1.bf16.msra.mxu0 %v3709
      %3830 = vmatprep.subr.bf16.mxu0 %v3716
      %3831 = vmatpush1.bf16.msra.mxu0 %v3715
      %3832 = vmatprep.subr.bf16.mxu0 %v3722
      %3833 = vmatpush1.bf16.msra.mxu0 %v3721
      %3834 = vmatprep.subr.bf16.mxu0 %v3728
      %3835 = vmatpush1.bf16.msra.mxu0 %v3727
      %3836 = vmatprep.subr.bf16.mxu0 %v3734
      %3837 = vmatpush1.bf16.msra.mxu0 %v3733
      %3838 = vmatprep.subr.bf16.mxu0 0
      %3839 = vmatpush1.bf16.msra.mxu0 0
      %3840 = vmatprep.subr.bf16.mxu0 0
      %3841 = vmatpush1.bf16.msra.mxu0 0
      %3842 = vmatprep.subr.bf16.mxu0 0
      %3843 = vmatpush1.bf16.msra.mxu0 0
      %3844 = vmatprep.subr.bf16.mxu0 0
      %3845 = vmatpush1.bf16.msra.mxu0 0
      %3846 = vmatprep.mubr.bf16.mxu0 %v3812
      %3847 = vmatmul.mubr.bf16.gmra.mrb[0].mxu0 %v3425
      %v3848 = vpop.f32.mrb[0].mxu0
      %v3849 = vadd.f32 %v3430, %v3848
      %v3850 = vpop.f32.mrb[0].mxu0
      %v3851 = vadd.f32 %v3434, %v3850
      %v3852 = vpop.f32.mrb[0].mxu0
      %v3853 = vadd.f32 %v3430, %v3852
      %v3854 = vpop.f32.mrb[0].mxu0
      %v3855 = vadd.f32 %v3434, %v3854
      %3856 = vdwg.mxu0
      %3857 = vmatprep.subr.bf16.mxu0 %v3670
      %3858 = vmatpush1.bf16.msra.mxu0 %v3669
      %3859 = vmatprep.subr.bf16.mxu0 %v3676
      %3860 = vmatpush1.bf16.msra.mxu0 %v3675
      %3861 = vmatprep.subr.bf16.mxu0 %v3682
      %3862 = vmatpush1.bf16.msra.mxu0 %v3681
      %3863 = vmatprep.subr.bf16.mxu0 %v3688
      %3864 = vmatpush1.bf16.msra.mxu0 %v3687
      %3865 = vmatprep.subr.bf16.mxu0 %v3694
      %3866 = vmatpush1.bf16.msra.mxu0 %v3693
      %3867 = vmatprep.subr.bf16.mxu0 %v3700
      %3868 = vmatpush1.bf16.msra.mxu0 %v3699
      %3869 = vmatprep.subr.bf16.mxu0 %v3706
      %3870 = vmatpush1.bf16.msra.mxu0 %v3705
      %3871 = vmatprep.subr.bf16.mxu0 %v3712
      %3872 = vmatpush1.bf16.msra.mxu0 %v3711
      %3873 = vmatprep.subr.bf16.mxu0 %v3718
      %3874 = vmatpush1.bf16.msra.mxu0 %v3717
      %3875 = vmatprep.subr.bf16.mxu0 %v3724
      %3876 = vmatpush1.bf16.msra.mxu0 %v3723
      %3877 = vmatprep.subr.bf16.mxu0 %v3730
      %3878 = vmatpush1.bf16.msra.mxu0 %v3729
      %3879 = vmatprep.subr.bf16.mxu0 %v3736
      %3880 = vmatpush1.bf16.msra.mxu0 %v3735
      %3881 = vmatprep.subr.bf16.mxu0 0
      %3882 = vmatpush1.bf16.msra.mxu0 0
      %3883 = vmatprep.subr.bf16.mxu0 0
      %3884 = vmatpush1.bf16.msra.mxu0 0
      %3885 = vmatprep.subr.bf16.mxu0 0
      %3886 = vmatpush1.bf16.msra.mxu0 0
      %3887 = vmatprep.subr.bf16.mxu0 0
      %3888 = vmatpush1.bf16.msra.mxu0 0
      %3889 = vmatprep.mubr.bf16.mxu0 %v3812
      %3890 = vmatmul.mubr.bf16.gmra.mrb[0].mxu0 %v3425
      %v3891 = vpop.f32.mrb[0].mxu0
      %v3892 = vadd.f32 %v3438, %v3891
      %v3893 = vpop.f32.mrb[0].mxu0
      %v3894 = vadd.f32 %v3442, %v3893
      %v3895 = vpop.f32.mrb[0].mxu0
      %v3896 = vadd.f32 %v3438, %v3895
      %v3897 = vpop.f32.mrb[0].mxu0
      %v3898 = vadd.f32 %v3442, %v3897
      %3899 = vdwg.mxu0
      %3900 = vmatprep.subr.bf16.mxu0 %v3672
      %3901 = vmatpush1.bf16.msra.mxu0 %v3671
      %3902 = vmatprep.subr.bf16.mxu0 %v3678
      %3903 = vmatpush1.bf16.msra.mxu0 %v3677
      %3904 = vmatprep.subr.bf16.mxu0 %v3684
      %3905 = vmatpush1.bf16.msra.mxu0 %v3683
      %3906 = vmatprep.subr.bf16.mxu0 %v3690
      %3907 = vmatpush1.bf16.msra.mxu0 %v3689
      %3908 = vmatprep.subr.bf16.mxu0 %v3696
      %3909 = vmatpush1.bf16.msra.mxu0 %v3695
      %3910 = vmatprep.subr.bf16.mxu0 %v3702
      %3911 = vmatpush1.bf16.msra.mxu0 %v3701
      %3912 = vmatprep.subr.bf16.mxu0 %v3708
      %3913 = vmatpush1.bf16.msra.mxu0 %v3707
      %3914 = vmatprep.subr.bf16.mxu0 %v3714
      %3915 = vmatpush1.bf16.msra.mxu0 %v3713
      %3916 = vmatprep.subr.bf16.mxu0 %v3720
      %3917 = vmatpush1.bf16.msra.mxu0 %v3719
      %3918 = vmatprep.subr.bf16.mxu0 %v3726
      %3919 = vmatpush1.bf16.msra.mxu0 %v3725
      %3920 = vmatprep.subr.bf16.mxu0 %v3732
      %3921 = vmatpush1.bf16.msra.mxu0 %v3731
      %3922 = vmatprep.subr.bf16.mxu0 %v3738
      %3923 = vmatpush1.bf16.msra.mxu0 %v3737
      %3924 = vmatprep.subr.bf16.mxu0 0
      %3925 = vmatpush1.bf16.msra.mxu0 0
      %3926 = vmatprep.subr.bf16.mxu0 0
      %3927 = vmatpush1.bf16.msra.mxu0 0
      %3928 = vmatprep.subr.bf16.mxu0 0
      %3929 = vmatpush1.bf16.msra.mxu0 0
      %3930 = vmatprep.subr.bf16.mxu0 0
      %3931 = vmatpush1.bf16.msra.mxu0 0
      %3932 = vmatprep.mubr.bf16.mxu0 %v3812
      %3933 = vmatmul.mubr.bf16.gmra.mrb[0].mxu0 %v3425
      %v3934 = vpop.f32.mrb[0].mxu0
      %v3935 = vadd.f32 %v3446, %v3934
      %v3936 = vpop.f32.mrb[0].mxu0
      %v3937 = vadd.f32 %v3450, %v3936
      %v3938 = vpop.f32.mrb[0].mxu0
      %v3939 = vadd.f32 %v3446, %v3938
      %v3940 = vpop.f32.mrb[0].mxu0
      %v3941 = vadd.f32 %v3450, %v3940
      %3942 = vdwg.mxu0
      %v3943 = vmul.f32 %v3849, 0.5
      %v3944 = vmul.f32 %v3851, 0.5
      %v3945 = vmul.f32 %v3892, 0.5
      %v3946 = vmul.f32 %v3894, 0.5
      %v3947 = vmul.f32 %v3935, 0.5
      %v3948 = vmul.f32 %v3937, 0.5
      %v3949 = vmul.f32 %v3853, 0.5
      %v3950 = vmul.f32 %v3855, 0.5
      %v3951 = vmul.f32 %v3896, 0.5
      %v3952 = vmul.f32 %v3898, 0.5
      %v3953 = vmul.f32 %v3939, 0.5
      %v3954 = vmul.f32 %v3941, 0.5
      %v3955 = vmul.f32 %v3849, 0.044715
      %v3956 = vmul.f32 %v3851, 0.044715
      %v3957 = vmul.f32 %v3892, 0.044715
      %v3958 = vmul.f32 %v3894, 0.044715
      %v3959 = vmul.f32 %v3935, 0.044715
      %v3960 = vmul.f32 %v3937, 0.044715
      %v3961 = vmul.f32 %v3853, 0.044715
      %v3962 = vmul.f32 %v3855, 0.044715
      %v3963 = vmul.f32 %v3896, 0.044715
      %v3964 = vmul.f32 %v3898, 0.044715
      %v3965 = vmul.f32 %v3939, 0.044715
      %v3966 = vmul.f32 %v3941, 0.044715
      %v3967 = vmul.f32 %v3955, %v3849
      %v3968 = vmul.f32 %v3956, %v3851
      %v3969 = vmul.f32 %v3957, %v3892
      %v3970 = vmul.f32 %v3958, %v3894
      %v3971 = vmul.f32 %v3959, %v3935
      %v3972 = vmul.f32 %v3960, %v3937
      %v3973 = vmul.f32 %v3961, %v3853
      %v3974 = vmul.f32 %v3962, %v3855
      %v3975 = vmul.f32 %v3963, %v3896
      %v3976 = vmul.f32 %v3964, %v3898
      %v3977 = vmul.f32 %v3965, %v3939
      %v3978 = vmul.f32 %v3966, %v3941
      %v3979 = vmul.f32 %v3967, %v3849
      %v3980 = vmul.f32 %v3968, %v3851
      %v3981 = vmul.f32 %v3969, %v3892
      %v3982 = vmul.f32 %v3970, %v3894
      %v3983 = vmul.f32 %v3971, %v3935
      %v3984 = vmul.f32 %v3972, %v3937
      %v3985 = vmul.f32 %v3973, %v3853
      %v3986 = vmul.f32 %v3974, %v3855
      %v3987 = vmul.f32 %v3975, %v3896
      %v3988 = vmul.f32 %v3976, %v3898
      %v3989 = vmul.f32 %v3977, %v3939
      %v3990 = vmul.f32 %v3978, %v3941
      %v3991 = vadd.f32 %v3849, %v3979
      %v3992 = vadd.f32 %v3851, %v3980
      %v3993 = vadd.f32 %v3892, %v3981
      %v3994 = vadd.f32 %v3894, %v3982
      %v3995 = vadd.f32 %v3935, %v3983
      %v3996 = vadd.f32 %v3937, %v3984
      %v3997 = vadd.f32 %v3853, %v3985
      %v3998 = vadd.f32 %v3855, %v3986
      %v3999 = vadd.f32 %v3896, %v3987
      %v4000 = vadd.f32 %v3898, %v3988
      %v4001 = vadd.f32 %v3939, %v3989
      %v4002 = vadd.f32 %v3941, %v3990
      %v4003 = vmul.f32 %v3991, 0.7978846
      %v4004 = vmul.f32 %v3992, 0.7978846
      %v4005 = vmul.f32 %v3993, 0.7978846
      %v4006 = vmul.f32 %v3994, 0.7978846
      %v4007 = vmul.f32 %v3995, 0.7978846
      %v4008 = vmul.f32 %v3996, 0.7978846
      %v4009 = vmul.f32 %v3997, 0.7978846
      %v4010 = vmul.f32 %v3998, 0.7978846
      %v4011 = vmul.f32 %v3999, 0.7978846
      %v4012 = vmul.f32 %v4000, 0.7978846
      %v4013 = vmul.f32 %v4001, 0.7978846
      %v4014 = vmul.f32 %v4002, 0.7978846
      %v4015 = vtanh.pop %v4003
      %v4016 = vtanh.pop %v4004
      %v4017 = vtanh.pop %v4005
      %v4018 = vtanh.pop %v4006
      %v4019 = vtanh.pop %v4007
      %v4020 = vtanh.pop %v4008
      %v4021 = vtanh.pop %v4009
      %v4022 = vtanh.pop %v4010
      %v4023 = vtanh.pop %v4011
      %v4024 = vtanh.pop %v4012
      %v4025 = vtanh.pop %v4013
      %v4026 = vtanh.pop %v4014
      %v4027 = vadd.f32 %v4015, 1.0
      %v4028 = vadd.f32 %v4016, 1.0
      %v4029 = vadd.f32 %v4017, 1.0
      %v4030 = vadd.f32 %v4018, 1.0
      %v4031 = vadd.f32 %v4019, 1.0
      %v4032 = vadd.f32 %v4020, 1.0
      %v4033 = vadd.f32 %v4021, 1.0
      %v4034 = vadd.f32 %v4022, 1.0
      %v4035 = vadd.f32 %v4023, 1.0
      %v4036 = vadd.f32 %v4024, 1.0
      %v4037 = vadd.f32 %v4025, 1.0
      %v4038 = vadd.f32 %v4026, 1.0
      %v4039 = vmul.f32 %v3943, %v4027
      %v4040 = vmul.f32 %v3944, %v4028
      %v4041 = vmul.f32 %v3945, %v4029
      %v4042 = vmul.f32 %v3946, %v4030
      %v4043 = vmul.f32 %v3947, %v4031
      %v4044 = vmul.f32 %v3948, %v4032
      %v4045 = vmul.f32 %v3949, %v4033
      %v4046 = vmul.f32 %v3950, %v4034
      %v4047 = vmul.f32 %v3951, %v4035
      %v4048 = vmul.f32 %v3952, %v4036
      %v4049 = vmul.f32 %v3953, %v4037
      %v4050 = vmul.f32 %v3954, %v4038
      %v4051 = vpack.c.bf16 %v4045, %v4039
      %v4052 = vpack.c.bf16 %v4046, %v4040
      %v4053 = vpack.c.bf16 %v4047, %v4041
      %v4054 = vpack.c.bf16 %v4048, %v4042
      %v4055 = vpack.c.bf16 %v4049, %v4043
      %v4056 = vpack.c.bf16 %v4050, %v4044
      %v4153 = vunpack.c.l.b16 %v1352
      %v4154 = vunpack.c.h.b16 %v1352
      %v4155 = vunpack.c.l.b16 %v1353
      %v4156 = vunpack.c.h.b16 %v1353
      %v4157 = vunpack.c.l.b16 %v1354
      %v4158 = vunpack.c.h.b16 %v1354
      %v4159 = vunpack.c.l.b16 %v1355
      %v4160 = vunpack.c.h.b16 %v1355
      %v4161 = vunpack.c.l.b16 %v1356
      %v4162 = vunpack.c.h.b16 %v1356
      %v4163 = vunpack.c.l.b16 %v1357
      %v4164 = vunpack.c.h.b16 %v1357
      %v4165 = vunpack.c.l.b16 %v1358
      %v4166 = vunpack.c.h.b16 %v1358
      %v4167 = vunpack.c.l.b16 %v1359
      %v4168 = vunpack.c.h.b16 %v1359
      %v4169 = vunpack.c.l.b16 %v1360
      %v4170 = vunpack.c.h.b16 %v1360
      %v4171 = vunpack.c.l.b16 %v1361
      %v4172 = vunpack.c.h.b16 %v1361
      %v4173 = vunpack.c.l.b16 %v1362
      %v4174 = vunpack.c.h.b16 %v1362
      %v4175 = vunpack.c.l.b16 %v1363
      %v4176 = vunpack.c.h.b16 %v1363
      %v4177 = vunpack.c.l.b16 %v1364
      %v4178 = vunpack.c.h.b16 %v1364
      %v4179 = vunpack.c.l.b16 %v1365
      %v4180 = vunpack.c.h.b16 %v1365
      %v4181 = vunpack.c.l.b16 %v1366
      %v4182 = vunpack.c.h.b16 %v1366
      %v4183 = vunpack.c.l.b16 %v1367
      %v4184 = vunpack.c.h.b16 %v1367
      %v4185 = vunpack.c.l.b16 %v1368
      %v4186 = vunpack.c.h.b16 %v1368
      %v4187 = vunpack.c.l.b16 %v1369
      %v4188 = vunpack.c.h.b16 %v1369
      %v4189 = vunpack.c.l.b16 %v1370
      %v4190 = vunpack.c.h.b16 %v1370
      %v4191 = vunpack.c.l.b16 %v1371
      %v4192 = vunpack.c.h.b16 %v1371
      %v4193 = vunpack.c.l.b16 %v1372
      %v4194 = vunpack.c.h.b16 %v1372
      %v4195 = vunpack.c.l.b16 %v1373
      %v4196 = vunpack.c.h.b16 %v1373
      %v4197 = vunpack.c.l.b16 %v1374
      %v4198 = vunpack.c.h.b16 %v1374
      %v4199 = vunpack.c.l.b16 %v1375
      %v4200 = vunpack.c.h.b16 %v1375
      %v4201 = vunpack.c.l.b16 %v1376
      %v4202 = vunpack.c.h.b16 %v1376
      %v4203 = vunpack.c.l.b16 %v1377
      %v4204 = vunpack.c.h.b16 %v1377
      %v4205 = vunpack.c.l.b16 %v1378
      %v4206 = vunpack.c.h.b16 %v1378
      %v4207 = vunpack.c.l.b16 %v1379
      %v4208 = vunpack.c.h.b16 %v1379
      %v4209 = vunpack.c.l.b16 %v1380
      %v4210 = vunpack.c.h.b16 %v1380
      %v4211 = vunpack.c.l.b16 %v1381
      %v4212 = vunpack.c.h.b16 %v1381
      %v4213 = vunpack.c.l.b16 %v1382
      %v4214 = vunpack.c.h.b16 %v1382
      %v4215 = vunpack.c.l.b16 %v1383
      %v4216 = vunpack.c.h.b16 %v1383
      %v4217 = vunpack.c.l.b16 %v1384
      %v4218 = vunpack.c.h.b16 %v1384
      %v4219 = vunpack.c.l.b16 %v1385
      %v4220 = vunpack.c.h.b16 %v1385
      %v4221 = vunpack.c.l.b16 %v1386
      %v4222 = vunpack.c.h.b16 %v1386
      %v4223 = vunpack.c.l.b16 %v1387
      %v4224 = vunpack.c.h.b16 %v1387
      %v4225 = vunpack.c.l.b16 %v1388
      %v4226 = vunpack.c.h.b16 %v1388
      %v4227 = vunpack.c.l.b16 %v1389
      %v4228 = vunpack.c.h.b16 %v1389
      %v4229 = vunpack.c.l.b16 %v1390
      %v4230 = vunpack.c.h.b16 %v1390
      %v4231 = vunpack.c.l.b16 %v1391
      %v4232 = vunpack.c.h.b16 %v1391
      %v4233 = vunpack.c.l.b16 %v1392
      %v4234 = vunpack.c.h.b16 %v1392
      %v4235 = vunpack.c.l.b16 %v1393
      %v4236 = vunpack.c.h.b16 %v1393
      %v4237 = vunpack.c.l.b16 %v1394
      %v4238 = vunpack.c.h.b16 %v1394
      %v4239 = vunpack.c.l.b16 %v1395
      %v4240 = vunpack.c.h.b16 %v1395
      %v4241 = vunpack.c.l.b16 %v1396
      %v4242 = vunpack.c.h.b16 %v1396
      %v4243 = vunpack.c.l.b16 %v1397
      %v4244 = vunpack.c.h.b16 %v1397
      %v4245 = vunpack.c.l.b16 %v1398
      %v4246 = vunpack.c.h.b16 %v1398
      %v4247 = vunpack.c.l.b16 %v1399
      %v4248 = vunpack.c.h.b16 %v1399
      %v4249 = vunpack.c.l.b16 %v1400
      %v4250 = vunpack.c.h.b16 %v1400
      %v4251 = vunpack.c.l.b16 %v1401
      %v4252 = vunpack.c.h.b16 %v1401
      %v4253 = vunpack.c.l.b16 %v1402
      %v4254 = vunpack.c.h.b16 %v1402
      %v4255 = vunpack.c.l.b16 %v1403
      %v4256 = vunpack.c.h.b16 %v1403
      %v4257 = vunpack.c.l.b16 %v1404
      %v4258 = vunpack.c.h.b16 %v1404
      %v4259 = vunpack.c.l.b16 %v1405
      %v4260 = vunpack.c.h.b16 %v1405
      %v4261 = vunpack.c.l.b16 %v1406
      %v4262 = vunpack.c.h.b16 %v1406
      %v4263 = vunpack.c.l.b16 %v1407
      %v4264 = vunpack.c.h.b16 %v1407
      %v4265 = vunpack.c.l.b16 %v1408
      %v4266 = vunpack.c.h.b16 %v1408
      %v4267 = vunpack.c.l.b16 %v1409
      %v4268 = vunpack.c.h.b16 %v1409
      %v4269 = vunpack.c.l.b16 %v1410
      %v4270 = vunpack.c.h.b16 %v1410
      %v4271 = vunpack.c.l.b16 %v1411
      %v4272 = vunpack.c.h.b16 %v1411
      %v4273 = vunpack.c.l.b16 %v1412
      %v4274 = vunpack.c.h.b16 %v1412
      %v4275 = vunpack.c.l.b16 %v1413
      %v4276 = vunpack.c.h.b16 %v1413
      %v4277 = vunpack.c.l.b16 %v1414
      %v4278 = vunpack.c.h.b16 %v1414
      %v4279 = vunpack.c.l.b16 %v1415
      %v4280 = vunpack.c.h.b16 %v1415
      %v4281 = vunpack.c.l.b16 %v1416
      %v4282 = vunpack.c.h.b16 %v1416
      %v4283 = vunpack.c.l.b16 %v1417
      %v4284 = vunpack.c.h.b16 %v1417
      %v4285 = vunpack.c.l.b16 %v1418
      %v4286 = vunpack.c.h.b16 %v1418
      %v4287 = vunpack.c.l.b16 %v1419
      %v4288 = vunpack.c.h.b16 %v1419
      %v4289 = vunpack.c.l.b16 %v1420
      %v4290 = vunpack.c.h.b16 %v1420
      %v4291 = vunpack.c.l.b16 %v1421
      %v4292 = vunpack.c.h.b16 %v1421
      %v4293 = vunpack.c.l.b16 %v1422
      %v4294 = vunpack.c.h.b16 %v1422
      %v4295 = vunpack.c.l.b16 %v1423
      %v4296 = vunpack.c.h.b16 %v1423
      %v4297 = vunpack.c.l.b16 %v1424
      %v4298 = vunpack.c.h.b16 %v1424
      %v4299 = vunpack.c.l.b16 %v1425
      %v4300 = vunpack.c.h.b16 %v1425
      %v4301 = vunpack.c.l.b16 %v1426
      %v4302 = vunpack.c.h.b16 %v1426
      %v4303 = vunpack.c.l.b16 %v1427
      %v4304 = vunpack.c.h.b16 %v1427
      %v4305 = vunpack.c.l.b16 %v1428
      %v4306 = vunpack.c.h.b16 %v1428
      %v4307 = vunpack.c.l.b16 %v1429
      %v4308 = vunpack.c.h.b16 %v1429
      %v4309 = vunpack.c.l.b16 %v1430
      %v4310 = vunpack.c.h.b16 %v1430
      %v4311 = vunpack.c.l.b16 %v1431
      %v4312 = vunpack.c.h.b16 %v1431
      %v4313 = vunpack.c.l.b16 %v1432
      %v4314 = vunpack.c.h.b16 %v1432
      %v4315 = vunpack.c.l.b16 %v1433
      %v4316 = vunpack.c.h.b16 %v1433
      %v4317 = vunpack.c.l.b16 %v1434
      %v4318 = vunpack.c.h.b16 %v1434
      %v4319 = vunpack.c.l.b16 %v1435
      %v4320 = vunpack.c.h.b16 %v1435
      %v4321 = vunpack.c.l.b16 %v1436
      %v4322 = vunpack.c.h.b16 %v1436
      %v4323 = vunpack.c.l.b16 %v1437
      %v4324 = vunpack.c.h.b16 %v1437
      %v4325 = vunpack.c.l.b16 %v1438
      %v4326 = vunpack.c.h.b16 %v1438
      %v4327 = vunpack.c.l.b16 %v1439
      %v4328 = vunpack.c.h.b16 %v1439
      %v4329 = vunpack.c.l.b16 %v1440
      %v4330 = vunpack.c.h.b16 %v1440
      %v4331 = vunpack.c.l.b16 %v1441
      %v4332 = vunpack.c.h.b16 %v1441
      %v4333 = vunpack.c.l.b16 %v1442
      %v4334 = vunpack.c.h.b16 %v1442
      %v4335 = vunpack.c.l.b16 %v1443
      %v4336 = vunpack.c.h.b16 %v1443
      %v4337 = vunpack.c.l.b16 %v1444
      %v4338 = vunpack.c.h.b16 %v1444
      %v4339 = vunpack.c.l.b16 %v1445
      %v4340 = vunpack.c.h.b16 %v1445
      %v4341 = vunpack.c.l.b16 %v1446
      %v4342 = vunpack.c.h.b16 %v1446
      %v4343 = vunpack.c.l.b16 %v1447
      %v4344 = vunpack.c.h.b16 %v1447
      %v4345 = vpack.c.b16 %v4155, %v4153
      %v4346 = vpack.c.b16 %v4156, %v4154
      %v4347 = vpack.c.b16 %v4159, %v4157
      %v4348 = vpack.c.b16 %v4160, %v4158
      %v4349 = vpack.c.b16 %v4163, %v4161
      %v4350 = vpack.c.b16 %v4164, %v4162
      %v4351 = vpack.c.b16 %v4167, %v4165
      %v4352 = vpack.c.b16 %v4168, %v4166
      %v4353 = vpack.c.b16 %v4171, %v4169
      %v4354 = vpack.c.b16 %v4172, %v4170
      %v4355 = vpack.c.b16 %v4175, %v4173
      %v4356 = vpack.c.b16 %v4176, %v4174
      %v4357 = vpack.c.b16 %v4179, %v4177
      %v4358 = vpack.c.b16 %v4180, %v4178
      %v4359 = vpack.c.b16 %v4183, %v4181
      %v4360 = vpack.c.b16 %v4184, %v4182
      %v4361 = vpack.c.b16 %v4187, %v4185
      %v4362 = vpack.c.b16 %v4188, %v4186
      %v4363 = vpack.c.b16 %v4191, %v4189
      %v4364 = vpack.c.b16 %v4192, %v4190
      %v4365 = vpack.c.b16 %v4195, %v4193
      %v4366 = vpack.c.b16 %v4196, %v4194
      %v4367 = vpack.c.b16 %v4199, %v4197
      %v4368 = vpack.c.b16 %v4200, %v4198
      %v4369 = vpack.c.b16 %v4203, %v4201
      %v4370 = vpack.c.b16 %v4204, %v4202
      %v4371 = vpack.c.b16 %v4207, %v4205
      %v4372 = vpack.c.b16 %v4208, %v4206
      %v4373 = vpack.c.b16 %v4211, %v4209
      %v4374 = vpack.c.b16 %v4212, %v4210
      %v4375 = vpack.c.b16 %v4215, %v4213
      %v4376 = vpack.c.b16 %v4216, %v4214
      %v4377 = vpack.c.b16 %v4219, %v4217
      %v4378 = vpack.c.b16 %v4220, %v4218
      %v4379 = vpack.c.b16 %v4223, %v4221
      %v4380 = vpack.c.b16 %v4224, %v4222
      %v4381 = vpack.c.b16 %v4227, %v4225
      %v4382 = vpack.c.b16 %v4228, %v4226
      %v4383 = vpack.c.b16 %v4231, %v4229
      %v4384 = vpack.c.b16 %v4232, %v4230
      %v4385 = vpack.c.b16 %v4235, %v4233
      %v4386 = vpack.c.b16 %v4236, %v4234
      %v4387 = vpack.c.b16 %v4239, %v4237
      %v4388 = vpack.c.b16 %v4240, %v4238
      %v4389 = vpack.c.b16 %v4243, %v4241
      %v4390 = vpack.c.b16 %v4244, %v4242
      %v4391 = vpack.c.b16 %v4247, %v4245
      %v4392 = vpack.c.b16 %v4248, %v4246
      %v4393 = vpack.c.b16 %v4251, %v4249
      %v4394 = vpack.c.b16 %v4252, %v4250
      %v4395 = vpack.c.b16 %v4255, %v4253
      %v4396 = vpack.c.b16 %v4256, %v4254
      %v4397 = vpack.c.b16 %v4259, %v4257
      %v4398 = vpack.c.b16 %v4260, %v4258
      %v4399 = vpack.c.b16 %v4263, %v4261
      %v4400 = vpack.c.b16 %v4264, %v4262
      %v4401 = vpack.c.b16 %v4267, %v4265
      %v4402 = vpack.c.b16 %v4268, %v4266
      %v4403 = vpack.c.b16 %v4271, %v4269
      %v4404 = vpack.c.b16 %v4272, %v4270
      %v4405 = vpack.c.b16 %v4275, %v4273
      %v4406 = vpack.c.b16 %v4276, %v4274
      %v4407 = vpack.c.b16 %v4279, %v4277
      %v4408 = vpack.c.b16 %v4280, %v4278
      %v4409 = vpack.c.b16 %v4283, %v4281
      %v4410 = vpack.c.b16 %v4284, %v4282
      %v4411 = vpack.c.b16 %v4287, %v4285
      %v4412 = vpack.c.b16 %v4288, %v4286
      %v4413 = vpack.c.b16 %v4291, %v4289
      %v4414 = vpack.c.b16 %v4292, %v4290
      %v4415 = vpack.c.b16 %v4295, %v4293
      %v4416 = vpack.c.b16 %v4296, %v4294
      %v4417 = vpack.c.b16 %v4299, %v4297
      %v4418 = vpack.c.b16 %v4300, %v4298
      %v4419 = vpack.c.b16 %v4303, %v4301
      %v4420 = vpack.c.b16 %v4304, %v4302
      %v4421 = vpack.c.b16 %v4307, %v4305
      %v4422 = vpack.c.b16 %v4308, %v4306
      %v4423 = vpack.c.b16 %v4311, %v4309
      %v4424 = vpack.c.b16 %v4312, %v4310
      %v4425 = vpack.c.b16 %v4315, %v4313
      %v4426 = vpack.c.b16 %v4316, %v4314
      %v4427 = vpack.c.b16 %v4319, %v4317
      %v4428 = vpack.c.b16 %v4320, %v4318
      %v4429 = vpack.c.b16 %v4323, %v4321
      %v4430 = vpack.c.b16 %v4324, %v4322
      %v4431 = vpack.c.b16 %v4327, %v4325
      %v4432 = vpack.c.b16 %v4328, %v4326
      %v4433 = vpack.c.b16 %v4331, %v4329
      %v4434 = vpack.c.b16 %v4332, %v4330
      %v4435 = vpack.c.b16 %v4335, %v4333
      %v4436 = vpack.c.b16 %v4336, %v4334
      %v4437 = vpack.c.b16 %v4339, %v4337
      %v4438 = vpack.c.b16 %v4340, %v4338
      %v4439 = vpack.c.b16 %v4343, %v4341
      %v4440 = vpack.c.b16 %v4344, %v4342
      %4537 = vmatprep.subr.bf16.mxu0 %v4346
      %4538 = vmatpush1.bf16.msra.mxu0 %v4345
      %4539 = vmatprep.subr.bf16.mxu0 %v4348
      %4540 = vmatpush1.bf16.msra.mxu0 %v4347
      %4541 = vmatprep.subr.bf16.mxu0 %v4350
      %4542 = vmatpush1.bf16.msra.mxu0 %v4349
      %4543 = vmatprep.subr.bf16.mxu0 %v4352
      %4544 = vmatpush1.bf16.msra.mxu0 %v4351
      %4545 = vmatprep.subr.bf16.mxu0 %v4354
      %4546 = vmatpush1.bf16.msra.mxu0 %v4353
      %4547 = vmatprep.subr.bf16.mxu0 %v4356
      %4548 = vmatpush1.bf16.msra.mxu0 %v4355
      %4549 = vmatprep.subr.bf16.mxu0 %v4358
      %4550 = vmatpush1.bf16.msra.mxu0 %v4357
      %4551 = vmatprep.subr.bf16.mxu0 %v4360
      %4552 = vmatpush1.bf16.msra.mxu0 %v4359
      %4553 = vmatprep.subr.bf16.mxu0 %v4362
      %4554 = vmatpush1.bf16.msra.mxu0 %v4361
      %4555 = vmatprep.subr.bf16.mxu0 %v4364
      %4556 = vmatpush1.bf16.msra.mxu0 %v4363
      %4557 = vmatprep.subr.bf16.mxu0 %v4366
      %4558 = vmatpush1.bf16.msra.mxu0 %v4365
      %4559 = vmatprep.subr.bf16.mxu0 %v4368
      %4560 = vmatpush1.bf16.msra.mxu0 %v4367
      %4561 = vmatprep.subr.bf16.mxu0 %v4370
      %4562 = vmatpush1.bf16.msra.mxu0 %v4369
      %4563 = vmatprep.subr.bf16.mxu0 %v4372
      %4564 = vmatpush1.bf16.msra.mxu0 %v4371
      %4565 = vmatprep.subr.bf16.mxu0 %v4374
      %4566 = vmatpush1.bf16.msra.mxu0 %v4373
      %4567 = vmatprep.subr.bf16.mxu0 %v4376
      %4568 = vmatpush1.bf16.msra.mxu0 %v4375
      %4569 = vmatprep.mubr.bf16.mxu0 %v4052
      %4570 = vmatmul.mubr.bf16.gmra.mrb[0].mxu0 %v4051
      %v4571 = vpop.f32.mrb[0].mxu0
      %v4572 = vadd.f32 0.0, %v4571
      %v4573 = vpop.f32.mrb[0].mxu0
      %v4574 = vadd.f32 0.0, %v4573
      %v4575 = vpop.f32.mrb[0].mxu0
      %v4576 = vadd.f32 0.0, %v4575
      %v4577 = vpop.f32.mrb[0].mxu0
      %v4578 = vadd.f32 0.0, %v4577
      %4579 = vdwg.mxu0
      %4580 = vmatprep.subr.bf16.mxu0 %v4378
      %4581 = vmatpush1.bf16.msra.mxu0 %v4377
      %4582 = vmatprep.subr.bf16.mxu0 %v4380
      %4583 = vmatpush1.bf16.msra.mxu0 %v4379
      %4584 = vmatprep.subr.bf16.mxu0 %v4382
      %4585 = vmatpush1.bf16.msra.mxu0 %v4381
      %4586 = vmatprep.subr.bf16.mxu0 %v4384
      %4587 = vmatpush1.bf16.msra.mxu0 %v4383
      %4588 = vmatprep.subr.bf16.mxu0 %v4386
      %4589 = vmatpush1.bf16.msra.mxu0 %v4385
      %4590 = vmatprep.subr.bf16.mxu0 %v4388
      %4591 = vmatpush1.bf16.msra.mxu0 %v4387
      %4592 = vmatprep.subr.bf16.mxu0 %v4390
      %4593 = vmatpush1.bf16.msra.mxu0 %v4389
      %4594 = vmatprep.subr.bf16.mxu0 %v4392
      %4595 = vmatpush1.bf16.msra.mxu0 %v4391
      %4596 = vmatprep.subr.bf16.mxu0 %v4394
      %4597 = vmatpush1.bf16.msra.mxu0 %v4393
      %4598 = vmatprep.subr.bf16.mxu0 %v4396
      %4599 = vmatpush1.bf16.msra.mxu0 %v4395
      %4600 = vmatprep.subr.bf16.mxu0 %v4398
      %4601 = vmatpush1.bf16.msra.mxu0 %v4397
      %4602 = vmatprep.subr.bf16.mxu0 %v4400
      %4603 = vmatpush1.bf16.msra.mxu0 %v4399
      %4604 = vmatprep.subr.bf16.mxu0 %v4402
      %4605 = vmatpush1.bf16.msra.mxu0 %v4401
      %4606 = vmatprep.subr.bf16.mxu0 %v4404
      %4607 = vmatpush1.bf16.msra.mxu0 %v4403
      %4608 = vmatprep.subr.bf16.mxu0 %v4406
      %4609 = vmatpush1.bf16.msra.mxu0 %v4405
      %4610 = vmatprep.subr.bf16.mxu0 %v4408
      %4611 = vmatpush1.bf16.msra.mxu0 %v4407
      %4612 = vmatprep.mubr.bf16.mxu0 %v4054
      %4613 = vmatmul.mubr.bf16.gmra.mrb[0].mxu0 %v4053
      %v4614 = vpop.f32.mrb[0].mxu0
      %v4615 = vadd.f32 %v4572, %v4614
      %v4616 = vpop.f32.mrb[0].mxu0
      %v4617 = vadd.f32 %v4574, %v4616
      %v4618 = vpop.f32.mrb[0].mxu0
      %v4619 = vadd.f32 %v4576, %v4618
      %v4620 = vpop.f32.mrb[0].mxu0
      %v4621 = vadd.f32 %v4578, %v4620
      %4622 = vdwg.mxu0
      %4623 = vmatprep.subr.bf16.mxu0 %v4410
      %4624 = vmatpush1.bf16.msra.mxu0 %v4409
      %4625 = vmatprep.subr.bf16.mxu0 %v4412
      %4626 = vmatpush1.bf16.msra.mxu0 %v4411
      %4627 = vmatprep.subr.bf16.mxu0 %v4414
      %4628 = vmatpush1.bf16.msra.mxu0 %v4413
      %4629 = vmatprep.subr.bf16.mxu0 %v4416
      %4630 = vmatpush1.bf16.msra.mxu0 %v4415
      %4631 = vmatprep.subr.bf16.mxu0 %v4418
      %4632 = vmatpush1.bf16.msra.mxu0 %v4417
      %4633 = vmatprep.subr.bf16.mxu0 %v4420
      %4634 = vmatpush1.bf16.msra.mxu0 %v4419
      %4635 = vmatprep.subr.bf16.mxu0 %v4422
      %4636 = vmatpush1.bf16.msra.mxu0 %v4421
      %4637 = vmatprep.subr.bf16.mxu0 %v4424
      %4638 = vmatpush1.bf16.msra.mxu0 %v4423
      %4639 = vmatprep.subr.bf16.mxu0 %v4426
      %4640 = vmatpush1.bf16.msra.mxu0 %v4425
      %4641 = vmatprep.subr.bf16.mxu0 %v4428
      %4642 = vmatpush1.bf16.msra.mxu0 %v4427
      %4643 = vmatprep.subr.bf16.mxu0 %v4430
      %4644 = vmatpush1.bf16.msra.mxu0 %v4429
      %4645 = vmatprep.subr.bf16.mxu0 %v4432
      %4646 = vmatpush1.bf16.msra.mxu0 %v4431
      %4647 = vmatprep.subr.bf16.mxu0 %v4434
      %4648 = vmatpush1.bf16.msra.mxu0 %v4433
      %4649 = vmatprep.subr.bf16.mxu0 %v4436
      %4650 = vmatpush1.bf16.msra.mxu0 %v4435
      %4651 = vmatprep.subr.bf16.mxu0 %v4438
      %4652 = vmatpush1.bf16.msra.mxu0 %v4437
      %4653 = vmatprep.subr.bf16.mxu0 %v4440
      %4654 = vmatpush1.bf16.msra.mxu0 %v4439
      %4655 = vmatprep.mubr.bf16.mxu0 %v4056
      %4656 = vmatmul.mubr.bf16.gmra.mrb[0].mxu0 %v4055
      %v4657 = vpop.f32.mrb[0].mxu0
      %v4658 = vadd.f32 %v4615, %v4657
      %v4659 = vpop.f32.mrb[0].mxu0
      %v4660 = vadd.f32 %v4617, %v4659
      %v4661 = vpop.f32.mrb[0].mxu0
      %v4662 = vadd.f32 %v4619, %v4661
      %v4663 = vpop.f32.mrb[0].mxu0
      %v4664 = vadd.f32 %v4621, %v4663
      %4665 = vdwg.mxu0
      %v4666 = vadd.f32 %v3361, %v4658
      %v4667 = vadd.f32 %v3362, %v4660
      %v4668 = vadd.f32 %v3363, %v4662
      %v4669 = vadd.f32 %v3364, %v4664
      %v4670 = vlaneseq
      %v4671 = vshrl.u32 %v4670, 7
      %v4672 = vsub.s32 7, %v4671
      %v4673 = vrot.slane %v1178, %v4672
      %v4674 = vlaneseq
      %v4675 = vshrl.u32 %v4674, 7
      %v4676 = vsub.s32 7, %v4675
      %v4677 = vrot.slane %v1179, %v4676
      %v4678 = vadd.f32 %v4666, %v4673
      %v4679 = vadd.f32 %v4667, %v4677
      %v4680 = vadd.f32 %v4668, %v4673
      %v4681 = vadd.f32 %v4669, %v4677
      %s4682 = scalar_lea.vmem %s440, 48
      %v4683 = vld [vmem:[%s4682] sm:$0xff]
      %v4684 = vld [vmem:[%s4682 + $0x8] sm:$0xff]
      %v4685 = vld [vmem:[%s4682 + $0x10] sm:$0xff]
      %v4686 = vld [vmem:[%s4682 + $0x18] sm:$0xff]
      %v4687 = vld [vmem:[%s4682 + $0x20] sm:$0xff]
      %v4688 = vld [vmem:[%s4682 + $0x28] sm:$0xff]
      %s4689 = scalar_lea.vmem %s420, 480
      %v4690 = vld [vmem:[%s4689] sm:$0xff]
      %v4691 = vld [vmem:[%s4689 + $0x8] sm:$0xff]
      %v4692 = vld [vmem:[%s4689 + $0x10] sm:$0xf]
      %v4693 = vld [vmem:[%s4689 + $0x14] sm:$0xff]
      %v4694 = vld [vmem:[%s4689 + $0x1c] sm:$0xff]
      %v4695 = vld [vmem:[%s4689 + $0x24] sm:$0xf]
      %v4696 = vld [vmem:[%s4689 + $0x28] sm:$0xff]
      %v4697 = vld [vmem:[%s4689 + $0x30] sm:$0xff]
      %v4698 = vld [vmem:[%s4689 + $0x38] sm:$0xf]
      %v4699 = vld [vmem:[%s4689 + $0x3c] sm:$0xff]
      %v4700 = vld [vmem:[%s4689 + $0x44] sm:$0xff]
      %v4701 = vld [vmem:[%s4689 + $0x4c] sm:$0xf]
      %v4702 = vld [vmem:[%s4689 + $0x50] sm:$0xff]
      %v4703 = vld [vmem:[%s4689 + $0x58] sm:$0xff]
      %v4704 = vld [vmem:[%s4689 + $0x60] sm:$0xf]
      %v4705 = vld [vmem:[%s4689 + $0x64] sm:$0xff]
      %v4706 = vld [vmem:[%s4689 + $0x6c] sm:$0xff]
      %v4707 = vld [vmem:[%s4689 + $0x74] sm:$0xf]
      %v4708 = vld [vmem:[%s4689 + $0x78] sm:$0xff]
      %v4709 = vld [vmem:[%s4689 + $0x80] sm:$0xff]
      %v4710 = vld [vmem:[%s4689 + $0x88] sm:$0xf]
      %v4711 = vld [vmem:[%s4689 + $0x8c] sm:$0xff]
      %v4712 = vld [vmem:[%s4689 + $0x94] sm:$0xff]
      %v4713 = vld [vmem:[%s4689 + $0x9c] sm:$0xf]
      %v4714 = vld [vmem:[%s4689 + $0xa0] sm:$0xff]
      %v4715 = vld [vmem:[%s4689 + $0xa8] sm:$0xff]
      %v4716 = vld [vmem:[%s4689 + $0xb0] sm:$0xf]
      %v4717 = vld [vmem:[%s4689 + $0xb4] sm:$0xff]
      %v4718 = vld [vmem:[%s4689 + $0xbc] sm:$0xff]
      %v4719 = vld [vmem:[%s4689 + $0xc4] sm:$0xf]
      %v4720 = vld [vmem:[%s4689 + $0xc8] sm:$0xff]
      %v4721 = vld [vmem:[%s4689 + $0xd0] sm:$0xff]
      %v4722 = vld [vmem:[%s4689 + $0xd8] sm:$0xf]
      %v4723 = vld [vmem:[%s4689 + $0xdc] sm:$0xff]
      %v4724 = vld [vmem:[%s4689 + $0xe4] sm:$0xff]
      %v4725 = vld [vmem:[%s4689 + $0xec] sm:$0xf]
      %v4726 = vld [vmem:[%s4689 + $0xf0] sm:$0xff]
      %v4727 = vld [vmem:[%s4689 + $0xf8] sm:$0xff]
      %v4728 = vld [vmem:[%s4689 + $0x100] sm:$0xf]
      %v4729 = vld [vmem:[%s4689 + $0x104] sm:$0xff]
      %v4730 = vld [vmem:[%s4689 + $0x10c] sm:$0xff]
      %v4731 = vld [vmem:[%s4689 + $0x114] sm:$0xf]
      %v4732 = vld [vmem:[%s4689 + $0x118] sm:$0xff]
      %v4733 = vld [vmem:[%s4689 + $0x120] sm:$0xff]
      %v4734 = vld [vmem:[%s4689 + $0x128] sm:$0xf]
      %v4735 = vld [vmem:[%s4689 + $0x12c] sm:$0xff]
      %v4736 = vld [vmem:[%s4689 + $0x134] sm:$0xff]
      %v4737 = vld [vmem:[%s4689 + $0x13c] sm:$0xf]
      %v4738 = vld [vmem:[%s4689 + $0x140] sm:$0xff]
      %v4739 = vld [vmem:[%s4689 + $0x148] sm:$0xff]
      %v4740 = vld [vmem:[%s4689 + $0x150] sm:$0xf]
      %v4741 = vld [vmem:[%s4689 + $0x154] sm:$0xff]
      %v4742 = vld [vmem:[%s4689 + $0x15c] sm:$0xff]
      %v4743 = vld [vmem:[%s4689 + $0x164] sm:$0xf]
      %v4744 = vld [vmem:[%s4689 + $0x168] sm:$0xff]
      %v4745 = vld [vmem:[%s4689 + $0x170] sm:$0xff]
      %v4746 = vld [vmem:[%s4689 + $0x178] sm:$0xf]
      %v4747 = vld [vmem:[%s4689 + $0x17c] sm:$0xff]
      %v4748 = vld [vmem:[%s4689 + $0x184] sm:$0xff]
      %v4749 = vld [vmem:[%s4689 + $0x18c] sm:$0xf]
      %v4750 = vld [vmem:[%s4689 + $0x190] sm:$0xff]
      %v4751 = vld [vmem:[%s4689 + $0x198] sm:$0xff]
      %v4752 = vld [vmem:[%s4689 + $0x1a0] sm:$0xf]
      %v4753 = vld [vmem:[%s4689 + $0x1a4] sm:$0xff]
      %v4754 = vld [vmem:[%s4689 + $0x1ac] sm:$0xff]
      %v4755 = vld [vmem:[%s4689 + $0x1b4] sm:$0xf]
      %v4756 = vld [vmem:[%s4689 + $0x1b8] sm:$0xff]
      %v4757 = vld [vmem:[%s4689 + $0x1c0] sm:$0xff]
      %v4758 = vld [vmem:[%s4689 + $0x1c8] sm:$0xf]
      %v4759 = vld [vmem:[%s4689 + $0x1cc] sm:$0xff]
      %v4760 = vld [vmem:[%s4689 + $0x1d4] sm:$0xff]
      %v4761 = vld [vmem:[%s4689 + $0x1dc] sm:$0xf]
      %s4762 = scalar_lea.vmem %s425, 192
      %v4763 = vld [vmem:[%s4762] sm:$0xff]
      %v4764 = vld [vmem:[%s4762 + $0x8] sm:$0xff]
      %v4765 = vld [vmem:[%s4762 + $0x10] sm:$0xff]
      %v4766 = vld [vmem:[%s4762 + $0x18] sm:$0xff]
      %v4767 = vld [vmem:[%s4762 + $0x20] sm:$0xff]
      %v4768 = vld [vmem:[%s4762 + $0x28] sm:$0xff]
      %v4769 = vld [vmem:[%s4762 + $0x30] sm:$0xff]
      %v4770 = vld [vmem:[%s4762 + $0x38] sm:$0xff]
      %v4771 = vld [vmem:[%s4762 + $0x40] sm:$0xff]
      %v4772 = vld [vmem:[%s4762 + $0x48] sm:$0xff]
      %v4773 = vld [vmem:[%s4762 + $0x50] sm:$0xff]
      %v4774 = vld [vmem:[%s4762 + $0x58] sm:$0xff]
      %v4775 = vld [vmem:[%s4762 + $0x60] sm:$0xff]
      %v4776 = vld [vmem:[%s4762 + $0x68] sm:$0xff]
      %v4777 = vld [vmem:[%s4762 + $0x70] sm:$0xff]
      %v4778 = vld [vmem:[%s4762 + $0x78] sm:$0xff]
      %v4779 = vld [vmem:[%s4762 + $0x80] sm:$0xff]
      %v4780 = vld [vmem:[%s4762 + $0x88] sm:$0xff]
      %v4781 = vld [vmem:[%s4762 + $0x90] sm:$0xff]
      %v4782 = vld [vmem:[%s4762 + $0x98] sm:$0xff]
      %v4783 = vld [vmem:[%s4762 + $0xa0] sm:$0xff]
      %v4784 = vld [vmem:[%s4762 + $0xa8] sm:$0xff]
      %v4785 = vld [vmem:[%s4762 + $0xb0] sm:$0xff]
      %v4786 = vld [vmem:[%s4762 + $0xb8] sm:$0xff]
      %s4787 = scalar_lea.vmem %s430, 576
      %v4788 = vld [vmem:[%s4787] sm:$0xff]
      %v4789 = vld [vmem:[%s4787 + $0x8] sm:$0xff]
      %v4790 = vld [vmem:[%s4787 + $0x10] sm:$0xff]
      %v4791 = vld [vmem:[%s4787 + $0x18] sm:$0xff]
      %v4792 = vld [vmem:[%s4787 + $0x20] sm:$0xff]
      %v4793 = vld [vmem:[%s4787 + $0x28] sm:$0xff]
      %v4794 = vld [vmem:[%s4787 + $0x30] sm:$0xff]
      %v4795 = vld [vmem:[%s4787 + $0x38] sm:$0xff]
      %v4796 = vld [vmem:[%s4787 + $0x40] sm:$0xff]
      %v4797 = vld [vmem:[%s4787 + $0x48] sm:$0xff]
      %v4798 = vld [vmem:[%s4787 + $0x50] sm:$0xff]
      %v4799 = vld [vmem:[%s4787 + $0x58] sm:$0xff]
      %v4800 = vld [vmem:[%s4787 + $0x60] sm:$0xff]
      %v4801 = vld [vmem:[%s4787 + $0x68] sm:$0xff]
      %v4802 = vld [vmem:[%s4787 + $0x70] sm:$0xff]
      %v4803 = vld [vmem:[%s4787 + $0x78] sm:$0xff]
      %v4804 = vld [vmem:[%s4787 + $0x80] sm:$0xff]
      %v4805 = vld [vmem:[%s4787 + $0x88] sm:$0xff]
      %v4806 = vld [vmem:[%s4787 + $0x90] sm:$0xff]
      %v4807 = vld [vmem:[%s4787 + $0x98] sm:$0xff]
      %v4808 = vld [vmem:[%s4787 + $0xa0] sm:$0xff]
      %v4809 = vld [vmem:[%s4787 + $0xa8] sm:$0xff]
      %v4810 = vld [vmem:[%s4787 + $0xb0] sm:$0xff]
      %v4811 = vld [vmem:[%s4787 + $0xb8] sm:$0xff]
      %v4812 = vld [vmem:[%s4787 + $0xc0] sm:$0xff]
      %v4813 = vld [vmem:[%s4787 + $0xc8] sm:$0xff]
      %v4814 = vld [vmem:[%s4787 + $0xd0] sm:$0xff]
      %v4815 = vld [vmem:[%s4787 + $0xd8] sm:$0xff]
      %v4816 = vld [vmem:[%s4787 + $0xe0] sm:$0xff]
      %v4817 = vld [vmem:[%s4787 + $0xe8] sm:$0xff]
      %v4818 = vld [vmem:[%s4787 + $0xf0] sm:$0xff]
      %v4819 = vld [vmem:[%s4787 + $0xf8] sm:$0xff]
      %v4820 = vld [vmem:[%s4787 + $0x100] sm:$0xff]
      %v4821 = vld [vmem:[%s4787 + $0x108] sm:$0xff]
      %v4822 = vld [vmem:[%s4787 + $0x110] sm:$0xff]
      %v4823 = vld [vmem:[%s4787 + $0x118] sm:$0xff]
      %v4824 = vld [vmem:[%s4787 + $0x120] sm:$0xff]
      %v4825 = vld [vmem:[%s4787 + $0x128] sm:$0xff]
      %v4826 = vld [vmem:[%s4787 + $0x130] sm:$0xff]
      %v4827 = vld [vmem:[%s4787 + $0x138] sm:$0xff]
      %v4828 = vld [vmem:[%s4787 + $0x140] sm:$0xff]
      %v4829 = vld [vmem:[%s4787 + $0x148] sm:$0xff]
      %v4830 = vld [vmem:[%s4787 + $0x150] sm:$0xff]
      %v4831 = vld [vmem:[%s4787 + $0x158] sm:$0xff]
      %v4832 = vld [vmem:[%s4787 + $0x160] sm:$0xff]
      %v4833 = vld [vmem:[%s4787 + $0x168] sm:$0xff]
      %v4834 = vld [vmem:[%s4787 + $0x170] sm:$0xff]
      %v4835 = vld [vmem:[%s4787 + $0x178] sm:$0xff]
      %v4836 = vld [vmem:[%s4787 + $0x180] sm:$0xff]
      %v4837 = vld [vmem:[%s4787 + $0x188] sm:$0xff]
      %v4838 = vld [vmem:[%s4787 + $0x190] sm:$0xff]
      %v4839 = vld [vmem:[%s4787 + $0x198] sm:$0xff]
      %v4840 = vld [vmem:[%s4787 + $0x1a0] sm:$0xff]
      %v4841 = vld [vmem:[%s4787 + $0x1a8] sm:$0xff]
      %v4842 = vld [vmem:[%s4787 + $0x1b0] sm:$0xff]
      %v4843 = vld [vmem:[%s4787 + $0x1b8] sm:$0xff]
      %v4844 = vld [vmem:[%s4787 + $0x1c0] sm:$0xff]
      %v4845 = vld [vmem:[%s4787 + $0x1c8] sm:$0xff]
      %v4846 = vld [vmem:[%s4787 + $0x1d0] sm:$0xff]
      %v4847 = vld [vmem:[%s4787 + $0x1d8] sm:$0xff]
      %v4848 = vld [vmem:[%s4787 + $0x1e0] sm:$0xff]
      %v4849 = vld [vmem:[%s4787 + $0x1e8] sm:$0xff]
      %v4850 = vld [vmem:[%s4787 + $0x1f0] sm:$0xff]
      %v4851 = vld [vmem:[%s4787 + $0x1f8] sm:$0xff]
      %v4852 = vld [vmem:[%s4787 + $0x200] sm:$0xff]
      %v4853 = vld [vmem:[%s4787 + $0x208] sm:$0xff]
      %v4854 = vld [vmem:[%s4787 + $0x210] sm:$0xff]
      %v4855 = vld [vmem:[%s4787 + $0x218] sm:$0xff]
      %v4856 = vld [vmem:[%s4787 + $0x220] sm:$0xff]
      %v4857 = vld [vmem:[%s4787 + $0x228] sm:$0xff]
      %v4858 = vld [vmem:[%s4787 + $0x230] sm:$0xff]
      %v4859 = vld [vmem:[%s4787 + $0x238] sm:$0xff]
      %s4860 = scalar_lea.vmem %s435, 768
      %v4861 = vld [vmem:[%s4860] sm:$0xff]
      %v4862 = vld [vmem:[%s4860 + $0x8] sm:$0xff]
      %v4863 = vld [vmem:[%s4860 + $0x10] sm:$0xff]
      %v4864 = vld [vmem:[%s4860 + $0x18] sm:$0xff]
      %v4865 = vld [vmem:[%s4860 + $0x20] sm:$0xff]
      %v4866 = vld [vmem:[%s4860 + $0x28] sm:$0xff]
      %v4867 = vld [vmem:[%s4860 + $0x30] sm:$0xff]
      %v4868 = vld [vmem:[%s4860 + $0x38] sm:$0xff]
      %v4869 = vld [vmem:[%s4860 + $0x40] sm:$0xff]
      %v4870 = vld [vmem:[%s4860 + $0x48] sm:$0xff]
      %v4871 = vld [vmem:[%s4860 + $0x50] sm:$0xff]
      %v4872 = vld [vmem:[%s4860 + $0x58] sm:$0xff]
      %v4873 = vld [vmem:[%s4860 + $0x60] sm:$0xff]
      %v4874 = vld [vmem:[%s4860 + $0x68] sm:$0xff]
      %v4875 = vld [vmem:[%s4860 + $0x70] sm:$0xff]
      %v4876 = vld [vmem:[%s4860 + $0x78] sm:$0xff]
      %v4877 = vld [vmem:[%s4860 + $0x80] sm:$0xff]
      %v4878 = vld [vmem:[%s4860 + $0x88] sm:$0xff]
      %v4879 = vld [vmem:[%s4860 + $0x90] sm:$0xff]
      %v4880 = vld [vmem:[%s4860 + $0x98] sm:$0xff]
      %v4881 = vld [vmem:[%s4860 + $0xa0] sm:$0xff]
      %v4882 = vld [vmem:[%s4860 + $0xa8] sm:$0xff]
      %v4883 = vld [vmem:[%s4860 + $0xb0] sm:$0xff]
      %v4884 = vld [vmem:[%s4860 + $0xb8] sm:$0xff]
      %v4885 = vld [vmem:[%s4860 + $0xc0] sm:$0xff]
      %v4886 = vld [vmem:[%s4860 + $0xc8] sm:$0xff]
      %v4887 = vld [vmem:[%s4860 + $0xd0] sm:$0xff]
      %v4888 = vld [vmem:[%s4860 + $0xd8] sm:$0xff]
      %v4889 = vld [vmem:[%s4860 + $0xe0] sm:$0xff]
      %v4890 = vld [vmem:[%s4860 + $0xe8] sm:$0xff]
      %v4891 = vld [vmem:[%s4860 + $0xf0] sm:$0xff]
      %v4892 = vld [vmem:[%s4860 + $0xf8] sm:$0xff]
      %v4893 = vld [vmem:[%s4860 + $0x100] sm:$0xff]
      %v4894 = vld [vmem:[%s4860 + $0x108] sm:$0xff]
      %v4895 = vld [vmem:[%s4860 + $0x110] sm:$0xff]
      %v4896 = vld [vmem:[%s4860 + $0x118] sm:$0xff]
      %v4897 = vld [vmem:[%s4860 + $0x120] sm:$0xff]
      %v4898 = vld [vmem:[%s4860 + $0x128] sm:$0xff]
      %v4899 = vld [vmem:[%s4860 + $0x130] sm:$0xff]
      %v4900 = vld [vmem:[%s4860 + $0x138] sm:$0xff]
      %v4901 = vld [vmem:[%s4860 + $0x140] sm:$0xff]
      %v4902 = vld [vmem:[%s4860 + $0x148] sm:$0xff]
      %v4903 = vld [vmem:[%s4860 + $0x150] sm:$0xff]
      %v4904 = vld [vmem:[%s4860 + $0x158] sm:$0xff]
      %v4905 = vld [vmem:[%s4860 + $0x160] sm:$0xff]
      %v4906 = vld [vmem:[%s4860 + $0x168] sm:$0xff]
      %v4907 = vld [vmem:[%s4860 + $0x170] sm:$0xff]
      %v4908 = vld [vmem:[%s4860 + $0x178] sm:$0xff]
      %v4909 = vld [vmem:[%s4860 + $0x180] sm:$0xff]
      %v4910 = vld [vmem:[%s4860 + $0x188] sm:$0xff]
      %v4911 = vld [vmem:[%s4860 + $0x190] sm:$0xff]
      %v4912 = vld [vmem:[%s4860 + $0x198] sm:$0xff]
      %v4913 = vld [vmem:[%s4860 + $0x1a0] sm:$0xff]
      %v4914 = vld [vmem:[%s4860 + $0x1a8] sm:$0xff]
      %v4915 = vld [vmem:[%s4860 + $0x1b0] sm:$0xff]
      %v4916 = vld [vmem:[%s4860 + $0x1b8] sm:$0xff]
      %v4917 = vld [vmem:[%s4860 + $0x1c0] sm:$0xff]
      %v4918 = vld [vmem:[%s4860 + $0x1c8] sm:$0xff]
      %v4919 = vld [vmem:[%s4860 + $0x1d0] sm:$0xff]
      %v4920 = vld [vmem:[%s4860 + $0x1d8] sm:$0xff]
      %v4921 = vld [vmem:[%s4860 + $0x1e0] sm:$0xff]
      %v4922 = vld [vmem:[%s4860 + $0x1e8] sm:$0xff]
      %v4923 = vld [vmem:[%s4860 + $0x1f0] sm:$0xff]
      %v4924 = vld [vmem:[%s4860 + $0x1f8] sm:$0xff]
      %v4925 = vld [vmem:[%s4860 + $0x200] sm:$0xff]
      %v4926 = vld [vmem:[%s4860 + $0x208] sm:$0xff]
      %v4927 = vld [vmem:[%s4860 + $0x210] sm:$0xff]
      %v4928 = vld [vmem:[%s4860 + $0x218] sm:$0xff]
      %v4929 = vld [vmem:[%s4860 + $0x220] sm:$0xff]
      %v4930 = vld [vmem:[%s4860 + $0x228] sm:$0xff]
      %v4931 = vld [vmem:[%s4860 + $0x230] sm:$0xff]
      %v4932 = vld [vmem:[%s4860 + $0x238] sm:$0xff]
      %v4933 = vld [vmem:[%s4860 + $0x240] sm:$0xff]
      %v4934 = vld [vmem:[%s4860 + $0x248] sm:$0xff]
      %v4935 = vld [vmem:[%s4860 + $0x250] sm:$0xff]
      %v4936 = vld [vmem:[%s4860 + $0x258] sm:$0xff]
      %v4937 = vld [vmem:[%s4860 + $0x260] sm:$0xff]
      %v4938 = vld [vmem:[%s4860 + $0x268] sm:$0xff]
      %v4939 = vld [vmem:[%s4860 + $0x270] sm:$0xff]
      %v4940 = vld [vmem:[%s4860 + $0x278] sm:$0xff]
      %v4941 = vld [vmem:[%s4860 + $0x280] sm:$0xff]
      %v4942 = vld [vmem:[%s4860 + $0x288] sm:$0xff]
      %v4943 = vld [vmem:[%s4860 + $0x290] sm:$0xff]
      %v4944 = vld [vmem:[%s4860 + $0x298] sm:$0xff]
      %v4945 = vld [vmem:[%s4860 + $0x2a0] sm:$0xff]
      %v4946 = vld [vmem:[%s4860 + $0x2a8] sm:$0xff]
      %v4947 = vld [vmem:[%s4860 + $0x2b0] sm:$0xff]
      %v4948 = vld [vmem:[%s4860 + $0x2b8] sm:$0xff]
      %v4949 = vld [vmem:[%s4860 + $0x2c0] sm:$0xff]
      %v4950 = vld [vmem:[%s4860 + $0x2c8] sm:$0xff]
      %v4951 = vld [vmem:[%s4860 + $0x2d0] sm:$0xff]
      %v4952 = vld [vmem:[%s4860 + $0x2d8] sm:$0xff]
      %v4953 = vld [vmem:[%s4860 + $0x2e0] sm:$0xff]
      %v4954 = vld [vmem:[%s4860 + $0x2e8] sm:$0xff]
      %v4955 = vld [vmem:[%s4860 + $0x2f0] sm:$0xff]
      %v4956 = vld [vmem:[%s4860 + $0x2f8] sm:$0xff]
      %v4957 = vsel %vm1448, %v4679, 0.0
      %v4958 = vadd.f32 %v4678, %v4957
      %4959 = vadd.xlane.f32.xlu0 %v4958
      %v4960 = vpop.xlane.xlu0 %4959
      %v4961 = vsel %vm1448, %v4681, 0.0
      %v4962 = vadd.f32 %v4680, %v4961
      %4963 = vadd.xlane.f32.xlu0 %v4962
      %v4964 = vpop.xlane.xlu0 %4963
      %v4965 = vmul.f32 %v4960, %v1457
      %v4966 = vmul.f32 %v4964, %v1457
      %v4967 = vsub.f32 %v4678, %v4965
      %v4968 = vsub.f32 %v4679, %v4965
      %v4969 = vsub.f32 %v4680, %v4966
      %v4970 = vsub.f32 %v4681, %v4966
      %v4971 = vmul.f32 %v4967, %v4967
      %v4972 = vmul.f32 %v4968, %v4968
      %v4973 = vmul.f32 %v4969, %v4969
      %v4974 = vmul.f32 %v4970, %v4970
      %v4975 = vsel %vm1448, %v4972, 0.0
      %v4976 = vadd.f32 %v4971, %v4975
      %4977 = vadd.xlane.f32.xlu0 %v4976
      %v4978 = vpop.xlane.xlu0 %4977
      %v4979 = vsel %vm1448, %v4974, 0.0
      %v4980 = vadd.f32 %v4973, %v4979
      %4981 = vadd.xlane.f32.xlu0 %v4980
      %v4982 = vpop.xlane.xlu0 %4981
      %v4983 = vmul.f32 %v4978, %v1457
      %v4984 = vmul.f32 %v4982, %v1457
      %v4985 = vadd.f32 %v4983, 1e-12
      %v4986 = vadd.f32 %v4984, 1e-12
      %v4987 = vrsqrt.pop %v4985
      %v4988 = vrsqrt.pop %v4986
      %v4989 = vmul.f32 %v4967, %v4987
      %v4990 = vmul.f32 %v4968, %v4987
      %v4991 = vmul.f32 %v4969, %v4988
      %v4992 = vmul.f32 %v4970, %v4988
      %v4993 = vlaneseq
      %v4994 = vshrl.u32 %v4993, 7
      %v4995 = vsub.s32 0, %v4994
      %v4996 = vrot.slane %v4683, %v4995
      %v4997 = vlaneseq
      %v4998 = vshrl.u32 %v4997, 7
      %v4999 = vsub.s32 0, %v4998
      %v5000 = vrot.slane %v4684, %v4999
      %v5001 = vmul.f32 %v4989, %v4996
      %v5002 = vmul.f32 %v4990, %v5000
      %v5003 = vmul.f32 %v4991, %v4996
      %v5004 = vmul.f32 %v4992, %v5000
      %v5005 = vlaneseq
      %v5006 = vshrl.u32 %v5005, 7
      %v5007 = vsub.s32 1, %v5006
      %v5008 = vrot.slane %v4683, %v5007
      %v5009 = vlaneseq
      %v5010 = vshrl.u32 %v5009, 7
      %v5011 = vsub.s32 1, %v5010
      %v5012 = vrot.slane %v4684, %v5011
      %v5013 = vadd.f32 %v5001, %v5008
      %v5014 = vadd.f32 %v5002, %v5012
      %v5015 = vadd.f32 %v5003, %v5008
      %v5016 = vadd.f32 %v5004, %v5012
      %v5017 = vpack.c.bf16 %v5015, %v5013
      %v5018 = vpack.c.bf16 %v5016, %v5014
      %v5019 = vlaneseq
      %v5020 = vshrl.u32 %v5019, 7
      %v5021 = vsub.s32 2, %v5020
      %v5022 = vrot.slane %v4683, %v5021
      %v5023 = vlaneseq
      %v5024 = vshrl.u32 %v5023, 7
      %v5025 = vsub.s32 2, %v5024
      %v5026 = vrot.slane %v4684, %v5025
      %v5027 = vlaneseq
      %v5028 = vshrl.u32 %v5027, 7
      %v5029 = vsub.s32 2, %v5028
      %v5030 = vrot.slane %v4685, %v5029
      %v5031 = vlaneseq
      %v5032 = vshrl.u32 %v5031, 7
      %v5033 = vsub.s32 2, %v5032
      %v5034 = vrot.slane %v4686, %v5033
      %v5035 = vlaneseq
      %v5036 = vshrl.u32 %v5035, 7
      %v5037 = vsub.s32 2, %v5036
      %v5038 = vrot.slane %v4687, %v5037
      %v5111 = vunpack.c.l.b16 %v4690
      %v5112 = vunpack.c.h.b16 %v4690
      %v5113 = vunpack.c.l.b16 %v4691
      %v5114 = vunpack.c.h.b16 %v4691
      %v5115 = vunpack.c.l.b16 %v4692
      %v5116 = vunpack.c.l.b16 %v4693
      %v5117 = vunpack.c.h.b16 %v4693
      %v5118 = vunpack.c.l.b16 %v4694
      %v5119 = vunpack.c.h.b16 %v4694
      %v5120 = vunpack.c.l.b16 %v4695
      %v5121 = vunpack.c.l.b16 %v4696
      %v5122 = vunpack.c.h.b16 %v4696
      %v5123 = vunpack.c.l.b16 %v4697
      %v5124 = vunpack.c.h.b16 %v4697
      %v5125 = vunpack.c.l.b16 %v4698
      %v5126 = vunpack.c.l.b16 %v4699
      %v5127 = vunpack.c.h.b16 %v4699
      %v5128 = vunpack.c.l.b16 %v4700
      %v5129 = vunpack.c.h.b16 %v4700
      %v5130 = vunpack.c.l.b16 %v4701
      %v5131 = vunpack.c.l.b16 %v4702
      %v5132 = vunpack.c.h.b16 %v4702
      %v5133 = vunpack.c.l.b16 %v4703
      %v5134 = vunpack.c.h.b16 %v4703
      %v5135 = vunpack.c.l.b16 %v4704
      %v5136 = vunpack.c.l.b16 %v4705
      %v5137 = vunpack.c.h.b16 %v4705
      %v5138 = vunpack.c.l.b16 %v4706
      %v5139 = vunpack.c.h.b16 %v4706
      %v5140 = vunpack.c.l.b16 %v4707
      %v5141 = vunpack.c.l.b16 %v4708
      %v5142 = vunpack.c.h.b16 %v4708
      %v5143 = vunpack.c.l.b16 %v4709
      %v5144 = vunpack.c.h.b16 %v4709
      %v5145 = vunpack.c.l.b16 %v4710
      %v5146 = vunpack.c.l.b16 %v4711
      %v5147 = vunpack.c.h.b16 %v4711
      %v5148 = vunpack.c.l.b16 %v4712
      %v5149 = vunpack.c.h.b16 %v4712
      %v5150 = vunpack.c.l.b16 %v4713
      %v5151 = vunpack.c.l.b16 %v4714
      %v5152 = vunpack.c.h.b16 %v4714
      %v5153 = vunpack.c.l.b16 %v4715
      %v5154 = vunpack.c.h.b16 %v4715
      %v5155 = vunpack.c.l.b16 %v4716
      %v5156 = vunpack.c.l.b16 %v4717
      %v5157 = vunpack.c.h.b16 %v4717
      %v5158 = vunpack.c.l.b16 %v4718
      %v5159 = vunpack.c.h.b16 %v4718
      %v5160 = vunpack.c.l.b16 %v4719
      %v5161 = vunpack.c.l.b16 %v4720
      %v5162 = vunpack.c.h.b16 %v4720
      %v5163 = vunpack.c.l.b16 %v4721
      %v5164 = vunpack.c.h.b16 %v4721
      %v5165 = vunpack.c.l.b16 %v4722
      %v5166 = vunpack.c.l.b16 %v4723
      %v5167 = vunpack.c.h.b16 %v4723
      %v5168 = vunpack.c.l.b16 %v4724
      %v5169 = vunpack.c.h.b16 %v4724
      %v5170 = vunpack.c.l.b16 %v4725
      %v5171 = vunpack.c.l.b16 %v4726
      %v5172 = vunpack.c.h.b16 %v4726
      %v5173 = vunpack.c.l.b16 %v4727
      %v5174 = vunpack.c.h.b16 %v4727
      %v5175 = vunpack.c.l.b16 %v4728
      %v5176 = vunpack.c.l.b16 %v4729
      %v5177 = vunpack.c.h.b16 %v4729
      %v5178 = vunpack.c.l.b16 %v4730
      %v5179 = vunpack.c.h.b16 %v4730
      %v5180 = vunpack.c.l.b16 %v4731
      %v5181 = vunpack.c.l.b16 %v4732
      %v5182 = vunpack.c.h.b16 %v4732
      %v5183 = vunpack.c.l.b16 %v4733
      %v5184 = vunpack.c.h.b16 %v4733
      %v5185 = vunpack.c.l.b16 %v4734
      %v5186 = vunpack.c.l.b16 %v4735
      %v5187 = vunpack.c.h.b16 %v4735
      %v5188 = vunpack.c.l.b16 %v4736
      %v5189 = vunpack.c.h.b16 %v4736
      %v5190 = vunpack.c.l.b16 %v4737
      %v5191 = vunpack.c.l.b16 %v4738
      %v5192 = vunpack.c.h.b16 %v4738
      %v5193 = vunpack.c.l.b16 %v4739
      %v5194 = vunpack.c.h.b16 %v4739
      %v5195 = vunpack.c.l.b16 %v4740
      %v5196 = vunpack.c.l.b16 %v4741
      %v5197 = vunpack.c.h.b16 %v4741
      %v5198 = vunpack.c.l.b16 %v4742
      %v5199 = vunpack.c.h.b16 %v4742
      %v5200 = vunpack.c.l.b16 %v4743
      %v5201 = vunpack.c.l.b16 %v4744
      %v5202 = vunpack.c.h.b16 %v4744
      %v5203 = vunpack.c.l.b16 %v4745
      %v5204 = vunpack.c.h.b16 %v4745
      %v5205 = vunpack.c.l.b16 %v4746
      %v5206 = vunpack.c.l.b16 %v4747
      %v5207 = vunpack.c.h.b16 %v4747
      %v5208 = vunpack.c.l.b16 %v4748
      %v5209 = vunpack.c.h.b16 %v4748
      %v5210 = vunpack.c.l.b16 %v4749
      %v5211 = vunpack.c.l.b16 %v4750
      %v5212 = vunpack.c.h.b16 %v4750
      %v5213 = vunpack.c.l.b16 %v4751
      %v5214 = vunpack.c.h.b16 %v4751
      %v5215 = vunpack.c.l.b16 %v4752
      %v5216 = vunpack.c.l.b16 %v4753
      %v5217 = vunpack.c.h.b16 %v4753
      %v5218 = vunpack.c.l.b16 %v4754
      %v5219 = vunpack.c.h.b16 %v4754
      %v5220 = vunpack.c.l.b16 %v4755
      %v5221 = vunpack.c.l.b16 %v4756
      %v5222 = vunpack.c.h.b16 %v4756
      %v5223 = vunpack.c.l.b16 %v4757
      %v5224 = vunpack.c.h.b16 %v4757
      %v5225 = vunpack.c.l.b16 %v4758
      %v5226 = vunpack.c.l.b16 %v4759
      %v5227 = vunpack.c.h.b16 %v4759
      %v5228 = vunpack.c.l.b16 %v4760
      %v5229 = vunpack.c.h.b16 %v4760
      %v5230 = vunpack.c.l.b16 %v4761
      %v5231 = vpack.c.b16 %v5116, %v5111
      %v5232 = vpack.c.b16 %v5117, %v5112
      %v5233 = vpack.c.b16 %v5118, %v5113
      %v5234 = vpack.c.b16 %v5119, %v5114
      %v5235 = vpack.c.b16 %v5120, %v5115
      %v5236 = vpack.c.b16 %v5126, %v5121
      %v5237 = vpack.c.b16 %v5127, %v5122
      %v5238 = vpack.c.b16 %v5128, %v5123
      %v5239 = vpack.c.b16 %v5129, %v5124
      %v5240 = vpack.c.b16 %v5130, %v5125
      %v5241 = vpack.c.b16 %v5136, %v5131
      %v5242 = vpack.c.b16 %v5137, %v5132
      %v5243 = vpack.c.b16 %v5138, %v5133
      %v5244 = vpack.c.b16 %v5139, %v5134
      %v5245 = vpack.c.b16 %v5140, %v5135
      %v5246 = vpack.c.b16 %v5146, %v5141
      %v5247 = vpack.c.b16 %v5147, %v5142
      %v5248 = vpack.c.b16 %v5148, %v5143
      %v5249 = vpack.c.b16 %v5149, %v5144
      %v5250 = vpack.c.b16 %v5150, %v5145
      %v5251 = vpack.c.b16 %v5156, %v5151
      %v5252 = vpack.c.b16 %v5157, %v5152
      %v5253 = vpack.c.b16 %v5158, %v5153
      %v5254 = vpack.c.b16 %v5159, %v5154
      %v5255 = vpack.c.b16 %v5160, %v5155
      %v5256 = vpack.c.b16 %v5166, %v5161
      %v5257 = vpack.c.b16 %v5167, %v5162
      %v5258 = vpack.c.b16 %v5168, %v5163
      %v5259 = vpack.c.b16 %v5169, %v5164
      %v5260 = vpack.c.b16 %v5170, %v5165
      %v5261 = vpack.c.b16 %v5176, %v5171
      %v5262 = vpack.c.b16 %v5177, %v5172
      %v5263 = vpack.c.b16 %v5178, %v5173
      %v5264 = vpack.c.b16 %v5179, %v5174
      %v5265 = vpack.c.b16 %v5180, %v5175
      %v5266 = vpack.c.b16 %v5186, %v5181
      %v5267 = vpack.c.b16 %v5187, %v5182
      %v5268 = vpack.c.b16 %v5188, %v5183
      %v5269 = vpack.c.b16 %v5189, %v5184
      %v5270 = vpack.c.b16 %v5190, %v5185
      %v5271 = vpack.c.b16 %v5196, %v5191
      %v5272 = vpack.c.b16 %v5197, %v5192
      %v5273 = vpack.c.b16 %v5198, %v5193
      %v5274 = vpack.c.b16 %v5199, %v5194
      %v5275 = vpack.c.b16 %v5200, %v5195
      %v5276 = vpack.c.b16 %v5206, %v5201
      %v5277 = vpack.c.b16 %v5207, %v5202
      %v5278 = vpack.c.b16 %v5208, %v5203
      %v5279 = vpack.c.b16 %v5209, %v5204
      %v5280 = vpack.c.b16 %v5210, %v5205
      %v5281 = vpack.c.b16 %v5216, %v5211
      %v5282 = vpack.c.b16 %v5217, %v5212
      %v5283 = vpack.c.b16 %v5218, %v5213
      %v5284 = vpack.c.b16 %v5219, %v5214
      %v5285 = vpack.c.b16 %v5220, %v5215
      %v5286 = vpack.c.b16 %v5226, %v5221
      %v5287 = vpack.c.b16 %v5227, %v5222
      %v5288 = vpack.c.b16 %v5228, %v5223
      %v5289 = vpack.c.b16 %v5229, %v5224
      %v5290 = vpack.c.b16 %v5230, %v5225
      %v5352 = vsel %vm1448, %v5018, 0
      %5354 = vmatprep.subr.bf16.mxu0 %v5232
      %5355 = vmatpush1.bf16.msra.mxu0 %v5231
      %5356 = vmatprep.subr.bf16.mxu0 %v5237
      %5357 = vmatpush1.bf16.msra.mxu0 %v5236
      %5358 = vmatprep.subr.bf16.mxu0 %v5242
      %5359 = vmatpush1.bf16.msra.mxu0 %v5241
      %5360 = vmatprep.subr.bf16.mxu0 %v5247
      %5361 = vmatpush1.bf16.msra.mxu0 %v5246
      %5362 = vmatprep.subr.bf16.mxu0 %v5252
      %5363 = vmatpush1.bf16.msra.mxu0 %v5251
      %5364 = vmatprep.subr.bf16.mxu0 %v5257
      %5365 = vmatpush1.bf16.msra.mxu0 %v5256
      %5366 = vmatprep.subr.bf16.mxu0 %v5262
      %5367 = vmatpush1.bf16.msra.mxu0 %v5261
      %5368 = vmatprep.subr.bf16.mxu0 %v5267
      %5369 = vmatpush1.bf16.msra.mxu0 %v5266
      %5370 = vmatprep.subr.bf16.mxu0 %v5272
      %5371 = vmatpush1.bf16.msra.mxu0 %v5271
      %5372 = vmatprep.subr.bf16.mxu0 %v5277
      %5373 = vmatpush1.bf16.msra.mxu0 %v5276
      %5374 = vmatprep.subr.bf16.mxu0 %v5282
      %5375 = vmatpush1.bf16.msra.mxu0 %v5281
      %5376 = vmatprep.subr.bf16.mxu0 %v5287
      %5377 = vmatpush1.bf16.msra.mxu0 %v5286
      %5378 = vmatprep.subr.bf16.mxu0 0
      %5379 = vmatpush1.bf16.msra.mxu0 0
      %5380 = vmatprep.subr.bf16.mxu0 0
      %5381 = vmatpush1.bf16.msra.mxu0 0
      %5382 = vmatprep.subr.bf16.mxu0 0
      %5383 = vmatpush1.bf16.msra.mxu0 0
      %5384 = vmatprep.subr.bf16.mxu0 0
      %5385 = vmatpush1.bf16.msra.mxu0 0
      %5386 = vmatprep.mubr.bf16.mxu0 %v5352
      %5387 = vmatmul.mubr.bf16.gmra.mrb[0].mxu0 %v5017
      %v5388 = vpop.f32.mrb[0].mxu0
      %v5389 = vadd.f32 %v5022, %v5388
      %v5390 = vpop.f32.mrb[0].mxu0
      %v5391 = vadd.f32 %v5026, %v5390
      %v5392 = vpop.f32.mrb[0].mxu0
      %v5393 = vadd.f32 %v5022, %v5392
      %v5394 = vpop.f32.mrb[0].mxu0
      %v5395 = vadd.f32 %v5026, %v5394
      %5396 = vdwg.mxu0
      %5397 = vmatprep.subr.bf16.mxu0 %v5234
      %5398 = vmatpush1.bf16.msra.mxu0 %v5233
      %5399 = vmatprep.subr.bf16.mxu0 %v5239
      %5400 = vmatpush1.bf16.msra.mxu0 %v5238
      %5401 = vmatprep.subr.bf16.mxu0 %v5244
      %5402 = vmatpush1.bf16.msra.mxu0 %v5243
      %5403 = vmatprep.subr.bf16.mxu0 %v5249
      %5404 = vmatpush1.bf16.msra.mxu0 %v5248
      %5405 = vmatprep.subr.bf16.mxu0 %v5254
      %5406 = vmatpush1.bf16.msra.mxu0 %v5253
      %5407 = vmatprep.subr.bf16.mxu0 %v5259
      %5408 = vmatpush1.bf16.msra.mxu0 %v5258
      %5409 = vmatprep.subr.bf16.mxu0 %v5264
      %5410 = vmatpush1.bf16.msra.mxu0 %v5263
      %5411 = vmatprep.subr.bf16.mxu0 %v5269
      %5412 = vmatpush1.bf16.msra.mxu0 %v5268
      %5413 = vmatprep.subr.bf16.mxu0 %v5274
      %5414 = vmatpush1.bf16.msra.mxu0 %v5273
      %5415 = vmatprep.subr.bf16.mxu0 %v5279
      %5416 = vmatpush1.bf16.msra.mxu0 %v5278
      %5417 = vmatprep.subr.bf16.mxu0 %v5284
      %5418 = vmatpush1.bf16.msra.mxu0 %v5283
      %5419 = vmatprep.subr.bf16.mxu0 %v5289
      %5420 = vmatpush1.bf16.msra.mxu0 %v5288
      %5421 = vmatprep.subr.bf16.mxu0 0
      %5422 = vmatpush1.bf16.msra.mxu0 0
      %5423 = vmatprep.subr.bf16.mxu0 0
      %5424 = vmatpush1.bf16.msra.mxu0 0
      %5425 = vmatprep.subr.bf16.mxu0 0
      %5426 = vmatpush1.bf16.msra.mxu0 0
      %5427 = vmatprep.subr.bf16.mxu0 0
      %5428 = vmatpush1.bf16.msra.mxu0 0
      %5429 = vmatprep.mubr.bf16.mxu0 %v5352
      %5430 = vmatmul.mubr.bf16.gmra.mrb[0].mxu0 %v5017
      %v5431 = vpop.f32.mrb[0].mxu0
      %v5432 = vadd.f32 %v5030, %v5431
      %v5433 = vpop.f32.mrb[0].mxu0
      %v5434 = vadd.f32 %v5034, %v5433
      %v5435 = vpop.f32.mrb[0].mxu0
      %v5436 = vadd.f32 %v5030, %v5435
      %v5437 = vpop.f32.mrb[0].mxu0
      %v5438 = vadd.f32 %v5034, %v5437
      %5439 = vdwg.mxu0
      %5440 = vmatprep.subr.bf16.mxu0 0
      %5441 = vmatpush1.bf16.msra.mxu0 %v5235
      %5442 = vmatprep.subr.bf16.mxu0 0
      %5443 = vmatpush1.bf16.msra.mxu0 %v5240
      %5444 = vmatprep.subr.bf16.mxu0 0
      %5445 = vmatpush1.bf16.msra.mxu0 %v5245
      %5446 = vmatprep.subr.bf16.mxu0 0
      %5447 = vmatpush1.bf16.msra.mxu0 %v5250
      %5448 = vmatprep.subr.bf16.mxu0 0
      %5449 = vmatpush1.bf16.msra.mxu0 %v5255
      %5450 = vmatprep.subr.bf16.mxu0 0
      %5451 = vmatpush1.bf16.msra.mxu0 %v5260
      %5452 = vmatprep.subr.bf16.mxu0 0
      %5453 = vmatpush1.bf16.msra.mxu0 %v5265
      %5454 = vmatprep.subr.bf16.mxu0 0
      %5455 = vmatpush1.bf16.msra.mxu0 %v5270
      %5456 = vmatprep.subr.bf16.mxu0 0
      %5457 = vmatpush1.bf16.msra.mxu0 %v5275
      %5458 = vmatprep.subr.bf16.mxu0 0
      %5459 = vmatpush1.bf16.msra.mxu0 %v5280
      %5460 = vmatprep.subr.bf16.mxu0 0
      %5461 = vmatpush1.bf16.msra.mxu0 %v5285
      %5462 = vmatprep.subr.bf16.mxu0 0
      %5463 = vmatpush1.bf16.msra.mxu0 %v5290
      %5464 = vmatprep.subr.bf16.mxu0 0
      %5465 = vmatpush1.bf16.msra.mxu0 0
      %5466 = vmatprep.subr.bf16.mxu0 0
      %5467 = vmatpush1.bf16.msra.mxu0 0
      %5468 = vmatprep.subr.bf16.mxu0 0
      %5469 = vmatpush1.bf16.msra.mxu0 0
      %5470 = vmatprep.subr.bf16.mxu0 0
      %5471 = vmatpush1.bf16.msra.mxu0 0
      %5472 = vmatprep.mubr.bf16.mxu0 %v5352
      %5473 = vmatmul.mubr.bf16.gmra.mrb[0].mxu0 %v5017
      %v5474 = vpop.f32.mrb[0].mxu0
      %v5475 = vadd.f32 %v5038, %v5474
      %v5476 = vpop.f32.mrb[0].mxu0
      %v5477 = vpop.f32.mrb[0].mxu0
      %v5478 = vadd.f32 %v5038, %v5477
      %v5479 = vpop.f32.mrb[0].mxu0
      %5480 = vdwg.mxu0
      %v5481 = vmul.f32 %v5389, 0.125
      %v5482 = vmul.f32 %v5391, 0.125
      %v5483 = vmul.f32 %v5393, 0.125
      %v5484 = vmul.f32 %v5395, 0.125
      %5486 = vrot.lane.b32.xlu0 %v5391, 64
      %v5487 = vpop.permute.xlu0 %5486
      %v5489 = vsel %vm1448, %v5481, 0
      %v5491 = vsel %vm1448, %v5487, 0
      %5493 = vmatprep.subr.mxu0 0.0
      %5494 = vmatpush1.xpose.msra.mxu0 %v5491
      %5495 = vmatprep.subr.mxu0 0.0
      %5496 = vmatpush1.xpose.msra.mxu0 0.0
      %5497 = vmatprep.subr.mxu0 0.0
      %5498 = vmatpush1.xpose.msra.mxu0 0.0
      %5499 = vmatprep.subr.mxu0 0.0
      %5500 = vmatpush1.xpose.msra.mxu0 0.0
      %5501 = vmatprep.subr.mxu0 0.0
      %5502 = vmatpush1.xpose.msra.mxu0 0.0
      %5503 = vmatprep.subr.mxu0 0.0
      %5504 = vmatpush1.xpose.msra.mxu0 0.0
      %5505 = vmatprep.subr.mxu0 0.0
      %5506 = vmatpush1.xpose.msra.mxu0 0.0
      %5507 = vmatprep.subr.mxu0 0.0
      %5508 = vmatpush1.xpose.msra.mxu0 0.0
      %5509 = vmatprep.subr.mxu0 0.0
      %5510 = vmatpush1.xpose.msra.mxu0 0.0
      %5511 = vmatprep.subr.mxu0 0.0
      %5512 = vmatpush1.xpose.msra.mxu0 0.0
      %5513 = vmatprep.subr.mxu0 0.0
      %5514 = vmatpush1.xpose.msra.mxu0 0.0
      %5515 = vmatprep.subr.mxu0 0.0
      %5516 = vmatpush1.xpose.msra.mxu0 0.0
      %5517 = vmatprep.subr.mxu0 0.0
      %5518 = vmatpush1.xpose.msra.mxu0 0.0
      %5519 = vmatprep.subr.mxu0 0.0
      %5520 = vmatpush1.xpose.msra.mxu0 0.0
      %5521 = vmatprep.subr.mxu0 0.0
      %5522 = vmatpush1.xpose.msra.mxu0 0.0
      %5523 = vmatprep.subr.mxu0 0.0
      %5524 = vmatpush1.xpose.msra.mxu0 0.0
      %5525 = vmatprep.subr.mxu0 0.0
      %5526 = vmatpush1.xpose.msra.mxu0 0.0
      %5527 = vmatprep.subr.mxu0 0.0
      %5528 = vmatpush1.xpose.msra.mxu0 0.0
      %5529 = vmatprep.subr.mxu0 0.0
      %5530 = vmatpush1.xpose.msra.mxu0 0.0
      %5531 = vmatprep.subr.mxu0 0.0
      %5532 = vmatpush1.xpose.msra.mxu0 0.0
      %5533 = vmatprep.subr.mxu0 0.0
      %5534 = vmatpush1.xpose.msra.mxu0 0.0
      %5535 = vmatprep.subr.mxu0 0.0
      %5536 = vmatpush1.xpose.msra.mxu0 0.0
      %5537 = vmatprep.subr.mxu0 0.0
      %5538 = vmatpush1.xpose.msra.mxu0 0.0
      %5539 = vmatprep.subr.mxu0 0.0
      %5540 = vmatpush1.xpose.msra.mxu0 0.0
      %5541 = vmatprep.subr.mxu0 0.0
      %5542 = vmatpush1.xpose.msra.mxu0 0.0
      %5543 = vmatprep.subr.mxu0 0.0
      %5544 = vmatpush1.xpose.msra.mxu0 0.0
      %5545 = vmatprep.subr.mxu0 0.0
      %5546 = vmatpush1.xpose.msra.mxu0 0.0
      %5547 = vmatprep.subr.mxu0 0.0
      %5548 = vmatpush1.xpose.msra.mxu0 0.0
      %5549 = vmatprep.subr.mxu0 0.0
      %5550 = vmatpush1.xpose.msra.mxu0 0.0
      %5551 = vmatprep.subr.mxu0 0.0
      %5552 = vmatpush1.xpose.msra.mxu0 0.0
      %5553 = vmatprep.subr.mxu0 0.0
      %5554 = vmatpush1.xpose.msra.mxu0 0.0
      %5555 = vmatprep.subr.mxu0 0.0
      %5556 = vmatpush1.xpose.msra.mxu0 0.0
      %5557 = vmatprep.mubr.f32.mxu0 0.0
      %5558 = vmatmul.mubr.f32.gmra.mrb[0].mxu0 %v5489
      %v5559 = vpop.f32.mrb[0].mxu0
      %v5560 = vadd.f32 %v1177, %v5559
      %v5561 = vpop.f32.mrb[0].mxu0
      %5562 = vdwg.mxu0
      %v5563 = vsel %vm2056, %v5560, -inf
      %5564 = vmax.xlane.f32.xlu0 %v5563
      %v5565 = vpop.xlane.xlu0 %5564
      %v5566 = vsub.f32 %v5560, %v5565
      %v5567 = vmul.f32 %v5566, 1.442695
      %v5568 = vpow.pop %v5567
      %v5569 = vsel %vm2056, %v5568, 0.0
      %5570 = vadd.xlane.f32.xlu0 %v5569
      %v5571 = vpop.xlane.xlu0 %5570
      %v5572 = vrcp.pop %v5571
      %v5573 = vmul.f32 %v5568, %v5572
      %v5575 = vsel %vm2056, %v5573, 0
      %5577 = vmatprep.subr.mxu0 0.0
      %5578 = vmatpush1.msra.mxu0 %v5434
      %5579 = vmatprep.subr.mxu0 0.0
      %5580 = vmatpush1.msra.mxu0 0.0
      %5581 = vmatprep.subr.mxu0 0.0
      %5582 = vmatpush1.msra.mxu0 0.0
      %5583 = vmatprep.subr.mxu0 0.0
      %5584 = vmatpush1.msra.mxu0 0.0
      %5585 = vmatprep.subr.mxu0 0.0
      %5586 = vmatpush1.msra.mxu0 0.0
      %5587 = vmatprep.subr.mxu0 0.0
      %5588 = vmatpush1.msra.mxu0 0.0
      %5589 = vmatprep.subr.mxu0 0.0
      %5590 = vmatpush1.msra.mxu0 0.0
      %5591 = vmatprep.subr.mxu0 0.0
      %5592 = vmatpush1.msra.mxu0 0.0
      %5593 = vmatprep.subr.mxu0 0.0
      %5594 = vmatpush1.msra.mxu0 0.0
      %5595 = vmatprep.subr.mxu0 0.0
      %5596 = vmatpush1.msra.mxu0 0.0
      %5597 = vmatprep.subr.mxu0 0.0
      %5598 = vmatpush1.msra.mxu0 0.0
      %5599 = vmatprep.subr.mxu0 0.0
      %5600 = vmatpush1.msra.mxu0 0.0
      %5601 = vmatprep.subr.mxu0 0.0
      %5602 = vmatpush1.msra.mxu0 0.0
      %5603 = vmatprep.subr.mxu0 0.0
      %5604 = vmatpush1.msra.mxu0 0.0
      %5605 = vmatprep.subr.mxu0 0.0
      %5606 = vmatpush1.msra.mxu0 0.0
      %5607 = vmatprep.subr.mxu0 0.0
      %5608 = vmatpush1.msra.mxu0 0.0
      %5609 = vmatprep.subr.mxu0 0.0
      %5610 = vmatpush1.msra.mxu0 0.0
      %5611 = vmatprep.subr.mxu0 0.0
      %5612 = vmatpush1.msra.mxu0 0.0
      %5613 = vmatprep.subr.mxu0 0.0
      %5614 = vmatpush1.msra.mxu0 0.0
      %5615 = vmatprep.subr.mxu0 0.0
      %5616 = vmatpush1.msra.mxu0 0.0
      %5617 = vmatprep.subr.mxu0 0.0
      %5618 = vmatpush1.msra.mxu0 0.0
      %5619 = vmatprep.subr.mxu0 0.0
      %5620 = vmatpush1.msra.mxu0 0.0
      %5621 = vmatprep.subr.mxu0 0.0
      %5622 = vmatpush1.msra.mxu0 0.0
      %5623 = vmatprep.subr.mxu0 0.0
      %5624 = vmatpush1.msra.mxu0 0.0
      %5625 = vmatprep.subr.mxu0 0.0
      %5626 = vmatpush1.msra.mxu0 0.0
      %5627 = vmatprep.subr.mxu0 0.0
      %5628 = vmatpush1.msra.mxu0 0.0
      %5629 = vmatprep.subr.mxu0 0.0
      %5630 = vmatpush1.msra.mxu0 0.0
      %5631 = vmatprep.subr.mxu0 0.0
      %5632 = vmatpush1.msra.mxu0 0.0
      %5633 = vmatprep.subr.mxu0 0.0
      %5634 = vmatpush1.msra.mxu0 0.0
      %5635 = vmatprep.subr.mxu0 0.0
      %5636 = vmatpush1.msra.mxu0 0.0
      %5637 = vmatprep.subr.mxu0 0.0
      %5638 = vmatpush1.msra.mxu0 0.0
      %5639 = vmatprep.subr.mxu0 0.0
      %5640 = vmatpush1.msra.mxu0 0.0
      %5641 = vmatprep.mubr.f32.mxu0 0.0
      %5642 = vmatmul.mubr.f32.gmra.mrb[0].mxu0 %v5575
      %v5643 = vpop.f32.mrb[0].mxu0
      %v5644 = vadd.f32 0.0, %v5643
      %v5645 = vpop.f32.mrb[0].mxu0
      %5646 = vdwg.mxu0
      %v5647 = vpack.c.bf16 %v5644, %v5644
      %5648 = vrot.lane.b32.xlu0 %v5481, 64
      %v5649 = vpop.permute.xlu0 %5648
      %v5650 = vsel %vm1448, %v5649, 0
      %v5653 = vsel %vm1448, %v5432, 0
      %5655 = vmatprep.subr.mxu0 0.0
      %5656 = vmatpush1.xpose.msra.mxu0 %v5653
      %5657 = vmatprep.subr.mxu0 0.0
      %5658 = vmatpush1.xpose.msra.mxu0 0.0
      %5659 = vmatprep.subr.mxu0 0.0
      %5660 = vmatpush1.xpose.msra.mxu0 0.0
      %5661 = vmatprep.subr.mxu0 0.0
      %5662 = vmatpush1.xpose.msra.mxu0 0.0
      %5663 = vmatprep.subr.mxu0 0.0
      %5664 = vmatpush1.xpose.msra.mxu0 0.0
      %5665 = vmatprep.subr.mxu0 0.0
      %5666 = vmatpush1.xpose.msra.mxu0 0.0
      %5667 = vmatprep.subr.mxu0 0.0
      %5668 = vmatpush1.xpose.msra.mxu0 0.0
      %5669 = vmatprep.subr.mxu0 0.0
      %5670 = vmatpush1.xpose.msra.mxu0 0.0
      %5671 = vmatprep.subr.mxu0 0.0
      %5672 = vmatpush1.xpose.msra.mxu0 0.0
      %5673 = vmatprep.subr.mxu0 0.0
      %5674 = vmatpush1.xpose.msra.mxu0 0.0
      %5675 = vmatprep.subr.mxu0 0.0
      %5676 = vmatpush1.xpose.msra.mxu0 0.0
      %5677 = vmatprep.subr.mxu0 0.0
      %5678 = vmatpush1.xpose.msra.mxu0 0.0
      %5679 = vmatprep.subr.mxu0 0.0
      %5680 = vmatpush1.xpose.msra.mxu0 0.0
      %5681 = vmatprep.subr.mxu0 0.0
      %5682 = vmatpush1.xpose.msra.mxu0 0.0
      %5683 = vmatprep.subr.mxu0 0.0
      %5684 = vmatpush1.xpose.msra.mxu0 0.0
      %5685 = vmatprep.subr.mxu0 0.0
      %5686 = vmatpush1.xpose.msra.mxu0 0.0
      %5687 = vmatprep.subr.mxu0 0.0
      %5688 = vmatpush1.xpose.msra.mxu0 0.0
      %5689 = vmatprep.subr.mxu0 0.0
      %5690 = vmatpush1.xpose.msra.mxu0 0.0
      %5691 = vmatprep.subr.mxu0 0.0
      %5692 = vmatpush1.xpose.msra.mxu0 0.0
      %5693 = vmatprep.subr.mxu0 0.0
      %5694 = vmatpush1.xpose.msra.mxu0 0.0
      %5695 = vmatprep.subr.mxu0 0.0
      %5696 = vmatpush1.xpose.msra.mxu0 0.0
      %5697 = vmatprep.subr.mxu0 0.0
      %5698 = vmatpush1.xpose.msra.mxu0 0.0
      %5699 = vmatprep.subr.mxu0 0.0
      %5700 = vmatpush1.xpose.msra.mxu0 0.0
      %5701 = vmatprep.subr.mxu0 0.0
      %5702 = vmatpush1.xpose.msra.mxu0 0.0
      %5703 = vmatprep.subr.mxu0 0.0
      %5704 = vmatpush1.xpose.msra.mxu0 0.0
      %5705 = vmatprep.subr.mxu0 0.0
      %5706 = vmatpush1.xpose.msra.mxu0 0.0
      %5707 = vmatprep.subr.mxu0 0.0
      %5708 = vmatpush1.xpose.msra.mxu0 0.0
      %5709 = vmatprep.subr.mxu0 0.0
      %5710 = vmatpush1.xpose.msra.mxu0 0.0
      %5711 = vmatprep.subr.mxu0 0.0
      %5712 = vmatpush1.xpose.msra.mxu0 0.0
      %5713 = vmatprep.subr.mxu0 0.0
      %5714 = vmatpush1.xpose.msra.mxu0 0.0
      %5715 = vmatprep.subr.mxu0 0.0
      %5716 = vmatpush1.xpose.msra.mxu0 0.0
      %5717 = vmatprep.subr.mxu0 0.0
      %5718 = vmatpush1.xpose.msra.mxu0 0.0
      %5719 = vmatprep.mubr.f32.mxu0 0.0
      %5720 = vmatmul.mubr.f32.gmra.mrb[0].mxu0 %v5650
      %v5721 = vpop.f32.mrb[0].mxu0
      %v5722 = vadd.f32 %v1177, %v5721
      %v5723 = vpop.f32.mrb[0].mxu0
      %5724 = vdwg.mxu0
      %v5725 = vsel %vm2056, %v5722, -inf
      %5726 = vmax.xlane.f32.xlu0 %v5725
      %v5727 = vpop.xlane.xlu0 %5726
      %v5728 = vsub.f32 %v5722, %v5727
      %v5729 = vmul.f32 %v5728, 1.442695
      %v5730 = vpow.pop %v5729
      %v5731 = vsel %vm2056, %v5730, 0.0
      %5732 = vadd.xlane.f32.xlu0 %v5731
      %v5733 = vpop.xlane.xlu0 %5732
      %v5734 = vrcp.pop %v5733
      %v5735 = vmul.f32 %v5730, %v5734
      %5737 = vrot.lane.b32.xlu0 %v5434, 64
      %v5738 = vpop.permute.xlu0 %5737
      %v5741 = vsel %vm2056, %v5735, 0
      %5743 = vmatprep.subr.mxu0 0.0
      %5744 = vmatpush1.msra.mxu0 %v5738
      %5745 = vmatprep.subr.mxu0 0.0
      %5746 = vmatpush1.msra.mxu0 0.0
      %5747 = vmatprep.subr.mxu0 0.0
      %5748 = vmatpush1.msra.mxu0 0.0
      %5749 = vmatprep.subr.mxu0 0.0
      %5750 = vmatpush1.msra.mxu0 0.0
      %5751 = vmatprep.subr.mxu0 0.0
      %5752 = vmatpush1.msra.mxu0 0.0
      %5753 = vmatprep.subr.mxu0 0.0
      %5754 = vmatpush1.msra.mxu0 0.0
      %5755 = vmatprep.subr.mxu0 0.0
      %5756 = vmatpush1.msra.mxu0 0.0
      %5757 = vmatprep.subr.mxu0 0.0
      %5758 = vmatpush1.msra.mxu0 0.0
      %5759 = vmatprep.subr.mxu0 0.0
      %5760 = vmatpush1.msra.mxu0 0.0
      %5761 = vmatprep.subr.mxu0 0.0
      %5762 = vmatpush1.msra.mxu0 0.0
      %5763 = vmatprep.subr.mxu0 0.0
      %5764 = vmatpush1.msra.mxu0 0.0
      %5765 = vmatprep.subr.mxu0 0.0
      %5766 = vmatpush1.msra.mxu0 0.0
      %5767 = vmatprep.subr.mxu0 0.0
      %5768 = vmatpush1.msra.mxu0 0.0
      %5769 = vmatprep.subr.mxu0 0.0
      %5770 = vmatpush1.msra.mxu0 0.0
      %5771 = vmatprep.subr.mxu0 0.0
      %5772 = vmatpush1.msra.mxu0 0.0
      %5773 = vmatprep.subr.mxu0 0.0
      %5774 = vmatpush1.msra.mxu0 0.0
      %5775 = vmatprep.subr.mxu0 0.0
      %5776 = vmatpush1.msra.mxu0 0.0
      %5777 = vmatprep.subr.mxu0 0.0
      %5778 = vmatpush1.msra.mxu0 0.0
      %5779 = vmatprep.subr.mxu0 0.0
      %5780 = vmatpush1.msra.mxu0 0.0
      %5781 = vmatprep.subr.mxu0 0.0
      %5782 = vmatpush1.msra.mxu0 0.0
      %5783 = vmatprep.subr.mxu0 0.0
      %5784 = vmatpush1.msra.mxu0 0.0
      %5785 = vmatprep.subr.mxu0 0.0
      %5786 = vmatpush1.msra.mxu0 0.0
      %5787 = vmatprep.subr.mxu0 0.0
      %5788 = vmatpush1.msra.mxu0 0.0
      %5789 = vmatprep.subr.mxu0 0.0
      %5790 = vmatpush1.msra.mxu0 0.0
      %5791 = vmatprep.subr.mxu0 0.0
      %5792 = vmatpush1.msra.mxu0 0.0
      %5793 = vmatprep.subr.mxu0 0.0
      %5794 = vmatpush1.msra.mxu0 0.0
      %5795 = vmatprep.subr.mxu0 0.0
      %5796 = vmatpush1.msra.mxu0 0.0
      %5797 = vmatprep.subr.mxu0 0.0
      %5798 = vmatpush1.msra.mxu0 0.0
      %5799 = vmatprep.subr.mxu0 0.0
      %5800 = vmatpush1.msra.mxu0 0.0
      %5801 = vmatprep.subr.mxu0 0.0
      %5802 = vmatpush1.msra.mxu0 0.0
      %5803 = vmatprep.subr.mxu0 0.0
      %5804 = vmatpush1.msra.mxu0 0.0
      %5805 = vmatprep.subr.mxu0 0.0
      %5806 = vmatpush1.msra.mxu0 0.0
      %5807 = vmatprep.mubr.f32.mxu0 0.0
      %5808 = vmatmul.mubr.f32.gmra.mrb[0].mxu0 %v5741
      %v5809 = vpop.f32.mrb[0].mxu0
      %v5810 = vadd.f32 0.0, %v5809
      %v5811 = vpop.f32.mrb[0].mxu0
      %5812 = vdwg.mxu0
      %v5813 = vpack.c.bf16 %v5810, %v5810
      %v5822 = vunpack.c.l.b16 %v4771
      %v5823 = vunpack.c.h.b16 %v4771
      %v5824 = vunpack.c.l.b16 %v4772
      %v5825 = vunpack.c.h.b16 %v4772
      %v5826 = vunpack.c.l.b16 %v4773
      %v5827 = vunpack.c.h.b16 %v4773
      %v5828 = vunpack.c.l.b16 %v4774
      %v5829 = vunpack.c.h.b16 %v4774
      %v5830 = vunpack.c.l.b16 %v4775
      %v5831 = vunpack.c.h.b16 %v4775
      %v5832 = vunpack.c.l.b16 %v4776
      %v5833 = vunpack.c.h.b16 %v4776
      %v5834 = vunpack.c.l.b16 %v4777
      %v5835 = vunpack.c.h.b16 %v4777
      %v5836 = vunpack.c.l.b16 %v4778
      %v5837 = vunpack.c.h.b16 %v4778
      %v5838 = vpack.c.b16 %v5824, %v5822
      %v5839 = vpack.c.b16 %v5825, %v5823
      %v5840 = vpack.c.b16 %v5828, %v5826
      %v5841 = vpack.c.b16 %v5829, %v5827
      %v5842 = vpack.c.b16 %v5832, %v5830
      %v5843 = vpack.c.b16 %v5833, %v5831
      %v5844 = vpack.c.b16 %v5836, %v5834
      %v5845 = vpack.c.b16 %v5837, %v5835
      %v5855 = vsel %vm1448, %v5813, 0
      %5857 = vmatprep.subr.bf16.mxu0 %v5839
      %5858 = vmatpush1.bf16.msra.mxu0 %v5838
      %5859 = vmatprep.subr.bf16.mxu0 %v5841
      %5860 = vmatpush1.bf16.msra.mxu0 %v5840
      %5861 = vmatprep.subr.bf16.mxu0 %v5843
      %5862 = vmatpush1.bf16.msra.mxu0 %v5842
      %5863 = vmatprep.subr.bf16.mxu0 %v5845
      %5864 = vmatpush1.bf16.msra.mxu0 %v5844
      %5865 = vmatprep.subr.bf16.mxu0 0
      %5866 = vmatpush1.bf16.msra.mxu0 0
      %5867 = vmatprep.subr.bf16.mxu0 0
      %5868 = vmatpush1.bf16.msra.mxu0 0
      %5869 = vmatprep.subr.bf16.mxu0 0
      %5870 = vmatpush1.bf16.msra.mxu0 0
      %5871 = vmatprep.subr.bf16.mxu0 0
      %5872 = vmatpush1.bf16.msra.mxu0 0
      %5873 = vmatprep.subr.bf16.mxu0 0
      %5874 = vmatpush1.bf16.msra.mxu0 0
      %5875 = vmatprep.subr.bf16.mxu0 0
      %5876 = vmatpush1.bf16.msra.mxu0 0
      %5877 = vmatprep.subr.bf16.mxu0 0
      %5878 = vmatpush1.bf16.msra.mxu0 0
      %5879 = vmatprep.subr.bf16.mxu0 0
      %5880 = vmatpush1.bf16.msra.mxu0 0
      %5881 = vmatprep.subr.bf16.mxu0 0
      %5882 = vmatpush1.bf16.msra.mxu0 0
      %5883 = vmatprep.subr.bf16.mxu0 0
      %5884 = vmatpush1.bf16.msra.mxu0 0
      %5885 = vmatprep.subr.bf16.mxu0 0
      %5886 = vmatpush1.bf16.msra.mxu0 0
      %5887 = vmatprep.subr.bf16.mxu0 0
      %5888 = vmatpush1.bf16.msra.mxu0 0
      %5889 = vmatprep.mubr.bf16.mxu0 0
      %5890 = vmatmul.mubr.bf16.gmra.mrb[0].mxu0 %v5855
      %v5891 = vpop.f32.mrb[0].mxu0
      %v5892 = vadd.f32 0.0, %v5891
      %v5893 = vpop.f32.mrb[0].mxu0
      %v5894 = vadd.f32 0.0, %v5893
      %v5895 = vpop.f32.mrb[0].mxu0
      %v5896 = vpop.f32.mrb[0].mxu0
      %5897 = vdwg.mxu0
      %v5906 = vunpack.c.l.b16 %v4763
      %v5907 = vunpack.c.h.b16 %v4763
      %v5908 = vunpack.c.l.b16 %v4764
      %v5909 = vunpack.c.h.b16 %v4764
      %v5910 = vunpack.c.l.b16 %v4765
      %v5911 = vunpack.c.h.b16 %v4765
      %v5912 = vunpack.c.l.b16 %v4766
      %v5913 = vunpack.c.h.b16 %v4766
      %v5914 = vunpack.c.l.b16 %v4767
      %v5915 = vunpack.c.h.b16 %v4767
      %v5916 = vunpack.c.l.b16 %v4768
      %v5917 = vunpack.c.h.b16 %v4768
      %v5918 = vunpack.c.l.b16 %v4769
      %v5919 = vunpack.c.h.b16 %v4769
      %v5920 = vunpack.c.l.b16 %v4770
      %v5921 = vunpack.c.h.b16 %v4770
      %v5922 = vpack.c.b16 %v5908, %v5906
      %v5923 = vpack.c.b16 %v5909, %v5907
      %v5924 = vpack.c.b16 %v5912, %v5910
      %v5925 = vpack.c.b16 %v5913, %v5911
      %v5926 = vpack.c.b16 %v5916, %v5914
      %v5927 = vpack.c.b16 %v5917, %v5915
      %v5928 = vpack.c.b16 %v5920, %v5918
      %v5929 = vpack.c.b16 %v5921, %v5919
      %v5939 = vsel %vm1448, %v5647, 0
      %5941 = vmatprep.subr.bf16.mxu0 %v5923
      %5942 = vmatpush1.bf16.msra.mxu0 %v5922
      %5943 = vmatprep.subr.bf16.mxu0 %v5925
      %5944 = vmatpush1.bf16.msra.mxu0 %v5924
      %5945 = vmatprep.subr.bf16.mxu0 %v5927
      %5946 = vmatpush1.bf16.msra.mxu0 %v5926
      %5947 = vmatprep.subr.bf16.mxu0 %v5929
      %5948 = vmatpush1.bf16.msra.mxu0 %v5928
      %5949 = vmatprep.subr.bf16.mxu0 0
      %5950 = vmatpush1.bf16.msra.mxu0 0
      %5951 = vmatprep.subr.bf16.mxu0 0
      %5952 = vmatpush1.bf16.msra.mxu0 0
      %5953 = vmatprep.subr.bf16.mxu0 0
      %5954 = vmatpush1.bf16.msra.mxu0 0
      %5955 = vmatprep.subr.bf16.mxu0 0
      %5956 = vmatpush1.bf16.msra.mxu0 0
      %5957 = vmatprep.subr.bf16.mxu0 0
      %5958 = vmatpush1.bf16.msra.mxu0 0
      %5959 = vmatprep.subr.bf16.mxu0 0
      %5960 = vmatpush1.bf16.msra.mxu0 0
      %5961 = vmatprep.subr.bf16.mxu0 0
      %5962 = vmatpush1.bf16.msra.mxu0 0
      %5963 = vmatprep.subr.bf16.mxu0 0
      %5964 = vmatpush1.bf16.msra.mxu0 0
      %5965 = vmatprep.subr.bf16.mxu0 0
      %5966 = vmatpush1.bf16.msra.mxu0 0
      %5967 = vmatprep.subr.bf16.mxu0 0
      %5968 = vmatpush1.bf16.msra.mxu0 0
      %5969 = vmatprep.subr.bf16.mxu0 0
      %5970 = vmatpush1.bf16.msra.mxu0 0
      %5971 = vmatprep.subr.bf16.mxu0 0
      %5972 = vmatpush1.bf16.msra.mxu0 0
      %5973 = vmatprep.mubr.bf16.mxu0 0
      %5974 = vmatmul.mubr.bf16.gmra.mrb[0].mxu0 %v5939
      %v5975 = vpop.f32.mrb[0].mxu0
      %v5976 = vadd.f32 %v5892, %v5975
      %v5977 = vpop.f32.mrb[0].mxu0
      %v5978 = vadd.f32 %v5894, %v5977
      %v5979 = vpop.f32.mrb[0].mxu0
      %v5980 = vpop.f32.mrb[0].mxu0
      %5981 = vdwg.mxu0
      %5982 = vrot.lane.b32.xlu0 %v5432, 64
      %v5983 = vpop.permute.xlu0 %5982
      %v5985 = vsel %vm1448, %v5482, 0
      %v5987 = vsel %vm1448, %v5983, 0
      %5989 = vmatprep.subr.mxu0 0.0
      %5990 = vmatpush1.xpose.msra.mxu0 %v5987
      %5991 = vmatprep.subr.mxu0 0.0
      %5992 = vmatpush1.xpose.msra.mxu0 0.0
      %5993 = vmatprep.subr.mxu0 0.0
      %5994 = vmatpush1.xpose.msra.mxu0 0.0
      %5995 = vmatprep.subr.mxu0 0.0
      %5996 = vmatpush1.xpose.msra.mxu0 0.0
      %5997 = vmatprep.subr.mxu0 0.0
      %5998 = vmatpush1.xpose.msra.mxu0 0.0
      %5999 = vmatprep.subr.mxu0 0.0
      %6000 = vmatpush1.xpose.msra.mxu0 0.0
      %6001 = vmatprep.subr.mxu0 0.0
      %6002 = vmatpush1.xpose.msra.mxu0 0.0
      %6003 = vmatprep.subr.mxu0 0.0
      %6004 = vmatpush1.xpose.msra.mxu0 0.0
      %6005 = vmatprep.subr.mxu0 0.0
      %6006 = vmatpush1.xpose.msra.mxu0 0.0
      %6007 = vmatprep.subr.mxu0 0.0
      %6008 = vmatpush1.xpose.msra.mxu0 0.0
      %6009 = vmatprep.subr.mxu0 0.0
      %6010 = vmatpush1.xpose.msra.mxu0 0.0
      %6011 = vmatprep.subr.mxu0 0.0
      %6012 = vmatpush1.xpose.msra.mxu0 0.0
      %6013 = vmatprep.subr.mxu0 0.0
      %6014 = vmatpush1.xpose.msra.mxu0 0.0
      %6015 = vmatprep.subr.mxu0 0.0
      %6016 = vmatpush1.xpose.msra.mxu0 0.0
      %6017 = vmatprep.subr.mxu0 0.0
      %6018 = vmatpush1.xpose.msra.mxu0 0.0
      %6019 = vmatprep.subr.mxu0 0.0
      %6020 = vmatpush1.xpose.msra.mxu0 0.0
      %6021 = vmatprep.subr.mxu0 0.0
      %6022 = vmatpush1.xpose.msra.mxu0 0.0
      %6023 = vmatprep.subr.mxu0 0.0
      %6024 = vmatpush1.xpose.msra.mxu0 0.0
      %6025 = vmatprep.subr.mxu0 0.0
      %6026 = vmatpush1.xpose.msra.mxu0 0.0
      %6027 = vmatprep.subr.mxu0 0.0
      %6028 = vmatpush1.xpose.msra.mxu0 0.0
      %6029 = vmatprep.subr.mxu0 0.0
      %6030 = vmatpush1.xpose.msra.mxu0 0.0
      %6031 = vmatprep.subr.mxu0 0.0
      %6032 = vmatpush1.xpose.msra.mxu0 0.0
      %6033 = vmatprep.subr.mxu0 0.0
      %6034 = vmatpush1.xpose.msra.mxu0 0.0
      %6035 = vmatprep.subr.mxu0 0.0
      %6036 = vmatpush1.xpose.msra.mxu0 0.0
      %6037 = vmatprep.subr.mxu0 0.0
      %6038 = vmatpush1.xpose.msra.mxu0 0.0
      %6039 = vmatprep.subr.mxu0 0.0
      %6040 = vmatpush1.xpose.msra.mxu0 0.0
      %6041 = vmatprep.subr.mxu0 0.0
      %6042 = vmatpush1.xpose.msra.mxu0 0.0
      %6043 = vmatprep.subr.mxu0 0.0
      %6044 = vmatpush1.xpose.msra.mxu0 0.0
      %6045 = vmatprep.subr.mxu0 0.0
      %6046 = vmatpush1.xpose.msra.mxu0 0.0
      %6047 = vmatprep.subr.mxu0 0.0
      %6048 = vmatpush1.xpose.msra.mxu0 0.0
      %6049 = vmatprep.subr.mxu0 0.0
      %6050 = vmatpush1.xpose.msra.mxu0 0.0
      %6051 = vmatprep.subr.mxu0 0.0
      %6052 = vmatpush1.xpose.msra.mxu0 0.0
      %6053 = vmatprep.mubr.f32.mxu0 0.0
      %6054 = vmatmul.mubr.f32.gmra.mrb[0].mxu0 %v5985
      %v6055 = vpop.f32.mrb[0].mxu0
      %v6056 = vadd.f32 %v1177, %v6055
      %v6057 = vpop.f32.mrb[0].mxu0
      %6058 = vdwg.mxu0
      %v6059 = vsel %vm2056, %v6056, -inf
      %6060 = vmax.xlane.f32.xlu0 %v6059
      %v6061 = vpop.xlane.xlu0 %6060
      %v6062 = vsub.f32 %v6056, %v6061
      %v6063 = vmul.f32 %v6062, 1.442695
      %v6064 = vpow.pop %v6063
      %v6065 = vsel %vm2056, %v6064, 0.0
      %6066 = vadd.xlane.f32.xlu0 %v6065
      %v6067 = vpop.xlane.xlu0 %6066
      %v6068 = vrcp.pop %v6067
      %v6069 = vmul.f32 %v6064, %v6068
      %v6071 = vsel %vm2056, %v6069, 0
      %6073 = vmatprep.subr.mxu0 0.0
      %6074 = vmatpush1.msra.mxu0 %v5475
      %6075 = vmatprep.subr.mxu0 0.0
      %6076 = vmatpush1.msra.mxu0 0.0
      %6077 = vmatprep.subr.mxu0 0.0
      %6078 = vmatpush1.msra.mxu0 0.0
      %6079 = vmatprep.subr.mxu0 0.0
      %6080 = vmatpush1.msra.mxu0 0.0
      %6081 = vmatprep.subr.mxu0 0.0
      %6082 = vmatpush1.msra.mxu0 0.0
      %6083 = vmatprep.subr.mxu0 0.0
      %6084 = vmatpush1.msra.mxu0 0.0
      %6085 = vmatprep.subr.mxu0 0.0
      %6086 = vmatpush1.msra.mxu0 0.0
      %6087 = vmatprep.subr.mxu0 0.0
      %6088 = vmatpush1.msra.mxu0 0.0
      %6089 = vmatprep.subr.mxu0 0.0
      %6090 = vmatpush1.msra.mxu0 0.0
      %6091 = vmatprep.subr.mxu0 0.0
      %6092 = vmatpush1.msra.mxu0 0.0
      %6093 = vmatprep.subr.mxu0 0.0
      %6094 = vmatpush1.msra.mxu0 0.0
      %6095 = vmatprep.subr.mxu0 0.0
      %6096 = vmatpush1.msra.mxu0 0.0
      %6097 = vmatprep.subr.mxu0 0.0
      %6098 = vmatpush1.msra.mxu0 0.0
      %6099 = vmatprep.subr.mxu0 0.0
      %6100 = vmatpush1.msra.mxu0 0.0
      %6101 = vmatprep.subr.mxu0 0.0
      %6102 = vmatpush1.msra.mxu0 0.0
      %6103 = vmatprep.subr.mxu0 0.0
      %6104 = vmatpush1.msra.mxu0 0.0
      %6105 = vmatprep.subr.mxu0 0.0
      %6106 = vmatpush1.msra.mxu0 0.0
      %6107 = vmatprep.subr.mxu0 0.0
      %6108 = vmatpush1.msra.mxu0 0.0
      %6109 = vmatprep.subr.mxu0 0.0
      %6110 = vmatpush1.msra.mxu0 0.0
      %6111 = vmatprep.subr.mxu0 0.0
      %6112 = vmatpush1.msra.mxu0 0.0
      %6113 = vmatprep.subr.mxu0 0.0
      %6114 = vmatpush1.msra.mxu0 0.0
      %6115 = vmatprep.subr.mxu0 0.0
      %6116 = vmatpush1.msra.mxu0 0.0
      %6117 = vmatprep.subr.mxu0 0.0
      %6118 = vmatpush1.msra.mxu0 0.0
      %6119 = vmatprep.subr.mxu0 0.0
      %6120 = vmatpush1.msra.mxu0 0.0
      %6121 = vmatprep.subr.mxu0 0.0
      %6122 = vmatpush1.msra.mxu0 0.0
      %6123 = vmatprep.subr.mxu0 0.0
      %6124 = vmatpush1.msra.mxu0 0.0
      %6125 = vmatprep.subr.mxu0 0.0
      %6126 = vmatpush1.msra.mxu0 0.0
      %6127 = vmatprep.subr.mxu0 0.0
      %6128 = vmatpush1.msra.mxu0 0.0
      %6129 = vmatprep.subr.mxu0 0.0
      %6130 = vmatpush1.msra.mxu0 0.0
      %6131 = vmatprep.subr.mxu0 0.0
      %6132 = vmatpush1.msra.mxu0 0.0
      %6133 = vmatprep.subr.mxu0 0.0
      %6134 = vmatpush1.msra.mxu0 0.0
      %6135 = vmatprep.subr.mxu0 0.0
      %6136 = vmatpush1.msra.mxu0 0.0
      %6137 = vmatprep.mubr.f32.mxu0 0.0
      %6138 = vmatmul.mubr.f32.gmra.mrb[0].mxu0 %v6071
      %v6139 = vpop.f32.mrb[0].mxu0
      %v6140 = vadd.f32 0.0, %v6139
      %v6141 = vpop.f32.mrb[0].mxu0
      %6142 = vdwg.mxu0
      %v6143 = vpack.c.bf16 %v6140, %v6140
      %v6152 = vunpack.c.l.b16 %v4779
      %v6153 = vunpack.c.h.b16 %v4779
      %v6154 = vunpack.c.l.b16 %v4780
      %v6155 = vunpack.c.h.b16 %v4780
      %v6156 = vunpack.c.l.b16 %v4781
      %v6157 = vunpack.c.h.b16 %v4781
      %v6158 = vunpack.c.l.b16 %v4782
      %v6159 = vunpack.c.h.b16 %v4782
      %v6160 = vunpack.c.l.b16 %v4783
      %v6161 = vunpack.c.h.b16 %v4783
      %v6162 = vunpack.c.l.b16 %v4784
      %v6163 = vunpack.c.h.b16 %v4784
      %v6164 = vunpack.c.l.b16 %v4785
      %v6165 = vunpack.c.h.b16 %v4785
      %v6166 = vunpack.c.l.b16 %v4786
      %v6167 = vunpack.c.h.b16 %v4786
      %v6168 = vpack.c.b16 %v6154, %v6152
      %v6169 = vpack.c.b16 %v6155, %v6153
      %v6170 = vpack.c.b16 %v6158, %v6156
      %v6171 = vpack.c.b16 %v6159, %v6157
      %v6172 = vpack.c.b16 %v6162, %v6160
      %v6173 = vpack.c.b16 %v6163, %v6161
      %v6174 = vpack.c.b16 %v6166, %v6164
      %v6175 = vpack.c.b16 %v6167, %v6165
      %v6185 = vsel %vm1448, %v6143, 0
      %6187 = vmatprep.subr.bf16.mxu0 %v6169
      %6188 = vmatpush1.bf16.msra.mxu0 %v6168
      %6189 = vmatprep.subr.bf16.mxu0 %v6171
      %6190 = vmatpush1.bf16.msra.mxu0 %v6170
      %6191 = vmatprep.subr.bf16.mxu0 %v6173
      %6192 = vmatpush1.bf16.msra.mxu0 %v6172
      %6193 = vmatprep.subr.bf16.mxu0 %v6175
      %6194 = vmatpush1.bf16.msra.mxu0 %v6174
      %6195 = vmatprep.subr.bf16.mxu0 0
      %6196 = vmatpush1.bf16.msra.mxu0 0
      %6197 = vmatprep.subr.bf16.mxu0 0
      %6198 = vmatpush1.bf16.msra.mxu0 0
      %6199 = vmatprep.subr.bf16.mxu0 0
      %6200 = vmatpush1.bf16.msra.mxu0 0
      %6201 = vmatprep.subr.bf16.mxu0 0
      %6202 = vmatpush1.bf16.msra.mxu0 0
      %6203 = vmatprep.subr.bf16.mxu0 0
      %6204 = vmatpush1.bf16.msra.mxu0 0
      %6205 = vmatprep.subr.bf16.mxu0 0
      %6206 = vmatpush1.bf16.msra.mxu0 0
      %6207 = vmatprep.subr.bf16.mxu0 0
      %6208 = vmatpush1.bf16.msra.mxu0 0
      %6209 = vmatprep.subr.bf16.mxu0 0
      %6210 = vmatpush1.bf16.msra.mxu0 0
      %6211 = vmatprep.subr.bf16.mxu0 0
      %6212 = vmatpush1.bf16.msra.mxu0 0
      %6213 = vmatprep.subr.bf16.mxu0 0
      %6214 = vmatpush1.bf16.msra.mxu0 0
      %6215 = vmatprep.subr.bf16.mxu0 0
      %6216 = vmatpush1.bf16.msra.mxu0 0
      %6217 = vmatprep.subr.bf16.mxu0 0
      %6218 = vmatpush1.bf16.msra.mxu0 0
      %6219 = vmatprep.mubr.bf16.mxu0 0
      %6220 = vmatmul.mubr.bf16.gmra.mrb[0].mxu0 %v6185
      %v6221 = vpop.f32.mrb[0].mxu0
      %v6222 = vadd.f32 0.0, %v6221
      %v6223 = vpop.f32.mrb[0].mxu0
      %v6224 = vadd.f32 0.0, %v6223
      %v6225 = vpop.f32.mrb[0].mxu0
      %v6226 = vpop.f32.mrb[0].mxu0
      %6227 = vdwg.mxu0
      %v6228 = vadd.f32 %v5976, %v6222
      %v6229 = vadd.f32 %v5978, %v6224
      %6231 = vrot.lane.b32.xlu0 %v5395, 64
      %v6232 = vpop.permute.xlu0 %6231
      %v6234 = vsel %vm1448, %v5483, 0
      %v6236 = vsel %vm1448, %v6232, 0
      %6238 = vmatprep.subr.mxu0 0.0
      %6239 = vmatpush1.xpose.msra.mxu0 %v6236
      %6240 = vmatprep.subr.mxu0 0.0
      %6241 = vmatpush1.xpose.msra.mxu0 0.0
      %6242 = vmatprep.subr.mxu0 0.0
      %6243 = vmatpush1.xpose.msra.mxu0 0.0
      %6244 = vmatprep.subr.mxu0 0.0
      %6245 = vmatpush1.xpose.msra.mxu0 0.0
      %6246 = vmatprep.subr.mxu0 0.0
      %6247 = vmatpush1.xpose.msra.mxu0 0.0
      %6248 = vmatprep.subr.mxu0 0.0
      %6249 = vmatpush1.xpose.msra.mxu0 0.0
      %6250 = vmatprep.subr.mxu0 0.0
      %6251 = vmatpush1.xpose.msra.mxu0 0.0
      %6252 = vmatprep.subr.mxu0 0.0
      %6253 = vmatpush1.xpose.msra.mxu0 0.0
      %6254 = vmatprep.subr.mxu0 0.0
      %6255 = vmatpush1.xpose.msra.mxu0 0.0
      %6256 = vmatprep.subr.mxu0 0.0
      %6257 = vmatpush1.xpose.msra.mxu0 0.0
      %6258 = vmatprep.subr.mxu0 0.0
      %6259 = vmatpush1.xpose.msra.mxu0 0.0
      %6260 = vmatprep.subr.mxu0 0.0
      %6261 = vmatpush1.xpose.msra.mxu0 0.0
      %6262 = vmatprep.subr.mxu0 0.0
      %6263 = vmatpush1.xpose.msra.mxu0 0.0
      %6264 = vmatprep.subr.mxu0 0.0
      %6265 = vmatpush1.xpose.msra.mxu0 0.0
      %6266 = vmatprep.subr.mxu0 0.0
      %6267 = vmatpush1.xpose.msra.mxu0 0.0
      %6268 = vmatprep.subr.mxu0 0.0
      %6269 = vmatpush1.xpose.msra.mxu0 0.0
      %6270 = vmatprep.subr.mxu0 0.0
      %6271 = vmatpush1.xpose.msra.mxu0 0.0
      %6272 = vmatprep.subr.mxu0 0.0
      %6273 = vmatpush1.xpose.msra.mxu0 0.0
      %6274 = vmatprep.subr.mxu0 0.0
      %6275 = vmatpush1.xpose.msra.mxu0 0.0
      %6276 = vmatprep.subr.mxu0 0.0
      %6277 = vmatpush1.xpose.msra.mxu0 0.0
      %6278 = vmatprep.subr.mxu0 0.0
      %6279 = vmatpush1.xpose.msra.mxu0 0.0
      %6280 = vmatprep.subr.mxu0 0.0
      %6281 = vmatpush1.xpose.msra.mxu0 0.0
      %6282 = vmatprep.subr.mxu0 0.0
      %6283 = vmatpush1.xpose.msra.mxu0 0.0
      %6284 = vmatprep.subr.mxu0 0.0
      %6285 = vmatpush1.xpose.msra.mxu0 0.0
      %6286 = vmatprep.subr.mxu0 0.0
      %6287 = vmatpush1.xpose.msra.mxu0 0.0
      %6288 = vmatprep.subr.mxu0 0.0
      %6289 = vmatpush1.xpose.msra.mxu0 0.0
      %6290 = vmatprep.subr.mxu0 0.0
      %6291 = vmatpush1.xpose.msra.mxu0 0.0
      %6292 = vmatprep.subr.mxu0 0.0
      %6293 = vmatpush1.xpose.msra.mxu0 0.0
      %6294 = vmatprep.subr.mxu0 0.0
      %6295 = vmatpush1.xpose.msra.mxu0 0.0
      %6296 = vmatprep.subr.mxu0 0.0
      %6297 = vmatpush1.xpose.msra.mxu0 0.0
      %6298 = vmatprep.subr.mxu0 0.0
      %6299 = vmatpush1.xpose.msra.mxu0 0.0
      %6300 = vmatprep.subr.mxu0 0.0
      %6301 = vmatpush1.xpose.msra.mxu0 0.0
      %6302 = vmatprep.mubr.f32.mxu0 0.0
      %6303 = vmatmul.mubr.f32.gmra.mrb[0].mxu0 %v6234
      %v6304 = vpop.f32.mrb[0].mxu0
      %v6305 = vadd.f32 %v1177, %v6304
      %v6306 = vpop.f32.mrb[0].mxu0
      %6307 = vdwg.mxu0
      %v6308 = vsel %vm2056, %v6305, -inf
      %6309 = vmax.xlane.f32.xlu0 %v6308
      %v6310 = vpop.xlane.xlu0 %6309
      %v6311 = vsub.f32 %v6305, %v6310
      %v6312 = vmul.f32 %v6311, 1.442695
      %v6313 = vpow.pop %v6312
      %v6314 = vsel %vm2056, %v6313, 0.0
      %6315 = vadd.xlane.f32.xlu0 %v6314
      %v6316 = vpop.xlane.xlu0 %6315
      %v6317 = vrcp.pop %v6316
      %v6318 = vmul.f32 %v6313, %v6317
      %v6320 = vsel %vm2056, %v6318, 0
      %6322 = vmatprep.subr.mxu0 0.0
      %6323 = vmatpush1.msra.mxu0 %v5438
      %6324 = vmatprep.subr.mxu0 0.0
      %6325 = vmatpush1.msra.mxu0 0.0
      %6326 = vmatprep.subr.mxu0 0.0
      %6327 = vmatpush1.msra.mxu0 0.0
      %6328 = vmatprep.subr.mxu0 0.0
      %6329 = vmatpush1.msra.mxu0 0.0
      %6330 = vmatprep.subr.mxu0 0.0
      %6331 = vmatpush1.msra.mxu0 0.0
      %6332 = vmatprep.subr.mxu0 0.0
      %6333 = vmatpush1.msra.mxu0 0.0
      %6334 = vmatprep.subr.mxu0 0.0
      %6335 = vmatpush1.msra.mxu0 0.0
      %6336 = vmatprep.subr.mxu0 0.0
      %6337 = vmatpush1.msra.mxu0 0.0
      %6338 = vmatprep.subr.mxu0 0.0
      %6339 = vmatpush1.msra.mxu0 0.0
      %6340 = vmatprep.subr.mxu0 0.0
      %6341 = vmatpush1.msra.mxu0 0.0
      %6342 = vmatprep.subr.mxu0 0.0
      %6343 = vmatpush1.msra.mxu0 0.0
      %6344 = vmatprep.subr.mxu0 0.0
      %6345 = vmatpush1.msra.mxu0 0.0
      %6346 = vmatprep.subr.mxu0 0.0
      %6347 = vmatpush1.msra.mxu0 0.0
      %6348 = vmatprep.subr.mxu0 0.0
      %6349 = vmatpush1.msra.mxu0 0.0
      %6350 = vmatprep.subr.mxu0 0.0
      %6351 = vmatpush1.msra.mxu0 0.0
      %6352 = vmatprep.subr.mxu0 0.0
      %6353 = vmatpush1.msra.mxu0 0.0
      %6354 = vmatprep.subr.mxu0 0.0
      %6355 = vmatpush1.msra.mxu0 0.0
      %6356 = vmatprep.subr.mxu0 0.0
      %6357 = vmatpush1.msra.mxu0 0.0
      %6358 = vmatprep.subr.mxu0 0.0
      %6359 = vmatpush1.msra.mxu0 0.0
      %6360 = vmatprep.subr.mxu0 0.0
      %6361 = vmatpush1.msra.mxu0 0.0
      %6362 = vmatprep.subr.mxu0 0.0
      %6363 = vmatpush1.msra.mxu0 0.0
      %6364 = vmatprep.subr.mxu0 0.0
      %6365 = vmatpush1.msra.mxu0 0.0
      %6366 = vmatprep.subr.mxu0 0.0
      %6367 = vmatpush1.msra.mxu0 0.0
      %6368 = vmatprep.subr.mxu0 0.0
      %6369 = vmatpush1.msra.mxu0 0.0
      %6370 = vmatprep.subr.mxu0 0.0
      %6371 = vmatpush1.msra.mxu0 0.0
      %6372 = vmatprep.subr.mxu0 0.0
      %6373 = vmatpush1.msra.mxu0 0.0
      %6374 = vmatprep.subr.mxu0 0.0
      %6375 = vmatpush1.msra.mxu0 0.0
      %6376 = vmatprep.subr.mxu0 0.0
      %6377 = vmatpush1.msra.mxu0 0.0
      %6378 = vmatprep.subr.mxu0 0.0
      %6379 = vmatpush1.msra.mxu0 0.0
      %6380 = vmatprep.subr.mxu0 0.0
      %6381 = vmatpush1.msra.mxu0 0.0
      %6382 = vmatprep.subr.mxu0 0.0
      %6383 = vmatpush1.msra.mxu0 0.0
      %6384 = vmatprep.subr.mxu0 0.0
      %6385 = vmatpush1.msra.mxu0 0.0
      %6386 = vmatprep.mubr.f32.mxu0 0.0
      %6387 = vmatmul.mubr.f32.gmra.mrb[0].mxu0 %v6320
      %v6388 = vpop.f32.mrb[0].mxu0
      %v6389 = vadd.f32 0.0, %v6388
      %v6390 = vpop.f32.mrb[0].mxu0
      %6391 = vdwg.mxu0
      %v6392 = vpack.c.bf16 %v6389, %v6389
      %6393 = vrot.lane.b32.xlu0 %v5483, 64
      %v6394 = vpop.permute.xlu0 %6393
      %v6395 = vsel %vm1448, %v6394, 0
      %v6398 = vsel %vm1448, %v5436, 0
      %6400 = vmatprep.subr.mxu0 0.0
      %6401 = vmatpush1.xpose.msra.mxu0 %v6398
      %6402 = vmatprep.subr.mxu0 0.0
      %6403 = vmatpush1.xpose.msra.mxu0 0.0
      %6404 = vmatprep.subr.mxu0 0.0
      %6405 = vmatpush1.xpose.msra.mxu0 0.0
      %6406 = vmatprep.subr.mxu0 0.0
      %6407 = vmatpush1.xpose.msra.mxu0 0.0
      %6408 = vmatprep.subr.mxu0 0.0
      %6409 = vmatpush1.xpose.msra.mxu0 0.0
      %6410 = vmatprep.subr.mxu0 0.0
      %6411 = vmatpush1.xpose.msra.mxu0 0.0
      %6412 = vmatprep.subr.mxu0 0.0
      %6413 = vmatpush1.xpose.msra.mxu0 0.0
      %6414 = vmatprep.subr.mxu0 0.0
      %6415 = vmatpush1.xpose.msra.mxu0 0.0
      %6416 = vmatprep.subr.mxu0 0.0
      %6417 = vmatpush1.xpose.msra.mxu0 0.0
      %6418 = vmatprep.subr.mxu0 0.0
      %6419 = vmatpush1.xpose.msra.mxu0 0.0
      %6420 = vmatprep.subr.mxu0 0.0
      %6421 = vmatpush1.xpose.msra.mxu0 0.0
      %6422 = vmatprep.subr.mxu0 0.0
      %6423 = vmatpush1.xpose.msra.mxu0 0.0
      %6424 = vmatprep.subr.mxu0 0.0
      %6425 = vmatpush1.xpose.msra.mxu0 0.0
      %6426 = vmatprep.subr.mxu0 0.0
      %6427 = vmatpush1.xpose.msra.mxu0 0.0
      %6428 = vmatprep.subr.mxu0 0.0
      %6429 = vmatpush1.xpose.msra.mxu0 0.0
      %6430 = vmatprep.subr.mxu0 0.0
      %6431 = vmatpush1.xpose.msra.mxu0 0.0
      %6432 = vmatprep.subr.mxu0 0.0
      %6433 = vmatpush1.xpose.msra.mxu0 0.0
      %6434 = vmatprep.subr.mxu0 0.0
      %6435 = vmatpush1.xpose.msra.mxu0 0.0
      %6436 = vmatprep.subr.mxu0 0.0
      %6437 = vmatpush1.xpose.msra.mxu0 0.0
      %6438 = vmatprep.subr.mxu0 0.0
      %6439 = vmatpush1.xpose.msra.mxu0 0.0
      %6440 = vmatprep.subr.mxu0 0.0
      %6441 = vmatpush1.xpose.msra.mxu0 0.0
      %6442 = vmatprep.subr.mxu0 0.0
      %6443 = vmatpush1.xpose.msra.mxu0 0.0
      %6444 = vmatprep.subr.mxu0 0.0
      %6445 = vmatpush1.xpose.msra.mxu0 0.0
      %6446 = vmatprep.subr.mxu0 0.0
      %6447 = vmatpush1.xpose.msra.mxu0 0.0
      %6448 = vmatprep.subr.mxu0 0.0
      %6449 = vmatpush1.xpose.msra.mxu0 0.0
      %6450 = vmatprep.subr.mxu0 0.0
      %6451 = vmatpush1.xpose.msra.mxu0 0.0
      %6452 = vmatprep.subr.mxu0 0.0
      %6453 = vmatpush1.xpose.msra.mxu0 0.0
      %6454 = vmatprep.subr.mxu0 0.0
      %6455 = vmatpush1.xpose.msra.mxu0 0.0
      %6456 = vmatprep.subr.mxu0 0.0
      %6457 = vmatpush1.xpose.msra.mxu0 0.0
      %6458 = vmatprep.subr.mxu0 0.0
      %6459 = vmatpush1.xpose.msra.mxu0 0.0
      %6460 = vmatprep.subr.mxu0 0.0
      %6461 = vmatpush1.xpose.msra.mxu0 0.0
      %6462 = vmatprep.subr.mxu0 0.0
      %6463 = vmatpush1.xpose.msra.mxu0 0.0
      %6464 = vmatprep.mubr.f32.mxu0 0.0
      %6465 = vmatmul.mubr.f32.gmra.mrb[0].mxu0 %v6395
      %v6466 = vpop.f32.mrb[0].mxu0
      %v6467 = vadd.f32 %v1177, %v6466
      %v6468 = vpop.f32.mrb[0].mxu0
      %6469 = vdwg.mxu0
      %v6470 = vsel %vm2056, %v6467, -inf
      %6471 = vmax.xlane.f32.xlu0 %v6470
      %v6472 = vpop.xlane.xlu0 %6471
      %v6473 = vsub.f32 %v6467, %v6472
      %v6474 = vmul.f32 %v6473, 1.442695
      %v6475 = vpow.pop %v6474
      %v6476 = vsel %vm2056, %v6475, 0.0
      %6477 = vadd.xlane.f32.xlu0 %v6476
      %v6478 = vpop.xlane.xlu0 %6477
      %v6479 = vrcp.pop %v6478
      %v6480 = vmul.f32 %v6475, %v6479
      %6482 = vrot.lane.b32.xlu0 %v5438, 64
      %v6483 = vpop.permute.xlu0 %6482
      %v6486 = vsel %vm2056, %v6480, 0
      %6488 = vmatprep.subr.mxu0 0.0
      %6489 = vmatpush1.msra.mxu0 %v6483
      %6490 = vmatprep.subr.mxu0 0.0
      %6491 = vmatpush1.msra.mxu0 0.0
      %6492 = vmatprep.subr.mxu0 0.0
      %6493 = vmatpush1.msra.mxu0 0.0
      %6494 = vmatprep.subr.mxu0 0.0
      %6495 = vmatpush1.msra.mxu0 0.0
      %6496 = vmatprep.subr.mxu0 0.0
      %6497 = vmatpush1.msra.mxu0 0.0
      %6498 = vmatprep.subr.mxu0 0.0
      %6499 = vmatpush1.msra.mxu0 0.0
      %6500 = vmatprep.subr.mxu0 0.0
      %6501 = vmatpush1.msra.mxu0 0.0
      %6502 = vmatprep.subr.mxu0 0.0
      %6503 = vmatpush1.msra.mxu0 0.0
      %6504 = vmatprep.subr.mxu0 0.0
      %6505 = vmatpush1.msra.mxu0 0.0
      %6506 = vmatprep.subr.mxu0 0.0
      %6507 = vmatpush1.msra.mxu0 0.0
      %6508 = vmatprep.subr.mxu0 0.0
      %6509 = vmatpush1.msra.mxu0 0.0
      %6510 = vmatprep.subr.mxu0 0.0
      %6511 = vmatpush1.msra.mxu0 0.0
      %6512 = vmatprep.subr.mxu0 0.0
      %6513 = vmatpush1.msra.mxu0 0.0
      %6514 = vmatprep.subr.mxu0 0.0
      %6515 = vmatpush1.msra.mxu0 0.0
      %6516 = vmatprep.subr.mxu0 0.0
      %6517 = vmatpush1.msra.mxu0 0.0
      %6518 = vmatprep.subr.mxu0 0.0
      %6519 = vmatpush1.msra.mxu0 0.0
      %6520 = vmatprep.subr.mxu0 0.0
      %6521 = vmatpush1.msra.mxu0 0.0
      %6522 = vmatprep.subr.mxu0 0.0
      %6523 = vmatpush1.msra.mxu0 0.0
      %6524 = vmatprep.subr.mxu0 0.0
      %6525 = vmatpush1.msra.mxu0 0.0
      %6526 = vmatprep.subr.mxu0 0.0
      %6527 = vmatpush1.msra.mxu0 0.0
      %6528 = vmatprep.subr.mxu0 0.0
      %6529 = vmatpush1.msra.mxu0 0.0
      %6530 = vmatprep.subr.mxu0 0.0
      %6531 = vmatpush1.msra.mxu0 0.0
      %6532 = vmatprep.subr.mxu0 0.0
      %6533 = vmatpush1.msra.mxu0 0.0
      %6534 = vmatprep.subr.mxu0 0.0
      %6535 = vmatpush1.msra.mxu0 0.0
      %6536 = vmatprep.subr.mxu0 0.0
      %6537 = vmatpush1.msra.mxu0 0.0
      %6538 = vmatprep.subr.mxu0 0.0
      %6539 = vmatpush1.msra.mxu0 0.0
      %6540 = vmatprep.subr.mxu0 0.0
      %6541 = vmatpush1.msra.mxu0 0.0
      %6542 = vmatprep.subr.mxu0 0.0
      %6543 = vmatpush1.msra.mxu0 0.0
      %6544 = vmatprep.subr.mxu0 0.0
      %6545 = vmatpush1.msra.mxu0 0.0
      %6546 = vmatprep.subr.mxu0 0.0
      %6547 = vmatpush1.msra.mxu0 0.0
      %6548 = vmatprep.subr.mxu0 0.0
      %6549 = vmatpush1.msra.mxu0 0.0
      %6550 = vmatprep.subr.mxu0 0.0
      %6551 = vmatpush1.msra.mxu0 0.0
      %6552 = vmatprep.mubr.f32.mxu0 0.0
      %6553 = vmatmul.mubr.f32.gmra.mrb[0].mxu0 %v6486
      %v6554 = vpop.f32.mrb[0].mxu0
      %v6555 = vadd.f32 0.0, %v6554
      %v6556 = vpop.f32.mrb[0].mxu0
      %6557 = vdwg.mxu0
      %v6558 = vpack.c.bf16 %v6555, %v6555
      %v6560 = vsel %vm1448, %v6558, 0
      %6562 = vmatprep.subr.bf16.mxu0 %v5839
      %6563 = vmatpush1.bf16.msra.mxu0 %v5838
      %6564 = vmatprep.subr.bf16.mxu0 %v5841
      %6565 = vmatpush1.bf16.msra.mxu0 %v5840
      %6566 = vmatprep.subr.bf16.mxu0 %v5843
      %6567 = vmatpush1.bf16.msra.mxu0 %v5842
      %6568 = vmatprep.subr.bf16.mxu0 %v5845
      %6569 = vmatpush1.bf16.msra.mxu0 %v5844
      %6570 = vmatprep.subr.bf16.mxu0 0
      %6571 = vmatpush1.bf16.msra.mxu0 0
      %6572 = vmatprep.subr.bf16.mxu0 0
      %6573 = vmatpush1.bf16.msra.mxu0 0
      %6574 = vmatprep.subr.bf16.mxu0 0
      %6575 = vmatpush1.bf16.msra.mxu0 0
      %6576 = vmatprep.subr.bf16.mxu0 0
      %6577 = vmatpush1.bf16.msra.mxu0 0
      %6578 = vmatprep.subr.bf16.mxu0 0
      %6579 = vmatpush1.bf16.msra.mxu0 0
      %6580 = vmatprep.subr.bf16.mxu0 0
      %6581 = vmatpush1.bf16.msra.mxu0 0
      %6582 = vmatprep.subr.bf16.mxu0 0
      %6583 = vmatpush1.bf16.msra.mxu0 0
      %6584 = vmatprep.subr.bf16.mxu0 0
      %6585 = vmatpush1.bf16.msra.mxu0 0
      %6586 = vmatprep.subr.bf16.mxu0 0
      %6587 = vmatpush1.bf16.msra.mxu0 0
      %6588 = vmatprep.subr.bf16.mxu0 0
      %6589 = vmatpush1.bf16.msra.mxu0 0
      %6590 = vmatprep.subr.bf16.mxu0 0
      %6591 = vmatpush1.bf16.msra.mxu0 0
      %6592 = vmatprep.subr.bf16.mxu0 0
      %6593 = vmatpush1.bf16.msra.mxu0 0
      %6594 = vmatprep.mubr.bf16.mxu0 0
      %6595 = vmatmul.mubr.bf16.gmra.mrb[0].mxu0 %v6560
      %v6596 = vpop.f32.mrb[0].mxu0
      %v6597 = vadd.f32 0.0, %v6596
      %v6598 = vpop.f32.mrb[0].mxu0
      %v6599 = vadd.f32 0.0, %v6598
      %v6600 = vpop.f32.mrb[0].mxu0
      %v6601 = vpop.f32.mrb[0].mxu0
      %6602 = vdwg.mxu0
      %v6604 = vsel %vm1448, %v6392, 0
      %6606 = vmatprep.subr.bf16.mxu0 %v5923
      %6607 = vmatpush1.bf16.msra.mxu0 %v5922
      %6608 = vmatprep.subr.bf16.mxu0 %v5925
      %6609 = vmatpush1.bf16.msra.mxu0 %v5924
      %6610 = vmatprep.subr.bf16.mxu0 %v5927
      %6611 = vmatpush1.bf16.msra.mxu0 %v5926
      %6612 = vmatprep.subr.bf16.mxu0 %v5929
      %6613 = vmatpush1.bf16.msra.mxu0 %v5928
      %6614 = vmatprep.subr.bf16.mxu0 0
      %6615 = vmatpush1.bf16.msra.mxu0 0
      %6616 = vmatprep.subr.bf16.mxu0 0
      %6617 = vmatpush1.bf16.msra.mxu0 0
      %6618 = vmatprep.subr.bf16.mxu0 0
      %6619 = vmatpush1.bf16.msra.mxu0 0
      %6620 = vmatprep.subr.bf16.mxu0 0
      %6621 = vmatpush1.bf16.msra.mxu0 0
      %6622 = vmatprep.subr.bf16.mxu0 0
      %6623 = vmatpush1.bf16.msra.mxu0 0
      %6624 = vmatprep.subr.bf16.mxu0 0
      %6625 = vmatpush1.bf16.msra.mxu0 0
      %6626 = vmatprep.subr.bf16.mxu0 0
      %6627 = vmatpush1.bf16.msra.mxu0 0
      %6628 = vmatprep.subr.bf16.mxu0 0
      %6629 = vmatpush1.bf16.msra.mxu0 0
      %6630 = vmatprep.subr.bf16.mxu0 0
      %6631 = vmatpush1.bf16.msra.mxu0 0
      %6632 = vmatprep.subr.bf16.mxu0 0
      %6633 = vmatpush1.bf16.msra.mxu0 0
      %6634 = vmatprep.subr.bf16.mxu0 0
      %6635 = vmatpush1.bf16.msra.mxu0 0
      %6636 = vmatprep.subr.bf16.mxu0 0
      %6637 = vmatpush1.bf16.msra.mxu0 0
      %6638 = vmatprep.mubr.bf16.mxu0 0
      %6639 = vmatmul.mubr.bf16.gmra.mrb[0].mxu0 %v6604
      %v6640 = vpop.f32.mrb[0].mxu0
      %v6641 = vadd.f32 %v6597, %v6640
      %v6642 = vpop.f32.mrb[0].mxu0
      %v6643 = vadd.f32 %v6599, %v6642
      %v6644 = vpop.f32.mrb[0].mxu0
      %v6645 = vpop.f32.mrb[0].mxu0
      %6646 = vdwg.mxu0
      %6647 = vrot.lane.b32.xlu0 %v5436, 64
      %v6648 = vpop.permute.xlu0 %6647
      %v6650 = vsel %vm1448, %v5484, 0
      %v6652 = vsel %vm1448, %v6648, 0
      %6654 = vmatprep.subr.mxu0 0.0
      %6655 = vmatpush1.xpose.msra.mxu0 %v6652
      %6656 = vmatprep.subr.mxu0 0.0
      %6657 = vmatpush1.xpose.msra.mxu0 0.0
      %6658 = vmatprep.subr.mxu0 0.0
      %6659 = vmatpush1.xpose.msra.mxu0 0.0
      %6660 = vmatprep.subr.mxu0 0.0
      %6661 = vmatpush1.xpose.msra.mxu0 0.0
      %6662 = vmatprep.subr.mxu0 0.0
      %6663 = vmatpush1.xpose.msra.mxu0 0.0
      %6664 = vmatprep.subr.mxu0 0.0
      %6665 = vmatpush1.xpose.msra.mxu0 0.0
      %6666 = vmatprep.subr.mxu0 0.0
      %6667 = vmatpush1.xpose.msra.mxu0 0.0
      %6668 = vmatprep.subr.mxu0 0.0
      %6669 = vmatpush1.xpose.msra.mxu0 0.0
      %6670 = vmatprep.subr.mxu0 0.0
      %6671 = vmatpush1.xpose.msra.mxu0 0.0
      %6672 = vmatprep.subr.mxu0 0.0
      %6673 = vmatpush1.xpose.msra.mxu0 0.0
      %6674 = vmatprep.subr.mxu0 0.0
      %6675 = vmatpush1.xpose.msra.mxu0 0.0
      %6676 = vmatprep.subr.mxu0 0.0
      %6677 = vmatpush1.xpose.msra.mxu0 0.0
      %6678 = vmatprep.subr.mxu0 0.0
      %6679 = vmatpush1.xpose.msra.mxu0 0.0
      %6680 = vmatprep.subr.mxu0 0.0
      %6681 = vmatpush1.xpose.msra.mxu0 0.0
      %6682 = vmatprep.subr.mxu0 0.0
      %6683 = vmatpush1.xpose.msra.mxu0 0.0
      %6684 = vmatprep.subr.mxu0 0.0
      %6685 = vmatpush1.xpose.msra.mxu0 0.0
      %6686 = vmatprep.subr.mxu0 0.0
      %6687 = vmatpush1.xpose.msra.mxu0 0.0
      %6688 = vmatprep.subr.mxu0 0.0
      %6689 = vmatpush1.xpose.msra.mxu0 0.0
      %6690 = vmatprep.subr.mxu0 0.0
      %6691 = vmatpush1.xpose.msra.mxu0 0.0
      %6692 = vmatprep.subr.mxu0 0.0
      %6693 = vmatpush1.xpose.msra.mxu0 0.0
      %6694 = vmatprep.subr.mxu0 0.0
      %6695 = vmatpush1.xpose.msra.mxu0 0.0
      %6696 = vmatprep.subr.mxu0 0.0
      %6697 = vmatpush1.xpose.msra.mxu0 0.0
      %6698 = vmatprep.subr.mxu0 0.0
      %6699 = vmatpush1.xpose.msra.mxu0 0.0
      %6700 = vmatprep.subr.mxu0 0.0
      %6701 = vmatpush1.xpose.msra.mxu0 0.0
      %6702 = vmatprep.subr.mxu0 0.0
      %6703 = vmatpush1.xpose.msra.mxu0 0.0
      %6704 = vmatprep.subr.mxu0 0.0
      %6705 = vmatpush1.xpose.msra.mxu0 0.0
      %6706 = vmatprep.subr.mxu0 0.0
      %6707 = vmatpush1.xpose.msra.mxu0 0.0
      %6708 = vmatprep.subr.mxu0 0.0
      %6709 = vmatpush1.xpose.msra.mxu0 0.0
      %6710 = vmatprep.subr.mxu0 0.0
      %6711 = vmatpush1.xpose.msra.mxu0 0.0
      %6712 = vmatprep.subr.mxu0 0.0
      %6713 = vmatpush1.xpose.msra.mxu0 0.0
      %6714 = vmatprep.subr.mxu0 0.0
      %6715 = vmatpush1.xpose.msra.mxu0 0.0
      %6716 = vmatprep.subr.mxu0 0.0
      %6717 = vmatpush1.xpose.msra.mxu0 0.0
      %6718 = vmatprep.mubr.f32.mxu0 0.0
      %6719 = vmatmul.mubr.f32.gmra.mrb[0].mxu0 %v6650
      %v6720 = vpop.f32.mrb[0].mxu0
      %v6721 = vadd.f32 %v1177, %v6720
      %v6722 = vpop.f32.mrb[0].mxu0
      %6723 = vdwg.mxu0
      %v6724 = vsel %vm2056, %v6721, -inf
      %6725 = vmax.xlane.f32.xlu0 %v6724
      %v6726 = vpop.xlane.xlu0 %6725
      %v6727 = vsub.f32 %v6721, %v6726
      %v6728 = vmul.f32 %v6727, 1.442695
      %v6729 = vpow.pop %v6728
      %v6730 = vsel %vm2056, %v6729, 0.0
      %6731 = vadd.xlane.f32.xlu0 %v6730
      %v6732 = vpop.xlane.xlu0 %6731
      %v6733 = vrcp.pop %v6732
      %v6734 = vmul.f32 %v6729, %v6733
      %v6736 = vsel %vm2056, %v6734, 0
      %6738 = vmatprep.subr.mxu0 0.0
      %6739 = vmatpush1.msra.mxu0 %v5478
      %6740 = vmatprep.subr.mxu0 0.0
      %6741 = vmatpush1.msra.mxu0 0.0
      %6742 = vmatprep.subr.mxu0 0.0
      %6743 = vmatpush1.msra.mxu0 0.0
      %6744 = vmatprep.subr.mxu0 0.0
      %6745 = vmatpush1.msra.mxu0 0.0
      %6746 = vmatprep.subr.mxu0 0.0
      %6747 = vmatpush1.msra.mxu0 0.0
      %6748 = vmatprep.subr.mxu0 0.0
      %6749 = vmatpush1.msra.mxu0 0.0
      %6750 = vmatprep.subr.mxu0 0.0
      %6751 = vmatpush1.msra.mxu0 0.0
      %6752 = vmatprep.subr.mxu0 0.0
      %6753 = vmatpush1.msra.mxu0 0.0
      %6754 = vmatprep.subr.mxu0 0.0
      %6755 = vmatpush1.msra.mxu0 0.0
      %6756 = vmatprep.subr.mxu0 0.0
      %6757 = vmatpush1.msra.mxu0 0.0
      %6758 = vmatprep.subr.mxu0 0.0
      %6759 = vmatpush1.msra.mxu0 0.0
      %6760 = vmatprep.subr.mxu0 0.0
      %6761 = vmatpush1.msra.mxu0 0.0
      %6762 = vmatprep.subr.mxu0 0.0
      %6763 = vmatpush1.msra.mxu0 0.0
      %6764 = vmatprep.subr.mxu0 0.0
      %6765 = vmatpush1.msra.mxu0 0.0
      %6766 = vmatprep.subr.mxu0 0.0
      %6767 = vmatpush1.msra.mxu0 0.0
      %6768 = vmatprep.subr.mxu0 0.0
      %6769 = vmatpush1.msra.mxu0 0.0
      %6770 = vmatprep.subr.mxu0 0.0
      %6771 = vmatpush1.msra.mxu0 0.0
      %6772 = vmatprep.subr.mxu0 0.0
      %6773 = vmatpush1.msra.mxu0 0.0
      %6774 = vmatprep.subr.mxu0 0.0
      %6775 = vmatpush1.msra.mxu0 0.0
      %6776 = vmatprep.subr.mxu0 0.0
      %6777 = vmatpush1.msra.mxu0 0.0
      %6778 = vmatprep.subr.mxu0 0.0
      %6779 = vmatpush1.msra.mxu0 0.0
      %6780 = vmatprep.subr.mxu0 0.0
      %6781 = vmatpush1.msra.mxu0 0.0
      %6782 = vmatprep.subr.mxu0 0.0
      %6783 = vmatpush1.msra.mxu0 0.0
      %6784 = vmatprep.subr.mxu0 0.0
      %6785 = vmatpush1.msra.mxu0 0.0
      %6786 = vmatprep.subr.mxu0 0.0
      %6787 = vmatpush1.msra.mxu0 0.0
      %6788 = vmatprep.subr.mxu0 0.0
      %6789 = vmatpush1.msra.mxu0 0.0
      %6790 = vmatprep.subr.mxu0 0.0
      %6791 = vmatpush1.msra.mxu0 0.0
      %6792 = vmatprep.subr.mxu0 0.0
      %6793 = vmatpush1.msra.mxu0 0.0
      %6794 = vmatprep.subr.mxu0 0.0
      %6795 = vmatpush1.msra.mxu0 0.0
      %6796 = vmatprep.subr.mxu0 0.0
      %6797 = vmatpush1.msra.mxu0 0.0
      %6798 = vmatprep.subr.mxu0 0.0
      %6799 = vmatpush1.msra.mxu0 0.0
      %6800 = vmatprep.subr.mxu0 0.0
      %6801 = vmatpush1.msra.mxu0 0.0
      %6802 = vmatprep.mubr.f32.mxu0 0.0
      %6803 = vmatmul.mubr.f32.gmra.mrb[0].mxu0 %v6736
      %v6804 = vpop.f32.mrb[0].mxu0
      %v6805 = vadd.f32 0.0, %v6804
      %v6806 = vpop.f32.mrb[0].mxu0
      %6807 = vdwg.mxu0
      %v6808 = vpack.c.bf16 %v6805, %v6805
      %v6810 = vsel %vm1448, %v6808, 0
      %6812 = vmatprep.subr.bf16.mxu0 %v6169
      %6813 = vmatpush1.bf16.msra.mxu0 %v6168
      %6814 = vmatprep.subr.bf16.mxu0 %v6171
      %6815 = vmatpush1.bf16.msra.mxu0 %v6170
      %6816 = vmatprep.subr.bf16.mxu0 %v6173
      %6817 = vmatpush1.bf16.msra.mxu0 %v6172
      %6818 = vmatprep.subr.bf16.mxu0 %v6175
      %6819 = vmatpush1.bf16.msra.mxu0 %v6174
      %6820 = vmatprep.subr.bf16.mxu0 0
      %6821 = vmatpush1.bf16.msra.mxu0 0
      %6822 = vmatprep.subr.bf16.mxu0 0
      %6823 = vmatpush1.bf16.msra.mxu0 0
      %6824 = vmatprep.subr.bf16.mxu0 0
      %6825 = vmatpush1.bf16.msra.mxu0 0
      %6826 = vmatprep.subr.bf16.mxu0 0
      %6827 = vmatpush1.bf16.msra.mxu0 0
      %6828 = vmatprep.subr.bf16.mxu0 0
      %6829 = vmatpush1.bf16.msra.mxu0 0
      %6830 = vmatprep.subr.bf16.mxu0 0
      %6831 = vmatpush1.bf16.msra.mxu0 0
      %6832 = vmatprep.subr.bf16.mxu0 0
      %6833 = vmatpush1.bf16.msra.mxu0 0
      %6834 = vmatprep.subr.bf16.mxu0 0
      %6835 = vmatpush1.bf16.msra.mxu0 0
      %6836 = vmatprep.subr.bf16.mxu0 0
      %6837 = vmatpush1.bf16.msra.mxu0 0
      %6838 = vmatprep.subr.bf16.mxu0 0
      %6839 = vmatpush1.bf16.msra.mxu0 0
      %6840 = vmatprep.subr.bf16.mxu0 0
      %6841 = vmatpush1.bf16.msra.mxu0 0
      %6842 = vmatprep.subr.bf16.mxu0 0
      %6843 = vmatpush1.bf16.msra.mxu0 0
      %6844 = vmatprep.mubr.bf16.mxu0 0
      %6845 = vmatmul.mubr.bf16.gmra.mrb[0].mxu0 %v6810
      %v6846 = vpop.f32.mrb[0].mxu0
      %v6847 = vadd.f32 0.0, %v6846
      %v6848 = vpop.f32.mrb[0].mxu0
      %v6849 = vadd.f32 0.0, %v6848
      %v6850 = vpop.f32.mrb[0].mxu0
      %v6851 = vpop.f32.mrb[0].mxu0
      %6852 = vdwg.mxu0
      %v6853 = vadd.f32 %v6641, %v6847
      %v6854 = vadd.f32 %v6643, %v6849
      %v6855 = vlaneseq
      %v6856 = vshrl.u32 %v6855, 7
      %v6857 = vsub.s32 3, %v6856
      %v6858 = vrot.slane %v4683, %v6857
      %v6859 = vlaneseq
      %v6860 = vshrl.u32 %v6859, 7
      %v6861 = vsub.s32 3, %v6860
      %v6862 = vrot.slane %v4684, %v6861
      %v6863 = vadd.f32 %v6228, %v6858
      %v6864 = vadd.f32 %v6229, %v6862
      %v6865 = vadd.f32 %v6853, %v6858
      %v6866 = vadd.f32 %v6854, %v6862
      %v6867 = vadd.f32 %v4678, %v6863
      %v6868 = vadd.f32 %v4679, %v6864
      %v6869 = vadd.f32 %v4680, %v6865
      %v6870 = vadd.f32 %v4681, %v6866
      %v6871 = vsel %vm1448, %v6868, 0.0
      %v6872 = vadd.f32 %v6867, %v6871
      %6873 = vadd.xlane.f32.xlu0 %v6872
      %v6874 = vpop.xlane.xlu0 %6873
      %v6875 = vsel %vm1448, %v6870, 0.0
      %v6876 = vadd.f32 %v6869, %v6875
      %6877 = vadd.xlane.f32.xlu0 %v6876
      %v6878 = vpop.xlane.xlu0 %6877
      %v6879 = vmul.f32 %v6874, %v1457
      %v6880 = vmul.f32 %v6878, %v1457
      %v6881 = vsub.f32 %v6867, %v6879
      %v6882 = vsub.f32 %v6868, %v6879
      %v6883 = vsub.f32 %v6869, %v6880
      %v6884 = vsub.f32 %v6870, %v6880
      %v6885 = vmul.f32 %v6881, %v6881
      %v6886 = vmul.f32 %v6882, %v6882
      %v6887 = vmul.f32 %v6883, %v6883
      %v6888 = vmul.f32 %v6884, %v6884
      %v6889 = vsel %vm1448, %v6886, 0.0
      %v6890 = vadd.f32 %v6885, %v6889
      %6891 = vadd.xlane.f32.xlu0 %v6890
      %v6892 = vpop.xlane.xlu0 %6891
      %v6893 = vsel %vm1448, %v6888, 0.0
      %v6894 = vadd.f32 %v6887, %v6893
      %6895 = vadd.xlane.f32.xlu0 %v6894
      %v6896 = vpop.xlane.xlu0 %6895
      %v6897 = vmul.f32 %v6892, %v1457
      %v6898 = vmul.f32 %v6896, %v1457
      %v6899 = vadd.f32 %v6897, 1e-12
      %v6900 = vadd.f32 %v6898, 1e-12
      %v6901 = vrsqrt.pop %v6899
      %v6902 = vrsqrt.pop %v6900
      %v6903 = vmul.f32 %v6881, %v6901
      %v6904 = vmul.f32 %v6882, %v6901
      %v6905 = vmul.f32 %v6883, %v6902
      %v6906 = vmul.f32 %v6884, %v6902
      %v6907 = vlaneseq
      %v6908 = vshrl.u32 %v6907, 7
      %v6909 = vsub.s32 4, %v6908
      %v6910 = vrot.slane %v4683, %v6909
      %v6911 = vlaneseq
      %v6912 = vshrl.u32 %v6911, 7
      %v6913 = vsub.s32 4, %v6912
      %v6914 = vrot.slane %v4684, %v6913
      %v6915 = vmul.f32 %v6903, %v6910
      %v6916 = vmul.f32 %v6904, %v6914
      %v6917 = vmul.f32 %v6905, %v6910
      %v6918 = vmul.f32 %v6906, %v6914
      %v6919 = vlaneseq
      %v6920 = vshrl.u32 %v6919, 7
      %v6921 = vsub.s32 5, %v6920
      %v6922 = vrot.slane %v4683, %v6921
      %v6923 = vlaneseq
      %v6924 = vshrl.u32 %v6923, 7
      %v6925 = vsub.s32 5, %v6924
      %v6926 = vrot.slane %v4684, %v6925
      %v6927 = vadd.f32 %v6915, %v6922
      %v6928 = vadd.f32 %v6916, %v6926
      %v6929 = vadd.f32 %v6917, %v6922
      %v6930 = vadd.f32 %v6918, %v6926
      %v6931 = vpack.c.bf16 %v6929, %v6927
      %v6932 = vpack.c.bf16 %v6930, %v6928
      %v6933 = vlaneseq
      %v6934 = vshrl.u32 %v6933, 7
      %v6935 = vsub.s32 6, %v6934
      %v6936 = vrot.slane %v4683, %v6935
      %v6937 = vlaneseq
      %v6938 = vshrl.u32 %v6937, 7
      %v6939 = vsub.s32 6, %v6938
      %v6940 = vrot.slane %v4684, %v6939
      %v6941 = vlaneseq
      %v6942 = vshrl.u32 %v6941, 7
      %v6943 = vsub.s32 6, %v6942
      %v6944 = vrot.slane %v4685, %v6943
      %v6945 = vlaneseq
      %v6946 = vshrl.u32 %v6945, 7
      %v6947 = vsub.s32 6, %v6946
      %v6948 = vrot.slane %v4686, %v6947
      %v6949 = vlaneseq
      %v6950 = vshrl.u32 %v6949, 7
      %v6951 = vsub.s32 6, %v6950
      %v6952 = vrot.slane %v4687, %v6951
      %v6953 = vlaneseq
      %v6954 = vshrl.u32 %v6953, 7
      %v6955 = vsub.s32 6, %v6954
      %v6956 = vrot.slane %v4688, %v6955
      %v7029 = vunpack.c.l.b16 %v4788
      %v7030 = vunpack.c.h.b16 %v4788
      %v7031 = vunpack.c.l.b16 %v4789
      %v7032 = vunpack.c.h.b16 %v4789
      %v7033 = vunpack.c.l.b16 %v4790
      %v7034 = vunpack.c.h.b16 %v4790
      %v7035 = vunpack.c.l.b16 %v4791
      %v7036 = vunpack.c.h.b16 %v4791
      %v7037 = vunpack.c.l.b16 %v4792
      %v7038 = vunpack.c.h.b16 %v4792
      %v7039 = vunpack.c.l.b16 %v4793
      %v7040 = vunpack.c.h.b16 %v4793
      %v7041 = vunpack.c.l.b16 %v4794
      %v7042 = vunpack.c.h.b16 %v4794
      %v7043 = vunpack.c.l.b16 %v4795
      %v7044 = vunpack.c.h.b16 %v4795
      %v7045 = vunpack.c.l.b16 %v4796
      %v7046 = vunpack.c.h.b16 %v4796
      %v7047 = vunpack.c.l.b16 %v4797
      %v7048 = vunpack.c.h.b16 %v4797
      %v7049 = vunpack.c.l.b16 %v4798
      %v7050 = vunpack.c.h.b16 %v4798
      %v7051 = vunpack.c.l.b16 %v4799
      %v7052 = vunpack.c.h.b16 %v4799
      %v7053 = vunpack.c.l.b16 %v4800
      %v7054 = vunpack.c.h.b16 %v4800
      %v7055 = vunpack.c.l.b16 %v4801
      %v7056 = vunpack.c.h.b16 %v4801
      %v7057 = vunpack.c.l.b16 %v4802
      %v7058 = vunpack.c.h.b16 %v4802
      %v7059 = vunpack.c.l.b16 %v4803
      %v7060 = vunpack.c.h.b16 %v4803
      %v7061 = vunpack.c.l.b16 %v4804
      %v7062 = vunpack.c.h.b16 %v4804
      %v7063 = vunpack.c.l.b16 %v4805
      %v7064 = vunpack.c.h.b16 %v4805
      %v7065 = vunpack.c.l.b16 %v4806
      %v7066 = vunpack.c.h.b16 %v4806
      %v7067 = vunpack.c.l.b16 %v4807
      %v7068 = vunpack.c.h.b16 %v4807
      %v7069 = vunpack.c.l.b16 %v4808
      %v7070 = vunpack.c.h.b16 %v4808
      %v7071 = vunpack.c.l.b16 %v4809
      %v7072 = vunpack.c.h.b16 %v4809
      %v7073 = vunpack.c.l.b16 %v4810
      %v7074 = vunpack.c.h.b16 %v4810
      %v7075 = vunpack.c.l.b16 %v4811
      %v7076 = vunpack.c.h.b16 %v4811
      %v7077 = vunpack.c.l.b16 %v4812
      %v7078 = vunpack.c.h.b16 %v4812
      %v7079 = vunpack.c.l.b16 %v4813
      %v7080 = vunpack.c.h.b16 %v4813
      %v7081 = vunpack.c.l.b16 %v4814
      %v7082 = vunpack.c.h.b16 %v4814
      %v7083 = vunpack.c.l.b16 %v4815
      %v7084 = vunpack.c.h.b16 %v4815
      %v7085 = vunpack.c.l.b16 %v4816
      %v7086 = vunpack.c.h.b16 %v4816
      %v7087 = vunpack.c.l.b16 %v4817
      %v7088 = vunpack.c.h.b16 %v4817
      %v7089 = vunpack.c.l.b16 %v4818
      %v7090 = vunpack.c.h.b16 %v4818
      %v7091 = vunpack.c.l.b16 %v4819
      %v7092 = vunpack.c.h.b16 %v4819
      %v7093 = vunpack.c.l.b16 %v4820
      %v7094 = vunpack.c.h.b16 %v4820
      %v7095 = vunpack.c.l.b16 %v4821
      %v7096 = vunpack.c.h.b16 %v4821
      %v7097 = vunpack.c.l.b16 %v4822
      %v7098 = vunpack.c.h.b16 %v4822
      %v7099 = vunpack.c.l.b16 %v4823
      %v7100 = vunpack.c.h.b16 %v4823
      %v7101 = vunpack.c.l.b16 %v4824
      %v7102 = vunpack.c.h.b16 %v4824
      %v7103 = vunpack.c.l.b16 %v4825
      %v7104 = vunpack.c.h.b16 %v4825
      %v7105 = vunpack.c.l.b16 %v4826
      %v7106 = vunpack.c.h.b16 %v4826
      %v7107 = vunpack.c.l.b16 %v4827
      %v7108 = vunpack.c.h.b16 %v4827
      %v7109 = vunpack.c.l.b16 %v4828
      %v7110 = vunpack.c.h.b16 %v4828
      %v7111 = vunpack.c.l.b16 %v4829
      %v7112 = vunpack.c.h.b16 %v4829
      %v7113 = vunpack.c.l.b16 %v4830
      %v7114 = vunpack.c.h.b16 %v4830
      %v7115 = vunpack.c.l.b16 %v4831
      %v7116 = vunpack.c.h.b16 %v4831
      %v7117 = vunpack.c.l.b16 %v4832
      %v7118 = vunpack.c.h.b16 %v4832
      %v7119 = vunpack.c.l.b16 %v4833
      %v7120 = vunpack.c.h.b16 %v4833
      %v7121 = vunpack.c.l.b16 %v4834
      %v7122 = vunpack.c.h.b16 %v4834
      %v7123 = vunpack.c.l.b16 %v4835
      %v7124 = vunpack.c.h.b16 %v4835
      %v7125 = vunpack.c.l.b16 %v4836
      %v7126 = vunpack.c.h.b16 %v4836
      %v7127 = vunpack.c.l.b16 %v4837
      %v7128 = vunpack.c.h.b16 %v4837
      %v7129 = vunpack.c.l.b16 %v4838
      %v7130 = vunpack.c.h.b16 %v4838
      %v7131 = vunpack.c.l.b16 %v4839
      %v7132 = vunpack.c.h.b16 %v4839
      %v7133 = vunpack.c.l.b16 %v4840
      %v7134 = vunpack.c.h.b16 %v4840
      %v7135 = vunpack.c.l.b16 %v4841
      %v7136 = vunpack.c.h.b16 %v4841
      %v7137 = vunpack.c.l.b16 %v4842
      %v7138 = vunpack.c.h.b16 %v4842
      %v7139 = vunpack.c.l.b16 %v4843
      %v7140 = vunpack.c.h.b16 %v4843
      %v7141 = vunpack.c.l.b16 %v4844
      %v7142 = vunpack.c.h.b16 %v4844
      %v7143 = vunpack.c.l.b16 %v4845
      %v7144 = vunpack.c.h.b16 %v4845
      %v7145 = vunpack.c.l.b16 %v4846
      %v7146 = vunpack.c.h.b16 %v4846
      %v7147 = vunpack.c.l.b16 %v4847
      %v7148 = vunpack.c.h.b16 %v4847
      %v7149 = vunpack.c.l.b16 %v4848
      %v7150 = vunpack.c.h.b16 %v4848
      %v7151 = vunpack.c.l.b16 %v4849
      %v7152 = vunpack.c.h.b16 %v4849
      %v7153 = vunpack.c.l.b16 %v4850
      %v7154 = vunpack.c.h.b16 %v4850
      %v7155 = vunpack.c.l.b16 %v4851
      %v7156 = vunpack.c.h.b16 %v4851
      %v7157 = vunpack.c.l.b16 %v4852
      %v7158 = vunpack.c.h.b16 %v4852
      %v7159 = vunpack.c.l.b16 %v4853
      %v7160 = vunpack.c.h.b16 %v4853
      %v7161 = vunpack.c.l.b16 %v4854
      %v7162 = vunpack.c.h.b16 %v4854
      %v7163 = vunpack.c.l.b16 %v4855
      %v7164 = vunpack.c.h.b16 %v4855
      %v7165 = vunpack.c.l.b16 %v4856
      %v7166 = vunpack.c.h.b16 %v4856
      %v7167 = vunpack.c.l.b16 %v4857
      %v7168 = vunpack.c.h.b16 %v4857
      %v7169 = vunpack.c.l.b16 %v4858
      %v7170 = vunpack.c.h.b16 %v4858
      %v7171 = vunpack.c.l.b16 %v4859
      %v7172 = vunpack.c.h.b16 %v4859
      %v7173 = vpack.c.b16 %v7035, %v7029
      %v7174 = vpack.c.b16 %v7036, %v7030
      %v7175 = vpack.c.b16 %v7037, %v7031
      %v7176 = vpack.c.b16 %v7038, %v7032
      %v7177 = vpack.c.b16 %v7039, %v7033
      %v7178 = vpack.c.b16 %v7040, %v7034
      %v7179 = vpack.c.b16 %v7047, %v7041
      %v7180 = vpack.c.b16 %v7048, %v7042
      %v7181 = vpack.c.b16 %v7049, %v7043
      %v7182 = vpack.c.b16 %v7050, %v7044
      %v7183 = vpack.c.b16 %v7051, %v7045
      %v7184 = vpack.c.b16 %v7052, %v7046
      %v7185 = vpack.c.b16 %v7059, %v7053
      %v7186 = vpack.c.b16 %v7060, %v7054
      %v7187 = vpack.c.b16 %v7061, %v7055
      %v7188 = vpack.c.b16 %v7062, %v7056
      %v7189 = vpack.c.b16 %v7063, %v7057
      %v7190 = vpack.c.b16 %v7064, %v7058
      %v7191 = vpack.c.b16 %v7071, %v7065
      %v7192 = vpack.c.b16 %v7072, %v7066
      %v7193 = vpack.c.b16 %v7073, %v7067
      %v7194 = vpack.c.b16 %v7074, %v7068
      %v7195 = vpack.c.b16 %v7075, %v7069
      %v7196 = vpack.c.b16 %v7076, %v7070
      %v7197 = vpack.c.b16 %v7083, %v7077
      %v7198 = vpack.c.b16 %v7084, %v7078
      %v7199 = vpack.c.b16 %v7085, %v7079
      %v7200 = vpack.c.b16 %v7086, %v7080
      %v7201 = vpack.c.b16 %v7087, %v7081
      %v7202 = vpack.c.b16 %v7088, %v7082
      %v7203 = vpack.c.b16 %v7095, %v7089
      %v7204 = vpack.c.b16 %v7096, %v7090
      %v7205 = vpack.c.b16 %v7097, %v7091
      %v7206 = vpack.c.b16 %v7098, %v7092
      %v7207 = vpack.c.b16 %v7099, %v7093
      %v7208 = vpack.c.b16 %v7100, %v7094
      %v7209 = vpack.c.b16 %v7107, %v7101
      %v7210 = vpack.c.b16 %v7108, %v7102
      %v7211 = vpack.c.b16 %v7109, %v7103
      %v7212 = vpack.c.b16 %v7110, %v7104
      %v7213 = vpack.c.b16 %v7111, %v7105
      %v7214 = vpack.c.b16 %v7112, %v7106
      %v7215 = vpack.c.b16 %v7119, %v7113
      %v7216 = vpack.c.b16 %v7120, %v7114
      %v7217 = vpack.c.b16 %v7121, %v7115
      %v7218 = vpack.c.b16 %v7122, %v7116
      %v7219 = vpack.c.b16 %v7123, %v7117
      %v7220 = vpack.c.b16 %v7124, %v7118
      %v7221 = vpack.c.b16 %v7131, %v7125
      %v7222 = vpack.c.b16 %v7132, %v7126
      %v7223 = vpack.c.b16 %v7133, %v7127
      %v7224 = vpack.c.b16 %v7134, %v7128
      %v7225 = vpack.c.b16 %v7135, %v7129
      %v7226 = vpack.c.b16 %v7136, %v7130
      %v7227 = vpack.c.b16 %v7143, %v7137
      %v7228 = vpack.c.b16 %v7144, %v7138
      %v7229 = vpack.c.b16 %v7145, %v7139
      %v7230 = vpack.c.b16 %v7146, %v7140
      %v7231 = vpack.c.b16 %v7147, %v7141
      %v7232 = vpack.c.b16 %v7148, %v7142
      %v7233 = vpack.c.b16 %v7155, %v7149
      %v7234 = vpack.c.b16 %v7156, %v7150
      %v7235 = vpack.c.b16 %v7157, %v7151
      %v7236 = vpack.c.b16 %v7158, %v7152
      %v7237 = vpack.c.b16 %v7159, %v7153
      %v7238 = vpack.c.b16 %v7160, %v7154
      %v7239 = vpack.c.b16 %v7167, %v7161
      %v7240 = vpack.c.b16 %v7168, %v7162
      %v7241 = vpack.c.b16 %v7169, %v7163
      %v7242 = vpack.c.b16 %v7170, %v7164
      %v7243 = vpack.c.b16 %v7171, %v7165
      %v7244 = vpack.c.b16 %v7172, %v7166
      %v7318 = vsel %vm1448, %v6932, 0
      %7320 = vmatprep.subr.bf16.mxu0 %v7174
      %7321 = vmatpush1.bf16.msra.mxu0 %v7173
      %7322 = vmatprep.subr.bf16.mxu0 %v7180
      %7323 = vmatpush1.bf16.msra.mxu0 %v7179
      %7324 = vmatprep.subr.bf16.mxu0 %v7186
      %7325 = vmatpush1.bf16.msra.mxu0 %v7185
      %7326 = vmatprep.subr.bf16.mxu0 %v7192
      %7327 = vmatpush1.bf16.msra.mxu0 %v7191
      %7328 = vmatprep.subr.bf16.mxu0 %v7198
      %7329 = vmatpush1.bf16.msra.mxu0 %v7197
      %7330 = vmatprep.subr.bf16.mxu0 %v7204
      %7331 = vmatpush1.bf16.msra.mxu0 %v7203
      %7332 = vmatprep.subr.bf16.mxu0 %v7210
      %7333 = vmatpush1.bf16.msra.mxu0 %v7209
      %7334 = vmatprep.subr.bf16.mxu0 %v7216
      %7335 = vmatpush1.bf16.msra.mxu0 %v7215
      %7336 = vmatprep.subr.bf16.mxu0 %v7222
      %7337 = vmatpush1.bf16.msra.mxu0 %v7221
      %7338 = vmatprep.subr.bf16.mxu0 %v7228
      %7339 = vmatpush1.bf16.msra.mxu0 %v7227
      %7340 = vmatprep.subr.bf16.mxu0 %v7234
      %7341 = vmatpush1.bf16.msra.mxu0 %v7233
      %7342 = vmatprep.subr.bf16.mxu0 %v7240
      %7343 = vmatpush1.bf16.msra.mxu0 %v7239
      %7344 = vmatprep.subr.bf16.mxu0 0
      %7345 = vmatpush1.bf16.msra.mxu0 0
      %7346 = vmatprep.subr.bf16.mxu0 0
      %7347 = vmatpush1.bf16.msra.mxu0 0
      %7348 = vmatprep.subr.bf16.mxu0 0
      %7349 = vmatpush1.bf16.msra.mxu0 0
      %7350 = vmatprep.subr.bf16.mxu0 0
      %7351 = vmatpush1.bf16.msra.mxu0 0
      %7352 = vmatprep.mubr.bf16.mxu0 %v7318
      %7353 = vmatmul.mubr.bf16.gmra.mrb[0].mxu0 %v6931
      %v7354 = vpop.f32.mrb[0].mxu0
      %v7355 = vadd.f32 %v6936, %v7354
      %v7356 = vpop.f32.mrb[0].mxu0
      %v7357 = vadd.f32 %v6940, %v7356
      %v7358 = vpop.f32.mrb[0].mxu0
      %v7359 = vadd.f32 %v6936, %v7358
      %v7360 = vpop.f32.mrb[0].mxu0
      %v7361 = vadd.f32 %v6940, %v7360
      %7362 = vdwg.mxu0
      %7363 = vmatprep.subr.bf16.mxu0 %v7176
      %7364 = vmatpush1.bf16.msra.mxu0 %v7175
      %7365 = vmatprep.subr.bf16.mxu0 %v7182
      %7366 = vmatpush1.bf16.msra.mxu0 %v7181
      %7367 = vmatprep.subr.bf16.mxu0 %v7188
      %7368 = vmatpush1.bf16.msra.mxu0 %v7187
      %7369 = vmatprep.subr.bf16.mxu0 %v7194
      %7370 = vmatpush1.bf16.msra.mxu0 %v7193
      %7371 = vmatprep.subr.bf16.mxu0 %v7200
      %7372 = vmatpush1.bf16.msra.mxu0 %v7199
      %7373 = vmatprep.subr.bf16.mxu0 %v7206
      %7374 = vmatpush1.bf16.msra.mxu0 %v7205
      %7375 = vmatprep.subr.bf16.mxu0 %v7212
      %7376 = vmatpush1.bf16.msra.mxu0 %v7211
      %7377 = vmatprep.subr.bf16.mxu0 %v7218
      %7378 = vmatpush1.bf16.msra.mxu0 %v7217
      %7379 = vmatprep.subr.bf16.mxu0 %v7224
      %7380 = vmatpush1.bf16.msra.mxu0 %v7223
      %7381 = vmatprep.subr.bf16.mxu0 %v7230
      %7382 = vmatpush1.bf16.msra.mxu0 %v7229
      %7383 = vmatprep.subr.bf16.mxu0 %v7236
      %7384 = vmatpush1.bf16.msra.mxu0 %v7235
      %7385 = vmatprep.subr.bf16.mxu0 %v7242
      %7386 = vmatpush1.bf16.msra.mxu0 %v7241
      %7387 = vmatprep.subr.bf16.mxu0 0
      %7388 = vmatpush1.bf16.msra.mxu0 0
      %7389 = vmatprep.subr.bf16.mxu0 0
      %7390 = vmatpush1.bf16.msra.mxu0 0
      %7391 = vmatprep.subr.bf16.mxu0 0
      %7392 = vmatpush1.bf16.msra.mxu0 0
      %7393 = vmatprep.subr.bf16.mxu0 0
      %7394 = vmatpush1.bf16.msra.mxu0 0
      %7395 = vmatprep.mubr.bf16.mxu0 %v7318
      %7396 = vmatmul.mubr.bf16.gmra.mrb[0].mxu0 %v6931
      %v7397 = vpop.f32.mrb[0].mxu0
      %v7398 = vadd.f32 %v6944, %v7397
      %v7399 = vpop.f32.mrb[0].mxu0
      %v7400 = vadd.f32 %v6948, %v7399
      %v7401 = vpop.f32.mrb[0].mxu0
      %v7402 = vadd.f32 %v6944, %v7401
      %v7403 = vpop.f32.mrb[0].mxu0
      %v7404 = vadd.f32 %v6948, %v7403
      %7405 = vdwg.mxu0
      %7406 = vmatprep.subr.bf16.mxu0 %v7178
      %7407 = vmatpush1.bf16.msra.mxu0 %v7177
      %7408 = vmatprep.subr.bf16.mxu0 %v7184
      %7409 = vmatpush1.bf16.msra.mxu0 %v7183
      %7410 = vmatprep.subr.bf16.mxu0 %v7190
      %7411 = vmatpush1.bf16.msra.mxu0 %v7189
      %7412 = vmatprep.subr.bf16.mxu0 %v7196
      %7413 = vmatpush1.bf16.msra.mxu0 %v7195
      %7414 = vmatprep.subr.bf16.mxu0 %v7202
      %7415 = vmatpush1.bf16.msra.mxu0 %v7201
      %7416 = vmatprep.subr.bf16.mxu0 %v7208
      %7417 = vmatpush1.bf16.msra.mxu0 %v7207
      %7418 = vmatprep.subr.bf16.mxu0 %v7214
      %7419 = vmatpush1.bf16.msra.mxu0 %v7213
      %7420 = vmatprep.subr.bf16.mxu0 %v7220
      %7421 = vmatpush1.bf16.msra.mxu0 %v7219
      %7422 = vmatprep.subr.bf16.mxu0 %v7226
      %7423 = vmatpush1.bf16.msra.mxu0 %v7225
      %7424 = vmatprep.subr.bf16.mxu0 %v7232
      %7425 = vmatpush1.bf16.msra.mxu0 %v7231
      %7426 = vmatprep.subr.bf16.mxu0 %v7238
      %7427 = vmatpush1.bf16.msra.mxu0 %v7237
      %7428 = vmatprep.subr.bf16.mxu0 %v7244
      %7429 = vmatpush1.bf16.msra.mxu0 %v7243
      %7430 = vmatprep.subr.bf16.mxu0 0
      %7431 = vmatpush1.bf16.msra.mxu0 0
      %7432 = vmatprep.subr.bf16.mxu0 0
      %7433 = vmatpush1.bf16.msra.mxu0 0
      %7434 = vmatprep.subr.bf16.mxu0 0
      %7435 = vmatpush1.bf16.msra.mxu0 0
      %7436 = vmatprep.subr.bf16.mxu0 0
      %7437 = vmatpush1.bf16.msra.mxu0 0
      %7438 = vmatprep.mubr.bf16.mxu0 %v7318
      %7439 = vmatmul.mubr.bf16.gmra.mrb[0].mxu0 %v6931
      %v7440 = vpop.f32.mrb[0].mxu0
      %v7441 = vadd.f32 %v6952, %v7440
      %v7442 = vpop.f32.mrb[0].mxu0
      %v7443 = vadd.f32 %v6956, %v7442
      %v7444 = vpop.f32.mrb[0].mxu0
      %v7445 = vadd.f32 %v6952, %v7444
      %v7446 = vpop.f32.mrb[0].mxu0
      %v7447 = vadd.f32 %v6956, %v7446
      %7448 = vdwg.mxu0
      %v7449 = vmul.f32 %v7355, 0.5
      %v7450 = vmul.f32 %v7357, 0.5
      %v7451 = vmul.f32 %v7398, 0.5
      %v7452 = vmul.f32 %v7400, 0.5
      %v7453 = vmul.f32 %v7441, 0.5
      %v7454 = vmul.f32 %v7443, 0.5
      %v7455 = vmul.f32 %v7359, 0.5
      %v7456 = vmul.f32 %v7361, 0.5
      %v7457 = vmul.f32 %v7402, 0.5
      %v7458 = vmul.f32 %v7404, 0.5
      %v7459 = vmul.f32 %v7445, 0.5
      %v7460 = vmul.f32 %v7447, 0.5
      %v7461 = vmul.f32 %v7355, 0.044715
      %v7462 = vmul.f32 %v7357, 0.044715
      %v7463 = vmul.f32 %v7398, 0.044715
      %v7464 = vmul.f32 %v7400, 0.044715
      %v7465 = vmul.f32 %v7441, 0.044715
      %v7466 = vmul.f32 %v7443, 0.044715
      %v7467 = vmul.f32 %v7359, 0.044715
      %v7468 = vmul.f32 %v7361, 0.044715
      %v7469 = vmul.f32 %v7402, 0.044715
      %v7470 = vmul.f32 %v7404, 0.044715
      %v7471 = vmul.f32 %v7445, 0.044715
      %v7472 = vmul.f32 %v7447, 0.044715
      %v7473 = vmul.f32 %v7461, %v7355
      %v7474 = vmul.f32 %v7462, %v7357
      %v7475 = vmul.f32 %v7463, %v7398
      %v7476 = vmul.f32 %v7464, %v7400
      %v7477 = vmul.f32 %v7465, %v7441
      %v7478 = vmul.f32 %v7466, %v7443
      %v7479 = vmul.f32 %v7467, %v7359
      %v7480 = vmul.f32 %v7468, %v7361
      %v7481 = vmul.f32 %v7469, %v7402
      %v7482 = vmul.f32 %v7470, %v7404
      %v7483 = vmul.f32 %v7471, %v7445
      %v7484 = vmul.f32 %v7472, %v7447
      %v7485 = vmul.f32 %v7473, %v7355
      %v7486 = vmul.f32 %v7474, %v7357
      %v7487 = vmul.f32 %v7475, %v7398
      %v7488 = vmul.f32 %v7476, %v7400
      %v7489 = vmul.f32 %v7477, %v7441
      %v7490 = vmul.f32 %v7478, %v7443
      %v7491 = vmul.f32 %v7479, %v7359
      %v7492 = vmul.f32 %v7480, %v7361
      %v7493 = vmul.f32 %v7481, %v7402
      %v7494 = vmul.f32 %v7482, %v7404
      %v7495 = vmul.f32 %v7483, %v7445
      %v7496 = vmul.f32 %v7484, %v7447
      %v7497 = vadd.f32 %v7355, %v7485
      %v7498 = vadd.f32 %v7357, %v7486
      %v7499 = vadd.f32 %v7398, %v7487
      %v7500 = vadd.f32 %v7400, %v7488
      %v7501 = vadd.f32 %v7441, %v7489
      %v7502 = vadd.f32 %v7443, %v7490
      %v7503 = vadd.f32 %v7359, %v7491
      %v7504 = vadd.f32 %v7361, %v7492
      %v7505 = vadd.f32 %v7402, %v7493
      %v7506 = vadd.f32 %v7404, %v7494
      %v7507 = vadd.f32 %v7445, %v7495
      %v7508 = vadd.f32 %v7447, %v7496
      %v7509 = vmul.f32 %v7497, 0.7978846
      %v7510 = vmul.f32 %v7498, 0.7978846
      %v7511 = vmul.f32 %v7499, 0.7978846
      %v7512 = vmul.f32 %v7500, 0.7978846
      %v7513 = vmul.f32 %v7501, 0.7978846
      %v7514 = vmul.f32 %v7502, 0.7978846
      %v7515 = vmul.f32 %v7503, 0.7978846
      %v7516 = vmul.f32 %v7504, 0.7978846
      %v7517 = vmul.f32 %v7505, 0.7978846
      %v7518 = vmul.f32 %v7506, 0.7978846
      %v7519 = vmul.f32 %v7507, 0.7978846
      %v7520 = vmul.f32 %v7508, 0.7978846
      %v7521 = vtanh.pop %v7509
      %v7522 = vtanh.pop %v7510
      %v7523 = vtanh.pop %v7511
      %v7524 = vtanh.pop %v7512
      %v7525 = vtanh.pop %v7513
      %v7526 = vtanh.pop %v7514
      %v7527 = vtanh.pop %v7515
      %v7528 = vtanh.pop %v7516
      %v7529 = vtanh.pop %v7517
      %v7530 = vtanh.pop %v7518
      %v7531 = vtanh.pop %v7519
      %v7532 = vtanh.pop %v7520
      %v7533 = vadd.f32 %v7521, 1.0
      %v7534 = vadd.f32 %v7522, 1.0
      %v7535 = vadd.f32 %v7523, 1.0
      %v7536 = vadd.f32 %v7524, 1.0
      %v7537 = vadd.f32 %v7525, 1.0
      %v7538 = vadd.f32 %v7526, 1.0
      %v7539 = vadd.f32 %v7527, 1.0
      %v7540 = vadd.f32 %v7528, 1.0
      %v7541 = vadd.f32 %v7529, 1.0
      %v7542 = vadd.f32 %v7530, 1.0
      %v7543 = vadd.f32 %v7531, 1.0
      %v7544 = vadd.f32 %v7532, 1.0
      %v7545 = vmul.f32 %v7449, %v7533
      %v7546 = vmul.f32 %v7450, %v7534
      %v7547 = vmul.f32 %v7451, %v7535
      %v7548 = vmul.f32 %v7452, %v7536
      %v7549 = vmul.f32 %v7453, %v7537
      %v7550 = vmul.f32 %v7454, %v7538
      %v7551 = vmul.f32 %v7455, %v7539
      %v7552 = vmul.f32 %v7456, %v7540
      %v7553 = vmul.f32 %v7457, %v7541
      %v7554 = vmul.f32 %v7458, %v7542
      %v7555 = vmul.f32 %v7459, %v7543
      %v7556 = vmul.f32 %v7460, %v7544
      %v7557 = vpack.c.bf16 %v7551, %v7545
      %v7558 = vpack.c.bf16 %v7552, %v7546
      %v7559 = vpack.c.bf16 %v7553, %v7547
      %v7560 = vpack.c.bf16 %v7554, %v7548
      %v7561 = vpack.c.bf16 %v7555, %v7549
      %v7562 = vpack.c.bf16 %v7556, %v7550
      %v7659 = vunpack.c.l.b16 %v4861
      %v7660 = vunpack.c.h.b16 %v4861
      %v7661 = vunpack.c.l.b16 %v4862
      %v7662 = vunpack.c.h.b16 %v4862
      %v7663 = vunpack.c.l.b16 %v4863
      %v7664 = vunpack.c.h.b16 %v4863
      %v7665 = vunpack.c.l.b16 %v4864
      %v7666 = vunpack.c.h.b16 %v4864
      %v7667 = vunpack.c.l.b16 %v4865
      %v7668 = vunpack.c.h.b16 %v4865
      %v7669 = vunpack.c.l.b16 %v4866
      %v7670 = vunpack.c.h.b16 %v4866
      %v7671 = vunpack.c.l.b16 %v4867
      %v7672 = vunpack.c.h.b16 %v4867
      %v7673 = vunpack.c.l.b16 %v4868
      %v7674 = vunpack.c.h.b16 %v4868
      %v7675 = vunpack.c.l.b16 %v4869
      %v7676 = vunpack.c.h.b16 %v4869
      %v7677 = vunpack.c.l.b16 %v4870
      %v7678 = vunpack.c.h.b16 %v4870
      %v7679 = vunpack.c.l.b16 %v4871
      %v7680 = vunpack.c.h.b16 %v4871
      %v7681 = vunpack.c.l.b16 %v4872
      %v7682 = vunpack.c.h.b16 %v4872
      %v7683 = vunpack.c.l.b16 %v4873
      %v7684 = vunpack.c.h.b16 %v4873
      %v7685 = vunpack.c.l.b16 %v4874
      %v7686 = vunpack.c.h.b16 %v4874
      %v7687 = vunpack.c.l.b16 %v4875
      %v7688 = vunpack.c.h.b16 %v4875
      %v7689 = vunpack.c.l.b16 %v4876
      %v7690 = vunpack.c.h.b16 %v4876
      %v7691 = vunpack.c.l.b16 %v4877
      %v7692 = vunpack.c.h.b16 %v4877
      %v7693 = vunpack.c.l.b16 %v4878
      %v7694 = vunpack.c.h.b16 %v4878
      %v7695 = vunpack.c.l.b16 %v4879
      %v7696 = vunpack.c.h.b16 %v4879
      %v7697 = vunpack.c.l.b16 %v4880
      %v7698 = vunpack.c.h.b16 %v4880
      %v7699 = vunpack.c.l.b16 %v4881
      %v7700 = vunpack.c.h.b16 %v4881
      %v7701 = vunpack.c.l.b16 %v4882
      %v7702 = vunpack.c.h.b16 %v4882
      %v7703 = vunpack.c.l.b16 %v4883
      %v7704 = vunpack.c.h.b16 %v4883
      %v7705 = vunpack.c.l.b16 %v4884
      %v7706 = vunpack.c.h.b16 %v4884
      %v7707 = vunpack.c.l.b16 %v4885
      %v7708 = vunpack.c.h.b16 %v4885
      %v7709 = vunpack.c.l.b16 %v4886
      %v7710 = vunpack.c.h.b16 %v4886
      %v7711 = vunpack.c.l.b16 %v4887
      %v7712 = vunpack.c.h.b16 %v4887
      %v7713 = vunpack.c.l.b16 %v4888
      %v7714 = vunpack.c.h.b16 %v4888
      %v7715 = vunpack.c.l.b16 %v4889
      %v7716 = vunpack.c.h.b16 %v4889
      %v7717 = vunpack.c.l.b16 %v4890
      %v7718 = vunpack.c.h.b16 %v4890
      %v7719 = vunpack.c.l.b16 %v4891
      %v7720 = vunpack.c.h.b16 %v4891
      %v7721 = vunpack.c.l.b16 %v4892
      %v7722 = vunpack.c.h.b16 %v4892
      %v7723 = vunpack.c.l.b16 %v4893
      %v7724 = vunpack.c.h.b16 %v4893
      %v7725 = vunpack.c.l.b16 %v4894
      %v7726 = vunpack.c.h.b16 %v4894
      %v7727 = vunpack.c.l.b16 %v4895
      %v7728 = vunpack.c.h.b16 %v4895
      %v7729 = vunpack.c.l.b16 %v4896
      %v7730 = vunpack.c.h.b16 %v4896
      %v7731 = vunpack.c.l.b16 %v4897
      %v7732 = vunpack.c.h.b16 %v4897
      %v7733 = vunpack.c.l.b16 %v4898
      %v7734 = vunpack.c.h.b16 %v4898
      %v7735 = vunpack.c.l.b16 %v4899
      %v7736 = vunpack.c.h.b16 %v4899
      %v7737 = vunpack.c.l.b16 %v4900
      %v7738 = vunpack.c.h.b16 %v4900
      %v7739 = vunpack.c.l.b16 %v4901
      %v7740 = vunpack.c.h.b16 %v4901
      %v7741 = vunpack.c.l.b16 %v4902
      %v7742 = vunpack.c.h.b16 %v4902
      %v7743 = vunpack.c.l.b16 %v4903
      %v7744 = vunpack.c.h.b16 %v4903
      %v7745 = vunpack.c.l.b16 %v4904
      %v7746 = vunpack.c.h.b16 %v4904
      %v7747 = vunpack.c.l.b16 %v4905
      %v7748 = vunpack.c.h.b16 %v4905
      %v7749 = vunpack.c.l.b16 %v4906
      %v7750 = vunpack.c.h.b16 %v4906
      %v7751 = vunpack.c.l.b16 %v4907
      %v7752 = vunpack.c.h.b16 %v4907
      %v7753 = vunpack.c.l.b16 %v4908
      %v7754 = vunpack.c.h.b16 %v4908
      %v7755 = vunpack.c.l.b16 %v4909
      %v7756 = vunpack.c.h.b16 %v4909
      %v7757 = vunpack.c.l.b16 %v4910
      %v7758 = vunpack.c.h.b16 %v4910
      %v7759 = vunpack.c.l.b16 %v4911
      %v7760 = vunpack.c.h.b16 %v4911
      %v7761 = vunpack.c.l.b16 %v4912
      %v7762 = vunpack.c.h.b16 %v4912
      %v7763 = vunpack.c.l.b16 %v4913
      %v7764 = vunpack.c.h.b16 %v4913
      %v7765 = vunpack.c.l.b16 %v4914
      %v7766 = vunpack.c.h.b16 %v4914
      %v7767 = vunpack.c.l.b16 %v4915
      %v7768 = vunpack.c.h.b16 %v4915
      %v7769 = vunpack.c.l.b16 %v4916
      %v7770 = vunpack.c.h.b16 %v4916
      %v7771 = vunpack.c.l.b16 %v4917
      %v7772 = vunpack.c.h.b16 %v4917
      %v7773 = vunpack.c.l.b16 %v4918
      %v7774 = vunpack.c.h.b16 %v4918
      %v7775 = vunpack.c.l.b16 %v4919
      %v7776 = vunpack.c.h.b16 %v4919
      %v7777 = vunpack.c.l.b16 %v4920
      %v7778 = vunpack.c.h.b16 %v4920
      %v7779 = vunpack.c.l.b16 %v4921
      %v7780 = vunpack.c.h.b16 %v4921
      %v7781 = vunpack.c.l.b16 %v4922
      %v7782 = vunpack.c.h.b16 %v4922
      %v7783 = vunpack.c.l.b16 %v4923
      %v7784 = vunpack.c.h.b16 %v4923
      %v7785 = vunpack.c.l.b16 %v4924
      %v7786 = vunpack.c.h.b16 %v4924
      %v7787 = vunpack.c.l.b16 %v4925
      %v7788 = vunpack.c.h.b16 %v4925
      %v7789 = vunpack.c.l.b16 %v4926
      %v7790 = vunpack.c.h.b16 %v4926
      %v7791 = vunpack.c.l.b16 %v4927
      %v7792 = vunpack.c.h.b16 %v4927
      %v7793 = vunpack.c.l.b16 %v4928
      %v7794 = vunpack.c.h.b16 %v4928
      %v7795 = vunpack.c.l.b16 %v4929
      %v7796 = vunpack.c.h.b16 %v4929
      %v7797 = vunpack.c.l.b16 %v4930
      %v7798 = vunpack.c.h.b16 %v4930
      %v7799 = vunpack.c.l.b16 %v4931
      %v7800 = vunpack.c.h.b16 %v4931
      %v7801 = vunpack.c.l.b16 %v4932
      %v7802 = vunpack.c.h.b16 %v4932
      %v7803 = vunpack.c.l.b16 %v4933
      %v7804 = vunpack.c.h.b16 %v4933
      %v7805 = vunpack.c.l.b16 %v4934
      %v7806 = vunpack.c.h.b16 %v4934
      %v7807 = vunpack.c.l.b16 %v4935
      %v7808 = vunpack.c.h.b16 %v4935
      %v7809 = vunpack.c.l.b16 %v4936
      %v7810 = vunpack.c.h.b16 %v4936
      %v7811 = vunpack.c.l.b16 %v4937
      %v7812 = vunpack.c.h.b16 %v4937
      %v7813 = vunpack.c.l.b16 %v4938
      %v7814 = vunpack.c.h.b16 %v4938
      %v7815 = vunpack.c.l.b16 %v4939
      %v7816 = vunpack.c.h.b16 %v4939
      %v7817 = vunpack.c.l.b16 %v4940
      %v7818 = vunpack.c.h.b16 %v4940
      %v7819 = vunpack.c.l.b16 %v4941
      %v7820 = vunpack.c.h.b16 %v4941
      %v7821 = vunpack.c.l.b16 %v4942
      %v7822 = vunpack.c.h.b16 %v4942
      %v7823 = vunpack.c.l.b16 %v4943
      %v7824 = vunpack.c.h.b16 %v4943
      %v7825 = vunpack.c.l.b16 %v4944
      %v7826 = vunpack.c.h.b16 %v4944
      %v7827 = vunpack.c.l.b16 %v4945
      %v7828 = vunpack.c.h.b16 %v4945
      %v7829 = vunpack.c.l.b16 %v4946
      %v7830 = vunpack.c.h.b16 %v4946
      %v7831 = vunpack.c.l.b16 %v4947
      %v7832 = vunpack.c.h.b16 %v4947
      %v7833 = vunpack.c.l.b16 %v4948
      %v7834 = vunpack.c.h.b16 %v4948
      %v7835 = vunpack.c.l.b16 %v4949
      %v7836 = vunpack.c.h.b16 %v4949
      %v7837 = vunpack.c.l.b16 %v4950
      %v7838 = vunpack.c.h.b16 %v4950
      %v7839 = vunpack.c.l.b16 %v4951
      %v7840 = vunpack.c.h.b16 %v4951
      %v7841 = vunpack.c.l.b16 %v4952
      %v7842 = vunpack.c.h.b16 %v4952
      %v7843 = vunpack.c.l.b16 %v4953
      %v7844 = vunpack.c.h.b16 %v4953
      %v7845 = vunpack.c.l.b16 %v4954
      %v7846 = vunpack.c.h.b16 %v4954
      %v7847 = vunpack.c.l.b16 %v4955
      %v7848 = vunpack.c.h.b16 %v4955
      %v7849 = vunpack.c.l.b16 %v4956
      %v7850 = vunpack.c.h.b16 %v4956
      %v7851 = vpack.c.b16 %v7661, %v7659
      %v7852 = vpack.c.b16 %v7662, %v7660
      %v7853 = vpack.c.b16 %v7665, %v7663
      %v7854 = vpack.c.b16 %v7666, %v7664
      %v7855 = vpack.c.b16 %v7669, %v7667
      %v7856 = vpack.c.b16 %v7670, %v7668
      %v7857 = vpack.c.b16 %v7673, %v7671
      %v7858 = vpack.c.b16 %v7674, %v7672
      %v7859 = vpack.c.b16 %v7677, %v7675
      %v7860 = vpack.c.b16 %v7678, %v7676
      %v7861 = vpack.c.b16 %v7681, %v7679
      %v7862 = vpack.c.b16 %v7682, %v7680
      %v7863 = vpack.c.b16 %v7685, %v7683
      %v7864 = vpack.c.b16 %v7686, %v7684
      %v7865 = vpack.c.b16 %v7689, %v7687
      %v7866 = vpack.c.b16 %v7690, %v7688
      %v7867 = vpack.c.b16 %v7693, %v7691
      %v7868 = vpack.c.b16 %v7694, %v7692
      %v7869 = vpack.c.b16 %v7697, %v7695
      %v7870 = vpack.c.b16 %v7698, %v7696
      %v7871 = vpack.c.b16 %v7701, %v7699
      %v7872 = vpack.c.b16 %v7702, %v7700
      %v7873 = vpack.c.b16 %v7705, %v7703
      %v7874 = vpack.c.b16 %v7706, %v7704
      %v7875 = vpack.c.b16 %v7709, %v7707
      %v7876 = vpack.c.b16 %v7710, %v7708
      %v7877 = vpack.c.b16 %v7713, %v7711
      %v7878 = vpack.c.b16 %v7714, %v7712
      %v7879 = vpack.c.b16 %v7717, %v7715
      %v7880 = vpack.c.b16 %v7718, %v7716
      %v7881 = vpack.c.b16 %v7721, %v7719
      %v7882 = vpack.c.b16 %v7722, %v7720
      %v7883 = vpack.c.b16 %v7725, %v7723
      %v7884 = vpack.c.b16 %v7726, %v7724
      %v7885 = vpack.c.b16 %v7729, %v7727
      %v7886 = vpack.c.b16 %v7730, %v7728
      %v7887 = vpack.c.b16 %v7733, %v7731
      %v7888 = vpack.c.b16 %v7734, %v7732
      %v7889 = vpack.c.b16 %v7737, %v7735
      %v7890 = vpack.c.b16 %v7738, %v7736
      %v7891 = vpack.c.b16 %v7741, %v7739
      %v7892 = vpack.c.b16 %v7742, %v7740
      %v7893 = vpack.c.b16 %v7745, %v7743
      %v7894 = vpack.c.b16 %v7746, %v7744
      %v7895 = vpack.c.b16 %v7749, %v7747
      %v7896 = vpack.c.b16 %v7750, %v7748
      %v7897 = vpack.c.b16 %v7753, %v7751
      %v7898 = vpack.c.b16 %v7754, %v7752
      %v7899 = vpack.c.b16 %v7757, %v7755
      %v7900 = vpack.c.b16 %v7758, %v7756
      %v7901 = vpack.c.b16 %v7761, %v7759
      %v7902 = vpack.c.b16 %v7762, %v7760
      %v7903 = vpack.c.b16 %v7765, %v7763
      %v7904 = vpack.c.b16 %v7766, %v7764
      %v7905 = vpack.c.b16 %v7769, %v7767
      %v7906 = vpack.c.b16 %v7770, %v7768
      %v7907 = vpack.c.b16 %v7773, %v7771
      %v7908 = vpack.c.b16 %v7774, %v7772
      %v7909 = vpack.c.b16 %v7777, %v7775
      %v7910 = vpack.c.b16 %v7778, %v7776
      %v7911 = vpack.c.b16 %v7781, %v7779
      %v7912 = vpack.c.b16 %v7782, %v7780
      %v7913 = vpack.c.b16 %v7785, %v7783
      %v7914 = vpack.c.b16 %v7786, %v7784
      %v7915 = vpack.c.b16 %v7789, %v7787
      %v7916 = vpack.c.b16 %v7790, %v7788
      %v7917 = vpack.c.b16 %v7793, %v7791
      %v7918 = vpack.c.b16 %v7794, %v7792
      %v7919 = vpack.c.b16 %v7797, %v7795
      %v7920 = vpack.c.b16 %v7798, %v7796
      %v7921 = vpack.c.b16 %v7801, %v7799
      %v7922 = vpack.c.b16 %v7802, %v7800
      %v7923 = vpack.c.b16 %v7805, %v7803
      %v7924 = vpack.c.b16 %v7806, %v7804
      %v7925 = vpack.c.b16 %v7809, %v7807
      %v7926 = vpack.c.b16 %v7810, %v7808
      %v7927 = vpack.c.b16 %v7813, %v7811
      %v7928 = vpack.c.b16 %v7814, %v7812
      %v7929 = vpack.c.b16 %v7817, %v7815
      %v7930 = vpack.c.b16 %v7818, %v7816
      %v7931 = vpack.c.b16 %v7821, %v7819
      %v7932 = vpack.c.b16 %v7822, %v7820
      %v7933 = vpack.c.b16 %v7825, %v7823
      %v7934 = vpack.c.b16 %v7826, %v7824
      %v7935 = vpack.c.b16 %v7829, %v7827
      %v7936 = vpack.c.b16 %v7830, %v7828
      %v7937 = vpack.c.b16 %v7833, %v7831
      %v7938 = vpack.c.b16 %v7834, %v7832
      %v7939 = vpack.c.b16 %v7837, %v7835
      %v7940 = vpack.c.b16 %v7838, %v7836
      %v7941 = vpack.c.b16 %v7841, %v7839
      %v7942 = vpack.c.b16 %v7842, %v7840
      %v7943 = vpack.c.b16 %v7845, %v7843
      %v7944 = vpack.c.b16 %v7846, %v7844
      %v7945 = vpack.c.b16 %v7849, %v7847
      %v7946 = vpack.c.b16 %v7850, %v7848
      %8043 = vmatprep.subr.bf16.mxu0 %v7852
      %8044 = vmatpush1.bf16.msra.mxu0 %v7851
      %8045 = vmatprep.subr.bf16.mxu0 %v7854
      %8046 = vmatpush1.bf16.msra.mxu0 %v7853
      %8047 = vmatprep.subr.bf16.mxu0 %v7856
      %8048 = vmatpush1.bf16.msra.mxu0 %v7855
      %8049 = vmatprep.subr.bf16.mxu0 %v7858
      %8050 = vmatpush1.bf16.msra.mxu0 %v7857
      %8051 = vmatprep.subr.bf16.mxu0 %v7860
      %8052 = vmatpush1.bf16.msra.mxu0 %v7859
      %8053 = vmatprep.subr.bf16.mxu0 %v7862
      %8054 = vmatpush1.bf16.msra.mxu0 %v7861
      %8055 = vmatprep.subr.bf16.mxu0 %v7864
      %8056 = vmatpush1.bf16.msra.mxu0 %v7863
      %8057 = vmatprep.subr.bf16.mxu0 %v7866
      %8058 = vmatpush1.bf16.msra.mxu0 %v7865
      %8059 = vmatprep.subr.bf16.mxu0 %v7868
      %8060 = vmatpush1.bf16.msra.mxu0 %v7867
      %8061 = vmatprep.subr.bf16.mxu0 %v7870
      %8062 = vmatpush1.bf16.msra.mxu0 %v7869
      %8063 = vmatprep.subr.bf16.mxu0 %v7872
      %8064 = vmatpush1.bf16.msra.mxu0 %v7871
      %8065 = vmatprep.subr.bf16.mxu0 %v7874
      %8066 = vmatpush1.bf16.msra.mxu0 %v7873
      %8067 = vmatprep.subr.bf16.mxu0 %v7876
      %8068 = vmatpush1.bf16.msra.mxu0 %v7875
      %8069 = vmatprep.subr.bf16.mxu0 %v7878
      %8070 = vmatpush1.bf16.msra.mxu0 %v7877
      %8071 = vmatprep.subr.bf16.mxu0 %v7880
      %8072 = vmatpush1.bf16.msra.mxu0 %v7879
      %8073 = vmatprep.subr.bf16.mxu0 %v7882
      %8074 = vmatpush1.bf16.msra.mxu0 %v7881
      %8075 = vmatprep.mubr.bf16.mxu0 %v7558
      %8076 = vmatmul.mubr.bf16.gmra.mrb[0].mxu0 %v7557
      %v8077 = vpop.f32.mrb[0].mxu0
      %v8078 = vadd.f32 0.0, %v8077
      %v8079 = vpop.f32.mrb[0].mxu0
      %v8080 = vadd.f32 0.0, %v8079
      %v8081 = vpop.f32.mrb[0].mxu0
      %v8082 = vadd.f32 0.0, %v8081
      %v8083 = vpop.f32.mrb[0].mxu0
      %v8084 = vadd.f32 0.0, %v8083
      %8085 = vdwg.mxu0
      %8086 = vmatprep.subr.bf16.mxu0 %v7884
      %8087 = vmatpush1.bf16.msra.mxu0 %v7883
      %8088 = vmatprep.subr.bf16.mxu0 %v7886
      %8089 = vmatpush1.bf16.msra.mxu0 %v7885
      %8090 = vmatprep.subr.bf16.mxu0 %v7888
      %8091 = vmatpush1.bf16.msra.mxu0 %v7887
      %8092 = vmatprep.subr.bf16.mxu0 %v7890
      %8093 = vmatpush1.bf16.msra.mxu0 %v7889
      %8094 = vmatprep.subr.bf16.mxu0 %v7892
      %8095 = vmatpush1.bf16.msra.mxu0 %v7891
      %8096 = vmatprep.subr.bf16.mxu0 %v7894
      %8097 = vmatpush1.bf16.msra.mxu0 %v7893
      %8098 = vmatprep.subr.bf16.mxu0 %v7896
      %8099 = vmatpush1.bf16.msra.mxu0 %v7895
      %8100 = vmatprep.subr.bf16.mxu0 %v7898
      %8101 = vmatpush1.bf16.msra.mxu0 %v7897
      %8102 = vmatprep.subr.bf16.mxu0 %v7900
      %8103 = vmatpush1.bf16.msra.mxu0 %v7899
      %8104 = vmatprep.subr.bf16.mxu0 %v7902
      %8105 = vmatpush1.bf16.msra.mxu0 %v7901
      %8106 = vmatprep.subr.bf16.mxu0 %v7904
      %8107 = vmatpush1.bf16.msra.mxu0 %v7903
      %8108 = vmatprep.subr.bf16.mxu0 %v7906
      %8109 = vmatpush1.bf16.msra.mxu0 %v7905
      %8110 = vmatprep.subr.bf16.mxu0 %v7908
      %8111 = vmatpush1.bf16.msra.mxu0 %v7907
      %8112 = vmatprep.subr.bf16.mxu0 %v7910
      %8113 = vmatpush1.bf16.msra.mxu0 %v7909
      %8114 = vmatprep.subr.bf16.mxu0 %v7912
      %8115 = vmatpush1.bf16.msra.mxu0 %v7911
      %8116 = vmatprep.subr.bf16.mxu0 %v7914
      %8117 = vmatpush1.bf16.msra.mxu0 %v7913
      %8118 = vmatprep.mubr.bf16.mxu0 %v7560
      %8119 = vmatmul.mubr.bf16.gmra.mrb[0].mxu0 %v7559
      %v8120 = vpop.f32.mrb[0].mxu0
      %v8121 = vadd.f32 %v8078, %v8120
      %v8122 = vpop.f32.mrb[0].mxu0
      %v8123 = vadd.f32 %v8080, %v8122
      %v8124 = vpop.f32.mrb[0].mxu0
      %v8125 = vadd.f32 %v8082, %v8124
      %v8126 = vpop.f32.mrb[0].mxu0
      %v8127 = vadd.f32 %v8084, %v8126
      %8128 = vdwg.mxu0
      %8129 = vmatprep.subr.bf16.mxu0 %v7916
      %8130 = vmatpush1.bf16.msra.mxu0 %v7915
      %8131 = vmatprep.subr.bf16.mxu0 %v7918
      %8132 = vmatpush1.bf16.msra.mxu0 %v7917
      %8133 = vmatprep.subr.bf16.mxu0 %v7920
      %8134 = vmatpush1.bf16.msra.mxu0 %v7919
      %8135 = vmatprep.subr.bf16.mxu0 %v7922
      %8136 = vmatpush1.bf16.msra.mxu0 %v7921
      %8137 = vmatprep.subr.bf16.mxu0 %v7924
      %8138 = vmatpush1.bf16.msra.mxu0 %v7923
      %8139 = vmatprep.subr.bf16.mxu0 %v7926
      %8140 = vmatpush1.bf16.msra.mxu0 %v7925
      %8141 = vmatprep.subr.bf16.mxu0 %v7928
      %8142 = vmatpush1.bf16.msra.mxu0 %v7927
      %8143 = vmatprep.subr.bf16.mxu0 %v7930
      %8144 = vmatpush1.bf16.msra.mxu0 %v7929
      %8145 = vmatprep.subr.bf16.mxu0 %v7932
      %8146 = vmatpush1.bf16.msra.mxu0 %v7931
      %8147 = vmatprep.subr.bf16.mxu0 %v7934
      %8148 = vmatpush1.bf16.msra.mxu0 %v7933
      %8149 = vmatprep.subr.bf16.mxu0 %v7936
      %8150 = vmatpush1.bf16.msra.mxu0 %v7935
      %8151 = vmatprep.subr.bf16.mxu0 %v7938
      %8152 = vmatpush1.bf16.msra.mxu0 %v7937
      %8153 = vmatprep.subr.bf16.mxu0 %v7940
      %8154 = vmatpush1.bf16.msra.mxu0 %v7939
      %8155 = vmatprep.subr.bf16.mxu0 %v7942
      %8156 = vmatpush1.bf16.msra.mxu0 %v7941
      %8157 = vmatprep.subr.bf16.mxu0 %v7944
      %8158 = vmatpush1.bf16.msra.mxu0 %v7943
      %8159 = vmatprep.subr.bf16.mxu0 %v7946
      %8160 = vmatpush1.bf16.msra.mxu0 %v7945
      %8161 = vmatprep.mubr.bf16.mxu0 %v7562
      %8162 = vmatmul.mubr.bf16.gmra.mrb[0].mxu0 %v7561
      %v8163 = vpop.f32.mrb[0].mxu0
      %v8164 = vadd.f32 %v8121, %v8163
      %v8165 = vpop.f32.mrb[0].mxu0
      %v8166 = vadd.f32 %v8123, %v8165
      %v8167 = vpop.f32.mrb[0].mxu0
      %v8168 = vadd.f32 %v8125, %v8167
      %v8169 = vpop.f32.mrb[0].mxu0
      %v8170 = vadd.f32 %v8127, %v8169
      %8171 = vdwg.mxu0
      %v8172 = vadd.f32 %v6867, %v8164
      %v8173 = vadd.f32 %v6868, %v8166
      %v8174 = vadd.f32 %v6869, %v8168
      %v8175 = vadd.f32 %v6870, %v8170
      %v8176 = vlaneseq
      %v8177 = vshrl.u32 %v8176, 7
      %v8178 = vsub.s32 7, %v8177
      %v8179 = vrot.slane %v4683, %v8178
      %v8180 = vlaneseq
      %v8181 = vshrl.u32 %v8180, 7
      %v8182 = vsub.s32 7, %v8181
      %v8183 = vrot.slane %v4684, %v8182
      %v8184 = vadd.f32 %v8172, %v8179
      %v8185 = vadd.f32 %v8173, %v8183
      %v8186 = vadd.f32 %v8174, %v8179
      %v8187 = vadd.f32 %v8175, %v8183
      %v8188 = vlaneseq
      %v8189 = vshrl.u32 %v8188, 7
      %v8190 = vmul.u32 %v8189, 8
      %vm8191 = vcmp.ge.s32.totalorder %v1175, %v8190
      %v8192 = vadd.s32 %v8190, 5
      %vm8193 = vcmp.lt.s32.totalorder %v1175, %v8192
      %vm8194 = vmand %vm8191, %vm8193
      %v8195 = vsel %vm8194, 0.2, 0.0
      %vm8196 = vcmask 130048
      %v8198 = vsel %vm8196, %v8195, 0
      %8200 = vmatprep.subr.mxu0 %v8185
      %8201 = vmatpush1.msra.mxu0 %v8184
      %8202 = vmatprep.subr.mxu0 %v8187
      %8203 = vmatpush1.msra.mxu0 %v8186
      %8204 = vmatprep.subr.mxu0 0.0
      %8205 = vmatpush1.msra.mxu0 0.0
      %8206 = vmatprep.subr.mxu0 0.0
      %8207 = vmatpush1.msra.mxu0 0.0
      %8208 = vmatprep.subr.mxu0 0.0
      %8209 = vmatpush1.msra.mxu0 0.0
      %8210 = vmatprep.subr.mxu0 0.0
      %8211 = vmatpush1.msra.mxu0 0.0
      %8212 = vmatprep.subr.mxu0 0.0
      %8213 = vmatpush1.msra.mxu0 0.0
      %8214 = vmatprep.subr.mxu0 0.0
      %8215 = vmatpush1.msra.mxu0 0.0
      %8216 = vmatprep.subr.mxu0 0.0
      %8217 = vmatpush1.msra.mxu0 0.0
      %8218 = vmatprep.subr.mxu0 0.0
      %8219 = vmatpush1.msra.mxu0 0.0
      %8220 = vmatprep.subr.mxu0 0.0
      %8221 = vmatpush1.msra.mxu0 0.0
      %8222 = vmatprep.subr.mxu0 0.0
      %8223 = vmatpush1.msra.mxu0 0.0
      %8224 = vmatprep.subr.mxu0 0.0
      %8225 = vmatpush1.msra.mxu0 0.0
      %8226 = vmatprep.subr.mxu0 0.0
      %8227 = vmatpush1.msra.mxu0 0.0
      %8228 = vmatprep.subr.mxu0 0.0
      %8229 = vmatpush1.msra.mxu0 0.0
      %8230 = vmatprep.subr.mxu0 0.0
      %8231 = vmatpush1.msra.mxu0 0.0
      %8232 = vmatprep.subr.mxu0 0.0
      %8233 = vmatpush1.msra.mxu0 0.0
      %8234 = vmatprep.subr.mxu0 0.0
      %8235 = vmatpush1.msra.mxu0 0.0
      %8236 = vmatprep.subr.mxu0 0.0
      %8237 = vmatpush1.msra.mxu0 0.0
      %8238 = vmatprep.subr.mxu0 0.0
      %8239 = vmatpush1.msra.mxu0 0.0
      %8240 = vmatprep.subr.mxu0 0.0
      %8241 = vmatpush1.msra.mxu0 0.0
      %8242 = vmatprep.subr.mxu0 0.0
      %8243 = vmatpush1.msra.mxu0 0.0
      %8244 = vmatprep.subr.mxu0 0.0
      %8245 = vmatpush1.msra.mxu0 0.0
      %8246 = vmatprep.subr.mxu0 0.0
      %8247 = vmatpush1.msra.mxu0 0.0
      %8248 = vmatprep.subr.mxu0 0.0
      %8249 = vmatpush1.msra.mxu0 0.0
      %8250 = vmatprep.subr.mxu0 0.0
      %8251 = vmatpush1.msra.mxu0 0.0
      %8252 = vmatprep.subr.mxu0 0.0
      %8253 = vmatpush1.msra.mxu0 0.0
      %8254 = vmatprep.subr.mxu0 0.0
      %8255 = vmatpush1.msra.mxu0 0.0
      %8256 = vmatprep.subr.mxu0 0.0
      %8257 = vmatpush1.msra.mxu0 0.0
      %8258 = vmatprep.subr.mxu0 0.0
      %8259 = vmatpush1.msra.mxu0 0.0
      %8260 = vmatprep.subr.mxu0 0.0
      %8261 = vmatpush1.msra.mxu0 0.0
      %8262 = vmatprep.subr.mxu0 0.0
      %8263 = vmatpush1.msra.mxu0 0.0
      %8264 = vmatprep.mubr.f32.mxu0 0.0
      %8265 = vmatmul.mubr.f32.gmra.mrb[0].mxu0 %v8198
      %v8266 = vpop.f32.mrb[0].mxu0
      %v8267 = vadd.f32 0.0, %v8266
      %v8268 = vpop.f32.mrb[0].mxu0
      %v8269 = vadd.f32 0.0, %v8268
      %8270 = vdwg.mxu0
      %8271 = vst [vmem:[%s445] sm:$0xff] %v8267
      %8272 = vst.msk [vmem:[%s445 + $0x8] sm:$0xff] %vm1448, %v8269
      %p8273 = scmp.lt.s32.totalorder %s19, 3
      %s8274 = scalar_select %p8273, %s19, 3
      %s8275 = smul.addr %s8274, 2
      %s8276 = smul.addr %s8275, 8
      %s8277 = scalar_lea.vmem %s8, %s8276
      // Predicated region
      $region53: #{dual_forward.2} parent=51 // pred_check
        %p8278 = pneg %p245
      $region54: #{dual_forward.2} parent=51 // pred_check_branch
        %8280 = sbr.rel (%p8278) target = $region56
      $region55: #{dual_forward.2} parent=51 // pred_region
        _
      $region56: #{dual_forward.2} parent=51 // pred_fallthru
        _
    $region52: #{dual_forward.2} parent=5 // pred_fallthru
      _
    %p8281 = scmp.le.s32.totalorder 2, %s14
    // Predicated region
    $region57: #{dual_forward.2} parent=5 // pred_check
      %p8282 = pneg %p8281
    $region58: #{dual_forward.2} parent=5 // pred_check_branch
      %8284 = sbr.rel (%p8282) target = $region60
    $region59: #{dual_forward.2} parent=5 // pred_region
      %s8285 = ssub.s32 %s14, 2
      // Predicated region
      $region61: #{dual_forward.2} parent=59 // pred_check
        %p8286 = pneg %p251
      $region62: #{dual_forward.2} parent=59 // pred_check_branch
        %8288 = sbr.rel (%p8286) target = $region64
      $region63: #{dual_forward.2} parent=59 // pred_region
        %p8289 = scmp.lt.s32.totalorder %s20, 3
        %s8290 = scalar_select %p8289, %s20, 3
        %s8291 = smul.addr %s8290, 2
        %s8292 = smul.addr %s8291, 8
        %s8293 = scalar_lea.vmem %s8, %s8292
      $region64: #{dual_forward.2} parent=59 // pred_fallthru
        _
    $region60: #{dual_forward.2} parent=5 // pred_fallthru
      _
  $region6: #{dual_forward.2} parent=0 // loop_footer
    %s18 = sadd.s32 1, %s14
  $region7: #{dual_forward.2} parent=0 // loop_footer_branch
    %13 = sbr.rel target = $region3
  $region8: #{dual_forward.2} parent=0 // loop_exit
    _

</llo_original>
